<compile_context>
chip_gen: v7x
topology: tpu7x:2x2x1
jax: 0.10.0
libtpu: 0.0.40
codegen_flags: <defaults>
</compile_context>

<pallas_src>
import math

import jax
import jax.numpy as jnp
from jax.experimental import pallas as pl
from jax.experimental.pallas import tpu as pltpu

# ----------------------------------------------------------------------------
# Static network geometry (from Net.__init__ and the 3x32x32 input it implies)
# ----------------------------------------------------------------------------
N_BATCH = 2
C_IN, H_IN, W_IN = 3, 32, 32
KSZ = 5
C1, C2 = 12, 32                    # conv1 / conv2 output channels
H1C, W1C = 28, 28                  # conv1 output spatial size
HP1, WP1 = 14, 14                  # pool1 output spatial size
H2C, W2C = 10, 10                  # conv2 output spatial size
HP2, WP2 = 5, 5                    # pool2 output spatial size
F1, F2, F3 = 120, 84, 10           # fc widths
FPAD = 128                         # lane-aligned fc width
LANES = 256                        # lane-aligned conv-stage width (multiple of 128)

K1 = KSZ * W_IN * C_IN             # 480 : conv1 contraction (ki, w, ci)
S1 = WP1 * C1                      # 168 : real stage-1 lane width (ow1, c1)
S2 = WP2 * C2                      # 160 : real stage-2 lane width (ow2, c2)
M1 = N_BATCH * 7                   # 14  : rows per conv1-output-row residue


# ----------------------------------------------------------------------------
# Fused forward-pass kernel (single grid step, everything VMEM resident)
# ----------------------------------------------------------------------------
def _net_kernel(l1_ref, w1_ref, b1_ref, w2_ref, b2_ref,
                wf1_ref, bf1_ref, wf2_ref, bf2_ref, wf3_ref, bf3_ref,
                out_ref, p1e_ref, p1o_ref):
    f32, bf16 = jnp.float32, jnp.bfloat16

    # ---------------- Stage 1: conv1 + bias + ReLU + 2x2 max-pool -------------
    # One matmul per conv1 output-row residue r (row h1 = 4*m + r).  The weight
    # already contains the W-direction im2col and the even/odd pooled-column
    # split: lanes [0:LANES) = even pooled columns, [LANES:2*LANES) = odd.
    mr = []
    for r in range(4):
        acc = jnp.dot(l1_ref[r], w1_ref[...], preferred_element_type=f32)  # (14, 512)
        mr.append(jnp.maximum(acc[:, :LANES], acc[:, LANES:]))             # W-pool
    b1 = b1_ref[...]
    # H-pool: rows (4m, 4m+1) -> pooled row 2m (even); (4m+2, 4m+3) -> 2m+1 (odd).
    # bias + ReLU commute with max, so they are applied once after pooling.
    p1e_ref[...] = jnp.maximum(jnp.maximum(mr[0], mr[1]) + b1, 0.0)        # (14, 256)
    p1o_ref[...] = jnp.maximum(jnp.maximum(mr[2], mr[3]) + b1, 0.0)

    b2 = b2_ref[...]
    bf1 = bf1_ref[...]
    bf2 = bf2_ref[...]
    bf3 = bf3_ref[...]

    # ------------- Stage 2 + MLP (per sample; everything stays in VMEM) -------
    for n in range(N_BATCH):
        # conv2 + bias + ReLU + 2x2 max-pool
        acc_j = []
        for j in range(2):                      # parity of the conv2 output row
            acc = None
            for ki in range(KSZ):
                t = (j + ki) % 2                # parity of the pool1 row needed
                s = (j + ki) // 2
                src = p1e_ref if t == 0 else p1o_ref
                slab = src[pl.ds(n * 7 + s, HP2), :].astype(bf16)            # (5, 256)
                term = jnp.dot(slab, w2_ref[ki], preferred_element_type=f32)  # (5, 512)
                acc = term if acc is None else acc + term
            acc_j.append(jnp.maximum(acc[:, :LANES], acc[:, LANES:]))        # W-pool
        p2 = jnp.maximum(acc_j[0], acc_j[1])                                 # H-pool
        p2 = jnp.maximum(p2 + b2, 0.0)                                       # (5, 256)

        # fc1: torch.flatten ordering folded into wf1's per-row weight blocks.
        f1 = None
        for h in range(HP2):
            lhs = p2[h:h + 1, :].astype(bf16)                                # (1, 256)
            term = jnp.dot(lhs, wf1_ref[h], preferred_element_type=f32)      # (1, 128)
            f1 = term if f1 is None else f1 + term
        f1 = jnp.maximum(f1 + bf1, 0.0).astype(bf16)
        f2 = jnp.maximum(
            jnp.dot(f1, wf2_ref[...], preferred_element_type=f32) + bf2, 0.0
        ).astype(bf16)
        f3 = jnp.dot(f2, wf3_ref[...], preferred_element_type=f32) + bf3     # (1, 128)
        out_ref[n:n + 1, :] = f3


def _full_block(shape):
    nd = len(shape)
    return pl.BlockSpec(shape, lambda i: (0,) * nd)


# ----------------------------------------------------------------------------
# Forward pass wrapper (one pallas_call; only tiny layout glue on the raw input)
# ----------------------------------------------------------------------------
@jax.jit
def net_forward(kparams, x):
    """Forward pass of Net.  x: (N, 3, 32, 32) float32, NCHW (PyTorch layout)."""
    (w1, b1a, w2, b2a, wf1, bf1, wf2, bf2, wf3, bf3) = kparams
    n = x.shape[0]
    assert n == N_BATCH and x.shape[1:] == (C_IN, H_IN, W_IN)

    # One-time glue on the 24 KB raw input: NHWC with (W, C) on lanes, H-direction
    # im2col (5 row-shifted copies concatenated on lanes), rows regrouped by the
    # conv1 output-row residue r (h1 = 4*m + r)  ->  (4, N*7, 480).
    xh = jnp.transpose(x, (0, 2, 3, 1)).reshape(n, H_IN, W_IN * C_IN)
    l1 = jnp.concatenate([xh[:, k:k + H1C, :] for k in range(KSZ)], axis=-1)
    l1 = l1.reshape(n, 7, 4, K1).transpose(2, 0, 1, 3).reshape(4, n * 7, K1)
    l1 = l1.astype(jnp.bfloat16)

    out = pl.pallas_call(
        _net_kernel,
        out_shape=jax.ShapeDtypeStruct((n, FPAD), jnp.float32),
        grid=(1,),
        in_specs=[
            _full_block(l1.shape),
            _full_block(w1.shape), _full_block(b1a.shape),
            _full_block(w2.shape), _full_block(b2a.shape),
            _full_block(wf1.shape), _full_block(bf1.shape),
            _full_block(wf2.shape), _full_block(bf2.shape),
            _full_block(wf3.shape), _full_block(bf3.shape),
        ],
        out_specs=_full_block((n, FPAD)),
        scratch_shapes=[
            pltpu.VMEM((M1, LANES), jnp.float32),   # pool1 output, even pooled rows
            pltpu.VMEM((M1, LANES), jnp.float32),   # pool1 output, odd pooled rows
        ],
        compiler_params=pltpu.CompilerParams(
            dimension_semantics=("arbitrary",),
            vmem_limit_bytes=32 * 1024 * 1024,
        ),
    )(l1, w1, b1a, w2, b2a, wf1, bf1, wf2, bf2, wf3, bf3)
    return out[:, :F3]


# ----------------------------------------------------------------------------
# One-time parameter re-layout: block-structured conv weights, padded FC weights
# ----------------------------------------------------------------------------
def prepare_params(params):
    (c1w, c1b), (c2w, c2b), (f1w, f1b), (f2w, f2b), (f3w, f3b) = params
    f32, bf16 = jnp.float32, jnp.bfloat16

    # conv1 block weight (480, 512):
    #   row = ki*96 + w*3 + ci (matches the l1 im2col layout)
    #   col = dj*256 + owp*12 + co (dj = parity of the pooled output column)
    #   val = conv1.weight[co, ci, ki, kj] with kj = w - 2*owp - dj  (if 0 <= kj < 5)
    ki = jnp.arange(KSZ).reshape(KSZ, 1, 1, 1, 1, 1)
    ww = jnp.arange(W_IN).reshape(1, W_IN, 1, 1, 1, 1)
    ci = jnp.arange(C_IN).reshape(1, 1, C_IN, 1, 1, 1)
    dj = jnp.arange(2).reshape(1, 1, 1, 2, 1, 1)
    op = jnp.arange(WP1).reshape(1, 1, 1, 1, WP1, 1)
    co = jnp.arange(C1).reshape(1, 1, 1, 1, 1, C1)
    kj = ww - 2 * op - dj
    vals = c1w[co, ci, ki, jnp.clip(kj, 0, KSZ - 1)]
    core = jnp.where((kj >= 0) & (kj < KSZ), vals, 0.0).reshape(K1, 2, S1)
    w1 = jnp.pad(core, ((0, 0), (0, 0), (0, LANES - S1))).reshape(K1, 2 * LANES)
    w1 = w1.astype(bf16)
    b1a = jnp.pad(jnp.tile(c1b, WP1), (0, LANES - S1)).reshape(1, LANES).astype(f32)

    # conv2 block weights (5, 256, 512):
    #   per ki: row = ow1*12 + ci (pool1 lane layout), col = dj2*256 + ow2*32 + co
    #   val = conv2.weight[co, ci, ki, kj] with kj = ow1 - 2*ow2 - dj2
    ki = jnp.arange(KSZ).reshape(KSZ, 1, 1, 1, 1, 1)
    o1 = jnp.arange(WP1).reshape(1, WP1, 1, 1, 1, 1)
    ci = jnp.arange(C1).reshape(1, 1, C1, 1, 1, 1)
    dj = jnp.arange(2).reshape(1, 1, 1, 2, 1, 1)
    o2 = jnp.arange(WP2).reshape(1, 1, 1, 1, WP2, 1)
    co = jnp.arange(C2).reshape(1, 1, 1, 1, 1, C2)
    kj = o1 - 2 * o2 - dj
    vals = c2w[co, ci, ki, jnp.clip(kj, 0, KSZ - 1)]
    core = jnp.where((kj >= 0) & (kj < KSZ), vals, 0.0).reshape(KSZ, S1, 2, S2)
    w2 = jnp.pad(core, ((0, 0), (0, LANES - S1), (0, 0), (0, LANES - S2)))
    w2 = w2.reshape(KSZ, LANES, 2 * LANES).astype(bf16)
    b2a = jnp.pad(jnp.tile(c2b, WP2), (0, LANES - S2)).reshape(1, LANES).astype(f32)

    # fc1: rows permuted so the kernel's (h, w, c) flatten order matches
    # torch.flatten(x, 1) on NCHW (flat index = c*25 + h*5 + w); out 120 -> 128.
    hh = jnp.arange(HP2).reshape(HP2, 1, 1)
    wv = jnp.arange(WP2).reshape(1, WP2, 1)
    cc = jnp.arange(C2).reshape(1, 1, C2)
    src = cc * (HP2 * WP2) + hh * WP2 + wv                       # (5, 5, 32)
    wf1 = f1w.T[src].reshape(HP2, S2, F1)                        # [h, w*32+c, out]
    wf1 = jnp.pad(wf1, ((0, 0), (0, LANES - S2), (0, FPAD - F1))).astype(bf16)
    bf1 = jnp.pad(f1b, (0, FPAD - F1)).reshape(1, FPAD).astype(f32)

    # fc2 / fc3: transposed to (in, out) and zero-padded to 128x128.
    wf2 = jnp.zeros((FPAD, FPAD), f32).at[:F1, :F2].set(f2w.T).astype(bf16)
    bf2 = jnp.pad(f2b, (0, FPAD - F2)).reshape(1, FPAD).astype(f32)
    wf3 = jnp.zeros((FPAD, FPAD), f32).at[:F2, :F3].set(f3w.T).astype(bf16)
    bf3 = jnp.pad(f3b, (0, FPAD - F3)).reshape(1, FPAD).astype(f32)

    return (w1, b1a, w2, b2a, wf1, bf1, wf2, bf2, wf3, bf3)


# ----------------------------------------------------------------------------
# Deterministic PyTorch-style parameter init (shapes from Net.__init__)
# ----------------------------------------------------------------------------
def _uniform(key, shape, bound):
    return jax.random.uniform(key, shape, jnp.float32, -bound, bound)


def init_params(key):
    ks = jax.random.split(key, 10)

    def conv_init(kw_, kb, cout, cin, k):
        bound = 1.0 / math.sqrt(cin * k * k)
        return (_uniform(kw_, (cout, cin, k, k), bound),
                _uniform(kb, (cout,), bound))

    def lin_init(kw_, kb, cout, cin):
        bound = 1.0 / math.sqrt(cin)
        return (_uniform(kw_, (cout, cin), bound),
                _uniform(kb, (cout,), bound))

    conv1 = conv_init(ks[0], ks[1], C1, C_IN, KSZ)
    conv2 = conv_init(ks[2], ks[3], C2, C1, KSZ)
    fc1 = lin_init(ks[4], ks[5], F1, C2 * HP2 * WP2)
    fc2 = lin_init(ks[6], ks[7], F2, F1)
    fc3 = lin_init(ks[8], ks[9], F3, F2)
    return conv1, conv2, fc1, fc2, fc3


if __name__ == "__main__":
    key = jax.random.PRNGKey(0)
    kx, kp = jax.random.split(key)
    x = jax.random.normal(kx, (N_BATCH, C_IN, H_IN, W_IN), jnp.float32)
    params = init_params(kp)
    kparams = prepare_params(params)          # one-time weight re-layout / padding
    out = jax.block_until_ready(net_forward(kparams, x))
    assert out.shape == (N_BATCH, F3) and out.dtype == jnp.float32
    print("KERNEL_OK")
</pallas_src>

<mosaic_0001>
module attributes {stable_mosaic.version = 11 : i64} {
  func.func @_net_kernel(%arg0: i32, %arg1: memref<4x14x480xbf16, #tpu.memory_space<vmem>>, %arg2: memref<480x512xbf16, #tpu.memory_space<vmem>>, %arg3: memref<1x256xf32, #tpu.memory_space<vmem>>, %arg4: memref<5x256x512xbf16, #tpu.memory_space<vmem>>, %arg5: memref<1x256xf32, #tpu.memory_space<vmem>>, %arg6: memref<5x256x128xbf16, #tpu.memory_space<vmem>>, %arg7: memref<1x128xf32, #tpu.memory_space<vmem>>, %arg8: memref<128x128xbf16, #tpu.memory_space<vmem>>, %arg9: memref<1x128xf32, #tpu.memory_space<vmem>>, %arg10: memref<128x128xbf16, #tpu.memory_space<vmem>>, %arg11: memref<1x128xf32, #tpu.memory_space<vmem>>, %arg12: memref<2x128xf32, #tpu.memory_space<vmem>>, %arg13: memref<14x256xf32, #tpu.memory_space<vmem>>, %arg14: memref<14x256xf32, #tpu.memory_space<vmem>>) attributes {dimension_semantics = [#tpu.dimension_semantics<arbitrary>], iteration_bounds = array<i64: 1>, scalar_prefetch = 0 : i64, scratch_operands = 2 : i64, tpu.core_type = #tpu.core_type<tc>, window_params = [{pipeline_mode = #tpu.pipeline_mode<synchronous>, transform_indices = @transform_0, window_bounds = array<i64: 4, 14, 480>}, {pipeline_mode = #tpu.pipeline_mode<synchronous>, transform_indices = @transform_1, window_bounds = array<i64: 480, 512>}, {pipeline_mode = #tpu.pipeline_mode<synchronous>, transform_indices = @transform_2, window_bounds = array<i64: 1, 256>}, {pipeline_mode = #tpu.pipeline_mode<synchronous>, transform_indices = @transform_3, window_bounds = array<i64: 5, 256, 512>}, {pipeline_mode = #tpu.pipeline_mode<synchronous>, transform_indices = @transform_4, window_bounds = array<i64: 1, 256>}, {pipeline_mode = #tpu.pipeline_mode<synchronous>, transform_indices = @transform_5, window_bounds = array<i64: 5, 256, 128>}, {pipeline_mode = #tpu.pipeline_mode<synchronous>, transform_indices = @transform_6, window_bounds = array<i64: 1, 128>}, {pipeline_mode = #tpu.pipeline_mode<synchronous>, transform_indices = @transform_7, window_bounds = array<i64: 128, 128>}, {pipeline_mode = #tpu.pipeline_mode<synchronous>, transform_indices = @transform_8, window_bounds = array<i64: 1, 128>}, {pipeline_mode = #tpu.pipeline_mode<synchronous>, transform_indices = @transform_9, window_bounds = array<i64: 128, 128>}, {pipeline_mode = #tpu.pipeline_mode<synchronous>, transform_indices = @transform_10, window_bounds = array<i64: 1, 128>}, {pipeline_mode = #tpu.pipeline_mode<synchronous>, transform_indices = @transform_11, window_bounds = array<i64: 2, 128>}]} {
    %c0 = arith.constant 0 : index
    %c0_0 = arith.constant 0 : index
    %c0_1 = arith.constant 0 : index
    %0 = vector.load %arg1[%c0, %c0_0, %c0_1] : memref<4x14x480xbf16, #tpu.memory_space<vmem>>, vector<1x14x480xbf16>
    %1 = vector.shape_cast %0 : vector<1x14x480xbf16> to vector<14x480xbf16>
    %c0_2 = arith.constant 0 : index
    %c0_3 = arith.constant 0 : index
    %2 = vector.load %arg2[%c0_2, %c0_3] : memref<480x512xbf16, #tpu.memory_space<vmem>>, vector<480x512xbf16>
    %cst = arith.constant dense<0.000000e+00> : vector<14x512xf32>
    %3 = tpu.matmul %1, %2, %cst {dimension_numbers = #tpu.dot_dimension_numbers<[1], [0], [0], [1], [0, 0, 1, 1], [], []>} : vector<14x480xbf16>, vector<480x512xbf16>, vector<14x512xf32> -> vector<14x512xf32>
    %4 = vector.extract_strided_slice %3 {offsets = [0, 0], sizes = [14, 256], strides = [1, 1]} : vector<14x512xf32> to vector<14x256xf32>
    %5 = vector.extract_strided_slice %3 {offsets = [0, 256], sizes = [14, 256], strides = [1, 1]} : vector<14x512xf32> to vector<14x256xf32>
    %6 = arith.maximumf %4, %5 : vector<14x256xf32>
    %c1 = arith.constant 1 : index
    %c0_4 = arith.constant 0 : index
    %c0_5 = arith.constant 0 : index
    %7 = vector.load %arg1[%c1, %c0_4, %c0_5] : memref<4x14x480xbf16, #tpu.memory_space<vmem>>, vector<1x14x480xbf16>
    %8 = vector.shape_cast %7 : vector<1x14x480xbf16> to vector<14x480xbf16>
    %c0_6 = arith.constant 0 : index
    %c0_7 = arith.constant 0 : index
    %9 = vector.load %arg2[%c0_6, %c0_7] : memref<480x512xbf16, #tpu.memory_space<vmem>>, vector<480x512xbf16>
    %cst_8 = arith.constant dense<0.000000e+00> : vector<14x512xf32>
    %10 = tpu.matmul %8, %9, %cst_8 {dimension_numbers = #tpu.dot_dimension_numbers<[1], [0], [0], [1], [0, 0, 1, 1], [], []>} : vector<14x480xbf16>, vector<480x512xbf16>, vector<14x512xf32> -> vector<14x512xf32>
    %11 = vector.extract_strided_slice %10 {offsets = [0, 0], sizes = [14, 256], strides = [1, 1]} : vector<14x512xf32> to vector<14x256xf32>
    %12 = vector.extract_strided_slice %10 {offsets = [0, 256], sizes = [14, 256], strides = [1, 1]} : vector<14x512xf32> to vector<14x256xf32>
    %13 = arith.maximumf %11, %12 : vector<14x256xf32>
    %c2 = arith.constant 2 : index
    %c0_9 = arith.constant 0 : index
    %c0_10 = arith.constant 0 : index
    %14 = vector.load %arg1[%c2, %c0_9, %c0_10] : memref<4x14x480xbf16, #tpu.memory_space<vmem>>, vector<1x14x480xbf16>
    %15 = vector.shape_cast %14 : vector<1x14x480xbf16> to vector<14x480xbf16>
    %c0_11 = arith.constant 0 : index
    %c0_12 = arith.constant 0 : index
    %16 = vector.load %arg2[%c0_11, %c0_12] : memref<480x512xbf16, #tpu.memory_space<vmem>>, vector<480x512xbf16>
    %cst_13 = arith.constant dense<0.000000e+00> : vector<14x512xf32>
    %17 = tpu.matmul %15, %16, %cst_13 {dimension_numbers = #tpu.dot_dimension_numbers<[1], [0], [0], [1], [0, 0, 1, 1], [], []>} : vector<14x480xbf16>, vector<480x512xbf16>, vector<14x512xf32> -> vector<14x512xf32>
    %18 = vector.extract_strided_slice %17 {offsets = [0, 0], sizes = [14, 256], strides = [1, 1]} : vector<14x512xf32> to vector<14x256xf32>
    %19 = vector.extract_strided_slice %17 {offsets = [0, 256], sizes = [14, 256], strides = [1, 1]} : vector<14x512xf32> to vector<14x256xf32>
    %20 = arith.maximumf %18, %19 : vector<14x256xf32>
    %c3 = arith.constant 3 : index
    %c0_14 = arith.constant 0 : index
    %c0_15 = arith.constant 0 : index
    %21 = vector.load %arg1[%c3, %c0_14, %c0_15] : memref<4x14x480xbf16, #tpu.memory_space<vmem>>, vector<1x14x480xbf16>
    %22 = vector.shape_cast %21 : vector<1x14x480xbf16> to vector<14x480xbf16>
    %c0_16 = arith.constant 0 : index
    %c0_17 = arith.constant 0 : index
    %23 = vector.load %arg2[%c0_16, %c0_17] : memref<480x512xbf16, #tpu.memory_space<vmem>>, vector<480x512xbf16>
    %cst_18 = arith.constant dense<0.000000e+00> : vector<14x512xf32>
    %24 = tpu.matmul %22, %23, %cst_18 {dimension_numbers = #tpu.dot_dimension_numbers<[1], [0], [0], [1], [0, 0, 1, 1], [], []>} : vector<14x480xbf16>, vector<480x512xbf16>, vector<14x512xf32> -> vector<14x512xf32>
    %25 = vector.extract_strided_slice %24 {offsets = [0, 0], sizes = [14, 256], strides = [1, 1]} : vector<14x512xf32> to vector<14x256xf32>
    %26 = vector.extract_strided_slice %24 {offsets = [0, 256], sizes = [14, 256], strides = [1, 1]} : vector<14x512xf32> to vector<14x256xf32>
    %27 = arith.maximumf %25, %26 : vector<14x256xf32>
    %c0_19 = arith.constant 0 : index
    %c0_20 = arith.constant 0 : index
    %28 = vector.load %arg3[%c0_19, %c0_20] : memref<1x256xf32, #tpu.memory_space<vmem>>, vector<1x256xf32>
    %29 = arith.maximumf %6, %13 : vector<14x256xf32>
    %30 = vector.broadcast %28 : vector<1x256xf32> to vector<14x256xf32>
    %31 = arith.addf %29, %30 : vector<14x256xf32>
    %cst_21 = arith.constant 0.000000e+00 : f32
    %32 = vector.broadcast %cst_21 : f32 to vector<14x256xf32>
    %33 = arith.maximumf %31, %32 : vector<14x256xf32>
    %c0_22 = arith.constant 0 : index
    %c0_23 = arith.constant 0 : index
    %34 = vector.load %arg13[%c0_22, %c0_23] : memref<14x256xf32, #tpu.memory_space<vmem>>, vector<14x256xf32>
    tpu.vector_store %arg13[%c0_22, %c0_23], %33 {strides = array<i32>} : memref<14x256xf32, #tpu.memory_space<vmem>>, vector<14x256xf32>,
    %35 = arith.maximumf %20, %27 : vector<14x256xf32>
    %36 = vector.broadcast %28 : vector<1x256xf32> to vector<14x256xf32>
    %37 = arith.addf %35, %36 : vector<14x256xf32>
    %cst_24 = arith.constant 0.000000e+00 : f32
    %38 = vector.broadcast %cst_24 : f32 to vector<14x256xf32>
    %39 = arith.maximumf %37, %38 : vector<14x256xf32>
    %c0_25 = arith.constant 0 : index
    %c0_26 = arith.constant 0 : index
    %40 = vector.load %arg14[%c0_25, %c0_26] : memref<14x256xf32, #tpu.memory_space<vmem>>, vector<14x256xf32>
    tpu.vector_store %arg14[%c0_25, %c0_26], %39 {strides = array<i32>} : memref<14x256xf32, #tpu.memory_space<vmem>>, vector<14x256xf32>,
    %c0_27 = arith.constant 0 : index
    %c0_28 = arith.constant 0 : index
    %41 = vector.load %arg5[%c0_27, %c0_28] : memref<1x256xf32, #tpu.memory_space<vmem>>, vector<1x256xf32>
    %c0_29 = arith.constant 0 : index
    %c0_30 = arith.constant 0 : index
    %42 = vector.load %arg7[%c0_29, %c0_30] : memref<1x128xf32, #tpu.memory_space<vmem>>, vector<1x128xf32>
    %c0_31 = arith.constant 0 : index
    %c0_32 = arith.constant 0 : index
    %43 = vector.load %arg9[%c0_31, %c0_32] : memref<1x128xf32, #tpu.memory_space<vmem>>, vector<1x128xf32>
    %c0_33 = arith.constant 0 : index
    %c0_34 = arith.constant 0 : index
    %44 = vector.load %arg11[%c0_33, %c0_34] : memref<1x128xf32, #tpu.memory_space<vmem>>, vector<1x128xf32>
    %c0_35 = arith.constant 0 : index
    %c0_36 = arith.constant 0 : index
    %45 = vector.load %arg13[%c0_35, %c0_36] : memref<14x256xf32, #tpu.memory_space<vmem>>, vector<5x256xf32>
    %46 = arith.truncf %45 : vector<5x256xf32> to vector<5x256xbf16>
    %c0_37 = arith.constant 0 : index
    %c0_38 = arith.constant 0 : index
    %c0_39 = arith.constant 0 : index
    %47 = vector.load %arg4[%c0_37, %c0_38, %c0_39] : memref<5x256x512xbf16, #tpu.memory_space<vmem>>, vector<1x256x512xbf16>
    %48 = vector.shape_cast %47 : vector<1x256x512xbf16> to vector<256x512xbf16>
    %cst_40 = arith.constant dense<0.000000e+00> : vector<5x512xf32>
    %49 = tpu.matmul %46, %48, %cst_40 {dimension_numbers = #tpu.dot_dimension_numbers<[1], [0], [0], [1], [0, 0, 1, 1], [], []>} : vector<5x256xbf16>, vector<256x512xbf16>, vector<5x512xf32> -> vector<5x512xf32>
    %c0_41 = arith.constant 0 : index
    %c0_42 = arith.constant 0 : index
    %50 = vector.load %arg14[%c0_41, %c0_42] : memref<14x256xf32, #tpu.memory_space<vmem>>, vector<5x256xf32>
    %51 = arith.truncf %50 : vector<5x256xf32> to vector<5x256xbf16>
    %c1_43 = arith.constant 1 : index
    %c0_44 = arith.constant 0 : index
    %c0_45 = arith.constant 0 : index
    %52 = vector.load %arg4[%c1_43, %c0_44, %c0_45] : memref<5x256x512xbf16, #tpu.memory_space<vmem>>, vector<1x256x512xbf16>
    %53 = vector.shape_cast %52 : vector<1x256x512xbf16> to vector<256x512xbf16>
    %cst_46 = arith.constant dense<0.000000e+00> : vector<5x512xf32>
    %54 = tpu.matmul %51, %53, %cst_46 {dimension_numbers = #tpu.dot_dimension_numbers<[1], [0], [0], [1], [0, 0, 1, 1], [], []>} : vector<5x256xbf16>, vector<256x512xbf16>, vector<5x512xf32> -> vector<5x512xf32>
    %55 = arith.addf %49, %54 : vector<5x512xf32>
    %c1_47 = arith.constant 1 : index
    %c0_48 = arith.constant 0 : index
    %56 = vector.load %arg13[%c1_47, %c0_48] : memref<14x256xf32, #tpu.memory_space<vmem>>, vector<5x256xf32>
    %57 = arith.truncf %56 : vector<5x256xf32> to vector<5x256xbf16>
    %c2_49 = arith.constant 2 : index
    %c0_50 = arith.constant 0 : index
    %c0_51 = arith.constant 0 : index
    %58 = vector.load %arg4[%c2_49, %c0_50, %c0_51] : memref<5x256x512xbf16, #tpu.memory_space<vmem>>, vector<1x256x512xbf16>
    %59 = vector.shape_cast %58 : vector<1x256x512xbf16> to vector<256x512xbf16>
    %cst_52 = arith.constant dense<0.000000e+00> : vector<5x512xf32>
    %60 = tpu.matmul %57, %59, %cst_52 {dimension_numbers = #tpu.dot_dimension_numbers<[1], [0], [0], [1], [0, 0, 1, 1], [], []>} : vector<5x256xbf16>, vector<256x512xbf16>, vector<5x512xf32> -> vector<5x512xf32>
    %61 = arith.addf %55, %60 : vector<5x512xf32>
    %c1_53 = arith.constant 1 : index
    %c0_54 = arith.constant 0 : index
    %62 = vector.load %arg14[%c1_53, %c0_54] : memref<14x256xf32, #tpu.memory_space<vmem>>, vector<5x256xf32>
    %63 = arith.truncf %62 : vector<5x256xf32> to vector<5x256xbf16>
    %c3_55 = arith.constant 3 : index
    %c0_56 = arith.constant 0 : index
    %c0_57 = arith.constant 0 : index
    %64 = vector.load %arg4[%c3_55, %c0_56, %c0_57] : memref<5x256x512xbf16, #tpu.memory_space<vmem>>, vector<1x256x512xbf16>
    %65 = vector.shape_cast %64 : vector<1x256x512xbf16> to vector<256x512xbf16>
    %cst_58 = arith.constant dense<0.000000e+00> : vector<5x512xf32>
    %66 = tpu.matmul %63, %65, %cst_58 {dimension_numbers = #tpu.dot_dimension_numbers<[1], [0], [0], [1], [0, 0, 1, 1], [], []>} : vector<5x256xbf16>, vector<256x512xbf16>, vector<5x512xf32> -> vector<5x512xf32>
    %67 = arith.addf %61, %66 : vector<5x512xf32>
    %c2_59 = arith.constant 2 : index
    %c0_60 = arith.constant 0 : index
    %68 = vector.load %arg13[%c2_59, %c0_60] : memref<14x256xf32, #tpu.memory_space<vmem>>, vector<5x256xf32>
    %69 = arith.truncf %68 : vector<5x256xf32> to vector<5x256xbf16>
    %c4 = arith.constant 4 : index
    %c0_61 = arith.constant 0 : index
    %c0_62 = arith.constant 0 : index
    %70 = vector.load %arg4[%c4, %c0_61, %c0_62] : memref<5x256x512xbf16, #tpu.memory_space<vmem>>, vector<1x256x512xbf16>
    %71 = vector.shape_cast %70 : vector<1x256x512xbf16> to vector<256x512xbf16>
    %cst_63 = arith.constant dense<0.000000e+00> : vector<5x512xf32>
    %72 = tpu.matmul %69, %71, %cst_63 {dimension_numbers = #tpu.dot_dimension_numbers<[1], [0], [0], [1], [0, 0, 1, 1], [], []>} : vector<5x256xbf16>, vector<256x512xbf16>, vector<5x512xf32> -> vector<5x512xf32>
    %73 = arith.addf %67, %72 : vector<5x512xf32>
    %74 = vector.extract_strided_slice %73 {offsets = [0, 0], sizes = [5, 256], strides = [1, 1]} : vector<5x512xf32> to vector<5x256xf32>
    %75 = vector.extract_strided_slice %73 {offsets = [0, 256], sizes = [5, 256], strides = [1, 1]} : vector<5x512xf32> to vector<5x256xf32>
    %76 = arith.maximumf %74, %75 : vector<5x256xf32>
    %c0_64 = arith.constant 0 : index
    %c0_65 = arith.constant 0 : index
    %77 = vector.load %arg14[%c0_64, %c0_65] : memref<14x256xf32, #tpu.memory_space<vmem>>, vector<5x256xf32>
    %78 = arith.truncf %77 : vector<5x256xf32> to vector<5x256xbf16>
    %c0_66 = arith.constant 0 : index
    %c0_67 = arith.constant 0 : index
    %c0_68 = arith.constant 0 : index
    %79 = vector.load %arg4[%c0_66, %c0_67, %c0_68] : memref<5x256x512xbf16, #tpu.memory_space<vmem>>, vector<1x256x512xbf16>
    %80 = vector.shape_cast %79 : vector<1x256x512xbf16> to vector<256x512xbf16>
    %cst_69 = arith.constant dense<0.000000e+00> : vector<5x512xf32>
    %81 = tpu.matmul %78, %80, %cst_69 {dimension_numbers = #tpu.dot_dimension_numbers<[1], [0], [0], [1], [0, 0, 1, 1], [], []>} : vector<5x256xbf16>, vector<256x512xbf16>, vector<5x512xf32> -> vector<5x512xf32>
    %c1_70 = arith.constant 1 : index
    %c0_71 = arith.constant 0 : index
    %82 = vector.load %arg13[%c1_70, %c0_71] : memref<14x256xf32, #tpu.memory_space<vmem>>, vector<5x256xf32>
    %83 = arith.truncf %82 : vector<5x256xf32> to vector<5x256xbf16>
    %c1_72 = arith.constant 1 : index
    %c0_73 = arith.constant 0 : index
    %c0_74 = arith.constant 0 : index
    %84 = vector.load %arg4[%c1_72, %c0_73, %c0_74] : memref<5x256x512xbf16, #tpu.memory_space<vmem>>, vector<1x256x512xbf16>
    %85 = vector.shape_cast %84 : vector<1x256x512xbf16> to vector<256x512xbf16>
    %cst_75 = arith.constant dense<0.000000e+00> : vector<5x512xf32>
    %86 = tpu.matmul %83, %85, %cst_75 {dimension_numbers = #tpu.dot_dimension_numbers<[1], [0], [0], [1], [0, 0, 1, 1], [], []>} : vector<5x256xbf16>, vector<256x512xbf16>, vector<5x512xf32> -> vector<5x512xf32>
    %87 = arith.addf %81, %86 : vector<5x512xf32>
    %c1_76 = arith.constant 1 : index
    %c0_77 = arith.constant 0 : index
    %88 = vector.load %arg14[%c1_76, %c0_77] : memref<14x256xf32, #tpu.memory_space<vmem>>, vector<5x256xf32>
    %89 = arith.truncf %88 : vector<5x256xf32> to vector<5x256xbf16>
    %c2_78 = arith.constant 2 : index
    %c0_79 = arith.constant 0 : index
    %c0_80 = arith.constant 0 : index
    %90 = vector.load %arg4[%c2_78, %c0_79, %c0_80] : memref<5x256x512xbf16, #tpu.memory_space<vmem>>, vector<1x256x512xbf16>
    %91 = vector.shape_cast %90 : vector<1x256x512xbf16> to vector<256x512xbf16>
    %cst_81 = arith.constant dense<0.000000e+00> : vector<5x512xf32>
    %92 = tpu.matmul %89, %91, %cst_81 {dimension_numbers = #tpu.dot_dimension_numbers<[1], [0], [0], [1], [0, 0, 1, 1], [], []>} : vector<5x256xbf16>, vector<256x512xbf16>, vector<5x512xf32> -> vector<5x512xf32>
    %93 = arith.addf %87, %92 : vector<5x512xf32>
    %c2_82 = arith.constant 2 : index
    %c0_83 = arith.constant 0 : index
    %94 = vector.load %arg13[%c2_82, %c0_83] : memref<14x256xf32, #tpu.memory_space<vmem>>, vector<5x256xf32>
    %95 = arith.truncf %94 : vector<5x256xf32> to vector<5x256xbf16>
    %c3_84 = arith.constant 3 : index
    %c0_85 = arith.constant 0 : index
    %c0_86 = arith.constant 0 : index
    %96 = vector.load %arg4[%c3_84, %c0_85, %c0_86] : memref<5x256x512xbf16, #tpu.memory_space<vmem>>, vector<1x256x512xbf16>
    %97 = vector.shape_cast %96 : vector<1x256x512xbf16> to vector<256x512xbf16>
    %cst_87 = arith.constant dense<0.000000e+00> : vector<5x512xf32>
    %98 = tpu.matmul %95, %97, %cst_87 {dimension_numbers = #tpu.dot_dimension_numbers<[1], [0], [0], [1], [0, 0, 1, 1], [], []>} : vector<5x256xbf16>, vector<256x512xbf16>, vector<5x512xf32> -> vector<5x512xf32>
    %99 = arith.addf %93, %98 : vector<5x512xf32>
    %c2_88 = arith.constant 2 : index
    %c0_89 = arith.constant 0 : index
    %100 = vector.load %arg14[%c2_88, %c0_89] : memref<14x256xf32, #tpu.memory_space<vmem>>, vector<5x256xf32>
    %101 = arith.truncf %100 : vector<5x256xf32> to vector<5x256xbf16>
    %c4_90 = arith.constant 4 : index
    %c0_91 = arith.constant 0 : index
    %c0_92 = arith.constant 0 : index
    %102 = vector.load %arg4[%c4_90, %c0_91, %c0_92] : memref<5x256x512xbf16, #tpu.memory_space<vmem>>, vector<1x256x512xbf16>
    %103 = vector.shape_cast %102 : vector<1x256x512xbf16> to vector<256x512xbf16>
    %cst_93 = arith.constant dense<0.000000e+00> : vector<5x512xf32>
    %104 = tpu.matmul %101, %103, %cst_93 {dimension_numbers = #tpu.dot_dimension_numbers<[1], [0], [0], [1], [0, 0, 1, 1], [], []>} : vector<5x256xbf16>, vector<256x512xbf16>, vector<5x512xf32> -> vector<5x512xf32>
    %105 = arith.addf %99, %104 : vector<5x512xf32>
    %106 = vector.extract_strided_slice %105 {offsets = [0, 0], sizes = [5, 256], strides = [1, 1]} : vector<5x512xf32> to vector<5x256xf32>
    %107 = vector.extract_strided_slice %105 {offsets = [0, 256], sizes = [5, 256], strides = [1, 1]} : vector<5x512xf32> to vector<5x256xf32>
    %108 = arith.maximumf %106, %107 : vector<5x256xf32>
    %109 = arith.maximumf %76, %108 : vector<5x256xf32>
    %110 = vector.broadcast %41 : vector<1x256xf32> to vector<5x256xf32>
    %111 = arith.addf %109, %110 : vector<5x256xf32>
    %cst_94 = arith.constant 0.000000e+00 : f32
    %112 = vector.broadcast %cst_94 : f32 to vector<5x256xf32>
    %113 = arith.maximumf %111, %112 : vector<5x256xf32>
    %114 = vector.extract_strided_slice %113 {offsets = [0, 0], sizes = [1, 256], strides = [1, 1]} : vector<5x256xf32> to vector<1x256xf32>
    %115 = arith.truncf %114 : vector<1x256xf32> to vector<1x256xbf16>
    %c0_95 = arith.constant 0 : index
    %c0_96 = arith.constant 0 : index
    %c0_97 = arith.constant 0 : index
    %116 = vector.load %arg6[%c0_95, %c0_96, %c0_97] : memref<5x256x128xbf16, #tpu.memory_space<vmem>>, vector<1x256x128xbf16>
    %117 = vector.shape_cast %116 : vector<1x256x128xbf16> to vector<256x128xbf16>
    %cst_98 = arith.constant dense<0.000000e+00> : vector<1x128xf32>
    %118 = tpu.matmul %115, %117, %cst_98 {dimension_numbers = #tpu.dot_dimension_numbers<[1], [0], [0], [1], [0, 0, 1, 1], [], []>} : vector<1x256xbf16>, vector<256x128xbf16>, vector<1x128xf32> -> vector<1x128xf32>
    %119 = vector.extract_strided_slice %113 {offsets = [1, 0], sizes = [1, 256], strides = [1, 1]} : vector<5x256xf32> to vector<1x256xf32>
    %120 = arith.truncf %119 : vector<1x256xf32> to vector<1x256xbf16>
    %c1_99 = arith.constant 1 : index
    %c0_100 = arith.constant 0 : index
    %c0_101 = arith.constant 0 : index
    %121 = vector.load %arg6[%c1_99, %c0_100, %c0_101] : memref<5x256x128xbf16, #tpu.memory_space<vmem>>, vector<1x256x128xbf16>
    %122 = vector.shape_cast %121 : vector<1x256x128xbf16> to vector<256x128xbf16>
    %cst_102 = arith.constant dense<0.000000e+00> : vector<1x128xf32>
    %123 = tpu.matmul %120, %122, %cst_102 {dimension_numbers = #tpu.dot_dimension_numbers<[1], [0], [0], [1], [0, 0, 1, 1], [], []>} : vector<1x256xbf16>, vector<256x128xbf16>, vector<1x128xf32> -> vector<1x128xf32>
    %124 = arith.addf %118, %123 : vector<1x128xf32>
    %125 = vector.extract_strided_slice %113 {offsets = [2, 0], sizes = [1, 256], strides = [1, 1]} : vector<5x256xf32> to vector<1x256xf32>
    %126 = arith.truncf %125 : vector<1x256xf32> to vector<1x256xbf16>
    %c2_103 = arith.constant 2 : index
    %c0_104 = arith.constant 0 : index
    %c0_105 = arith.constant 0 : index
    %127 = vector.load %arg6[%c2_103, %c0_104, %c0_105] : memref<5x256x128xbf16, #tpu.memory_space<vmem>>, vector<1x256x128xbf16>
    %128 = vector.shape_cast %127 : vector<1x256x128xbf16> to vector<256x128xbf16>
    %cst_106 = arith.constant dense<0.000000e+00> : vector<1x128xf32>
    %129 = tpu.matmul %126, %128, %cst_106 {dimension_numbers = #tpu.dot_dimension_numbers<[1], [0], [0], [1], [0, 0, 1, 1], [], []>} : vector<1x256xbf16>, vector<256x128xbf16>, vector<1x128xf32> -> vector<1x128xf32>
    %130 = arith.addf %124, %129 : vector<1x128xf32>
    %131 = vector.extract_strided_slice %113 {offsets = [3, 0], sizes = [1, 256], strides = [1, 1]} : vector<5x256xf32> to vector<1x256xf32>
    %132 = arith.truncf %131 : vector<1x256xf32> to vector<1x256xbf16>
    %c3_107 = arith.constant 3 : index
    %c0_108 = arith.constant 0 : index
    %c0_109 = arith.constant 0 : index
    %133 = vector.load %arg6[%c3_107, %c0_108, %c0_109] : memref<5x256x128xbf16, #tpu.memory_space<vmem>>, vector<1x256x128xbf16>
    %134 = vector.shape_cast %133 : vector<1x256x128xbf16> to vector<256x128xbf16>
    %cst_110 = arith.constant dense<0.000000e+00> : vector<1x128xf32>
    %135 = tpu.matmul %132, %134, %cst_110 {dimension_numbers = #tpu.dot_dimension_numbers<[1], [0], [0], [1], [0, 0, 1, 1], [], []>} : vector<1x256xbf16>, vector<256x128xbf16>, vector<1x128xf32> -> vector<1x128xf32>
    %136 = arith.addf %130, %135 : vector<1x128xf32>
    %137 = vector.extract_strided_slice %113 {offsets = [4, 0], sizes = [1, 256], strides = [1, 1]} : vector<5x256xf32> to vector<1x256xf32>
    %138 = arith.truncf %137 : vector<1x256xf32> to vector<1x256xbf16>
    %c4_111 = arith.constant 4 : index
    %c0_112 = arith.constant 0 : index
    %c0_113 = arith.constant 0 : index
    %139 = vector.load %arg6[%c4_111, %c0_112, %c0_113] : memref<5x256x128xbf16, #tpu.memory_space<vmem>>, vector<1x256x128xbf16>
    %140 = vector.shape_cast %139 : vector<1x256x128xbf16> to vector<256x128xbf16>
    %cst_114 = arith.constant dense<0.000000e+00> : vector<1x128xf32>
    %141 = tpu.matmul %138, %140, %cst_114 {dimension_numbers = #tpu.dot_dimension_numbers<[1], [0], [0], [1], [0, 0, 1, 1], [], []>} : vector<1x256xbf16>, vector<256x128xbf16>, vector<1x128xf32> -> vector<1x128xf32>
    %142 = arith.addf %136, %141 : vector<1x128xf32>
    %143 = arith.addf %142, %42 : vector<1x128xf32>
    %cst_115 = arith.constant 0.000000e+00 : f32
    %144 = vector.broadcast %cst_115 : f32 to vector<1x128xf32>
    %145 = arith.maximumf %143, %144 : vector<1x128xf32>
    %146 = arith.truncf %145 : vector<1x128xf32> to vector<1x128xbf16>
    %c0_116 = arith.constant 0 : index
    %c0_117 = arith.constant 0 : index
    %147 = vector.load %arg8[%c0_116, %c0_117] : memref<128x128xbf16, #tpu.memory_space<vmem>>, vector<128x128xbf16>
    %cst_118 = arith.constant dense<0.000000e+00> : vector<1x128xf32>
    %148 = tpu.matmul %146, %147, %cst_118 {dimension_numbers = #tpu.dot_dimension_numbers<[1], [0], [0], [1], [0, 0, 1, 1], [], []>} : vector<1x128xbf16>, vector<128x128xbf16>, vector<1x128xf32> -> vector<1x128xf32>
    %149 = arith.addf %148, %43 : vector<1x128xf32>
    %cst_119 = arith.constant 0.000000e+00 : f32
    %150 = vector.broadcast %cst_119 : f32 to vector<1x128xf32>
    %151 = arith.maximumf %149, %150 : vector<1x128xf32>
    %152 = arith.truncf %151 : vector<1x128xf32> to vector<1x128xbf16>
    %c0_120 = arith.constant 0 : index
    %c0_121 = arith.constant 0 : index
    %153 = vector.load %arg10[%c0_120, %c0_121] : memref<128x128xbf16, #tpu.memory_space<vmem>>, vector<128x128xbf16>
    %cst_122 = arith.constant dense<0.000000e+00> : vector<1x128xf32>
    %154 = tpu.matmul %152, %153, %cst_122 {dimension_numbers = #tpu.dot_dimension_numbers<[1], [0], [0], [1], [0, 0, 1, 1], [], []>} : vector<1x128xbf16>, vector<128x128xbf16>, vector<1x128xf32> -> vector<1x128xf32>
    %155 = arith.addf %154, %44 : vector<1x128xf32>
    %c0_123 = arith.constant 0 : index
    %c0_124 = arith.constant 0 : index
    %156 = vector.load %arg12[%c0_123, %c0_124] : memref<2x128xf32, #tpu.memory_space<vmem>>, vector<1x128xf32>
    tpu.vector_store %arg12[%c0_123, %c0_124], %155 {strides = array<i32>} : memref<2x128xf32, #tpu.memory_space<vmem>>, vector<1x128xf32>,
    %c7 = arith.constant 7 : index
    %c0_125 = arith.constant 0 : index
    %157 = vector.load %arg13[%c7, %c0_125] : memref<14x256xf32, #tpu.memory_space<vmem>>, vector<5x256xf32>
    %158 = arith.truncf %157 : vector<5x256xf32> to vector<5x256xbf16>
    %c0_126 = arith.constant 0 : index
    %c0_127 = arith.constant 0 : index
    %c0_128 = arith.constant 0 : index
    %159 = vector.load %arg4[%c0_126, %c0_127, %c0_128] : memref<5x256x512xbf16, #tpu.memory_space<vmem>>, vector<1x256x512xbf16>
    %160 = vector.shape_cast %159 : vector<1x256x512xbf16> to vector<256x512xbf16>
    %cst_129 = arith.constant dense<0.000000e+00> : vector<5x512xf32>
    %161 = tpu.matmul %158, %160, %cst_129 {dimension_numbers = #tpu.dot_dimension_numbers<[1], [0], [0], [1], [0, 0, 1, 1], [], []>} : vector<5x256xbf16>, vector<256x512xbf16>, vector<5x512xf32> -> vector<5x512xf32>
    %c7_130 = arith.constant 7 : index
    %c0_131 = arith.constant 0 : index
    %162 = vector.load %arg14[%c7_130, %c0_131] : memref<14x256xf32, #tpu.memory_space<vmem>>, vector<5x256xf32>
    %163 = arith.truncf %162 : vector<5x256xf32> to vector<5x256xbf16>
    %c1_132 = arith.constant 1 : index
    %c0_133 = arith.constant 0 : index
    %c0_134 = arith.constant 0 : index
    %164 = vector.load %arg4[%c1_132, %c0_133, %c0_134] : memref<5x256x512xbf16, #tpu.memory_space<vmem>>, vector<1x256x512xbf16>
    %165 = vector.shape_cast %164 : vector<1x256x512xbf16> to vector<256x512xbf16>
    %cst_135 = arith.constant dense<0.000000e+00> : vector<5x512xf32>
    %166 = tpu.matmul %163, %165, %cst_135 {dimension_numbers = #tpu.dot_dimension_numbers<[1], [0], [0], [1], [0, 0, 1, 1], [], []>} : vector<5x256xbf16>, vector<256x512xbf16>, vector<5x512xf32> -> vector<5x512xf32>
    %167 = arith.addf %161, %166 : vector<5x512xf32>
    %c8 = arith.constant 8 : index
    %c0_136 = arith.constant 0 : index
    %168 = vector.load %arg13[%c8, %c0_136] : memref<14x256xf32, #tpu.memory_space<vmem>>, vector<5x256xf32>
    %169 = arith.truncf %168 : vector<5x256xf32> to vector<5x256xbf16>
    %c2_137 = arith.constant 2 : index
    %c0_138 = arith.constant 0 : index
    %c0_139 = arith.constant 0 : index
    %170 = vector.load %arg4[%c2_137, %c0_138, %c0_139] : memref<5x256x512xbf16, #tpu.memory_space<vmem>>, vector<1x256x512xbf16>
    %171 = vector.shape_cast %170 : vector<1x256x512xbf16> to vector<256x512xbf16>
    %cst_140 = arith.constant dense<0.000000e+00> : vector<5x512xf32>
    %172 = tpu.matmul %169, %171, %cst_140 {dimension_numbers = #tpu.dot_dimension_numbers<[1], [0], [0], [1], [0, 0, 1, 1], [], []>} : vector<5x256xbf16>, vector<256x512xbf16>, vector<5x512xf32> -> vector<5x512xf32>
    %173 = arith.addf %167, %172 : vector<5x512xf32>
    %c8_141 = arith.constant 8 : index
    %c0_142 = arith.constant 0 : index
    %174 = vector.load %arg14[%c8_141, %c0_142] : memref<14x256xf32, #tpu.memory_space<vmem>>, vector<5x256xf32>
    %175 = arith.truncf %174 : vector<5x256xf32> to vector<5x256xbf16>
    %c3_143 = arith.constant 3 : index
    %c0_144 = arith.constant 0 : index
    %c0_145 = arith.constant 0 : index
    %176 = vector.load %arg4[%c3_143, %c0_144, %c0_145] : memref<5x256x512xbf16, #tpu.memory_space<vmem>>, vector<1x256x512xbf16>
    %177 = vector.shape_cast %176 : vector<1x256x512xbf16> to vector<256x512xbf16>
    %cst_146 = arith.constant dense<0.000000e+00> : vector<5x512xf32>
    %178 = tpu.matmul %175, %177, %cst_146 {dimension_numbers = #tpu.dot_dimension_numbers<[1], [0], [0], [1], [0, 0, 1, 1], [], []>} : vector<5x256xbf16>, vector<256x512xbf16>, vector<5x512xf32> -> vector<5x512xf32>
    %179 = arith.addf %173, %178 : vector<5x512xf32>
    %c9 = arith.constant 9 : index
    %c0_147 = arith.constant 0 : index
    %180 = vector.load %arg13[%c9, %c0_147] : memref<14x256xf32, #tpu.memory_space<vmem>>, vector<5x256xf32>
    %181 = arith.truncf %180 : vector<5x256xf32> to vector<5x256xbf16>
    %c4_148 = arith.constant 4 : index
    %c0_149 = arith.constant 0 : index
    %c0_150 = arith.constant 0 : index
    %182 = vector.load %arg4[%c4_148, %c0_149, %c0_150] : memref<5x256x512xbf16, #tpu.memory_space<vmem>>, vector<1x256x512xbf16>
    %183 = vector.shape_cast %182 : vector<1x256x512xbf16> to vector<256x512xbf16>
    %cst_151 = arith.constant dense<0.000000e+00> : vector<5x512xf32>
    %184 = tpu.matmul %181, %183, %cst_151 {dimension_numbers = #tpu.dot_dimension_numbers<[1], [0], [0], [1], [0, 0, 1, 1], [], []>} : vector<5x256xbf16>, vector<256x512xbf16>, vector<5x512xf32> -> vector<5x512xf32>
    %185 = arith.addf %179, %184 : vector<5x512xf32>
    %186 = vector.extract_strided_slice %185 {offsets = [0, 0], sizes = [5, 256], strides = [1, 1]} : vector<5x512xf32> to vector<5x256xf32>
    %187 = vector.extract_strided_slice %185 {offsets = [0, 256], sizes = [5, 256], strides = [1, 1]} : vector<5x512xf32> to vector<5x256xf32>
    %188 = arith.maximumf %186, %187 : vector<5x256xf32>
    %c7_152 = arith.constant 7 : index
    %c0_153 = arith.constant 0 : index
    %189 = vector.load %arg14[%c7_152, %c0_153] : memref<14x256xf32, #tpu.memory_space<vmem>>, vector<5x256xf32>
    %190 = arith.truncf %189 : vector<5x256xf32> to vector<5x256xbf16>
    %c0_154 = arith.constant 0 : index
    %c0_155 = arith.constant 0 : index
    %c0_156 = arith.constant 0 : index
    %191 = vector.load %arg4[%c0_154, %c0_155, %c0_156] : memref<5x256x512xbf16, #tpu.memory_space<vmem>>, vector<1x256x512xbf16>
    %192 = vector.shape_cast %191 : vector<1x256x512xbf16> to vector<256x512xbf16>
    %cst_157 = arith.constant dense<0.000000e+00> : vector<5x512xf32>
    %193 = tpu.matmul %190, %192, %cst_157 {dimension_numbers = #tpu.dot_dimension_numbers<[1], [0], [0], [1], [0, 0, 1, 1], [], []>} : vector<5x256xbf16>, vector<256x512xbf16>, vector<5x512xf32> -> vector<5x512xf32>
    %c8_158 = arith.constant 8 : index
    %c0_159 = arith.constant 0 : index
    %194 = vector.load %arg13[%c8_158, %c0_159] : memref<14x256xf32, #tpu.memory_space<vmem>>, vector<5x256xf32>
    %195 = arith.truncf %194 : vector<5x256xf32> to vector<5x256xbf16>
    %c1_160 = arith.constant 1 : index
    %c0_161 = arith.constant 0 : index
    %c0_162 = arith.constant 0 : index
    %196 = vector.load %arg4[%c1_160, %c0_161, %c0_162] : memref<5x256x512xbf16, #tpu.memory_space<vmem>>, vector<1x256x512xbf16>
    %197 = vector.shape_cast %196 : vector<1x256x512xbf16> to vector<256x512xbf16>
    %cst_163 = arith.constant dense<0.000000e+00> : vector<5x512xf32>
    %198 = tpu.matmul %195, %197, %cst_163 {dimension_numbers = #tpu.dot_dimension_numbers<[1], [0], [0], [1], [0, 0, 1, 1], [], []>} : vector<5x256xbf16>, vector<256x512xbf16>, vector<5x512xf32> -> vector<5x512xf32>
    %199 = arith.addf %193, %198 : vector<5x512xf32>
    %c8_164 = arith.constant 8 : index
    %c0_165 = arith.constant 0 : index
    %200 = vector.load %arg14[%c8_164, %c0_165] : memref<14x256xf32, #tpu.memory_space<vmem>>, vector<5x256xf32>
    %201 = arith.truncf %200 : vector<5x256xf32> to vector<5x256xbf16>
    %c2_166 = arith.constant 2 : index
    %c0_167 = arith.constant 0 : index
    %c0_168 = arith.constant 0 : index
    %202 = vector.load %arg4[%c2_166, %c0_167, %c0_168] : memref<5x256x512xbf16, #tpu.memory_space<vmem>>, vector<1x256x512xbf16>
    %203 = vector.shape_cast %202 : vector<1x256x512xbf16> to vector<256x512xbf16>
    %cst_169 = arith.constant dense<0.000000e+00> : vector<5x512xf32>
    %204 = tpu.matmul %201, %203, %cst_169 {dimension_numbers = #tpu.dot_dimension_numbers<[1], [0], [0], [1], [0, 0, 1, 1], [], []>} : vector<5x256xbf16>, vector<256x512xbf16>, vector<5x512xf32> -> vector<5x512xf32>
    %205 = arith.addf %199, %204 : vector<5x512xf32>
    %c9_170 = arith.constant 9 : index
    %c0_171 = arith.constant 0 : index
    %206 = vector.load %arg13[%c9_170, %c0_171] : memref<14x256xf32, #tpu.memory_space<vmem>>, vector<5x256xf32>
    %207 = arith.truncf %206 : vector<5x256xf32> to vector<5x256xbf16>
    %c3_172 = arith.constant 3 : index
    %c0_173 = arith.constant 0 : index
    %c0_174 = arith.constant 0 : index
    %208 = vector.load %arg4[%c3_172, %c0_173, %c0_174] : memref<5x256x512xbf16, #tpu.memory_space<vmem>>, vector<1x256x512xbf16>
    %209 = vector.shape_cast %208 : vector<1x256x512xbf16> to vector<256x512xbf16>
    %cst_175 = arith.constant dense<0.000000e+00> : vector<5x512xf32>
    %210 = tpu.matmul %207, %209, %cst_175 {dimension_numbers = #tpu.dot_dimension_numbers<[1], [0], [0], [1], [0, 0, 1, 1], [], []>} : vector<5x256xbf16>, vector<256x512xbf16>, vector<5x512xf32> -> vector<5x512xf32>
    %211 = arith.addf %205, %210 : vector<5x512xf32>
    %c9_176 = arith.constant 9 : index
    %c0_177 = arith.constant 0 : index
    %212 = vector.load %arg14[%c9_176, %c0_177] : memref<14x256xf32, #tpu.memory_space<vmem>>, vector<5x256xf32>
    %213 = arith.truncf %212 : vector<5x256xf32> to vector<5x256xbf16>
    %c4_178 = arith.constant 4 : index
    %c0_179 = arith.constant 0 : index
    %c0_180 = arith.constant 0 : index
    %214 = vector.load %arg4[%c4_178, %c0_179, %c0_180] : memref<5x256x512xbf16, #tpu.memory_space<vmem>>, vector<1x256x512xbf16>
    %215 = vector.shape_cast %214 : vector<1x256x512xbf16> to vector<256x512xbf16>
    %cst_181 = arith.constant dense<0.000000e+00> : vector<5x512xf32>
    %216 = tpu.matmul %213, %215, %cst_181 {dimension_numbers = #tpu.dot_dimension_numbers<[1], [0], [0], [1], [0, 0, 1, 1], [], []>} : vector<5x256xbf16>, vector<256x512xbf16>, vector<5x512xf32> -> vector<5x512xf32>
    %217 = arith.addf %211, %216 : vector<5x512xf32>
    %218 = vector.extract_strided_slice %217 {offsets = [0, 0], sizes = [5, 256], strides = [1, 1]} : vector<5x512xf32> to vector<5x256xf32>
    %219 = vector.extract_strided_slice %217 {offsets = [0, 256], sizes = [5, 256], strides = [1, 1]} : vector<5x512xf32> to vector<5x256xf32>
    %220 = arith.maximumf %218, %219 : vector<5x256xf32>
    %221 = arith.maximumf %188, %220 : vector<5x256xf32>
    %222 = vector.broadcast %41 : vector<1x256xf32> to vector<5x256xf32>
    %223 = arith.addf %221, %222 : vector<5x256xf32>
    %cst_182 = arith.constant 0.000000e+00 : f32
    %224 = vector.broadcast %cst_182 : f32 to vector<5x256xf32>
    %225 = arith.maximumf %223, %224 : vector<5x256xf32>
    %226 = vector.extract_strided_slice %225 {offsets = [0, 0], sizes = [1, 256], strides = [1, 1]} : vector<5x256xf32> to vector<1x256xf32>
    %227 = arith.truncf %226 : vector<1x256xf32> to vector<1x256xbf16>
    %c0_183 = arith.constant 0 : index
    %c0_184 = arith.constant 0 : index
    %c0_185 = arith.constant 0 : index
    %228 = vector.load %arg6[%c0_183, %c0_184, %c0_185] : memref<5x256x128xbf16, #tpu.memory_space<vmem>>, vector<1x256x128xbf16>
    %229 = vector.shape_cast %228 : vector<1x256x128xbf16> to vector<256x128xbf16>
    %cst_186 = arith.constant dense<0.000000e+00> : vector<1x128xf32>
    %230 = tpu.matmul %227, %229, %cst_186 {dimension_numbers = #tpu.dot_dimension_numbers<[1], [0], [0], [1], [0, 0, 1, 1], [], []>} : vector<1x256xbf16>, vector<256x128xbf16>, vector<1x128xf32> -> vector<1x128xf32>
    %231 = vector.extract_strided_slice %225 {offsets = [1, 0], sizes = [1, 256], strides = [1, 1]} : vector<5x256xf32> to vector<1x256xf32>
    %232 = arith.truncf %231 : vector<1x256xf32> to vector<1x256xbf16>
    %c1_187 = arith.constant 1 : index
    %c0_188 = arith.constant 0 : index
    %c0_189 = arith.constant 0 : index
    %233 = vector.load %arg6[%c1_187, %c0_188, %c0_189] : memref<5x256x128xbf16, #tpu.memory_space<vmem>>, vector<1x256x128xbf16>
    %234 = vector.shape_cast %233 : vector<1x256x128xbf16> to vector<256x128xbf16>
    %cst_190 = arith.constant dense<0.000000e+00> : vector<1x128xf32>
    %235 = tpu.matmul %232, %234, %cst_190 {dimension_numbers = #tpu.dot_dimension_numbers<[1], [0], [0], [1], [0, 0, 1, 1], [], []>} : vector<1x256xbf16>, vector<256x128xbf16>, vector<1x128xf32> -> vector<1x128xf32>
    %236 = arith.addf %230, %235 : vector<1x128xf32>
    %237 = vector.extract_strided_slice %225 {offsets = [2, 0], sizes = [1, 256], strides = [1, 1]} : vector<5x256xf32> to vector<1x256xf32>
    %238 = arith.truncf %237 : vector<1x256xf32> to vector<1x256xbf16>
    %c2_191 = arith.constant 2 : index
    %c0_192 = arith.constant 0 : index
    %c0_193 = arith.constant 0 : index
    %239 = vector.load %arg6[%c2_191, %c0_192, %c0_193] : memref<5x256x128xbf16, #tpu.memory_space<vmem>>, vector<1x256x128xbf16>
    %240 = vector.shape_cast %239 : vector<1x256x128xbf16> to vector<256x128xbf16>
    %cst_194 = arith.constant dense<0.000000e+00> : vector<1x128xf32>
    %241 = tpu.matmul %238, %240, %cst_194 {dimension_numbers = #tpu.dot_dimension_numbers<[1], [0], [0], [1], [0, 0, 1, 1], [], []>} : vector<1x256xbf16>, vector<256x128xbf16>, vector<1x128xf32> -> vector<1x128xf32>
    %242 = arith.addf %236, %241 : vector<1x128xf32>
    %243 = vector.extract_strided_slice %225 {offsets = [3, 0], sizes = [1, 256], strides = [1, 1]} : vector<5x256xf32> to vector<1x256xf32>
    %244 = arith.truncf %243 : vector<1x256xf32> to vector<1x256xbf16>
    %c3_195 = arith.constant 3 : index
    %c0_196 = arith.constant 0 : index
    %c0_197 = arith.constant 0 : index
    %245 = vector.load %arg6[%c3_195, %c0_196, %c0_197] : memref<5x256x128xbf16, #tpu.memory_space<vmem>>, vector<1x256x128xbf16>
    %246 = vector.shape_cast %245 : vector<1x256x128xbf16> to vector<256x128xbf16>
    %cst_198 = arith.constant dense<0.000000e+00> : vector<1x128xf32>
    %247 = tpu.matmul %244, %246, %cst_198 {dimension_numbers = #tpu.dot_dimension_numbers<[1], [0], [0], [1], [0, 0, 1, 1], [], []>} : vector<1x256xbf16>, vector<256x128xbf16>, vector<1x128xf32> -> vector<1x128xf32>
    %248 = arith.addf %242, %247 : vector<1x128xf32>
    %249 = vector.extract_strided_slice %225 {offsets = [4, 0], sizes = [1, 256], strides = [1, 1]} : vector<5x256xf32> to vector<1x256xf32>
    %250 = arith.truncf %249 : vector<1x256xf32> to vector<1x256xbf16>
    %c4_199 = arith.constant 4 : index
    %c0_200 = arith.constant 0 : index
    %c0_201 = arith.constant 0 : index
    %251 = vector.load %arg6[%c4_199, %c0_200, %c0_201] : memref<5x256x128xbf16, #tpu.memory_space<vmem>>, vector<1x256x128xbf16>
    %252 = vector.shape_cast %251 : vector<1x256x128xbf16> to vector<256x128xbf16>
    %cst_202 = arith.constant dense<0.000000e+00> : vector<1x128xf32>
    %253 = tpu.matmul %250, %252, %cst_202 {dimension_numbers = #tpu.dot_dimension_numbers<[1], [0], [0], [1], [0, 0, 1, 1], [], []>} : vector<1x256xbf16>, vector<256x128xbf16>, vector<1x128xf32> -> vector<1x128xf32>
    %254 = arith.addf %248, %253 : vector<1x128xf32>
    %255 = arith.addf %254, %42 : vector<1x128xf32>
    %cst_203 = arith.constant 0.000000e+00 : f32
    %256 = vector.broadcast %cst_203 : f32 to vector<1x128xf32>
    %257 = arith.maximumf %255, %256 : vector<1x128xf32>
    %258 = arith.truncf %257 : vector<1x128xf32> to vector<1x128xbf16>
    %c0_204 = arith.constant 0 : index
    %c0_205 = arith.constant 0 : index
    %259 = vector.load %arg8[%c0_204, %c0_205] : memref<128x128xbf16, #tpu.memory_space<vmem>>, vector<128x128xbf16>
    %cst_206 = arith.constant dense<0.000000e+00> : vector<1x128xf32>
    %260 = tpu.matmul %258, %259, %cst_206 {dimension_numbers = #tpu.dot_dimension_numbers<[1], [0], [0], [1], [0, 0, 1, 1], [], []>} : vector<1x128xbf16>, vector<128x128xbf16>, vector<1x128xf32> -> vector<1x128xf32>
    %261 = arith.addf %260, %43 : vector<1x128xf32>
    %cst_207 = arith.constant 0.000000e+00 : f32
    %262 = vector.broadcast %cst_207 : f32 to vector<1x128xf32>
    %263 = arith.maximumf %261, %262 : vector<1x128xf32>
    %264 = arith.truncf %263 : vector<1x128xf32> to vector<1x128xbf16>
    %c0_208 = arith.constant 0 : index
    %c0_209 = arith.constant 0 : index
    %265 = vector.load %arg10[%c0_208, %c0_209] : memref<128x128xbf16, #tpu.memory_space<vmem>>, vector<128x128xbf16>
    %cst_210 = arith.constant dense<0.000000e+00> : vector<1x128xf32>
    %266 = tpu.matmul %264, %265, %cst_210 {dimension_numbers = #tpu.dot_dimension_numbers<[1], [0], [0], [1], [0, 0, 1, 1], [], []>} : vector<1x128xbf16>, vector<128x128xbf16>, vector<1x128xf32> -> vector<1x128xf32>
    %267 = arith.addf %266, %44 : vector<1x128xf32>
    %c1_211 = arith.constant 1 : index
    %c0_212 = arith.constant 0 : index
    %268 = vector.load %arg12[%c1_211, %c0_212] : memref<2x128xf32, #tpu.memory_space<vmem>>, vector<1x128xf32>
    tpu.vector_store %arg12[%c1_211, %c0_212], %267 {strides = array<i32>} : memref<2x128xf32, #tpu.memory_space<vmem>>, vector<1x128xf32>,
    return
  }
  func.func @transform_0(%arg0: i32) -> (i32, i32, i32) {
    %c0_i32 = arith.constant 0 : i32
    %c0_i32_0 = arith.constant 0 : i32
    %c0_i32_1 = arith.constant 0 : i32
    %c0_i32_2 = arith.constant 0 : i32
    return %c0_i32, %c0_i32_0, %c0_i32_1 : i32, i32, i32
  }
  func.func @transform_1(%arg0: i32) -> (i32, i32) {
    %c0_i32 = arith.constant 0 : i32
    %c0_i32_0 = arith.constant 0 : i32
    %c0_i32_1 = arith.constant 0 : i32
    return %c0_i32, %c0_i32_0 : i32, i32
  }
  func.func @transform_2(%arg0: i32) -> (i32, i32) {
    %c0_i32 = arith.constant 0 : i32
    %c0_i32_0 = arith.constant 0 : i32
    %c0_i32_1 = arith.constant 0 : i32
    return %c0_i32, %c0_i32_0 : i32, i32
  }
  func.func @transform_3(%arg0: i32) -> (i32, i32, i32) {
    %c0_i32 = arith.constant 0 : i32
    %c0_i32_0 = arith.constant 0 : i32
    %c0_i32_1 = arith.constant 0 : i32
    %c0_i32_2 = arith.constant 0 : i32
    return %c0_i32, %c0_i32_0, %c0_i32_1 : i32, i32, i32
  }
  func.func @transform_4(%arg0: i32) -> (i32, i32) {
    %c0_i32 = arith.constant 0 : i32
    %c0_i32_0 = arith.constant 0 : i32
    %c0_i32_1 = arith.constant 0 : i32
    return %c0_i32, %c0_i32_0 : i32, i32
  }
  func.func @transform_5(%arg0: i32) -> (i32, i32, i32) {
    %c0_i32 = arith.constant 0 : i32
    %c0_i32_0 = arith.constant 0 : i32
    %c0_i32_1 = arith.constant 0 : i32
    %c0_i32_2 = arith.constant 0 : i32
    return %c0_i32, %c0_i32_0, %c0_i32_1 : i32, i32, i32
  }
  func.func @transform_6(%arg0: i32) -> (i32, i32) {
    %c0_i32 = arith.constant 0 : i32
    %c0_i32_0 = arith.constant 0 : i32
    %c0_i32_1 = arith.constant 0 : i32
    return %c0_i32, %c0_i32_0 : i32, i32
  }
  func.func @transform_7(%arg0: i32) -> (i32, i32) {
    %c0_i32 = arith.constant 0 : i32
    %c0_i32_0 = arith.constant 0 : i32
    %c0_i32_1 = arith.constant 0 : i32
    return %c0_i32, %c0_i32_0 : i32, i32
  }
  func.func @transform_8(%arg0: i32) -> (i32, i32) {
    %c0_i32 = arith.constant 0 : i32
    %c0_i32_0 = arith.constant 0 : i32
    %c0_i32_1 = arith.constant 0 : i32
    return %c0_i32, %c0_i32_0 : i32, i32
  }
  func.func @transform_9(%arg0: i32) -> (i32, i32) {
    %c0_i32 = arith.constant 0 : i32
    %c0_i32_0 = arith.constant 0 : i32
    %c0_i32_1 = arith.constant 0 : i32
    return %c0_i32, %c0_i32_0 : i32, i32
  }
  func.func @transform_10(%arg0: i32) -> (i32, i32) {
    %c0_i32 = arith.constant 0 : i32
    %c0_i32_0 = arith.constant 0 : i32
    %c0_i32_1 = arith.constant 0 : i32
    return %c0_i32, %c0_i32_0 : i32, i32
  }
  func.func @transform_11(%arg0: i32) -> (i32, i32) {
    %c0_i32 = arith.constant 0 : i32
    %c0_i32_0 = arith.constant 0 : i32
    %c0_i32_1 = arith.constant 0 : i32
    return %c0_i32, %c0_i32_0 : i32, i32
  }
}

</mosaic_0001>

<llo_original>
// kernel: net_forward.1
$region0: #{net_forward.1}
  #allocation0 [shape = 'u32[]', space=smem, size = 0x4, offset = 0x4, fixed_abs, tag = 'smem constant byte address 0x4 - core index']
  #allocation1 [shape = 'u32[144,128]{1,0:T(1,128)}', space=vmem, size = 0x12000, scoped, tag = 'internal scratch']
  #allocation2 [shape = 'f32[14,256]{1,0:T(8,128)}', space=vmem, size = 0x4000, scoped, tag = 'scratch operand']
  #allocation3 [shape = 'f32[14,256]{1,0:T(8,128)}', space=vmem, size = 0x4000, scoped, tag = 'scratch operand']
  %s0 = inlined_call_operand.vmem [shape: bf16[4,14,480], index: 0, kind: input, shape index: {}]
  %s1 = inlined_call_operand.hbm [shape: bf16[480,512], index: 1, kind: input, shape index: {}]
  %s2 = inlined_call_operand.vmem [shape: f32[1,256], index: 2, kind: input, shape index: {}]
  %s3 = inlined_call_operand.vmem [shape: bf16[5,256,512], index: 3, kind: input, shape index: {}]
  %s4 = inlined_call_operand.vmem [shape: f32[1,256], index: 4, kind: input, shape index: {}]
  %s5 = inlined_call_operand.hbm [shape: bf16[5,256,128], index: 5, kind: input, shape index: {}]
  %s6 = inlined_call_operand.vmem [shape: f32[1,128], index: 6, kind: input, shape index: {}]
  %s7 = inlined_call_operand.vmem [shape: bf16[128,128], index: 7, kind: input, shape index: {}]
  %s8 = inlined_call_operand.vmem [shape: f32[1,128], index: 8, kind: input, shape index: {}]
  %s9 = inlined_call_operand.vmem [shape: bf16[128,128], index: 9, kind: input, shape index: {}]
  %s10 = inlined_call_operand.vmem [shape: f32[1,128], index: 10, kind: input, shape index: {}]
  %s11 = inlined_call_operand.hbm [shape: f32[2,128], index: 11, kind: output, shape index: {}]
  %s12 = sld [smem:[#allocation0]]
  $region62: #{net_forward.1} parent=0
    _
  %s14 = ssub.s32 1, %s12
  %s15 = scalar_select 0, %s14, %s12
  $region1: #{net_forward.1} parent=0
    #allocation4 [shape = 'u8[491520]{0}', space=vmem, size = 0x78000, scoped, tag = 'input window, operand 1, single buffered']
    #allocation5 [shape = 's32[1]{0}', space=sflag, size = 0x4, scoped, tag = 'scoped memory for net_forward.1']
    #allocation6 [shape = 's32[1]{0}', space=sflag, size = 0x4, scoped, tag = 'scoped memory for net_forward.1']
    #allocation7 [shape = 'u8[327680]{0}', space=vmem, size = 0x50000, scoped, tag = 'input window, operand 5, single buffered']
    #allocation8 [shape = 's32[1]{0}', space=sflag, size = 0x4, scoped, tag = 'scoped memory for net_forward.1']
    #allocation9 [shape = 'u8[1024]{0}', space=vmem, size = 0x400, scoped, tag = 'output window, operand 0, single buffered']
    %16 = vsyncpa [#allocation5], 0
    %17 = vsyncpa [#allocation8], 0
    %18 = vsyncpa [#allocation6], 0
    // Predicated region
    $region2: #{net_forward.1} parent=1 // pred_check
      _
    $region3: #{net_forward.1} parent=1 // pred_check_branch
      %20 = sbr.rel (0) target = $region5
    $region4: #{net_forward.1} parent=1 // pred_region
      _
    $region5: #{net_forward.1} parent=1 // pred_fallthru
      _
    // Predicated region
    $region6: #{net_forward.1} parent=1 // pred_check
      _
    $region7: #{net_forward.1} parent=1 // pred_check_branch
      %22 = sbr.rel (0) target = $region9
    $region8: #{net_forward.1} parent=1 // pred_region
      %s24 = ssub.s32 15360, 15360
      %25 = vsyncadd [#allocation5], %s24
      %s26 = sshll.u32 [#allocation4], 4
      %s27 = int_to_ptr.vmem [resolvable:$true] %s26
      %32 = dma.hbm_to_vmem [thread:$0]  %s1, 15360, %s27, [#allocation5], 256, 256, 16
    $region9: #{net_forward.1} parent=1 // pred_fallthru
      _
    // Predicated region
    $region10: #{net_forward.1} parent=1 // pred_check
      _
    $region11: #{net_forward.1} parent=1 // pred_check_branch
      %34 = sbr.rel (0) target = $region13
    $region12: #{net_forward.1} parent=1 // pred_region
      _
    $region13: #{net_forward.1} parent=1 // pred_fallthru
      _
    // Predicated region
    $region14: #{net_forward.1} parent=1 // pred_check
      _
    $region15: #{net_forward.1} parent=1 // pred_check_branch
      %36 = sbr.rel (0) target = $region17
    $region16: #{net_forward.1} parent=1 // pred_region
      _
    $region17: #{net_forward.1} parent=1 // pred_fallthru
      _
    // Predicated region
    $region18: #{net_forward.1} parent=1 // pred_check
      _
    $region19: #{net_forward.1} parent=1 // pred_check_branch
      %38 = sbr.rel (0) target = $region21
    $region20: #{net_forward.1} parent=1 // pred_region
      _
    $region21: #{net_forward.1} parent=1 // pred_fallthru
      _
    // Predicated region
    $region22: #{net_forward.1} parent=1 // pred_check
      _
    $region23: #{net_forward.1} parent=1 // pred_check_branch
      %40 = sbr.rel (0) target = $region25
    $region24: #{net_forward.1} parent=1 // pred_region
      %s42 = ssub.s32 10240, 10240
      %43 = vsyncadd [#allocation8], %s42
      %s44 = sshll.u32 [#allocation7], 4
      %s45 = int_to_ptr.vmem [resolvable:$true] %s44
      %50 = dma.hbm_to_vmem [thread:$0]  %s5, 10240, %s45, [#allocation8], 64, 64, 4
    $region25: #{net_forward.1} parent=1 // pred_fallthru
      _
    // Predicated region
    $region26: #{net_forward.1} parent=1 // pred_check
      _
    $region27: #{net_forward.1} parent=1 // pred_check_branch
      %52 = sbr.rel (0) target = $region29
    $region28: #{net_forward.1} parent=1 // pred_region
      _
    $region29: #{net_forward.1} parent=1 // pred_fallthru
      _
    // Predicated region
    $region30: #{net_forward.1} parent=1 // pred_check
      _
    $region31: #{net_forward.1} parent=1 // pred_check_branch
      %54 = sbr.rel (0) target = $region33
    $region32: #{net_forward.1} parent=1 // pred_region
      _
    $region33: #{net_forward.1} parent=1 // pred_fallthru
      _
    // Predicated region
    $region34: #{net_forward.1} parent=1 // pred_check
      _
    $region35: #{net_forward.1} parent=1 // pred_check_branch
      %56 = sbr.rel (0) target = $region37
    $region36: #{net_forward.1} parent=1 // pred_region
      _
    $region37: #{net_forward.1} parent=1 // pred_fallthru
      _
    // Predicated region
    $region38: #{net_forward.1} parent=1 // pred_check
      _
    $region39: #{net_forward.1} parent=1 // pred_check_branch
      %58 = sbr.rel (0) target = $region41
    $region40: #{net_forward.1} parent=1 // pred_region
      _
    $region41: #{net_forward.1} parent=1 // pred_fallthru
      _
    // Predicated region
    $region42: #{net_forward.1} parent=1 // pred_check
      _
    $region43: #{net_forward.1} parent=1 // pred_check_branch
      %60 = sbr.rel (0) target = $region45
    $region44: #{net_forward.1} parent=1 // pred_region
      _
    $region45: #{net_forward.1} parent=1 // pred_fallthru
      _
    // Predicated region
    $region46: #{net_forward.1} parent=1 // pred_check
      _
    $region47: #{net_forward.1} parent=1 // pred_check_branch
      %62 = sbr.rel (0) target = $region49
    $region48: #{net_forward.1} parent=1 // pred_region
      %63 = dma.done [#allocation5], 15360
    $region49: #{net_forward.1} parent=1 // pred_fallthru
      _
    // Predicated region
    $region50: #{net_forward.1} parent=1 // pred_check
      _
    $region51: #{net_forward.1} parent=1 // pred_check_branch
      %65 = sbr.rel (0) target = $region53
    $region52: #{net_forward.1} parent=1 // pred_region
      %66 = dma.done [#allocation8], 10240
    $region53: #{net_forward.1} parent=1 // pred_fallthru
      _
    %v68 = vld [vmem:[%s0] sm:$0xff]
    %v69 = vld [vmem:[%s0 + $0x8] sm:$0xff]
    %v70 = vld [vmem:[%s0 + $0x10] sm:$0x77]
    %v71 = vld [vmem:[%s0 + $0x18] sm:$0x77]
    %v72 = vld [vmem:[#allocation4] sm:$0xff]
    %v73 = vld [vmem:[#allocation4 + $0x8] sm:$0xff]
    %v74 = vld [vmem:[#allocation4 + $0x10] sm:$0xff]
    %v75 = vld [vmem:[#allocation4 + $0x18] sm:$0xff]
    %v76 = vld [vmem:[#allocation4 + $0x20] sm:$0xff]
    %v77 = vld [vmem:[#allocation4 + $0x28] sm:$0xff]
    %v78 = vld [vmem:[#allocation4 + $0x30] sm:$0xff]
    %v79 = vld [vmem:[#allocation4 + $0x38] sm:$0xff]
    %v80 = vld [vmem:[#allocation4 + $0x40] sm:$0xff]
    %v81 = vld [vmem:[#allocation4 + $0x48] sm:$0xff]
    %v82 = vld [vmem:[#allocation4 + $0x50] sm:$0xff]
    %v83 = vld [vmem:[#allocation4 + $0x58] sm:$0xff]
    %v84 = vld [vmem:[#allocation4 + $0x60] sm:$0xff]
    %v85 = vld [vmem:[#allocation4 + $0x68] sm:$0xff]
    %v86 = vld [vmem:[#allocation4 + $0x70] sm:$0xff]
    %v87 = vld [vmem:[#allocation4 + $0x78] sm:$0xff]
    %v88 = vld [vmem:[#allocation4 + $0x80] sm:$0xff]
    %v89 = vld [vmem:[#allocation4 + $0x88] sm:$0xff]
    %v90 = vld [vmem:[#allocation4 + $0x90] sm:$0xff]
    %v91 = vld [vmem:[#allocation4 + $0x98] sm:$0xff]
    %v92 = vld [vmem:[#allocation4 + $0xa0] sm:$0xff]
    %v93 = vld [vmem:[#allocation4 + $0xa8] sm:$0xff]
    %v94 = vld [vmem:[#allocation4 + $0xb0] sm:$0xff]
    %v95 = vld [vmem:[#allocation4 + $0xb8] sm:$0xff]
    %v96 = vld [vmem:[#allocation4 + $0xc0] sm:$0xff]
    %v97 = vld [vmem:[#allocation4 + $0xc8] sm:$0xff]
    %v98 = vld [vmem:[#allocation4 + $0xd0] sm:$0xff]
    %v99 = vld [vmem:[#allocation4 + $0xd8] sm:$0xff]
    %v100 = vld [vmem:[#allocation4 + $0xe0] sm:$0xff]
    %v101 = vld [vmem:[#allocation4 + $0xe8] sm:$0xff]
    %v102 = vld [vmem:[#allocation4 + $0xf0] sm:$0xff]
    %v103 = vld [vmem:[#allocation4 + $0xf8] sm:$0xff]
    %v104 = vld [vmem:[#allocation4 + $0x100] sm:$0xff]
    %v105 = vld [vmem:[#allocation4 + $0x108] sm:$0xff]
    %v106 = vld [vmem:[#allocation4 + $0x110] sm:$0xff]
    %v107 = vld [vmem:[#allocation4 + $0x118] sm:$0xff]
    %v108 = vld [vmem:[#allocation4 + $0x120] sm:$0xff]
    %v109 = vld [vmem:[#allocation4 + $0x128] sm:$0xff]
    %v110 = vld [vmem:[#allocation4 + $0x130] sm:$0xff]
    %v111 = vld [vmem:[#allocation4 + $0x138] sm:$0xff]
    %v112 = vld [vmem:[#allocation4 + $0x140] sm:$0xff]
    %v113 = vld [vmem:[#allocation4 + $0x148] sm:$0xff]
    %v114 = vld [vmem:[#allocation4 + $0x150] sm:$0xff]
    %v115 = vld [vmem:[#allocation4 + $0x158] sm:$0xff]
    %v116 = vld [vmem:[#allocation4 + $0x160] sm:$0xff]
    %v117 = vld [vmem:[#allocation4 + $0x168] sm:$0xff]
    %v118 = vld [vmem:[#allocation4 + $0x170] sm:$0xff]
    %v119 = vld [vmem:[#allocation4 + $0x178] sm:$0xff]
    %v120 = vld [vmem:[#allocation4 + $0x180] sm:$0xff]
    %v121 = vld [vmem:[#allocation4 + $0x188] sm:$0xff]
    %v122 = vld [vmem:[#allocation4 + $0x190] sm:$0xff]
    %v123 = vld [vmem:[#allocation4 + $0x198] sm:$0xff]
    %v124 = vld [vmem:[#allocation4 + $0x1a0] sm:$0xff]
    %v125 = vld [vmem:[#allocation4 + $0x1a8] sm:$0xff]
    %v126 = vld [vmem:[#allocation4 + $0x1b0] sm:$0xff]
    %v127 = vld [vmem:[#allocation4 + $0x1b8] sm:$0xff]
    %v128 = vld [vmem:[#allocation4 + $0x1c0] sm:$0xff]
    %v129 = vld [vmem:[#allocation4 + $0x1c8] sm:$0xff]
    %v130 = vld [vmem:[#allocation4 + $0x1d0] sm:$0xff]
    %v131 = vld [vmem:[#allocation4 + $0x1d8] sm:$0xff]
    %v132 = vld [vmem:[#allocation4 + $0x1e0] sm:$0xff]
    %v133 = vld [vmem:[#allocation4 + $0x1e8] sm:$0xff]
    %v134 = vld [vmem:[#allocation4 + $0x1f0] sm:$0xff]
    %v135 = vld [vmem:[#allocation4 + $0x1f8] sm:$0xff]
    %v136 = vld [vmem:[#allocation4 + $0x200] sm:$0xff]
    %v137 = vld [vmem:[#allocation4 + $0x208] sm:$0xff]
    %v138 = vld [vmem:[#allocation4 + $0x210] sm:$0xff]
    %v139 = vld [vmem:[#allocation4 + $0x218] sm:$0xff]
    %v140 = vld [vmem:[#allocation4 + $0x220] sm:$0xff]
    %v141 = vld [vmem:[#allocation4 + $0x228] sm:$0xff]
    %v142 = vld [vmem:[#allocation4 + $0x230] sm:$0xff]
    %v143 = vld [vmem:[#allocation4 + $0x238] sm:$0xff]
    %v144 = vld [vmem:[#allocation4 + $0x240] sm:$0xff]
    %v145 = vld [vmem:[#allocation4 + $0x248] sm:$0xff]
    %v146 = vld [vmem:[#allocation4 + $0x250] sm:$0xff]
    %v147 = vld [vmem:[#allocation4 + $0x258] sm:$0xff]
    %v148 = vld [vmem:[#allocation4 + $0x260] sm:$0xff]
    %v149 = vld [vmem:[#allocation4 + $0x268] sm:$0xff]
    %v150 = vld [vmem:[#allocation4 + $0x270] sm:$0xff]
    %v151 = vld [vmem:[#allocation4 + $0x278] sm:$0xff]
    %v152 = vld [vmem:[#allocation4 + $0x280] sm:$0xff]
    %v153 = vld [vmem:[#allocation4 + $0x288] sm:$0xff]
    %v154 = vld [vmem:[#allocation4 + $0x290] sm:$0xff]
    %v155 = vld [vmem:[#allocation4 + $0x298] sm:$0xff]
    %v156 = vld [vmem:[#allocation4 + $0x2a0] sm:$0xff]
    %v157 = vld [vmem:[#allocation4 + $0x2a8] sm:$0xff]
    %v158 = vld [vmem:[#allocation4 + $0x2b0] sm:$0xff]
    %v159 = vld [vmem:[#allocation4 + $0x2b8] sm:$0xff]
    %v160 = vld [vmem:[#allocation4 + $0x2c0] sm:$0xff]
    %v161 = vld [vmem:[#allocation4 + $0x2c8] sm:$0xff]
    %v162 = vld [vmem:[#allocation4 + $0x2d0] sm:$0xff]
    %v163 = vld [vmem:[#allocation4 + $0x2d8] sm:$0xff]
    %v164 = vld [vmem:[#allocation4 + $0x2e0] sm:$0xff]
    %v165 = vld [vmem:[#allocation4 + $0x2e8] sm:$0xff]
    %v166 = vld [vmem:[#allocation4 + $0x2f0] sm:$0xff]
    %v167 = vld [vmem:[#allocation4 + $0x2f8] sm:$0xff]
    %v168 = vld [vmem:[#allocation4 + $0x300] sm:$0xff]
    %v169 = vld [vmem:[#allocation4 + $0x308] sm:$0xff]
    %v170 = vld [vmem:[#allocation4 + $0x310] sm:$0xff]
    %v171 = vld [vmem:[#allocation4 + $0x318] sm:$0xff]
    %v172 = vld [vmem:[#allocation4 + $0x320] sm:$0xff]
    %v173 = vld [vmem:[#allocation4 + $0x328] sm:$0xff]
    %v174 = vld [vmem:[#allocation4 + $0x330] sm:$0xff]
    %v175 = vld [vmem:[#allocation4 + $0x338] sm:$0xff]
    %v176 = vld [vmem:[#allocation4 + $0x340] sm:$0xff]
    %v177 = vld [vmem:[#allocation4 + $0x348] sm:$0xff]
    %v178 = vld [vmem:[#allocation4 + $0x350] sm:$0xff]
    %v179 = vld [vmem:[#allocation4 + $0x358] sm:$0xff]
    %v180 = vld [vmem:[#allocation4 + $0x360] sm:$0xff]
    %v181 = vld [vmem:[#allocation4 + $0x368] sm:$0xff]
    %v182 = vld [vmem:[#allocation4 + $0x370] sm:$0xff]
    %v183 = vld [vmem:[#allocation4 + $0x378] sm:$0xff]
    %v184 = vld [vmem:[#allocation4 + $0x380] sm:$0xff]
    %v185 = vld [vmem:[#allocation4 + $0x388] sm:$0xff]
    %v186 = vld [vmem:[#allocation4 + $0x390] sm:$0xff]
    %v187 = vld [vmem:[#allocation4 + $0x398] sm:$0xff]
    %v188 = vld [vmem:[#allocation4 + $0x3a0] sm:$0xff]
    %v189 = vld [vmem:[#allocation4 + $0x3a8] sm:$0xff]
    %v190 = vld [vmem:[#allocation4 + $0x3b0] sm:$0xff]
    %v191 = vld [vmem:[#allocation4 + $0x3b8] sm:$0xff]
    %v196 = vunpack.c.l.b16 %v68
    %v197 = vunpack.c.h.b16 %v68
    %v198 = vunpack.c.l.b16 %v69
    %v199 = vunpack.c.h.b16 %v69
    %v200 = vunpack.c.l.b16 %v70
    %v201 = vunpack.c.h.b16 %v70
    %v202 = vunpack.c.l.b16 %v71
    %v203 = vunpack.c.h.b16 %v71
    %v204 = vpack.c.b16 %v200, %v196
    %v205 = vpack.c.b16 %v201, %v197
    %v206 = vpack.c.b16 %v202, %v198
    %v207 = vpack.c.b16 %v203, %v199
    %v331 = vunpack.c.l.b16 %v72
    %v332 = vunpack.c.h.b16 %v72
    %v333 = vunpack.c.l.b16 %v73
    %v334 = vunpack.c.h.b16 %v73
    %v335 = vunpack.c.l.b16 %v74
    %v336 = vunpack.c.h.b16 %v74
    %v337 = vunpack.c.l.b16 %v75
    %v338 = vunpack.c.h.b16 %v75
    %v339 = vunpack.c.l.b16 %v76
    %v340 = vunpack.c.h.b16 %v76
    %v341 = vunpack.c.l.b16 %v77
    %v342 = vunpack.c.h.b16 %v77
    %v343 = vunpack.c.l.b16 %v78
    %v344 = vunpack.c.h.b16 %v78
    %v345 = vunpack.c.l.b16 %v79
    %v346 = vunpack.c.h.b16 %v79
    %v347 = vunpack.c.l.b16 %v80
    %v348 = vunpack.c.h.b16 %v80
    %v349 = vunpack.c.l.b16 %v81
    %v350 = vunpack.c.h.b16 %v81
    %v351 = vunpack.c.l.b16 %v82
    %v352 = vunpack.c.h.b16 %v82
    %v353 = vunpack.c.l.b16 %v83
    %v354 = vunpack.c.h.b16 %v83
    %v355 = vunpack.c.l.b16 %v84
    %v356 = vunpack.c.h.b16 %v84
    %v357 = vunpack.c.l.b16 %v85
    %v358 = vunpack.c.h.b16 %v85
    %v359 = vunpack.c.l.b16 %v86
    %v360 = vunpack.c.h.b16 %v86
    %v361 = vunpack.c.l.b16 %v87
    %v362 = vunpack.c.h.b16 %v87
    %v363 = vunpack.c.l.b16 %v88
    %v364 = vunpack.c.h.b16 %v88
    %v365 = vunpack.c.l.b16 %v89
    %v366 = vunpack.c.h.b16 %v89
    %v367 = vunpack.c.l.b16 %v90
    %v368 = vunpack.c.h.b16 %v90
    %v369 = vunpack.c.l.b16 %v91
    %v370 = vunpack.c.h.b16 %v91
    %v371 = vunpack.c.l.b16 %v92
    %v372 = vunpack.c.h.b16 %v92
    %v373 = vunpack.c.l.b16 %v93
    %v374 = vunpack.c.h.b16 %v93
    %v375 = vunpack.c.l.b16 %v94
    %v376 = vunpack.c.h.b16 %v94
    %v377 = vunpack.c.l.b16 %v95
    %v378 = vunpack.c.h.b16 %v95
    %v379 = vunpack.c.l.b16 %v96
    %v380 = vunpack.c.h.b16 %v96
    %v381 = vunpack.c.l.b16 %v97
    %v382 = vunpack.c.h.b16 %v97
    %v383 = vunpack.c.l.b16 %v98
    %v384 = vunpack.c.h.b16 %v98
    %v385 = vunpack.c.l.b16 %v99
    %v386 = vunpack.c.h.b16 %v99
    %v387 = vunpack.c.l.b16 %v100
    %v388 = vunpack.c.h.b16 %v100
    %v389 = vunpack.c.l.b16 %v101
    %v390 = vunpack.c.h.b16 %v101
    %v391 = vunpack.c.l.b16 %v102
    %v392 = vunpack.c.h.b16 %v102
    %v393 = vunpack.c.l.b16 %v103
    %v394 = vunpack.c.h.b16 %v103
    %v395 = vunpack.c.l.b16 %v104
    %v396 = vunpack.c.h.b16 %v104
    %v397 = vunpack.c.l.b16 %v105
    %v398 = vunpack.c.h.b16 %v105
    %v399 = vunpack.c.l.b16 %v106
    %v400 = vunpack.c.h.b16 %v106
    %v401 = vunpack.c.l.b16 %v107
    %v402 = vunpack.c.h.b16 %v107
    %v403 = vunpack.c.l.b16 %v108
    %v404 = vunpack.c.h.b16 %v108
    %v405 = vunpack.c.l.b16 %v109
    %v406 = vunpack.c.h.b16 %v109
    %v407 = vunpack.c.l.b16 %v110
    %v408 = vunpack.c.h.b16 %v110
    %v409 = vunpack.c.l.b16 %v111
    %v410 = vunpack.c.h.b16 %v111
    %v411 = vunpack.c.l.b16 %v112
    %v412 = vunpack.c.h.b16 %v112
    %v413 = vunpack.c.l.b16 %v113
    %v414 = vunpack.c.h.b16 %v113
    %v415 = vunpack.c.l.b16 %v114
    %v416 = vunpack.c.h.b16 %v114
    %v417 = vunpack.c.l.b16 %v115
    %v418 = vunpack.c.h.b16 %v115
    %v419 = vunpack.c.l.b16 %v116
    %v420 = vunpack.c.h.b16 %v116
    %v421 = vunpack.c.l.b16 %v117
    %v422 = vunpack.c.h.b16 %v117
    %v423 = vunpack.c.l.b16 %v118
    %v424 = vunpack.c.h.b16 %v118
    %v425 = vunpack.c.l.b16 %v119
    %v426 = vunpack.c.h.b16 %v119
    %v427 = vunpack.c.l.b16 %v120
    %v428 = vunpack.c.h.b16 %v120
    %v429 = vunpack.c.l.b16 %v121
    %v430 = vunpack.c.h.b16 %v121
    %v431 = vunpack.c.l.b16 %v122
    %v432 = vunpack.c.h.b16 %v122
    %v433 = vunpack.c.l.b16 %v123
    %v434 = vunpack.c.h.b16 %v123
    %v435 = vunpack.c.l.b16 %v124
    %v436 = vunpack.c.h.b16 %v124
    %v437 = vunpack.c.l.b16 %v125
    %v438 = vunpack.c.h.b16 %v125
    %v439 = vunpack.c.l.b16 %v126
    %v440 = vunpack.c.h.b16 %v126
    %v441 = vunpack.c.l.b16 %v127
    %v442 = vunpack.c.h.b16 %v127
    %v443 = vunpack.c.l.b16 %v128
    %v444 = vunpack.c.h.b16 %v128
    %v445 = vunpack.c.l.b16 %v129
    %v446 = vunpack.c.h.b16 %v129
    %v447 = vunpack.c.l.b16 %v130
    %v448 = vunpack.c.h.b16 %v130
    %v449 = vunpack.c.l.b16 %v131
    %v450 = vunpack.c.h.b16 %v131
    %v451 = vunpack.c.l.b16 %v132
    %v452 = vunpack.c.h.b16 %v132
    %v453 = vunpack.c.l.b16 %v133
    %v454 = vunpack.c.h.b16 %v133
    %v455 = vunpack.c.l.b16 %v134
    %v456 = vunpack.c.h.b16 %v134
    %v457 = vunpack.c.l.b16 %v135
    %v458 = vunpack.c.h.b16 %v135
    %v459 = vunpack.c.l.b16 %v136
    %v460 = vunpack.c.h.b16 %v136
    %v461 = vunpack.c.l.b16 %v137
    %v462 = vunpack.c.h.b16 %v137
    %v463 = vunpack.c.l.b16 %v138
    %v464 = vunpack.c.h.b16 %v138
    %v465 = vunpack.c.l.b16 %v139
    %v466 = vunpack.c.h.b16 %v139
    %v467 = vunpack.c.l.b16 %v140
    %v468 = vunpack.c.h.b16 %v140
    %v469 = vunpack.c.l.b16 %v141
    %v470 = vunpack.c.h.b16 %v141
    %v471 = vunpack.c.l.b16 %v142
    %v472 = vunpack.c.h.b16 %v142
    %v473 = vunpack.c.l.b16 %v143
    %v474 = vunpack.c.h.b16 %v143
    %v475 = vunpack.c.l.b16 %v144
    %v476 = vunpack.c.h.b16 %v144
    %v477 = vunpack.c.l.b16 %v145
    %v478 = vunpack.c.h.b16 %v145
    %v479 = vunpack.c.l.b16 %v146
    %v480 = vunpack.c.h.b16 %v146
    %v481 = vunpack.c.l.b16 %v147
    %v482 = vunpack.c.h.b16 %v147
    %v483 = vunpack.c.l.b16 %v148
    %v484 = vunpack.c.h.b16 %v148
    %v485 = vunpack.c.l.b16 %v149
    %v486 = vunpack.c.h.b16 %v149
    %v487 = vunpack.c.l.b16 %v150
    %v488 = vunpack.c.h.b16 %v150
    %v489 = vunpack.c.l.b16 %v151
    %v490 = vunpack.c.h.b16 %v151
    %v491 = vunpack.c.l.b16 %v152
    %v492 = vunpack.c.h.b16 %v152
    %v493 = vunpack.c.l.b16 %v153
    %v494 = vunpack.c.h.b16 %v153
    %v495 = vunpack.c.l.b16 %v154
    %v496 = vunpack.c.h.b16 %v154
    %v497 = vunpack.c.l.b16 %v155
    %v498 = vunpack.c.h.b16 %v155
    %v499 = vunpack.c.l.b16 %v156
    %v500 = vunpack.c.h.b16 %v156
    %v501 = vunpack.c.l.b16 %v157
    %v502 = vunpack.c.h.b16 %v157
    %v503 = vunpack.c.l.b16 %v158
    %v504 = vunpack.c.h.b16 %v158
    %v505 = vunpack.c.l.b16 %v159
    %v506 = vunpack.c.h.b16 %v159
    %v507 = vunpack.c.l.b16 %v160
    %v508 = vunpack.c.h.b16 %v160
    %v509 = vunpack.c.l.b16 %v161
    %v510 = vunpack.c.h.b16 %v161
    %v511 = vunpack.c.l.b16 %v162
    %v512 = vunpack.c.h.b16 %v162
    %v513 = vunpack.c.l.b16 %v163
    %v514 = vunpack.c.h.b16 %v163
    %v515 = vunpack.c.l.b16 %v164
    %v516 = vunpack.c.h.b16 %v164
    %v517 = vunpack.c.l.b16 %v165
    %v518 = vunpack.c.h.b16 %v165
    %v519 = vunpack.c.l.b16 %v166
    %v520 = vunpack.c.h.b16 %v166
    %v521 = vunpack.c.l.b16 %v167
    %v522 = vunpack.c.h.b16 %v167
    %v523 = vunpack.c.l.b16 %v168
    %v524 = vunpack.c.h.b16 %v168
    %v525 = vunpack.c.l.b16 %v169
    %v526 = vunpack.c.h.b16 %v169
    %v527 = vunpack.c.l.b16 %v170
    %v528 = vunpack.c.h.b16 %v170
    %v529 = vunpack.c.l.b16 %v171
    %v530 = vunpack.c.h.b16 %v171
    %v531 = vunpack.c.l.b16 %v172
    %v532 = vunpack.c.h.b16 %v172
    %v533 = vunpack.c.l.b16 %v173
    %v534 = vunpack.c.h.b16 %v173
    %v535 = vunpack.c.l.b16 %v174
    %v536 = vunpack.c.h.b16 %v174
    %v537 = vunpack.c.l.b16 %v175
    %v538 = vunpack.c.h.b16 %v175
    %v539 = vunpack.c.l.b16 %v176
    %v540 = vunpack.c.h.b16 %v176
    %v541 = vunpack.c.l.b16 %v177
    %v542 = vunpack.c.h.b16 %v177
    %v543 = vunpack.c.l.b16 %v178
    %v544 = vunpack.c.h.b16 %v178
    %v545 = vunpack.c.l.b16 %v179
    %v546 = vunpack.c.h.b16 %v179
    %v547 = vunpack.c.l.b16 %v180
    %v548 = vunpack.c.h.b16 %v180
    %v549 = vunpack.c.l.b16 %v181
    %v550 = vunpack.c.h.b16 %v181
    %v551 = vunpack.c.l.b16 %v182
    %v552 = vunpack.c.h.b16 %v182
    %v553 = vunpack.c.l.b16 %v183
    %v554 = vunpack.c.h.b16 %v183
    %v555 = vunpack.c.l.b16 %v184
    %v556 = vunpack.c.h.b16 %v184
    %v557 = vunpack.c.l.b16 %v185
    %v558 = vunpack.c.h.b16 %v185
    %v559 = vunpack.c.l.b16 %v186
    %v560 = vunpack.c.h.b16 %v186
    %v561 = vunpack.c.l.b16 %v187
    %v562 = vunpack.c.h.b16 %v187
    %v563 = vunpack.c.l.b16 %v188
    %v564 = vunpack.c.h.b16 %v188
    %v565 = vunpack.c.l.b16 %v189
    %v566 = vunpack.c.h.b16 %v189
    %v567 = vunpack.c.l.b16 %v190
    %v568 = vunpack.c.h.b16 %v190
    %v569 = vunpack.c.l.b16 %v191
    %v570 = vunpack.c.h.b16 %v191
    %v571 = vpack.c.b16 %v335, %v331
    %v572 = vpack.c.b16 %v336, %v332
    %v573 = vpack.c.b16 %v337, %v333
    %v574 = vpack.c.b16 %v338, %v334
    %v575 = vpack.c.b16 %v343, %v339
    %v576 = vpack.c.b16 %v344, %v340
    %v577 = vpack.c.b16 %v345, %v341
    %v578 = vpack.c.b16 %v346, %v342
    %v579 = vpack.c.b16 %v351, %v347
    %v580 = vpack.c.b16 %v352, %v348
    %v581 = vpack.c.b16 %v353, %v349
    %v582 = vpack.c.b16 %v354, %v350
    %v583 = vpack.c.b16 %v359, %v355
    %v584 = vpack.c.b16 %v360, %v356
    %v585 = vpack.c.b16 %v361, %v357
    %v586 = vpack.c.b16 %v362, %v358
    %v587 = vpack.c.b16 %v367, %v363
    %v588 = vpack.c.b16 %v368, %v364
    %v589 = vpack.c.b16 %v369, %v365
    %v590 = vpack.c.b16 %v370, %v366
    %v591 = vpack.c.b16 %v375, %v371
    %v592 = vpack.c.b16 %v376, %v372
    %v593 = vpack.c.b16 %v377, %v373
    %v594 = vpack.c.b16 %v378, %v374
    %v595 = vpack.c.b16 %v383, %v379
    %v596 = vpack.c.b16 %v384, %v380
    %v597 = vpack.c.b16 %v385, %v381
    %v598 = vpack.c.b16 %v386, %v382
    %v599 = vpack.c.b16 %v391, %v387
    %v600 = vpack.c.b16 %v392, %v388
    %v601 = vpack.c.b16 %v393, %v389
    %v602 = vpack.c.b16 %v394, %v390
    %v603 = vpack.c.b16 %v399, %v395
    %v604 = vpack.c.b16 %v400, %v396
    %v605 = vpack.c.b16 %v401, %v397
    %v606 = vpack.c.b16 %v402, %v398
    %v607 = vpack.c.b16 %v407, %v403
    %v608 = vpack.c.b16 %v408, %v404
    %v609 = vpack.c.b16 %v409, %v405
    %v610 = vpack.c.b16 %v410, %v406
    %v611 = vpack.c.b16 %v415, %v411
    %v612 = vpack.c.b16 %v416, %v412
    %v613 = vpack.c.b16 %v417, %v413
    %v614 = vpack.c.b16 %v418, %v414
    %v615 = vpack.c.b16 %v423, %v419
    %v616 = vpack.c.b16 %v424, %v420
    %v617 = vpack.c.b16 %v425, %v421
    %v618 = vpack.c.b16 %v426, %v422
    %v619 = vpack.c.b16 %v431, %v427
    %v620 = vpack.c.b16 %v432, %v428
    %v621 = vpack.c.b16 %v433, %v429
    %v622 = vpack.c.b16 %v434, %v430
    %v623 = vpack.c.b16 %v439, %v435
    %v624 = vpack.c.b16 %v440, %v436
    %v625 = vpack.c.b16 %v441, %v437
    %v626 = vpack.c.b16 %v442, %v438
    %v627 = vpack.c.b16 %v447, %v443
    %v628 = vpack.c.b16 %v448, %v444
    %v629 = vpack.c.b16 %v449, %v445
    %v630 = vpack.c.b16 %v450, %v446
    %v631 = vpack.c.b16 %v455, %v451
    %v632 = vpack.c.b16 %v456, %v452
    %v633 = vpack.c.b16 %v457, %v453
    %v634 = vpack.c.b16 %v458, %v454
    %v635 = vpack.c.b16 %v463, %v459
    %v636 = vpack.c.b16 %v464, %v460
    %v637 = vpack.c.b16 %v465, %v461
    %v638 = vpack.c.b16 %v466, %v462
    %v639 = vpack.c.b16 %v471, %v467
    %v640 = vpack.c.b16 %v472, %v468
    %v641 = vpack.c.b16 %v473, %v469
    %v642 = vpack.c.b16 %v474, %v470
    %v643 = vpack.c.b16 %v479, %v475
    %v644 = vpack.c.b16 %v480, %v476
    %v645 = vpack.c.b16 %v481, %v477
    %v646 = vpack.c.b16 %v482, %v478
    %v647 = vpack.c.b16 %v487, %v483
    %v648 = vpack.c.b16 %v488, %v484
    %v649 = vpack.c.b16 %v489, %v485
    %v650 = vpack.c.b16 %v490, %v486
    %v651 = vpack.c.b16 %v495, %v491
    %v652 = vpack.c.b16 %v496, %v492
    %v653 = vpack.c.b16 %v497, %v493
    %v654 = vpack.c.b16 %v498, %v494
    %v655 = vpack.c.b16 %v503, %v499
    %v656 = vpack.c.b16 %v504, %v500
    %v657 = vpack.c.b16 %v505, %v501
    %v658 = vpack.c.b16 %v506, %v502
    %v659 = vpack.c.b16 %v511, %v507
    %v660 = vpack.c.b16 %v512, %v508
    %v661 = vpack.c.b16 %v513, %v509
    %v662 = vpack.c.b16 %v514, %v510
    %v663 = vpack.c.b16 %v519, %v515
    %v664 = vpack.c.b16 %v520, %v516
    %v665 = vpack.c.b16 %v521, %v517
    %v666 = vpack.c.b16 %v522, %v518
    %v667 = vpack.c.b16 %v527, %v523
    %v668 = vpack.c.b16 %v528, %v524
    %v669 = vpack.c.b16 %v529, %v525
    %v670 = vpack.c.b16 %v530, %v526
    %v671 = vpack.c.b16 %v535, %v531
    %v672 = vpack.c.b16 %v536, %v532
    %v673 = vpack.c.b16 %v537, %v533
    %v674 = vpack.c.b16 %v538, %v534
    %v675 = vpack.c.b16 %v543, %v539
    %v676 = vpack.c.b16 %v544, %v540
    %v677 = vpack.c.b16 %v545, %v541
    %v678 = vpack.c.b16 %v546, %v542
    %v679 = vpack.c.b16 %v551, %v547
    %v680 = vpack.c.b16 %v552, %v548
    %v681 = vpack.c.b16 %v553, %v549
    %v682 = vpack.c.b16 %v554, %v550
    %v683 = vpack.c.b16 %v559, %v555
    %v684 = vpack.c.b16 %v560, %v556
    %v685 = vpack.c.b16 %v561, %v557
    %v686 = vpack.c.b16 %v562, %v558
    %v687 = vpack.c.b16 %v567, %v563
    %v688 = vpack.c.b16 %v568, %v564
    %v689 = vpack.c.b16 %v569, %v565
    %v690 = vpack.c.b16 %v570, %v566
    %vm811 = vcmask 785408
    %v813 = vsel %vm811, %v207, 0
    %815 = vmatprep.subr.bf16.mxu0 %v572
    %816 = vmatpush1.bf16.msra.mxu0 %v571
    %817 = vmatprep.subr.bf16.mxu0 %v576
    %818 = vmatpush1.bf16.msra.mxu0 %v575
    %819 = vmatprep.subr.bf16.mxu0 %v580
    %820 = vmatpush1.bf16.msra.mxu0 %v579
    %821 = vmatprep.subr.bf16.mxu0 %v584
    %822 = vmatpush1.bf16.msra.mxu0 %v583
    %823 = vmatprep.subr.bf16.mxu0 %v588
    %824 = vmatpush1.bf16.msra.mxu0 %v587
    %825 = vmatprep.subr.bf16.mxu0 %v592
    %826 = vmatpush1.bf16.msra.mxu0 %v591
    %827 = vmatprep.subr.bf16.mxu0 %v596
    %828 = vmatpush1.bf16.msra.mxu0 %v595
    %829 = vmatprep.subr.bf16.mxu0 %v600
    %830 = vmatpush1.bf16.msra.mxu0 %v599
    %831 = vmatprep.subr.bf16.mxu0 %v604
    %832 = vmatpush1.bf16.msra.mxu0 %v603
    %833 = vmatprep.subr.bf16.mxu0 %v608
    %834 = vmatpush1.bf16.msra.mxu0 %v607
    %835 = vmatprep.subr.bf16.mxu0 %v612
    %836 = vmatpush1.bf16.msra.mxu0 %v611
    %837 = vmatprep.subr.bf16.mxu0 %v616
    %838 = vmatpush1.bf16.msra.mxu0 %v615
    %839 = vmatprep.subr.bf16.mxu0 %v620
    %840 = vmatpush1.bf16.msra.mxu0 %v619
    %841 = vmatprep.subr.bf16.mxu0 %v624
    %842 = vmatpush1.bf16.msra.mxu0 %v623
    %843 = vmatprep.subr.bf16.mxu0 %v628
    %844 = vmatpush1.bf16.msra.mxu0 %v627
    %845 = vmatprep.subr.bf16.mxu0 %v632
    %846 = vmatpush1.bf16.msra.mxu0 %v631
    %847 = vmatprep.mubr.bf16.mxu0 %v205
    %848 = vmatmul.mubr.bf16.gmra.mrb[0].mxu0 %v204
    %v849 = vpop.f32.mrb[0].mxu0
    %v850 = vadd.f32 0.0, %v849
    %v851 = vpop.f32.mrb[0].mxu0
    %v852 = vadd.f32 0.0, %v851
    %v853 = vpop.f32.mrb[0].mxu0
    %v854 = vadd.f32 0.0, %v853
    %v855 = vpop.f32.mrb[0].mxu0
    %v856 = vadd.f32 0.0, %v855
    %857 = vdwg.mxu0
    %858 = vmatprep.subr.bf16.mxu0 %v636
    %859 = vmatpush1.bf16.msra.mxu0 %v635
    %860 = vmatprep.subr.bf16.mxu0 %v640
    %861 = vmatpush1.bf16.msra.mxu0 %v639
    %862 = vmatprep.subr.bf16.mxu0 %v644
    %863 = vmatpush1.bf16.msra.mxu0 %v643
    %864 = vmatprep.subr.bf16.mxu0 %v648
    %865 = vmatpush1.bf16.msra.mxu0 %v647
    %866 = vmatprep.subr.bf16.mxu0 %v652
    %867 = vmatpush1.bf16.msra.mxu0 %v651
    %868 = vmatprep.subr.bf16.mxu0 %v656
    %869 = vmatpush1.bf16.msra.mxu0 %v655
    %870 = vmatprep.subr.bf16.mxu0 %v660
    %871 = vmatpush1.bf16.msra.mxu0 %v659
    %872 = vmatprep.subr.bf16.mxu0 %v664
    %873 = vmatpush1.bf16.msra.mxu0 %v663
    %874 = vmatprep.subr.bf16.mxu0 %v668
    %875 = vmatpush1.bf16.msra.mxu0 %v667
    %876 = vmatprep.subr.bf16.mxu0 %v672
    %877 = vmatpush1.bf16.msra.mxu0 %v671
    %878 = vmatprep.subr.bf16.mxu0 %v676
    %879 = vmatpush1.bf16.msra.mxu0 %v675
    %880 = vmatprep.subr.bf16.mxu0 %v680
    %881 = vmatpush1.bf16.msra.mxu0 %v679
    %882 = vmatprep.subr.bf16.mxu0 %v684
    %883 = vmatpush1.bf16.msra.mxu0 %v683
    %884 = vmatprep.subr.bf16.mxu0 %v688
    %885 = vmatpush1.bf16.msra.mxu0 %v687
    %886 = vmatprep.subr.bf16.mxu0 0
    %887 = vmatpush1.bf16.msra.mxu0 0
    %888 = vmatprep.subr.bf16.mxu0 0
    %889 = vmatpush1.bf16.msra.mxu0 0
    %890 = vmatprep.mubr.bf16.mxu0 %v813
    %891 = vmatmul.mubr.bf16.gmra.mrb[0].mxu0 %v206
    %v892 = vpop.f32.mrb[0].mxu0
    %v893 = vadd.f32 %v850, %v892
    %v894 = vpop.f32.mrb[0].mxu0
    %v895 = vadd.f32 %v852, %v894
    %v896 = vpop.f32.mrb[0].mxu0
    %v897 = vadd.f32 %v854, %v896
    %v898 = vpop.f32.mrb[0].mxu0
    %v899 = vadd.f32 %v856, %v898
    %900 = vdwg.mxu0
    %901 = vmatprep.subr.bf16.mxu0 %v574
    %902 = vmatpush1.bf16.msra.mxu0 %v573
    %903 = vmatprep.subr.bf16.mxu0 %v578
    %904 = vmatpush1.bf16.msra.mxu0 %v577
    %905 = vmatprep.subr.bf16.mxu0 %v582
    %906 = vmatpush1.bf16.msra.mxu0 %v581
    %907 = vmatprep.subr.bf16.mxu0 %v586
    %908 = vmatpush1.bf16.msra.mxu0 %v585
    %909 = vmatprep.subr.bf16.mxu0 %v590
    %910 = vmatpush1.bf16.msra.mxu0 %v589
    %911 = vmatprep.subr.bf16.mxu0 %v594
    %912 = vmatpush1.bf16.msra.mxu0 %v593
    %913 = vmatprep.subr.bf16.mxu0 %v598
    %914 = vmatpush1.bf16.msra.mxu0 %v597
    %915 = vmatprep.subr.bf16.mxu0 %v602
    %916 = vmatpush1.bf16.msra.mxu0 %v601
    %917 = vmatprep.subr.bf16.mxu0 %v606
    %918 = vmatpush1.bf16.msra.mxu0 %v605
    %919 = vmatprep.subr.bf16.mxu0 %v610
    %920 = vmatpush1.bf16.msra.mxu0 %v609
    %921 = vmatprep.subr.bf16.mxu0 %v614
    %922 = vmatpush1.bf16.msra.mxu0 %v613
    %923 = vmatprep.subr.bf16.mxu0 %v618
    %924 = vmatpush1.bf16.msra.mxu0 %v617
    %925 = vmatprep.subr.bf16.mxu0 %v622
    %926 = vmatpush1.bf16.msra.mxu0 %v621
    %927 = vmatprep.subr.bf16.mxu0 %v626
    %928 = vmatpush1.bf16.msra.mxu0 %v625
    %929 = vmatprep.subr.bf16.mxu0 %v630
    %930 = vmatpush1.bf16.msra.mxu0 %v629
    %931 = vmatprep.subr.bf16.mxu0 %v634
    %932 = vmatpush1.bf16.msra.mxu0 %v633
    %933 = vmatprep.mubr.bf16.mxu0 %v205
    %934 = vmatmul.mubr.bf16.gmra.mrb[0].mxu0 %v204
    %v935 = vpop.f32.mrb[0].mxu0
    %v936 = vadd.f32 0.0, %v935
    %v937 = vpop.f32.mrb[0].mxu0
    %v938 = vadd.f32 0.0, %v937
    %v939 = vpop.f32.mrb[0].mxu0
    %v940 = vadd.f32 0.0, %v939
    %v941 = vpop.f32.mrb[0].mxu0
    %v942 = vadd.f32 0.0, %v941
    %943 = vdwg.mxu0
    %944 = vmatprep.subr.bf16.mxu0 %v638
    %945 = vmatpush1.bf16.msra.mxu0 %v637
    %946 = vmatprep.subr.bf16.mxu0 %v642
    %947 = vmatpush1.bf16.msra.mxu0 %v641
    %948 = vmatprep.subr.bf16.mxu0 %v646
    %949 = vmatpush1.bf16.msra.mxu0 %v645
    %950 = vmatprep.subr.bf16.mxu0 %v650
    %951 = vmatpush1.bf16.msra.mxu0 %v649
    %952 = vmatprep.subr.bf16.mxu0 %v654
    %953 = vmatpush1.bf16.msra.mxu0 %v653
    %954 = vmatprep.subr.bf16.mxu0 %v658
    %955 = vmatpush1.bf16.msra.mxu0 %v657
    %956 = vmatprep.subr.bf16.mxu0 %v662
    %957 = vmatpush1.bf16.msra.mxu0 %v661
    %958 = vmatprep.subr.bf16.mxu0 %v666
    %959 = vmatpush1.bf16.msra.mxu0 %v665
    %960 = vmatprep.subr.bf16.mxu0 %v670
    %961 = vmatpush1.bf16.msra.mxu0 %v669
    %962 = vmatprep.subr.bf16.mxu0 %v674
    %963 = vmatpush1.bf16.msra.mxu0 %v673
    %964 = vmatprep.subr.bf16.mxu0 %v678
    %965 = vmatpush1.bf16.msra.mxu0 %v677
    %966 = vmatprep.subr.bf16.mxu0 %v682
    %967 = vmatpush1.bf16.msra.mxu0 %v681
    %968 = vmatprep.subr.bf16.mxu0 %v686
    %969 = vmatpush1.bf16.msra.mxu0 %v685
    %970 = vmatprep.subr.bf16.mxu0 %v690
    %971 = vmatpush1.bf16.msra.mxu0 %v689
    %972 = vmatprep.subr.bf16.mxu0 0
    %973 = vmatpush1.bf16.msra.mxu0 0
    %974 = vmatprep.subr.bf16.mxu0 0
    %975 = vmatpush1.bf16.msra.mxu0 0
    %976 = vmatprep.mubr.bf16.mxu0 %v813
    %977 = vmatmul.mubr.bf16.gmra.mrb[0].mxu0 %v206
    %v978 = vpop.f32.mrb[0].mxu0
    %v979 = vadd.f32 %v936, %v978
    %v980 = vpop.f32.mrb[0].mxu0
    %v981 = vadd.f32 %v938, %v980
    %v982 = vpop.f32.mrb[0].mxu0
    %v983 = vadd.f32 %v940, %v982
    %v984 = vpop.f32.mrb[0].mxu0
    %v985 = vadd.f32 %v942, %v984
    %986 = vdwg.mxu0
    %v987 = vmax.f32 %v893, %v979
    %v988 = vmax.f32 %v895, %v981
    %v989 = vmax.f32 %v897, %v983
    %v990 = vmax.f32 %v899, %v985
    %s991 = scalar_lea.vmem %s0, 32
    %v992 = vld [vmem:[%s991] sm:$0xff]
    %v993 = vld [vmem:[%s991 + $0x8] sm:$0xff]
    %v994 = vld [vmem:[%s991 + $0x10] sm:$0x77]
    %v995 = vld [vmem:[%s991 + $0x18] sm:$0x77]
    %v1000 = vunpack.c.l.b16 %v992
    %v1001 = vunpack.c.h.b16 %v992
    %v1002 = vunpack.c.l.b16 %v993
    %v1003 = vunpack.c.h.b16 %v993
    %v1004 = vunpack.c.l.b16 %v994
    %v1005 = vunpack.c.h.b16 %v994
    %v1006 = vunpack.c.l.b16 %v995
    %v1007 = vunpack.c.h.b16 %v995
    %v1008 = vpack.c.b16 %v1004, %v1000
    %v1009 = vpack.c.b16 %v1005, %v1001
    %v1010 = vpack.c.b16 %v1006, %v1002
    %v1011 = vpack.c.b16 %v1007, %v1003
    %v1016 = vsel %vm811, %v1011, 0
    %1018 = vmatprep.subr.bf16.mxu0 %v572
    %1019 = vmatpush1.bf16.msra.mxu0 %v571
    %1020 = vmatprep.subr.bf16.mxu0 %v576
    %1021 = vmatpush1.bf16.msra.mxu0 %v575
    %1022 = vmatprep.subr.bf16.mxu0 %v580
    %1023 = vmatpush1.bf16.msra.mxu0 %v579
    %1024 = vmatprep.subr.bf16.mxu0 %v584
    %1025 = vmatpush1.bf16.msra.mxu0 %v583
    %1026 = vmatprep.subr.bf16.mxu0 %v588
    %1027 = vmatpush1.bf16.msra.mxu0 %v587
    %1028 = vmatprep.subr.bf16.mxu0 %v592
    %1029 = vmatpush1.bf16.msra.mxu0 %v591
    %1030 = vmatprep.subr.bf16.mxu0 %v596
    %1031 = vmatpush1.bf16.msra.mxu0 %v595
    %1032 = vmatprep.subr.bf16.mxu0 %v600
    %1033 = vmatpush1.bf16.msra.mxu0 %v599
    %1034 = vmatprep.subr.bf16.mxu0 %v604
    %1035 = vmatpush1.bf16.msra.mxu0 %v603
    %1036 = vmatprep.subr.bf16.mxu0 %v608
    %1037 = vmatpush1.bf16.msra.mxu0 %v607
    %1038 = vmatprep.subr.bf16.mxu0 %v612
    %1039 = vmatpush1.bf16.msra.mxu0 %v611
    %1040 = vmatprep.subr.bf16.mxu0 %v616
    %1041 = vmatpush1.bf16.msra.mxu0 %v615
    %1042 = vmatprep.subr.bf16.mxu0 %v620
    %1043 = vmatpush1.bf16.msra.mxu0 %v619
    %1044 = vmatprep.subr.bf16.mxu0 %v624
    %1045 = vmatpush1.bf16.msra.mxu0 %v623
    %1046 = vmatprep.subr.bf16.mxu0 %v628
    %1047 = vmatpush1.bf16.msra.mxu0 %v627
    %1048 = vmatprep.subr.bf16.mxu0 %v632
    %1049 = vmatpush1.bf16.msra.mxu0 %v631
    %1050 = vmatprep.mubr.bf16.mxu0 %v1009
    %1051 = vmatmul.mubr.bf16.gmra.mrb[0].mxu0 %v1008
    %v1052 = vpop.f32.mrb[0].mxu0
    %v1053 = vadd.f32 0.0, %v1052
    %v1054 = vpop.f32.mrb[0].mxu0
    %v1055 = vadd.f32 0.0, %v1054
    %v1056 = vpop.f32.mrb[0].mxu0
    %v1057 = vadd.f32 0.0, %v1056
    %v1058 = vpop.f32.mrb[0].mxu0
    %v1059 = vadd.f32 0.0, %v1058
    %1060 = vdwg.mxu0
    %1061 = vmatprep.subr.bf16.mxu0 %v636
    %1062 = vmatpush1.bf16.msra.mxu0 %v635
    %1063 = vmatprep.subr.bf16.mxu0 %v640
    %1064 = vmatpush1.bf16.msra.mxu0 %v639
    %1065 = vmatprep.subr.bf16.mxu0 %v644
    %1066 = vmatpush1.bf16.msra.mxu0 %v643
    %1067 = vmatprep.subr.bf16.mxu0 %v648
    %1068 = vmatpush1.bf16.msra.mxu0 %v647
    %1069 = vmatprep.subr.bf16.mxu0 %v652
    %1070 = vmatpush1.bf16.msra.mxu0 %v651
    %1071 = vmatprep.subr.bf16.mxu0 %v656
    %1072 = vmatpush1.bf16.msra.mxu0 %v655
    %1073 = vmatprep.subr.bf16.mxu0 %v660
    %1074 = vmatpush1.bf16.msra.mxu0 %v659
    %1075 = vmatprep.subr.bf16.mxu0 %v664
    %1076 = vmatpush1.bf16.msra.mxu0 %v663
    %1077 = vmatprep.subr.bf16.mxu0 %v668
    %1078 = vmatpush1.bf16.msra.mxu0 %v667
    %1079 = vmatprep.subr.bf16.mxu0 %v672
    %1080 = vmatpush1.bf16.msra.mxu0 %v671
    %1081 = vmatprep.subr.bf16.mxu0 %v676
    %1082 = vmatpush1.bf16.msra.mxu0 %v675
    %1083 = vmatprep.subr.bf16.mxu0 %v680
    %1084 = vmatpush1.bf16.msra.mxu0 %v679
    %1085 = vmatprep.subr.bf16.mxu0 %v684
    %1086 = vmatpush1.bf16.msra.mxu0 %v683
    %1087 = vmatprep.subr.bf16.mxu0 %v688
    %1088 = vmatpush1.bf16.msra.mxu0 %v687
    %1089 = vmatprep.subr.bf16.mxu0 0
    %1090 = vmatpush1.bf16.msra.mxu0 0
    %1091 = vmatprep.subr.bf16.mxu0 0
    %1092 = vmatpush1.bf16.msra.mxu0 0
    %1093 = vmatprep.mubr.bf16.mxu0 %v1016
    %1094 = vmatmul.mubr.bf16.gmra.mrb[0].mxu0 %v1010
    %v1095 = vpop.f32.mrb[0].mxu0
    %v1096 = vadd.f32 %v1053, %v1095
    %v1097 = vpop.f32.mrb[0].mxu0
    %v1098 = vadd.f32 %v1055, %v1097
    %v1099 = vpop.f32.mrb[0].mxu0
    %v1100 = vadd.f32 %v1057, %v1099
    %v1101 = vpop.f32.mrb[0].mxu0
    %v1102 = vadd.f32 %v1059, %v1101
    %1103 = vdwg.mxu0
    %1104 = vmatprep.subr.bf16.mxu0 %v574
    %1105 = vmatpush1.bf16.msra.mxu0 %v573
    %1106 = vmatprep.subr.bf16.mxu0 %v578
    %1107 = vmatpush1.bf16.msra.mxu0 %v577
    %1108 = vmatprep.subr.bf16.mxu0 %v582
    %1109 = vmatpush1.bf16.msra.mxu0 %v581
    %1110 = vmatprep.subr.bf16.mxu0 %v586
    %1111 = vmatpush1.bf16.msra.mxu0 %v585
    %1112 = vmatprep.subr.bf16.mxu0 %v590
    %1113 = vmatpush1.bf16.msra.mxu0 %v589
    %1114 = vmatprep.subr.bf16.mxu0 %v594
    %1115 = vmatpush1.bf16.msra.mxu0 %v593
    %1116 = vmatprep.subr.bf16.mxu0 %v598
    %1117 = vmatpush1.bf16.msra.mxu0 %v597
    %1118 = vmatprep.subr.bf16.mxu0 %v602
    %1119 = vmatpush1.bf16.msra.mxu0 %v601
    %1120 = vmatprep.subr.bf16.mxu0 %v606
    %1121 = vmatpush1.bf16.msra.mxu0 %v605
    %1122 = vmatprep.subr.bf16.mxu0 %v610
    %1123 = vmatpush1.bf16.msra.mxu0 %v609
    %1124 = vmatprep.subr.bf16.mxu0 %v614
    %1125 = vmatpush1.bf16.msra.mxu0 %v613
    %1126 = vmatprep.subr.bf16.mxu0 %v618
    %1127 = vmatpush1.bf16.msra.mxu0 %v617
    %1128 = vmatprep.subr.bf16.mxu0 %v622
    %1129 = vmatpush1.bf16.msra.mxu0 %v621
    %1130 = vmatprep.subr.bf16.mxu0 %v626
    %1131 = vmatpush1.bf16.msra.mxu0 %v625
    %1132 = vmatprep.subr.bf16.mxu0 %v630
    %1133 = vmatpush1.bf16.msra.mxu0 %v629
    %1134 = vmatprep.subr.bf16.mxu0 %v634
    %1135 = vmatpush1.bf16.msra.mxu0 %v633
    %1136 = vmatprep.mubr.bf16.mxu0 %v1009
    %1137 = vmatmul.mubr.bf16.gmra.mrb[0].mxu0 %v1008
    %v1138 = vpop.f32.mrb[0].mxu0
    %v1139 = vadd.f32 0.0, %v1138
    %v1140 = vpop.f32.mrb[0].mxu0
    %v1141 = vadd.f32 0.0, %v1140
    %v1142 = vpop.f32.mrb[0].mxu0
    %v1143 = vadd.f32 0.0, %v1142
    %v1144 = vpop.f32.mrb[0].mxu0
    %v1145 = vadd.f32 0.0, %v1144
    %1146 = vdwg.mxu0
    %1147 = vmatprep.subr.bf16.mxu0 %v638
    %1148 = vmatpush1.bf16.msra.mxu0 %v637
    %1149 = vmatprep.subr.bf16.mxu0 %v642
    %1150 = vmatpush1.bf16.msra.mxu0 %v641
    %1151 = vmatprep.subr.bf16.mxu0 %v646
    %1152 = vmatpush1.bf16.msra.mxu0 %v645
    %1153 = vmatprep.subr.bf16.mxu0 %v650
    %1154 = vmatpush1.bf16.msra.mxu0 %v649
    %1155 = vmatprep.subr.bf16.mxu0 %v654
    %1156 = vmatpush1.bf16.msra.mxu0 %v653
    %1157 = vmatprep.subr.bf16.mxu0 %v658
    %1158 = vmatpush1.bf16.msra.mxu0 %v657
    %1159 = vmatprep.subr.bf16.mxu0 %v662
    %1160 = vmatpush1.bf16.msra.mxu0 %v661
    %1161 = vmatprep.subr.bf16.mxu0 %v666
    %1162 = vmatpush1.bf16.msra.mxu0 %v665
    %1163 = vmatprep.subr.bf16.mxu0 %v670
    %1164 = vmatpush1.bf16.msra.mxu0 %v669
    %1165 = vmatprep.subr.bf16.mxu0 %v674
    %1166 = vmatpush1.bf16.msra.mxu0 %v673
    %1167 = vmatprep.subr.bf16.mxu0 %v678
    %1168 = vmatpush1.bf16.msra.mxu0 %v677
    %1169 = vmatprep.subr.bf16.mxu0 %v682
    %1170 = vmatpush1.bf16.msra.mxu0 %v681
    %1171 = vmatprep.subr.bf16.mxu0 %v686
    %1172 = vmatpush1.bf16.msra.mxu0 %v685
    %1173 = vmatprep.subr.bf16.mxu0 %v690
    %1174 = vmatpush1.bf16.msra.mxu0 %v689
    %1175 = vmatprep.subr.bf16.mxu0 0
    %1176 = vmatpush1.bf16.msra.mxu0 0
    %1177 = vmatprep.subr.bf16.mxu0 0
    %1178 = vmatpush1.bf16.msra.mxu0 0
    %1179 = vmatprep.mubr.bf16.mxu0 %v1016
    %1180 = vmatmul.mubr.bf16.gmra.mrb[0].mxu0 %v1010
    %v1181 = vpop.f32.mrb[0].mxu0
    %v1182 = vadd.f32 %v1139, %v1181
    %v1183 = vpop.f32.mrb[0].mxu0
    %v1184 = vadd.f32 %v1141, %v1183
    %v1185 = vpop.f32.mrb[0].mxu0
    %v1186 = vadd.f32 %v1143, %v1185
    %v1187 = vpop.f32.mrb[0].mxu0
    %v1188 = vadd.f32 %v1145, %v1187
    %1189 = vdwg.mxu0
    %v1190 = vmax.f32 %v1096, %v1182
    %v1191 = vmax.f32 %v1098, %v1184
    %v1192 = vmax.f32 %v1100, %v1186
    %v1193 = vmax.f32 %v1102, %v1188
    %s1194 = scalar_lea.vmem %s0, 64
    %v1195 = vld [vmem:[%s1194] sm:$0xff]
    %v1196 = vld [vmem:[%s1194 + $0x8] sm:$0xff]
    %v1197 = vld [vmem:[%s1194 + $0x10] sm:$0x77]
    %v1198 = vld [vmem:[%s1194 + $0x18] sm:$0x77]
    %v1203 = vunpack.c.l.b16 %v1195
    %v1204 = vunpack.c.h.b16 %v1195
    %v1205 = vunpack.c.l.b16 %v1196
    %v1206 = vunpack.c.h.b16 %v1196
    %v1207 = vunpack.c.l.b16 %v1197
    %v1208 = vunpack.c.h.b16 %v1197
    %v1209 = vunpack.c.l.b16 %v1198
    %v1210 = vunpack.c.h.b16 %v1198
    %v1211 = vpack.c.b16 %v1207, %v1203
    %v1212 = vpack.c.b16 %v1208, %v1204
    %v1213 = vpack.c.b16 %v1209, %v1205
    %v1214 = vpack.c.b16 %v1210, %v1206
    %v1219 = vsel %vm811, %v1214, 0
    %1221 = vmatprep.subr.bf16.mxu0 %v572
    %1222 = vmatpush1.bf16.msra.mxu0 %v571
    %1223 = vmatprep.subr.bf16.mxu0 %v576
    %1224 = vmatpush1.bf16.msra.mxu0 %v575
    %1225 = vmatprep.subr.bf16.mxu0 %v580
    %1226 = vmatpush1.bf16.msra.mxu0 %v579
    %1227 = vmatprep.subr.bf16.mxu0 %v584
    %1228 = vmatpush1.bf16.msra.mxu0 %v583
    %1229 = vmatprep.subr.bf16.mxu0 %v588
    %1230 = vmatpush1.bf16.msra.mxu0 %v587
    %1231 = vmatprep.subr.bf16.mxu0 %v592
    %1232 = vmatpush1.bf16.msra.mxu0 %v591
    %1233 = vmatprep.subr.bf16.mxu0 %v596
    %1234 = vmatpush1.bf16.msra.mxu0 %v595
    %1235 = vmatprep.subr.bf16.mxu0 %v600
    %1236 = vmatpush1.bf16.msra.mxu0 %v599
    %1237 = vmatprep.subr.bf16.mxu0 %v604
    %1238 = vmatpush1.bf16.msra.mxu0 %v603
    %1239 = vmatprep.subr.bf16.mxu0 %v608
    %1240 = vmatpush1.bf16.msra.mxu0 %v607
    %1241 = vmatprep.subr.bf16.mxu0 %v612
    %1242 = vmatpush1.bf16.msra.mxu0 %v611
    %1243 = vmatprep.subr.bf16.mxu0 %v616
    %1244 = vmatpush1.bf16.msra.mxu0 %v615
    %1245 = vmatprep.subr.bf16.mxu0 %v620
    %1246 = vmatpush1.bf16.msra.mxu0 %v619
    %1247 = vmatprep.subr.bf16.mxu0 %v624
    %1248 = vmatpush1.bf16.msra.mxu0 %v623
    %1249 = vmatprep.subr.bf16.mxu0 %v628
    %1250 = vmatpush1.bf16.msra.mxu0 %v627
    %1251 = vmatprep.subr.bf16.mxu0 %v632
    %1252 = vmatpush1.bf16.msra.mxu0 %v631
    %1253 = vmatprep.mubr.bf16.mxu0 %v1212
    %1254 = vmatmul.mubr.bf16.gmra.mrb[0].mxu0 %v1211
    %v1255 = vpop.f32.mrb[0].mxu0
    %v1256 = vadd.f32 0.0, %v1255
    %v1257 = vpop.f32.mrb[0].mxu0
    %v1258 = vadd.f32 0.0, %v1257
    %v1259 = vpop.f32.mrb[0].mxu0
    %v1260 = vadd.f32 0.0, %v1259
    %v1261 = vpop.f32.mrb[0].mxu0
    %v1262 = vadd.f32 0.0, %v1261
    %1263 = vdwg.mxu0
    %1264 = vmatprep.subr.bf16.mxu0 %v636
    %1265 = vmatpush1.bf16.msra.mxu0 %v635
    %1266 = vmatprep.subr.bf16.mxu0 %v640
    %1267 = vmatpush1.bf16.msra.mxu0 %v639
    %1268 = vmatprep.subr.bf16.mxu0 %v644
    %1269 = vmatpush1.bf16.msra.mxu0 %v643
    %1270 = vmatprep.subr.bf16.mxu0 %v648
    %1271 = vmatpush1.bf16.msra.mxu0 %v647
    %1272 = vmatprep.subr.bf16.mxu0 %v652
    %1273 = vmatpush1.bf16.msra.mxu0 %v651
    %1274 = vmatprep.subr.bf16.mxu0 %v656
    %1275 = vmatpush1.bf16.msra.mxu0 %v655
    %1276 = vmatprep.subr.bf16.mxu0 %v660
    %1277 = vmatpush1.bf16.msra.mxu0 %v659
    %1278 = vmatprep.subr.bf16.mxu0 %v664
    %1279 = vmatpush1.bf16.msra.mxu0 %v663
    %1280 = vmatprep.subr.bf16.mxu0 %v668
    %1281 = vmatpush1.bf16.msra.mxu0 %v667
    %1282 = vmatprep.subr.bf16.mxu0 %v672
    %1283 = vmatpush1.bf16.msra.mxu0 %v671
    %1284 = vmatprep.subr.bf16.mxu0 %v676
    %1285 = vmatpush1.bf16.msra.mxu0 %v675
    %1286 = vmatprep.subr.bf16.mxu0 %v680
    %1287 = vmatpush1.bf16.msra.mxu0 %v679
    %1288 = vmatprep.subr.bf16.mxu0 %v684
    %1289 = vmatpush1.bf16.msra.mxu0 %v683
    %1290 = vmatprep.subr.bf16.mxu0 %v688
    %1291 = vmatpush1.bf16.msra.mxu0 %v687
    %1292 = vmatprep.subr.bf16.mxu0 0
    %1293 = vmatpush1.bf16.msra.mxu0 0
    %1294 = vmatprep.subr.bf16.mxu0 0
    %1295 = vmatpush1.bf16.msra.mxu0 0
    %1296 = vmatprep.mubr.bf16.mxu0 %v1219
    %1297 = vmatmul.mubr.bf16.gmra.mrb[0].mxu0 %v1213
    %v1298 = vpop.f32.mrb[0].mxu0
    %v1299 = vadd.f32 %v1256, %v1298
    %v1300 = vpop.f32.mrb[0].mxu0
    %v1301 = vadd.f32 %v1258, %v1300
    %v1302 = vpop.f32.mrb[0].mxu0
    %v1303 = vadd.f32 %v1260, %v1302
    %v1304 = vpop.f32.mrb[0].mxu0
    %v1305 = vadd.f32 %v1262, %v1304
    %1306 = vdwg.mxu0
    %1307 = vmatprep.subr.bf16.mxu0 %v574
    %1308 = vmatpush1.bf16.msra.mxu0 %v573
    %1309 = vmatprep.subr.bf16.mxu0 %v578
    %1310 = vmatpush1.bf16.msra.mxu0 %v577
    %1311 = vmatprep.subr.bf16.mxu0 %v582
    %1312 = vmatpush1.bf16.msra.mxu0 %v581
    %1313 = vmatprep.subr.bf16.mxu0 %v586
    %1314 = vmatpush1.bf16.msra.mxu0 %v585
    %1315 = vmatprep.subr.bf16.mxu0 %v590
    %1316 = vmatpush1.bf16.msra.mxu0 %v589
    %1317 = vmatprep.subr.bf16.mxu0 %v594
    %1318 = vmatpush1.bf16.msra.mxu0 %v593
    %1319 = vmatprep.subr.bf16.mxu0 %v598
    %1320 = vmatpush1.bf16.msra.mxu0 %v597
    %1321 = vmatprep.subr.bf16.mxu0 %v602
    %1322 = vmatpush1.bf16.msra.mxu0 %v601
    %1323 = vmatprep.subr.bf16.mxu0 %v606
    %1324 = vmatpush1.bf16.msra.mxu0 %v605
    %1325 = vmatprep.subr.bf16.mxu0 %v610
    %1326 = vmatpush1.bf16.msra.mxu0 %v609
    %1327 = vmatprep.subr.bf16.mxu0 %v614
    %1328 = vmatpush1.bf16.msra.mxu0 %v613
    %1329 = vmatprep.subr.bf16.mxu0 %v618
    %1330 = vmatpush1.bf16.msra.mxu0 %v617
    %1331 = vmatprep.subr.bf16.mxu0 %v622
    %1332 = vmatpush1.bf16.msra.mxu0 %v621
    %1333 = vmatprep.subr.bf16.mxu0 %v626
    %1334 = vmatpush1.bf16.msra.mxu0 %v625
    %1335 = vmatprep.subr.bf16.mxu0 %v630
    %1336 = vmatpush1.bf16.msra.mxu0 %v629
    %1337 = vmatprep.subr.bf16.mxu0 %v634
    %1338 = vmatpush1.bf16.msra.mxu0 %v633
    %1339 = vmatprep.mubr.bf16.mxu0 %v1212
    %1340 = vmatmul.mubr.bf16.gmra.mrb[0].mxu0 %v1211
    %v1341 = vpop.f32.mrb[0].mxu0
    %v1342 = vadd.f32 0.0, %v1341
    %v1343 = vpop.f32.mrb[0].mxu0
    %v1344 = vadd.f32 0.0, %v1343
    %v1345 = vpop.f32.mrb[0].mxu0
    %v1346 = vadd.f32 0.0, %v1345
    %v1347 = vpop.f32.mrb[0].mxu0
    %v1348 = vadd.f32 0.0, %v1347
    %1349 = vdwg.mxu0
    %1350 = vmatprep.subr.bf16.mxu0 %v638
    %1351 = vmatpush1.bf16.msra.mxu0 %v637
    %1352 = vmatprep.subr.bf16.mxu0 %v642
    %1353 = vmatpush1.bf16.msra.mxu0 %v641
    %1354 = vmatprep.subr.bf16.mxu0 %v646
    %1355 = vmatpush1.bf16.msra.mxu0 %v645
    %1356 = vmatprep.subr.bf16.mxu0 %v650
    %1357 = vmatpush1.bf16.msra.mxu0 %v649
    %1358 = vmatprep.subr.bf16.mxu0 %v654
    %1359 = vmatpush1.bf16.msra.mxu0 %v653
    %1360 = vmatprep.subr.bf16.mxu0 %v658
    %1361 = vmatpush1.bf16.msra.mxu0 %v657
    %1362 = vmatprep.subr.bf16.mxu0 %v662
    %1363 = vmatpush1.bf16.msra.mxu0 %v661
    %1364 = vmatprep.subr.bf16.mxu0 %v666
    %1365 = vmatpush1.bf16.msra.mxu0 %v665
    %1366 = vmatprep.subr.bf16.mxu0 %v670
    %1367 = vmatpush1.bf16.msra.mxu0 %v669
    %1368 = vmatprep.subr.bf16.mxu0 %v674
    %1369 = vmatpush1.bf16.msra.mxu0 %v673
    %1370 = vmatprep.subr.bf16.mxu0 %v678
    %1371 = vmatpush1.bf16.msra.mxu0 %v677
    %1372 = vmatprep.subr.bf16.mxu0 %v682
    %1373 = vmatpush1.bf16.msra.mxu0 %v681
    %1374 = vmatprep.subr.bf16.mxu0 %v686
    %1375 = vmatpush1.bf16.msra.mxu0 %v685
    %1376 = vmatprep.subr.bf16.mxu0 %v690
    %1377 = vmatpush1.bf16.msra.mxu0 %v689
    %1378 = vmatprep.subr.bf16.mxu0 0
    %1379 = vmatpush1.bf16.msra.mxu0 0
    %1380 = vmatprep.subr.bf16.mxu0 0
    %1381 = vmatpush1.bf16.msra.mxu0 0
    %1382 = vmatprep.mubr.bf16.mxu0 %v1219
    %1383 = vmatmul.mubr.bf16.gmra.mrb[0].mxu0 %v1213
    %v1384 = vpop.f32.mrb[0].mxu0
    %v1385 = vadd.f32 %v1342, %v1384
    %v1386 = vpop.f32.mrb[0].mxu0
    %v1387 = vadd.f32 %v1344, %v1386
    %v1388 = vpop.f32.mrb[0].mxu0
    %v1389 = vadd.f32 %v1346, %v1388
    %v1390 = vpop.f32.mrb[0].mxu0
    %v1391 = vadd.f32 %v1348, %v1390
    %1392 = vdwg.mxu0
    %v1393 = vmax.f32 %v1299, %v1385
    %v1394 = vmax.f32 %v1301, %v1387
    %v1395 = vmax.f32 %v1303, %v1389
    %v1396 = vmax.f32 %v1305, %v1391
    %s1397 = scalar_lea.vmem %s0, 96
    %v1398 = vld [vmem:[%s1397] sm:$0xff]
    %v1399 = vld [vmem:[%s1397 + $0x8] sm:$0xff]
    %v1400 = vld [vmem:[%s1397 + $0x10] sm:$0x77]
    %v1401 = vld [vmem:[%s1397 + $0x18] sm:$0x77]
    %v1406 = vunpack.c.l.b16 %v1398
    %v1407 = vunpack.c.h.b16 %v1398
    %v1408 = vunpack.c.l.b16 %v1399
    %v1409 = vunpack.c.h.b16 %v1399
    %v1410 = vunpack.c.l.b16 %v1400
    %v1411 = vunpack.c.h.b16 %v1400
    %v1412 = vunpack.c.l.b16 %v1401
    %v1413 = vunpack.c.h.b16 %v1401
    %v1414 = vpack.c.b16 %v1410, %v1406
    %v1415 = vpack.c.b16 %v1411, %v1407
    %v1416 = vpack.c.b16 %v1412, %v1408
    %v1417 = vpack.c.b16 %v1413, %v1409
    %v1422 = vsel %vm811, %v1417, 0
    %1424 = vmatprep.subr.bf16.mxu0 %v572
    %1425 = vmatpush1.bf16.msra.mxu0 %v571
    %1426 = vmatprep.subr.bf16.mxu0 %v576
    %1427 = vmatpush1.bf16.msra.mxu0 %v575
    %1428 = vmatprep.subr.bf16.mxu0 %v580
    %1429 = vmatpush1.bf16.msra.mxu0 %v579
    %1430 = vmatprep.subr.bf16.mxu0 %v584
    %1431 = vmatpush1.bf16.msra.mxu0 %v583
    %1432 = vmatprep.subr.bf16.mxu0 %v588
    %1433 = vmatpush1.bf16.msra.mxu0 %v587
    %1434 = vmatprep.subr.bf16.mxu0 %v592
    %1435 = vmatpush1.bf16.msra.mxu0 %v591
    %1436 = vmatprep.subr.bf16.mxu0 %v596
    %1437 = vmatpush1.bf16.msra.mxu0 %v595
    %1438 = vmatprep.subr.bf16.mxu0 %v600
    %1439 = vmatpush1.bf16.msra.mxu0 %v599
    %1440 = vmatprep.subr.bf16.mxu0 %v604
    %1441 = vmatpush1.bf16.msra.mxu0 %v603
    %1442 = vmatprep.subr.bf16.mxu0 %v608
    %1443 = vmatpush1.bf16.msra.mxu0 %v607
    %1444 = vmatprep.subr.bf16.mxu0 %v612
    %1445 = vmatpush1.bf16.msra.mxu0 %v611
    %1446 = vmatprep.subr.bf16.mxu0 %v616
    %1447 = vmatpush1.bf16.msra.mxu0 %v615
    %1448 = vmatprep.subr.bf16.mxu0 %v620
    %1449 = vmatpush1.bf16.msra.mxu0 %v619
    %1450 = vmatprep.subr.bf16.mxu0 %v624
    %1451 = vmatpush1.bf16.msra.mxu0 %v623
    %1452 = vmatprep.subr.bf16.mxu0 %v628
    %1453 = vmatpush1.bf16.msra.mxu0 %v627
    %1454 = vmatprep.subr.bf16.mxu0 %v632
    %1455 = vmatpush1.bf16.msra.mxu0 %v631
    %1456 = vmatprep.mubr.bf16.mxu0 %v1415
    %1457 = vmatmul.mubr.bf16.gmra.mrb[0].mxu0 %v1414
    %v1458 = vpop.f32.mrb[0].mxu0
    %v1459 = vadd.f32 0.0, %v1458
    %v1460 = vpop.f32.mrb[0].mxu0
    %v1461 = vadd.f32 0.0, %v1460
    %v1462 = vpop.f32.mrb[0].mxu0
    %v1463 = vadd.f32 0.0, %v1462
    %v1464 = vpop.f32.mrb[0].mxu0
    %v1465 = vadd.f32 0.0, %v1464
    %1466 = vdwg.mxu0
    %1467 = vmatprep.subr.bf16.mxu0 %v636
    %1468 = vmatpush1.bf16.msra.mxu0 %v635
    %1469 = vmatprep.subr.bf16.mxu0 %v640
    %1470 = vmatpush1.bf16.msra.mxu0 %v639
    %1471 = vmatprep.subr.bf16.mxu0 %v644
    %1472 = vmatpush1.bf16.msra.mxu0 %v643
    %1473 = vmatprep.subr.bf16.mxu0 %v648
    %1474 = vmatpush1.bf16.msra.mxu0 %v647
    %1475 = vmatprep.subr.bf16.mxu0 %v652
    %1476 = vmatpush1.bf16.msra.mxu0 %v651
    %1477 = vmatprep.subr.bf16.mxu0 %v656
    %1478 = vmatpush1.bf16.msra.mxu0 %v655
    %1479 = vmatprep.subr.bf16.mxu0 %v660
    %1480 = vmatpush1.bf16.msra.mxu0 %v659
    %1481 = vmatprep.subr.bf16.mxu0 %v664
    %1482 = vmatpush1.bf16.msra.mxu0 %v663
    %1483 = vmatprep.subr.bf16.mxu0 %v668
    %1484 = vmatpush1.bf16.msra.mxu0 %v667
    %1485 = vmatprep.subr.bf16.mxu0 %v672
    %1486 = vmatpush1.bf16.msra.mxu0 %v671
    %1487 = vmatprep.subr.bf16.mxu0 %v676
    %1488 = vmatpush1.bf16.msra.mxu0 %v675
    %1489 = vmatprep.subr.bf16.mxu0 %v680
    %1490 = vmatpush1.bf16.msra.mxu0 %v679
    %1491 = vmatprep.subr.bf16.mxu0 %v684
    %1492 = vmatpush1.bf16.msra.mxu0 %v683
    %1493 = vmatprep.subr.bf16.mxu0 %v688
    %1494 = vmatpush1.bf16.msra.mxu0 %v687
    %1495 = vmatprep.subr.bf16.mxu0 0
    %1496 = vmatpush1.bf16.msra.mxu0 0
    %1497 = vmatprep.subr.bf16.mxu0 0
    %1498 = vmatpush1.bf16.msra.mxu0 0
    %1499 = vmatprep.mubr.bf16.mxu0 %v1422
    %1500 = vmatmul.mubr.bf16.gmra.mrb[0].mxu0 %v1416
    %v1501 = vpop.f32.mrb[0].mxu0
    %v1502 = vadd.f32 %v1459, %v1501
    %v1503 = vpop.f32.mrb[0].mxu0
    %v1504 = vadd.f32 %v1461, %v1503
    %v1505 = vpop.f32.mrb[0].mxu0
    %v1506 = vadd.f32 %v1463, %v1505
    %v1507 = vpop.f32.mrb[0].mxu0
    %v1508 = vadd.f32 %v1465, %v1507
    %1509 = vdwg.mxu0
    %1510 = vmatprep.subr.bf16.mxu0 %v574
    %1511 = vmatpush1.bf16.msra.mxu0 %v573
    %1512 = vmatprep.subr.bf16.mxu0 %v578
    %1513 = vmatpush1.bf16.msra.mxu0 %v577
    %1514 = vmatprep.subr.bf16.mxu0 %v582
    %1515 = vmatpush1.bf16.msra.mxu0 %v581
    %1516 = vmatprep.subr.bf16.mxu0 %v586
    %1517 = vmatpush1.bf16.msra.mxu0 %v585
    %1518 = vmatprep.subr.bf16.mxu0 %v590
    %1519 = vmatpush1.bf16.msra.mxu0 %v589
    %1520 = vmatprep.subr.bf16.mxu0 %v594
    %1521 = vmatpush1.bf16.msra.mxu0 %v593
    %1522 = vmatprep.subr.bf16.mxu0 %v598
    %1523 = vmatpush1.bf16.msra.mxu0 %v597
    %1524 = vmatprep.subr.bf16.mxu0 %v602
    %1525 = vmatpush1.bf16.msra.mxu0 %v601
    %1526 = vmatprep.subr.bf16.mxu0 %v606
    %1527 = vmatpush1.bf16.msra.mxu0 %v605
    %1528 = vmatprep.subr.bf16.mxu0 %v610
    %1529 = vmatpush1.bf16.msra.mxu0 %v609
    %1530 = vmatprep.subr.bf16.mxu0 %v614
    %1531 = vmatpush1.bf16.msra.mxu0 %v613
    %1532 = vmatprep.subr.bf16.mxu0 %v618
    %1533 = vmatpush1.bf16.msra.mxu0 %v617
    %1534 = vmatprep.subr.bf16.mxu0 %v622
    %1535 = vmatpush1.bf16.msra.mxu0 %v621
    %1536 = vmatprep.subr.bf16.mxu0 %v626
    %1537 = vmatpush1.bf16.msra.mxu0 %v625
    %1538 = vmatprep.subr.bf16.mxu0 %v630
    %1539 = vmatpush1.bf16.msra.mxu0 %v629
    %1540 = vmatprep.subr.bf16.mxu0 %v634
    %1541 = vmatpush1.bf16.msra.mxu0 %v633
    %1542 = vmatprep.mubr.bf16.mxu0 %v1415
    %1543 = vmatmul.mubr.bf16.gmra.mrb[0].mxu0 %v1414
    %v1544 = vpop.f32.mrb[0].mxu0
    %v1545 = vadd.f32 0.0, %v1544
    %v1546 = vpop.f32.mrb[0].mxu0
    %v1547 = vadd.f32 0.0, %v1546
    %v1548 = vpop.f32.mrb[0].mxu0
    %v1549 = vadd.f32 0.0, %v1548
    %v1550 = vpop.f32.mrb[0].mxu0
    %v1551 = vadd.f32 0.0, %v1550
    %1552 = vdwg.mxu0
    %1553 = vmatprep.subr.bf16.mxu0 %v638
    %1554 = vmatpush1.bf16.msra.mxu0 %v637
    %1555 = vmatprep.subr.bf16.mxu0 %v642
    %1556 = vmatpush1.bf16.msra.mxu0 %v641
    %1557 = vmatprep.subr.bf16.mxu0 %v646
    %1558 = vmatpush1.bf16.msra.mxu0 %v645
    %1559 = vmatprep.subr.bf16.mxu0 %v650
    %1560 = vmatpush1.bf16.msra.mxu0 %v649
    %1561 = vmatprep.subr.bf16.mxu0 %v654
    %1562 = vmatpush1.bf16.msra.mxu0 %v653
    %1563 = vmatprep.subr.bf16.mxu0 %v658
    %1564 = vmatpush1.bf16.msra.mxu0 %v657
    %1565 = vmatprep.subr.bf16.mxu0 %v662
    %1566 = vmatpush1.bf16.msra.mxu0 %v661
    %1567 = vmatprep.subr.bf16.mxu0 %v666
    %1568 = vmatpush1.bf16.msra.mxu0 %v665
    %1569 = vmatprep.subr.bf16.mxu0 %v670
    %1570 = vmatpush1.bf16.msra.mxu0 %v669
    %1571 = vmatprep.subr.bf16.mxu0 %v674
    %1572 = vmatpush1.bf16.msra.mxu0 %v673
    %1573 = vmatprep.subr.bf16.mxu0 %v678
    %1574 = vmatpush1.bf16.msra.mxu0 %v677
    %1575 = vmatprep.subr.bf16.mxu0 %v682
    %1576 = vmatpush1.bf16.msra.mxu0 %v681
    %1577 = vmatprep.subr.bf16.mxu0 %v686
    %1578 = vmatpush1.bf16.msra.mxu0 %v685
    %1579 = vmatprep.subr.bf16.mxu0 %v690
    %1580 = vmatpush1.bf16.msra.mxu0 %v689
    %1581 = vmatprep.subr.bf16.mxu0 0
    %1582 = vmatpush1.bf16.msra.mxu0 0
    %1583 = vmatprep.subr.bf16.mxu0 0
    %1584 = vmatpush1.bf16.msra.mxu0 0
    %1585 = vmatprep.mubr.bf16.mxu0 %v1422
    %1586 = vmatmul.mubr.bf16.gmra.mrb[0].mxu0 %v1416
    %v1587 = vpop.f32.mrb[0].mxu0
    %v1588 = vadd.f32 %v1545, %v1587
    %v1589 = vpop.f32.mrb[0].mxu0
    %v1590 = vadd.f32 %v1547, %v1589
    %v1591 = vpop.f32.mrb[0].mxu0
    %v1592 = vadd.f32 %v1549, %v1591
    %v1593 = vpop.f32.mrb[0].mxu0
    %v1594 = vadd.f32 %v1551, %v1593
    %1595 = vdwg.mxu0
    %v1596 = vmax.f32 %v1502, %v1588
    %v1597 = vmax.f32 %v1504, %v1590
    %v1598 = vmax.f32 %v1506, %v1592
    %v1599 = vmax.f32 %v1508, %v1594
    %v1600 = vld [vmem:[%s2] sm:$0x3]
    %v1601 = vmax.f32 %v987, %v1190
    %v1602 = vmax.f32 %v988, %v1191
    %v1603 = vmax.f32 %v989, %v1192
    %v1604 = vmax.f32 %v990, %v1193
    %v1606 = vlaneseq
    %v1607 = vshrl.u32 %v1606, 7
    %v1608 = vsub.s32 0, %v1607
    %v1609 = vrot.slane %v1600, %v1608
    %v1610 = vlaneseq
    %v1611 = vshrl.u32 %v1610, 7
    %v1612 = vsub.s32 1, %v1611
    %v1613 = vrot.slane %v1600, %v1612
    %v1616 = vadd.f32 %v1601, %v1609
    %v1617 = vadd.f32 %v1602, %v1613
    %v1618 = vadd.f32 %v1603, %v1609
    %v1619 = vadd.f32 %v1604, %v1613
    %v1620 = vmax.f32 %v1616, 0.0
    %v1621 = vmax.f32 %v1617, 0.0
    %v1622 = vmax.f32 %v1618, 0.0
    %v1623 = vmax.f32 %v1619, 0.0
    %1624 = vst [vmem:[#allocation2] sm:$0xff] %v1620
    %1625 = vst [vmem:[#allocation2 + $0x8] sm:$0xff] %v1621
    %1626 = vst [vmem:[#allocation2 + $0x10] sm:$0x3f] %v1622
    %1627 = vst [vmem:[#allocation2 + $0x18] sm:$0x3f] %v1623
    %v1628 = vmax.f32 %v1393, %v1596
    %v1629 = vmax.f32 %v1394, %v1597
    %v1630 = vmax.f32 %v1395, %v1598
    %v1631 = vmax.f32 %v1396, %v1599
    %v1632 = vadd.f32 %v1628, %v1609
    %v1633 = vadd.f32 %v1629, %v1613
    %v1634 = vadd.f32 %v1630, %v1609
    %v1635 = vadd.f32 %v1631, %v1613
    %v1636 = vmax.f32 %v1632, 0.0
    %v1637 = vmax.f32 %v1633, 0.0
    %v1638 = vmax.f32 %v1634, 0.0
    %v1639 = vmax.f32 %v1635, 0.0
    %1640 = vst [vmem:[#allocation3] sm:$0xff] %v1636
    %1641 = vst [vmem:[#allocation3 + $0x8] sm:$0xff] %v1637
    %1642 = vst [vmem:[#allocation3 + $0x10] sm:$0x3f] %v1638
    %1643 = vst [vmem:[#allocation3 + $0x18] sm:$0x3f] %v1639
    %v1644 = vld [vmem:[%s4] sm:$0x3]
    %v1645 = vld [vmem:[%s6] sm:$0x1]
    %v1646 = vld [vmem:[%s8] sm:$0x1]
    %v1647 = vld [vmem:[%s10] sm:$0x1]
    %v1648 = vld [vmem:[#allocation2] sm:$0x1f]
    %v1649 = vld [vmem:[#allocation2 + $0x8] sm:$0x1f]
    %v1650 = vpack.c.bf16 %v1648, %v1648
    %v1651 = vpack.c.bf16 %v1649, %v1649
    %v1652 = vld [vmem:[%s3] sm:$0xff]
    %v1653 = vld [vmem:[%s3 + $0x8] sm:$0xff]
    %v1654 = vld [vmem:[%s3 + $0x10] sm:$0xff]
    %v1655 = vld [vmem:[%s3 + $0x18] sm:$0xff]
    %v1656 = vld [vmem:[%s3 + $0x20] sm:$0xff]
    %v1657 = vld [vmem:[%s3 + $0x28] sm:$0xff]
    %v1658 = vld [vmem:[%s3 + $0x30] sm:$0xff]
    %v1659 = vld [vmem:[%s3 + $0x38] sm:$0xff]
    %v1660 = vld [vmem:[%s3 + $0x40] sm:$0xff]
    %v1661 = vld [vmem:[%s3 + $0x48] sm:$0xff]
    %v1662 = vld [vmem:[%s3 + $0x50] sm:$0xff]
    %v1663 = vld [vmem:[%s3 + $0x58] sm:$0xff]
    %v1664 = vld [vmem:[%s3 + $0x60] sm:$0xff]
    %v1665 = vld [vmem:[%s3 + $0x68] sm:$0xff]
    %v1666 = vld [vmem:[%s3 + $0x70] sm:$0xff]
    %v1667 = vld [vmem:[%s3 + $0x78] sm:$0xff]
    %v1668 = vld [vmem:[%s3 + $0x80] sm:$0xff]
    %v1669 = vld [vmem:[%s3 + $0x88] sm:$0xff]
    %v1670 = vld [vmem:[%s3 + $0x90] sm:$0xff]
    %v1671 = vld [vmem:[%s3 + $0x98] sm:$0xff]
    %v1672 = vld [vmem:[%s3 + $0xa0] sm:$0xff]
    %v1673 = vld [vmem:[%s3 + $0xa8] sm:$0xff]
    %v1674 = vld [vmem:[%s3 + $0xb0] sm:$0xff]
    %v1675 = vld [vmem:[%s3 + $0xb8] sm:$0xff]
    %v1676 = vld [vmem:[%s3 + $0xc0] sm:$0xff]
    %v1677 = vld [vmem:[%s3 + $0xc8] sm:$0xff]
    %v1678 = vld [vmem:[%s3 + $0xd0] sm:$0xff]
    %v1679 = vld [vmem:[%s3 + $0xd8] sm:$0xff]
    %v1680 = vld [vmem:[%s3 + $0xe0] sm:$0xff]
    %v1681 = vld [vmem:[%s3 + $0xe8] sm:$0xff]
    %v1682 = vld [vmem:[%s3 + $0xf0] sm:$0xff]
    %v1683 = vld [vmem:[%s3 + $0xf8] sm:$0xff]
    %v1684 = vld [vmem:[%s3 + $0x100] sm:$0xff]
    %v1685 = vld [vmem:[%s3 + $0x108] sm:$0xff]
    %v1686 = vld [vmem:[%s3 + $0x110] sm:$0xff]
    %v1687 = vld [vmem:[%s3 + $0x118] sm:$0xff]
    %v1688 = vld [vmem:[%s3 + $0x120] sm:$0xff]
    %v1689 = vld [vmem:[%s3 + $0x128] sm:$0xff]
    %v1690 = vld [vmem:[%s3 + $0x130] sm:$0xff]
    %v1691 = vld [vmem:[%s3 + $0x138] sm:$0xff]
    %v1692 = vld [vmem:[%s3 + $0x140] sm:$0xff]
    %v1693 = vld [vmem:[%s3 + $0x148] sm:$0xff]
    %v1694 = vld [vmem:[%s3 + $0x150] sm:$0xff]
    %v1695 = vld [vmem:[%s3 + $0x158] sm:$0xff]
    %v1696 = vld [vmem:[%s3 + $0x160] sm:$0xff]
    %v1697 = vld [vmem:[%s3 + $0x168] sm:$0xff]
    %v1698 = vld [vmem:[%s3 + $0x170] sm:$0xff]
    %v1699 = vld [vmem:[%s3 + $0x178] sm:$0xff]
    %v1700 = vld [vmem:[%s3 + $0x180] sm:$0xff]
    %v1701 = vld [vmem:[%s3 + $0x188] sm:$0xff]
    %v1702 = vld [vmem:[%s3 + $0x190] sm:$0xff]
    %v1703 = vld [vmem:[%s3 + $0x198] sm:$0xff]
    %v1704 = vld [vmem:[%s3 + $0x1a0] sm:$0xff]
    %v1705 = vld [vmem:[%s3 + $0x1a8] sm:$0xff]
    %v1706 = vld [vmem:[%s3 + $0x1b0] sm:$0xff]
    %v1707 = vld [vmem:[%s3 + $0x1b8] sm:$0xff]
    %v1708 = vld [vmem:[%s3 + $0x1c0] sm:$0xff]
    %v1709 = vld [vmem:[%s3 + $0x1c8] sm:$0xff]
    %v1710 = vld [vmem:[%s3 + $0x1d0] sm:$0xff]
    %v1711 = vld [vmem:[%s3 + $0x1d8] sm:$0xff]
    %v1712 = vld [vmem:[%s3 + $0x1e0] sm:$0xff]
    %v1713 = vld [vmem:[%s3 + $0x1e8] sm:$0xff]
    %v1714 = vld [vmem:[%s3 + $0x1f0] sm:$0xff]
    %v1715 = vld [vmem:[%s3 + $0x1f8] sm:$0xff]
    %v1716 = vld [vmem:[#allocation3] sm:$0x1f]
    %v1717 = vld [vmem:[#allocation3 + $0x8] sm:$0x1f]
    %v1718 = vpack.c.bf16 %v1716, %v1716
    %v1719 = vpack.c.bf16 %v1717, %v1717
    %s1720 = scalar_lea.vmem %s3, 512
    %v1721 = vld [vmem:[%s1720] sm:$0xff]
    %v1722 = vld [vmem:[%s1720 + $0x8] sm:$0xff]
    %v1723 = vld [vmem:[%s1720 + $0x10] sm:$0xff]
    %v1724 = vld [vmem:[%s1720 + $0x18] sm:$0xff]
    %v1725 = vld [vmem:[%s1720 + $0x20] sm:$0xff]
    %v1726 = vld [vmem:[%s1720 + $0x28] sm:$0xff]
    %v1727 = vld [vmem:[%s1720 + $0x30] sm:$0xff]
    %v1728 = vld [vmem:[%s1720 + $0x38] sm:$0xff]
    %v1729 = vld [vmem:[%s1720 + $0x40] sm:$0xff]
    %v1730 = vld [vmem:[%s1720 + $0x48] sm:$0xff]
    %v1731 = vld [vmem:[%s1720 + $0x50] sm:$0xff]
    %v1732 = vld [vmem:[%s1720 + $0x58] sm:$0xff]
    %v1733 = vld [vmem:[%s1720 + $0x60] sm:$0xff]
    %v1734 = vld [vmem:[%s1720 + $0x68] sm:$0xff]
    %v1735 = vld [vmem:[%s1720 + $0x70] sm:$0xff]
    %v1736 = vld [vmem:[%s1720 + $0x78] sm:$0xff]
    %v1737 = vld [vmem:[%s1720 + $0x80] sm:$0xff]
    %v1738 = vld [vmem:[%s1720 + $0x88] sm:$0xff]
    %v1739 = vld [vmem:[%s1720 + $0x90] sm:$0xff]
    %v1740 = vld [vmem:[%s1720 + $0x98] sm:$0xff]
    %v1741 = vld [vmem:[%s1720 + $0xa0] sm:$0xff]
    %v1742 = vld [vmem:[%s1720 + $0xa8] sm:$0xff]
    %v1743 = vld [vmem:[%s1720 + $0xb0] sm:$0xff]
    %v1744 = vld [vmem:[%s1720 + $0xb8] sm:$0xff]
    %v1745 = vld [vmem:[%s1720 + $0xc0] sm:$0xff]
    %v1746 = vld [vmem:[%s1720 + $0xc8] sm:$0xff]
    %v1747 = vld [vmem:[%s1720 + $0xd0] sm:$0xff]
    %v1748 = vld [vmem:[%s1720 + $0xd8] sm:$0xff]
    %v1749 = vld [vmem:[%s1720 + $0xe0] sm:$0xff]
    %v1750 = vld [vmem:[%s1720 + $0xe8] sm:$0xff]
    %v1751 = vld [vmem:[%s1720 + $0xf0] sm:$0xff]
    %v1752 = vld [vmem:[%s1720 + $0xf8] sm:$0xff]
    %v1753 = vld [vmem:[%s1720 + $0x100] sm:$0xff]
    %v1754 = vld [vmem:[%s1720 + $0x108] sm:$0xff]
    %v1755 = vld [vmem:[%s1720 + $0x110] sm:$0xff]
    %v1756 = vld [vmem:[%s1720 + $0x118] sm:$0xff]
    %v1757 = vld [vmem:[%s1720 + $0x120] sm:$0xff]
    %v1758 = vld [vmem:[%s1720 + $0x128] sm:$0xff]
    %v1759 = vld [vmem:[%s1720 + $0x130] sm:$0xff]
    %v1760 = vld [vmem:[%s1720 + $0x138] sm:$0xff]
    %v1761 = vld [vmem:[%s1720 + $0x140] sm:$0xff]
    %v1762 = vld [vmem:[%s1720 + $0x148] sm:$0xff]
    %v1763 = vld [vmem:[%s1720 + $0x150] sm:$0xff]
    %v1764 = vld [vmem:[%s1720 + $0x158] sm:$0xff]
    %v1765 = vld [vmem:[%s1720 + $0x160] sm:$0xff]
    %v1766 = vld [vmem:[%s1720 + $0x168] sm:$0xff]
    %v1767 = vld [vmem:[%s1720 + $0x170] sm:$0xff]
    %v1768 = vld [vmem:[%s1720 + $0x178] sm:$0xff]
    %v1769 = vld [vmem:[%s1720 + $0x180] sm:$0xff]
    %v1770 = vld [vmem:[%s1720 + $0x188] sm:$0xff]
    %v1771 = vld [vmem:[%s1720 + $0x190] sm:$0xff]
    %v1772 = vld [vmem:[%s1720 + $0x198] sm:$0xff]
    %v1773 = vld [vmem:[%s1720 + $0x1a0] sm:$0xff]
    %v1774 = vld [vmem:[%s1720 + $0x1a8] sm:$0xff]
    %v1775 = vld [vmem:[%s1720 + $0x1b0] sm:$0xff]
    %v1776 = vld [vmem:[%s1720 + $0x1b8] sm:$0xff]
    %v1777 = vld [vmem:[%s1720 + $0x1c0] sm:$0xff]
    %v1778 = vld [vmem:[%s1720 + $0x1c8] sm:$0xff]
    %v1779 = vld [vmem:[%s1720 + $0x1d0] sm:$0xff]
    %v1780 = vld [vmem:[%s1720 + $0x1d8] sm:$0xff]
    %v1781 = vld [vmem:[%s1720 + $0x1e0] sm:$0xff]
    %v1782 = vld [vmem:[%s1720 + $0x1e8] sm:$0xff]
    %v1783 = vld [vmem:[%s1720 + $0x1f0] sm:$0xff]
    %v1784 = vld [vmem:[%s1720 + $0x1f8] sm:$0xff]
    %v1849 = vunpack.c.l.b16 %v1721
    %v1850 = vunpack.c.h.b16 %v1721
    %v1851 = vunpack.c.l.b16 %v1722
    %v1852 = vunpack.c.h.b16 %v1722
    %v1853 = vunpack.c.l.b16 %v1723
    %v1854 = vunpack.c.h.b16 %v1723
    %v1855 = vunpack.c.l.b16 %v1724
    %v1856 = vunpack.c.h.b16 %v1724
    %v1857 = vunpack.c.l.b16 %v1725
    %v1858 = vunpack.c.h.b16 %v1725
    %v1859 = vunpack.c.l.b16 %v1726
    %v1860 = vunpack.c.h.b16 %v1726
    %v1861 = vunpack.c.l.b16 %v1727
    %v1862 = vunpack.c.h.b16 %v1727
    %v1863 = vunpack.c.l.b16 %v1728
    %v1864 = vunpack.c.h.b16 %v1728
    %v1865 = vunpack.c.l.b16 %v1729
    %v1866 = vunpack.c.h.b16 %v1729
    %v1867 = vunpack.c.l.b16 %v1730
    %v1868 = vunpack.c.h.b16 %v1730
    %v1869 = vunpack.c.l.b16 %v1731
    %v1870 = vunpack.c.h.b16 %v1731
    %v1871 = vunpack.c.l.b16 %v1732
    %v1872 = vunpack.c.h.b16 %v1732
    %v1873 = vunpack.c.l.b16 %v1733
    %v1874 = vunpack.c.h.b16 %v1733
    %v1875 = vunpack.c.l.b16 %v1734
    %v1876 = vunpack.c.h.b16 %v1734
    %v1877 = vunpack.c.l.b16 %v1735
    %v1878 = vunpack.c.h.b16 %v1735
    %v1879 = vunpack.c.l.b16 %v1736
    %v1880 = vunpack.c.h.b16 %v1736
    %v1881 = vunpack.c.l.b16 %v1737
    %v1882 = vunpack.c.h.b16 %v1737
    %v1883 = vunpack.c.l.b16 %v1738
    %v1884 = vunpack.c.h.b16 %v1738
    %v1885 = vunpack.c.l.b16 %v1739
    %v1886 = vunpack.c.h.b16 %v1739
    %v1887 = vunpack.c.l.b16 %v1740
    %v1888 = vunpack.c.h.b16 %v1740
    %v1889 = vunpack.c.l.b16 %v1741
    %v1890 = vunpack.c.h.b16 %v1741
    %v1891 = vunpack.c.l.b16 %v1742
    %v1892 = vunpack.c.h.b16 %v1742
    %v1893 = vunpack.c.l.b16 %v1743
    %v1894 = vunpack.c.h.b16 %v1743
    %v1895 = vunpack.c.l.b16 %v1744
    %v1896 = vunpack.c.h.b16 %v1744
    %v1897 = vunpack.c.l.b16 %v1745
    %v1898 = vunpack.c.h.b16 %v1745
    %v1899 = vunpack.c.l.b16 %v1746
    %v1900 = vunpack.c.h.b16 %v1746
    %v1901 = vunpack.c.l.b16 %v1747
    %v1902 = vunpack.c.h.b16 %v1747
    %v1903 = vunpack.c.l.b16 %v1748
    %v1904 = vunpack.c.h.b16 %v1748
    %v1905 = vunpack.c.l.b16 %v1749
    %v1906 = vunpack.c.h.b16 %v1749
    %v1907 = vunpack.c.l.b16 %v1750
    %v1908 = vunpack.c.h.b16 %v1750
    %v1909 = vunpack.c.l.b16 %v1751
    %v1910 = vunpack.c.h.b16 %v1751
    %v1911 = vunpack.c.l.b16 %v1752
    %v1912 = vunpack.c.h.b16 %v1752
    %v1913 = vunpack.c.l.b16 %v1753
    %v1914 = vunpack.c.h.b16 %v1753
    %v1915 = vunpack.c.l.b16 %v1754
    %v1916 = vunpack.c.h.b16 %v1754
    %v1917 = vunpack.c.l.b16 %v1755
    %v1918 = vunpack.c.h.b16 %v1755
    %v1919 = vunpack.c.l.b16 %v1756
    %v1920 = vunpack.c.h.b16 %v1756
    %v1921 = vunpack.c.l.b16 %v1757
    %v1922 = vunpack.c.h.b16 %v1757
    %v1923 = vunpack.c.l.b16 %v1758
    %v1924 = vunpack.c.h.b16 %v1758
    %v1925 = vunpack.c.l.b16 %v1759
    %v1926 = vunpack.c.h.b16 %v1759
    %v1927 = vunpack.c.l.b16 %v1760
    %v1928 = vunpack.c.h.b16 %v1760
    %v1929 = vunpack.c.l.b16 %v1761
    %v1930 = vunpack.c.h.b16 %v1761
    %v1931 = vunpack.c.l.b16 %v1762
    %v1932 = vunpack.c.h.b16 %v1762
    %v1933 = vunpack.c.l.b16 %v1763
    %v1934 = vunpack.c.h.b16 %v1763
    %v1935 = vunpack.c.l.b16 %v1764
    %v1936 = vunpack.c.h.b16 %v1764
    %v1937 = vunpack.c.l.b16 %v1765
    %v1938 = vunpack.c.h.b16 %v1765
    %v1939 = vunpack.c.l.b16 %v1766
    %v1940 = vunpack.c.h.b16 %v1766
    %v1941 = vunpack.c.l.b16 %v1767
    %v1942 = vunpack.c.h.b16 %v1767
    %v1943 = vunpack.c.l.b16 %v1768
    %v1944 = vunpack.c.h.b16 %v1768
    %v1945 = vunpack.c.l.b16 %v1769
    %v1946 = vunpack.c.h.b16 %v1769
    %v1947 = vunpack.c.l.b16 %v1770
    %v1948 = vunpack.c.h.b16 %v1770
    %v1949 = vunpack.c.l.b16 %v1771
    %v1950 = vunpack.c.h.b16 %v1771
    %v1951 = vunpack.c.l.b16 %v1772
    %v1952 = vunpack.c.h.b16 %v1772
    %v1953 = vunpack.c.l.b16 %v1773
    %v1954 = vunpack.c.h.b16 %v1773
    %v1955 = vunpack.c.l.b16 %v1774
    %v1956 = vunpack.c.h.b16 %v1774
    %v1957 = vunpack.c.l.b16 %v1775
    %v1958 = vunpack.c.h.b16 %v1775
    %v1959 = vunpack.c.l.b16 %v1776
    %v1960 = vunpack.c.h.b16 %v1776
    %v1961 = vunpack.c.l.b16 %v1777
    %v1962 = vunpack.c.h.b16 %v1777
    %v1963 = vunpack.c.l.b16 %v1778
    %v1964 = vunpack.c.h.b16 %v1778
    %v1965 = vunpack.c.l.b16 %v1779
    %v1966 = vunpack.c.h.b16 %v1779
    %v1967 = vunpack.c.l.b16 %v1780
    %v1968 = vunpack.c.h.b16 %v1780
    %v1969 = vunpack.c.l.b16 %v1781
    %v1970 = vunpack.c.h.b16 %v1781
    %v1971 = vunpack.c.l.b16 %v1782
    %v1972 = vunpack.c.h.b16 %v1782
    %v1973 = vunpack.c.l.b16 %v1783
    %v1974 = vunpack.c.h.b16 %v1783
    %v1975 = vunpack.c.l.b16 %v1784
    %v1976 = vunpack.c.h.b16 %v1784
    %v1977 = vpack.c.b16 %v1853, %v1849
    %v1978 = vpack.c.b16 %v1854, %v1850
    %v1979 = vpack.c.b16 %v1855, %v1851
    %v1980 = vpack.c.b16 %v1856, %v1852
    %v1981 = vpack.c.b16 %v1861, %v1857
    %v1982 = vpack.c.b16 %v1862, %v1858
    %v1983 = vpack.c.b16 %v1863, %v1859
    %v1984 = vpack.c.b16 %v1864, %v1860
    %v1985 = vpack.c.b16 %v1869, %v1865
    %v1986 = vpack.c.b16 %v1870, %v1866
    %v1987 = vpack.c.b16 %v1871, %v1867
    %v1988 = vpack.c.b16 %v1872, %v1868
    %v1989 = vpack.c.b16 %v1877, %v1873
    %v1990 = vpack.c.b16 %v1878, %v1874
    %v1991 = vpack.c.b16 %v1879, %v1875
    %v1992 = vpack.c.b16 %v1880, %v1876
    %v1993 = vpack.c.b16 %v1885, %v1881
    %v1994 = vpack.c.b16 %v1886, %v1882
    %v1995 = vpack.c.b16 %v1887, %v1883
    %v1996 = vpack.c.b16 %v1888, %v1884
    %v1997 = vpack.c.b16 %v1893, %v1889
    %v1998 = vpack.c.b16 %v1894, %v1890
    %v1999 = vpack.c.b16 %v1895, %v1891
    %v2000 = vpack.c.b16 %v1896, %v1892
    %v2001 = vpack.c.b16 %v1901, %v1897
    %v2002 = vpack.c.b16 %v1902, %v1898
    %v2003 = vpack.c.b16 %v1903, %v1899
    %v2004 = vpack.c.b16 %v1904, %v1900
    %v2005 = vpack.c.b16 %v1909, %v1905
    %v2006 = vpack.c.b16 %v1910, %v1906
    %v2007 = vpack.c.b16 %v1911, %v1907
    %v2008 = vpack.c.b16 %v1912, %v1908
    %v2009 = vpack.c.b16 %v1917, %v1913
    %v2010 = vpack.c.b16 %v1918, %v1914
    %v2011 = vpack.c.b16 %v1919, %v1915
    %v2012 = vpack.c.b16 %v1920, %v1916
    %v2013 = vpack.c.b16 %v1925, %v1921
    %v2014 = vpack.c.b16 %v1926, %v1922
    %v2015 = vpack.c.b16 %v1927, %v1923
    %v2016 = vpack.c.b16 %v1928, %v1924
    %v2017 = vpack.c.b16 %v1933, %v1929
    %v2018 = vpack.c.b16 %v1934, %v1930
    %v2019 = vpack.c.b16 %v1935, %v1931
    %v2020 = vpack.c.b16 %v1936, %v1932
    %v2021 = vpack.c.b16 %v1941, %v1937
    %v2022 = vpack.c.b16 %v1942, %v1938
    %v2023 = vpack.c.b16 %v1943, %v1939
    %v2024 = vpack.c.b16 %v1944, %v1940
    %v2025 = vpack.c.b16 %v1949, %v1945
    %v2026 = vpack.c.b16 %v1950, %v1946
    %v2027 = vpack.c.b16 %v1951, %v1947
    %v2028 = vpack.c.b16 %v1952, %v1948
    %v2029 = vpack.c.b16 %v1957, %v1953
    %v2030 = vpack.c.b16 %v1958, %v1954
    %v2031 = vpack.c.b16 %v1959, %v1955
    %v2032 = vpack.c.b16 %v1960, %v1956
    %v2033 = vpack.c.b16 %v1965, %v1961
    %v2034 = vpack.c.b16 %v1966, %v1962
    %v2035 = vpack.c.b16 %v1967, %v1963
    %v2036 = vpack.c.b16 %v1968, %v1964
    %v2037 = vpack.c.b16 %v1973, %v1969
    %v2038 = vpack.c.b16 %v1974, %v1970
    %v2039 = vpack.c.b16 %v1975, %v1971
    %v2040 = vpack.c.b16 %v1976, %v1972
    %2105 = vmatprep.subr.bf16.mxu0 %v1978
    %2106 = vmatpush1.bf16.msra.mxu0 %v1977
    %2107 = vmatprep.subr.bf16.mxu0 %v1982
    %2108 = vmatpush1.bf16.msra.mxu0 %v1981
    %2109 = vmatprep.subr.bf16.mxu0 %v1986
    %2110 = vmatpush1.bf16.msra.mxu0 %v1985
    %2111 = vmatprep.subr.bf16.mxu0 %v1990
    %2112 = vmatpush1.bf16.msra.mxu0 %v1989
    %2113 = vmatprep.subr.bf16.mxu0 %v1994
    %2114 = vmatpush1.bf16.msra.mxu0 %v1993
    %2115 = vmatprep.subr.bf16.mxu0 %v1998
    %2116 = vmatpush1.bf16.msra.mxu0 %v1997
    %2117 = vmatprep.subr.bf16.mxu0 %v2002
    %2118 = vmatpush1.bf16.msra.mxu0 %v2001
    %2119 = vmatprep.subr.bf16.mxu0 %v2006
    %2120 = vmatpush1.bf16.msra.mxu0 %v2005
    %2121 = vmatprep.subr.bf16.mxu0 %v2010
    %2122 = vmatpush1.bf16.msra.mxu0 %v2009
    %2123 = vmatprep.subr.bf16.mxu0 %v2014
    %2124 = vmatpush1.bf16.msra.mxu0 %v2013
    %2125 = vmatprep.subr.bf16.mxu0 %v2018
    %2126 = vmatpush1.bf16.msra.mxu0 %v2017
    %2127 = vmatprep.subr.bf16.mxu0 %v2022
    %2128 = vmatpush1.bf16.msra.mxu0 %v2021
    %2129 = vmatprep.subr.bf16.mxu0 %v2026
    %2130 = vmatpush1.bf16.msra.mxu0 %v2025
    %2131 = vmatprep.subr.bf16.mxu0 %v2030
    %2132 = vmatpush1.bf16.msra.mxu0 %v2029
    %2133 = vmatprep.subr.bf16.mxu0 %v2034
    %2134 = vmatpush1.bf16.msra.mxu0 %v2033
    %2135 = vmatprep.subr.bf16.mxu0 %v2038
    %2136 = vmatpush1.bf16.msra.mxu0 %v2037
    %2137 = vmatprep.mubr.bf16.mxu0 %v1719
    %2138 = vmatmul.mubr.bf16.gmra.mrb[0].mxu0 %v1718
    %v2139 = vpop.f32.mrb[0].mxu0
    %v2140 = vadd.f32 0.0, %v2139
    %v2141 = vpop.f32.mrb[0].mxu0
    %v2142 = vadd.f32 0.0, %v2141
    %v2143 = vpop.f32.mrb[0].mxu0
    %v2144 = vpop.f32.mrb[0].mxu0
    %2145 = vdwg.mxu0
    %2146 = vmatprep.subr.bf16.mxu0 %v1980
    %2147 = vmatpush1.bf16.msra.mxu0 %v1979
    %2148 = vmatprep.subr.bf16.mxu0 %v1984
    %2149 = vmatpush1.bf16.msra.mxu0 %v1983
    %2150 = vmatprep.subr.bf16.mxu0 %v1988
    %2151 = vmatpush1.bf16.msra.mxu0 %v1987
    %2152 = vmatprep.subr.bf16.mxu0 %v1992
    %2153 = vmatpush1.bf16.msra.mxu0 %v1991
    %2154 = vmatprep.subr.bf16.mxu0 %v1996
    %2155 = vmatpush1.bf16.msra.mxu0 %v1995
    %2156 = vmatprep.subr.bf16.mxu0 %v2000
    %2157 = vmatpush1.bf16.msra.mxu0 %v1999
    %2158 = vmatprep.subr.bf16.mxu0 %v2004
    %2159 = vmatpush1.bf16.msra.mxu0 %v2003
    %2160 = vmatprep.subr.bf16.mxu0 %v2008
    %2161 = vmatpush1.bf16.msra.mxu0 %v2007
    %2162 = vmatprep.subr.bf16.mxu0 %v2012
    %2163 = vmatpush1.bf16.msra.mxu0 %v2011
    %2164 = vmatprep.subr.bf16.mxu0 %v2016
    %2165 = vmatpush1.bf16.msra.mxu0 %v2015
    %2166 = vmatprep.subr.bf16.mxu0 %v2020
    %2167 = vmatpush1.bf16.msra.mxu0 %v2019
    %2168 = vmatprep.subr.bf16.mxu0 %v2024
    %2169 = vmatpush1.bf16.msra.mxu0 %v2023
    %2170 = vmatprep.subr.bf16.mxu0 %v2028
    %2171 = vmatpush1.bf16.msra.mxu0 %v2027
    %2172 = vmatprep.subr.bf16.mxu0 %v2032
    %2173 = vmatpush1.bf16.msra.mxu0 %v2031
    %2174 = vmatprep.subr.bf16.mxu0 %v2036
    %2175 = vmatpush1.bf16.msra.mxu0 %v2035
    %2176 = vmatprep.subr.bf16.mxu0 %v2040
    %2177 = vmatpush1.bf16.msra.mxu0 %v2039
    %2178 = vmatprep.mubr.bf16.mxu0 %v1719
    %2179 = vmatmul.mubr.bf16.gmra.mrb[0].mxu0 %v1718
    %v2180 = vpop.f32.mrb[0].mxu0
    %v2181 = vadd.f32 0.0, %v2180
    %v2182 = vpop.f32.mrb[0].mxu0
    %v2183 = vadd.f32 0.0, %v2182
    %v2184 = vpop.f32.mrb[0].mxu0
    %v2185 = vpop.f32.mrb[0].mxu0
    %2186 = vdwg.mxu0
    %v2251 = vunpack.c.l.b16 %v1652
    %v2252 = vunpack.c.h.b16 %v1652
    %v2253 = vunpack.c.l.b16 %v1653
    %v2254 = vunpack.c.h.b16 %v1653
    %v2255 = vunpack.c.l.b16 %v1654
    %v2256 = vunpack.c.h.b16 %v1654
    %v2257 = vunpack.c.l.b16 %v1655
    %v2258 = vunpack.c.h.b16 %v1655
    %v2259 = vunpack.c.l.b16 %v1656
    %v2260 = vunpack.c.h.b16 %v1656
    %v2261 = vunpack.c.l.b16 %v1657
    %v2262 = vunpack.c.h.b16 %v1657
    %v2263 = vunpack.c.l.b16 %v1658
    %v2264 = vunpack.c.h.b16 %v1658
    %v2265 = vunpack.c.l.b16 %v1659
    %v2266 = vunpack.c.h.b16 %v1659
    %v2267 = vunpack.c.l.b16 %v1660
    %v2268 = vunpack.c.h.b16 %v1660
    %v2269 = vunpack.c.l.b16 %v1661
    %v2270 = vunpack.c.h.b16 %v1661
    %v2271 = vunpack.c.l.b16 %v1662
    %v2272 = vunpack.c.h.b16 %v1662
    %v2273 = vunpack.c.l.b16 %v1663
    %v2274 = vunpack.c.h.b16 %v1663
    %v2275 = vunpack.c.l.b16 %v1664
    %v2276 = vunpack.c.h.b16 %v1664
    %v2277 = vunpack.c.l.b16 %v1665
    %v2278 = vunpack.c.h.b16 %v1665
    %v2279 = vunpack.c.l.b16 %v1666
    %v2280 = vunpack.c.h.b16 %v1666
    %v2281 = vunpack.c.l.b16 %v1667
    %v2282 = vunpack.c.h.b16 %v1667
    %v2283 = vunpack.c.l.b16 %v1668
    %v2284 = vunpack.c.h.b16 %v1668
    %v2285 = vunpack.c.l.b16 %v1669
    %v2286 = vunpack.c.h.b16 %v1669
    %v2287 = vunpack.c.l.b16 %v1670
    %v2288 = vunpack.c.h.b16 %v1670
    %v2289 = vunpack.c.l.b16 %v1671
    %v2290 = vunpack.c.h.b16 %v1671
    %v2291 = vunpack.c.l.b16 %v1672
    %v2292 = vunpack.c.h.b16 %v1672
    %v2293 = vunpack.c.l.b16 %v1673
    %v2294 = vunpack.c.h.b16 %v1673
    %v2295 = vunpack.c.l.b16 %v1674
    %v2296 = vunpack.c.h.b16 %v1674
    %v2297 = vunpack.c.l.b16 %v1675
    %v2298 = vunpack.c.h.b16 %v1675
    %v2299 = vunpack.c.l.b16 %v1676
    %v2300 = vunpack.c.h.b16 %v1676
    %v2301 = vunpack.c.l.b16 %v1677
    %v2302 = vunpack.c.h.b16 %v1677
    %v2303 = vunpack.c.l.b16 %v1678
    %v2304 = vunpack.c.h.b16 %v1678
    %v2305 = vunpack.c.l.b16 %v1679
    %v2306 = vunpack.c.h.b16 %v1679
    %v2307 = vunpack.c.l.b16 %v1680
    %v2308 = vunpack.c.h.b16 %v1680
    %v2309 = vunpack.c.l.b16 %v1681
    %v2310 = vunpack.c.h.b16 %v1681
    %v2311 = vunpack.c.l.b16 %v1682
    %v2312 = vunpack.c.h.b16 %v1682
    %v2313 = vunpack.c.l.b16 %v1683
    %v2314 = vunpack.c.h.b16 %v1683
    %v2315 = vunpack.c.l.b16 %v1684
    %v2316 = vunpack.c.h.b16 %v1684
    %v2317 = vunpack.c.l.b16 %v1685
    %v2318 = vunpack.c.h.b16 %v1685
    %v2319 = vunpack.c.l.b16 %v1686
    %v2320 = vunpack.c.h.b16 %v1686
    %v2321 = vunpack.c.l.b16 %v1687
    %v2322 = vunpack.c.h.b16 %v1687
    %v2323 = vunpack.c.l.b16 %v1688
    %v2324 = vunpack.c.h.b16 %v1688
    %v2325 = vunpack.c.l.b16 %v1689
    %v2326 = vunpack.c.h.b16 %v1689
    %v2327 = vunpack.c.l.b16 %v1690
    %v2328 = vunpack.c.h.b16 %v1690
    %v2329 = vunpack.c.l.b16 %v1691
    %v2330 = vunpack.c.h.b16 %v1691
    %v2331 = vunpack.c.l.b16 %v1692
    %v2332 = vunpack.c.h.b16 %v1692
    %v2333 = vunpack.c.l.b16 %v1693
    %v2334 = vunpack.c.h.b16 %v1693
    %v2335 = vunpack.c.l.b16 %v1694
    %v2336 = vunpack.c.h.b16 %v1694
    %v2337 = vunpack.c.l.b16 %v1695
    %v2338 = vunpack.c.h.b16 %v1695
    %v2339 = vunpack.c.l.b16 %v1696
    %v2340 = vunpack.c.h.b16 %v1696
    %v2341 = vunpack.c.l.b16 %v1697
    %v2342 = vunpack.c.h.b16 %v1697
    %v2343 = vunpack.c.l.b16 %v1698
    %v2344 = vunpack.c.h.b16 %v1698
    %v2345 = vunpack.c.l.b16 %v1699
    %v2346 = vunpack.c.h.b16 %v1699
    %v2347 = vunpack.c.l.b16 %v1700
    %v2348 = vunpack.c.h.b16 %v1700
    %v2349 = vunpack.c.l.b16 %v1701
    %v2350 = vunpack.c.h.b16 %v1701
    %v2351 = vunpack.c.l.b16 %v1702
    %v2352 = vunpack.c.h.b16 %v1702
    %v2353 = vunpack.c.l.b16 %v1703
    %v2354 = vunpack.c.h.b16 %v1703
    %v2355 = vunpack.c.l.b16 %v1704
    %v2356 = vunpack.c.h.b16 %v1704
    %v2357 = vunpack.c.l.b16 %v1705
    %v2358 = vunpack.c.h.b16 %v1705
    %v2359 = vunpack.c.l.b16 %v1706
    %v2360 = vunpack.c.h.b16 %v1706
    %v2361 = vunpack.c.l.b16 %v1707
    %v2362 = vunpack.c.h.b16 %v1707
    %v2363 = vunpack.c.l.b16 %v1708
    %v2364 = vunpack.c.h.b16 %v1708
    %v2365 = vunpack.c.l.b16 %v1709
    %v2366 = vunpack.c.h.b16 %v1709
    %v2367 = vunpack.c.l.b16 %v1710
    %v2368 = vunpack.c.h.b16 %v1710
    %v2369 = vunpack.c.l.b16 %v1711
    %v2370 = vunpack.c.h.b16 %v1711
    %v2371 = vunpack.c.l.b16 %v1712
    %v2372 = vunpack.c.h.b16 %v1712
    %v2373 = vunpack.c.l.b16 %v1713
    %v2374 = vunpack.c.h.b16 %v1713
    %v2375 = vunpack.c.l.b16 %v1714
    %v2376 = vunpack.c.h.b16 %v1714
    %v2377 = vunpack.c.l.b16 %v1715
    %v2378 = vunpack.c.h.b16 %v1715
    %v2379 = vpack.c.b16 %v2255, %v2251
    %v2380 = vpack.c.b16 %v2256, %v2252
    %v2381 = vpack.c.b16 %v2257, %v2253
    %v2382 = vpack.c.b16 %v2258, %v2254
    %v2383 = vpack.c.b16 %v2263, %v2259
    %v2384 = vpack.c.b16 %v2264, %v2260
    %v2385 = vpack.c.b16 %v2265, %v2261
    %v2386 = vpack.c.b16 %v2266, %v2262
    %v2387 = vpack.c.b16 %v2271, %v2267
    %v2388 = vpack.c.b16 %v2272, %v2268
    %v2389 = vpack.c.b16 %v2273, %v2269
    %v2390 = vpack.c.b16 %v2274, %v2270
    %v2391 = vpack.c.b16 %v2279, %v2275
    %v2392 = vpack.c.b16 %v2280, %v2276
    %v2393 = vpack.c.b16 %v2281, %v2277
    %v2394 = vpack.c.b16 %v2282, %v2278
    %v2395 = vpack.c.b16 %v2287, %v2283
    %v2396 = vpack.c.b16 %v2288, %v2284
    %v2397 = vpack.c.b16 %v2289, %v2285
    %v2398 = vpack.c.b16 %v2290, %v2286
    %v2399 = vpack.c.b16 %v2295, %v2291
    %v2400 = vpack.c.b16 %v2296, %v2292
    %v2401 = vpack.c.b16 %v2297, %v2293
    %v2402 = vpack.c.b16 %v2298, %v2294
    %v2403 = vpack.c.b16 %v2303, %v2299
    %v2404 = vpack.c.b16 %v2304, %v2300
    %v2405 = vpack.c.b16 %v2305, %v2301
    %v2406 = vpack.c.b16 %v2306, %v2302
    %v2407 = vpack.c.b16 %v2311, %v2307
    %v2408 = vpack.c.b16 %v2312, %v2308
    %v2409 = vpack.c.b16 %v2313, %v2309
    %v2410 = vpack.c.b16 %v2314, %v2310
    %v2411 = vpack.c.b16 %v2319, %v2315
    %v2412 = vpack.c.b16 %v2320, %v2316
    %v2413 = vpack.c.b16 %v2321, %v2317
    %v2414 = vpack.c.b16 %v2322, %v2318
    %v2415 = vpack.c.b16 %v2327, %v2323
    %v2416 = vpack.c.b16 %v2328, %v2324
    %v2417 = vpack.c.b16 %v2329, %v2325
    %v2418 = vpack.c.b16 %v2330, %v2326
    %v2419 = vpack.c.b16 %v2335, %v2331
    %v2420 = vpack.c.b16 %v2336, %v2332
    %v2421 = vpack.c.b16 %v2337, %v2333
    %v2422 = vpack.c.b16 %v2338, %v2334
    %v2423 = vpack.c.b16 %v2343, %v2339
    %v2424 = vpack.c.b16 %v2344, %v2340
    %v2425 = vpack.c.b16 %v2345, %v2341
    %v2426 = vpack.c.b16 %v2346, %v2342
    %v2427 = vpack.c.b16 %v2351, %v2347
    %v2428 = vpack.c.b16 %v2352, %v2348
    %v2429 = vpack.c.b16 %v2353, %v2349
    %v2430 = vpack.c.b16 %v2354, %v2350
    %v2431 = vpack.c.b16 %v2359, %v2355
    %v2432 = vpack.c.b16 %v2360, %v2356
    %v2433 = vpack.c.b16 %v2361, %v2357
    %v2434 = vpack.c.b16 %v2362, %v2358
    %v2435 = vpack.c.b16 %v2367, %v2363
    %v2436 = vpack.c.b16 %v2368, %v2364
    %v2437 = vpack.c.b16 %v2369, %v2365
    %v2438 = vpack.c.b16 %v2370, %v2366
    %v2439 = vpack.c.b16 %v2375, %v2371
    %v2440 = vpack.c.b16 %v2376, %v2372
    %v2441 = vpack.c.b16 %v2377, %v2373
    %v2442 = vpack.c.b16 %v2378, %v2374
    %2507 = vmatprep.subr.bf16.mxu0 %v2380
    %2508 = vmatpush1.bf16.msra.mxu0 %v2379
    %2509 = vmatprep.subr.bf16.mxu0 %v2384
    %2510 = vmatpush1.bf16.msra.mxu0 %v2383
    %2511 = vmatprep.subr.bf16.mxu0 %v2388
    %2512 = vmatpush1.bf16.msra.mxu0 %v2387
    %2513 = vmatprep.subr.bf16.mxu0 %v2392
    %2514 = vmatpush1.bf16.msra.mxu0 %v2391
    %2515 = vmatprep.subr.bf16.mxu0 %v2396
    %2516 = vmatpush1.bf16.msra.mxu0 %v2395
    %2517 = vmatprep.subr.bf16.mxu0 %v2400
    %2518 = vmatpush1.bf16.msra.mxu0 %v2399
    %2519 = vmatprep.subr.bf16.mxu0 %v2404
    %2520 = vmatpush1.bf16.msra.mxu0 %v2403
    %2521 = vmatprep.subr.bf16.mxu0 %v2408
    %2522 = vmatpush1.bf16.msra.mxu0 %v2407
    %2523 = vmatprep.subr.bf16.mxu0 %v2412
    %2524 = vmatpush1.bf16.msra.mxu0 %v2411
    %2525 = vmatprep.subr.bf16.mxu0 %v2416
    %2526 = vmatpush1.bf16.msra.mxu0 %v2415
    %2527 = vmatprep.subr.bf16.mxu0 %v2420
    %2528 = vmatpush1.bf16.msra.mxu0 %v2419
    %2529 = vmatprep.subr.bf16.mxu0 %v2424
    %2530 = vmatpush1.bf16.msra.mxu0 %v2423
    %2531 = vmatprep.subr.bf16.mxu0 %v2428
    %2532 = vmatpush1.bf16.msra.mxu0 %v2427
    %2533 = vmatprep.subr.bf16.mxu0 %v2432
    %2534 = vmatpush1.bf16.msra.mxu0 %v2431
    %2535 = vmatprep.subr.bf16.mxu0 %v2436
    %2536 = vmatpush1.bf16.msra.mxu0 %v2435
    %2537 = vmatprep.subr.bf16.mxu0 %v2440
    %2538 = vmatpush1.bf16.msra.mxu0 %v2439
    %2539 = vmatprep.mubr.bf16.mxu0 %v1651
    %2540 = vmatmul.mubr.bf16.gmra.mrb[0].mxu0 %v1650
    %v2541 = vpop.f32.mrb[0].mxu0
    %v2542 = vadd.f32 %v2140, %v2541
    %v2543 = vpop.f32.mrb[0].mxu0
    %v2544 = vadd.f32 %v2142, %v2543
    %v2545 = vpop.f32.mrb[0].mxu0
    %v2546 = vpop.f32.mrb[0].mxu0
    %2547 = vdwg.mxu0
    %2548 = vmatprep.subr.bf16.mxu0 %v2382
    %2549 = vmatpush1.bf16.msra.mxu0 %v2381
    %2550 = vmatprep.subr.bf16.mxu0 %v2386
    %2551 = vmatpush1.bf16.msra.mxu0 %v2385
    %2552 = vmatprep.subr.bf16.mxu0 %v2390
    %2553 = vmatpush1.bf16.msra.mxu0 %v2389
    %2554 = vmatprep.subr.bf16.mxu0 %v2394
    %2555 = vmatpush1.bf16.msra.mxu0 %v2393
    %2556 = vmatprep.subr.bf16.mxu0 %v2398
    %2557 = vmatpush1.bf16.msra.mxu0 %v2397
    %2558 = vmatprep.subr.bf16.mxu0 %v2402
    %2559 = vmatpush1.bf16.msra.mxu0 %v2401
    %2560 = vmatprep.subr.bf16.mxu0 %v2406
    %2561 = vmatpush1.bf16.msra.mxu0 %v2405
    %2562 = vmatprep.subr.bf16.mxu0 %v2410
    %2563 = vmatpush1.bf16.msra.mxu0 %v2409
    %2564 = vmatprep.subr.bf16.mxu0 %v2414
    %2565 = vmatpush1.bf16.msra.mxu0 %v2413
    %2566 = vmatprep.subr.bf16.mxu0 %v2418
    %2567 = vmatpush1.bf16.msra.mxu0 %v2417
    %2568 = vmatprep.subr.bf16.mxu0 %v2422
    %2569 = vmatpush1.bf16.msra.mxu0 %v2421
    %2570 = vmatprep.subr.bf16.mxu0 %v2426
    %2571 = vmatpush1.bf16.msra.mxu0 %v2425
    %2572 = vmatprep.subr.bf16.mxu0 %v2430
    %2573 = vmatpush1.bf16.msra.mxu0 %v2429
    %2574 = vmatprep.subr.bf16.mxu0 %v2434
    %2575 = vmatpush1.bf16.msra.mxu0 %v2433
    %2576 = vmatprep.subr.bf16.mxu0 %v2438
    %2577 = vmatpush1.bf16.msra.mxu0 %v2437
    %2578 = vmatprep.subr.bf16.mxu0 %v2442
    %2579 = vmatpush1.bf16.msra.mxu0 %v2441
    %2580 = vmatprep.mubr.bf16.mxu0 %v1651
    %2581 = vmatmul.mubr.bf16.gmra.mrb[0].mxu0 %v1650
    %v2582 = vpop.f32.mrb[0].mxu0
    %v2583 = vadd.f32 %v2181, %v2582
    %v2584 = vpop.f32.mrb[0].mxu0
    %v2585 = vadd.f32 %v2183, %v2584
    %v2586 = vpop.f32.mrb[0].mxu0
    %v2587 = vpop.f32.mrb[0].mxu0
    %2588 = vdwg.mxu0
    %v2589 = vld [vmem:[#allocation2] sm:$0x3e]
    %v2590 = vld [vmem:[#allocation2 + $0x8] sm:$0x3e]
    %v2591 = vpack.c.bf16 %v2589, %v2589
    %v2592 = vpack.c.bf16 %v2590, %v2590
    %s2593 = scalar_lea.vmem %s3, 1024
    %v2594 = vld [vmem:[%s2593] sm:$0xff]
    %v2595 = vld [vmem:[%s2593 + $0x8] sm:$0xff]
    %v2596 = vld [vmem:[%s2593 + $0x10] sm:$0xff]
    %v2597 = vld [vmem:[%s2593 + $0x18] sm:$0xff]
    %v2598 = vld [vmem:[%s2593 + $0x20] sm:$0xff]
    %v2599 = vld [vmem:[%s2593 + $0x28] sm:$0xff]
    %v2600 = vld [vmem:[%s2593 + $0x30] sm:$0xff]
    %v2601 = vld [vmem:[%s2593 + $0x38] sm:$0xff]
    %v2602 = vld [vmem:[%s2593 + $0x40] sm:$0xff]
    %v2603 = vld [vmem:[%s2593 + $0x48] sm:$0xff]
    %v2604 = vld [vmem:[%s2593 + $0x50] sm:$0xff]
    %v2605 = vld [vmem:[%s2593 + $0x58] sm:$0xff]
    %v2606 = vld [vmem:[%s2593 + $0x60] sm:$0xff]
    %v2607 = vld [vmem:[%s2593 + $0x68] sm:$0xff]
    %v2608 = vld [vmem:[%s2593 + $0x70] sm:$0xff]
    %v2609 = vld [vmem:[%s2593 + $0x78] sm:$0xff]
    %v2610 = vld [vmem:[%s2593 + $0x80] sm:$0xff]
    %v2611 = vld [vmem:[%s2593 + $0x88] sm:$0xff]
    %v2612 = vld [vmem:[%s2593 + $0x90] sm:$0xff]
    %v2613 = vld [vmem:[%s2593 + $0x98] sm:$0xff]
    %v2614 = vld [vmem:[%s2593 + $0xa0] sm:$0xff]
    %v2615 = vld [vmem:[%s2593 + $0xa8] sm:$0xff]
    %v2616 = vld [vmem:[%s2593 + $0xb0] sm:$0xff]
    %v2617 = vld [vmem:[%s2593 + $0xb8] sm:$0xff]
    %v2618 = vld [vmem:[%s2593 + $0xc0] sm:$0xff]
    %v2619 = vld [vmem:[%s2593 + $0xc8] sm:$0xff]
    %v2620 = vld [vmem:[%s2593 + $0xd0] sm:$0xff]
    %v2621 = vld [vmem:[%s2593 + $0xd8] sm:$0xff]
    %v2622 = vld [vmem:[%s2593 + $0xe0] sm:$0xff]
    %v2623 = vld [vmem:[%s2593 + $0xe8] sm:$0xff]
    %v2624 = vld [vmem:[%s2593 + $0xf0] sm:$0xff]
    %v2625 = vld [vmem:[%s2593 + $0xf8] sm:$0xff]
    %v2626 = vld [vmem:[%s2593 + $0x100] sm:$0xff]
    %v2627 = vld [vmem:[%s2593 + $0x108] sm:$0xff]
    %v2628 = vld [vmem:[%s2593 + $0x110] sm:$0xff]
    %v2629 = vld [vmem:[%s2593 + $0x118] sm:$0xff]
    %v2630 = vld [vmem:[%s2593 + $0x120] sm:$0xff]
    %v2631 = vld [vmem:[%s2593 + $0x128] sm:$0xff]
    %v2632 = vld [vmem:[%s2593 + $0x130] sm:$0xff]
    %v2633 = vld [vmem:[%s2593 + $0x138] sm:$0xff]
    %v2634 = vld [vmem:[%s2593 + $0x140] sm:$0xff]
    %v2635 = vld [vmem:[%s2593 + $0x148] sm:$0xff]
    %v2636 = vld [vmem:[%s2593 + $0x150] sm:$0xff]
    %v2637 = vld [vmem:[%s2593 + $0x158] sm:$0xff]
    %v2638 = vld [vmem:[%s2593 + $0x160] sm:$0xff]
    %v2639 = vld [vmem:[%s2593 + $0x168] sm:$0xff]
    %v2640 = vld [vmem:[%s2593 + $0x170] sm:$0xff]
    %v2641 = vld [vmem:[%s2593 + $0x178] sm:$0xff]
    %v2642 = vld [vmem:[%s2593 + $0x180] sm:$0xff]
    %v2643 = vld [vmem:[%s2593 + $0x188] sm:$0xff]
    %v2644 = vld [vmem:[%s2593 + $0x190] sm:$0xff]
    %v2645 = vld [vmem:[%s2593 + $0x198] sm:$0xff]
    %v2646 = vld [vmem:[%s2593 + $0x1a0] sm:$0xff]
    %v2647 = vld [vmem:[%s2593 + $0x1a8] sm:$0xff]
    %v2648 = vld [vmem:[%s2593 + $0x1b0] sm:$0xff]
    %v2649 = vld [vmem:[%s2593 + $0x1b8] sm:$0xff]
    %v2650 = vld [vmem:[%s2593 + $0x1c0] sm:$0xff]
    %v2651 = vld [vmem:[%s2593 + $0x1c8] sm:$0xff]
    %v2652 = vld [vmem:[%s2593 + $0x1d0] sm:$0xff]
    %v2653 = vld [vmem:[%s2593 + $0x1d8] sm:$0xff]
    %v2654 = vld [vmem:[%s2593 + $0x1e0] sm:$0xff]
    %v2655 = vld [vmem:[%s2593 + $0x1e8] sm:$0xff]
    %v2656 = vld [vmem:[%s2593 + $0x1f0] sm:$0xff]
    %v2657 = vld [vmem:[%s2593 + $0x1f8] sm:$0xff]
    %v2659 = vshrl.u32 %v2591, 16
    %v2661 = vshll.u32 %v2591, 16
    %v2663 = vrot.slane %v2661, 1
    %v2664 = vor.u32 %v2659, %v2663
    %v2666 = vshrl.u32 %v2592, 16
    %v2668 = vshll.u32 %v2592, 16
    %v2670 = vrot.slane %v2668, 1
    %v2671 = vor.u32 %v2666, %v2670
    %v2738 = vunpack.c.l.b16 %v2594
    %v2739 = vunpack.c.h.b16 %v2594
    %v2740 = vunpack.c.l.b16 %v2595
    %v2741 = vunpack.c.h.b16 %v2595
    %v2742 = vunpack.c.l.b16 %v2596
    %v2743 = vunpack.c.h.b16 %v2596
    %v2744 = vunpack.c.l.b16 %v2597
    %v2745 = vunpack.c.h.b16 %v2597
    %v2746 = vunpack.c.l.b16 %v2598
    %v2747 = vunpack.c.h.b16 %v2598
    %v2748 = vunpack.c.l.b16 %v2599
    %v2749 = vunpack.c.h.b16 %v2599
    %v2750 = vunpack.c.l.b16 %v2600
    %v2751 = vunpack.c.h.b16 %v2600
    %v2752 = vunpack.c.l.b16 %v2601
    %v2753 = vunpack.c.h.b16 %v2601
    %v2754 = vunpack.c.l.b16 %v2602
    %v2755 = vunpack.c.h.b16 %v2602
    %v2756 = vunpack.c.l.b16 %v2603
    %v2757 = vunpack.c.h.b16 %v2603
    %v2758 = vunpack.c.l.b16 %v2604
    %v2759 = vunpack.c.h.b16 %v2604
    %v2760 = vunpack.c.l.b16 %v2605
    %v2761 = vunpack.c.h.b16 %v2605
    %v2762 = vunpack.c.l.b16 %v2606
    %v2763 = vunpack.c.h.b16 %v2606
    %v2764 = vunpack.c.l.b16 %v2607
    %v2765 = vunpack.c.h.b16 %v2607
    %v2766 = vunpack.c.l.b16 %v2608
    %v2767 = vunpack.c.h.b16 %v2608
    %v2768 = vunpack.c.l.b16 %v2609
    %v2769 = vunpack.c.h.b16 %v2609
    %v2770 = vunpack.c.l.b16 %v2610
    %v2771 = vunpack.c.h.b16 %v2610
    %v2772 = vunpack.c.l.b16 %v2611
    %v2773 = vunpack.c.h.b16 %v2611
    %v2774 = vunpack.c.l.b16 %v2612
    %v2775 = vunpack.c.h.b16 %v2612
    %v2776 = vunpack.c.l.b16 %v2613
    %v2777 = vunpack.c.h.b16 %v2613
    %v2778 = vunpack.c.l.b16 %v2614
    %v2779 = vunpack.c.h.b16 %v2614
    %v2780 = vunpack.c.l.b16 %v2615
    %v2781 = vunpack.c.h.b16 %v2615
    %v2782 = vunpack.c.l.b16 %v2616
    %v2783 = vunpack.c.h.b16 %v2616
    %v2784 = vunpack.c.l.b16 %v2617
    %v2785 = vunpack.c.h.b16 %v2617
    %v2786 = vunpack.c.l.b16 %v2618
    %v2787 = vunpack.c.h.b16 %v2618
    %v2788 = vunpack.c.l.b16 %v2619
    %v2789 = vunpack.c.h.b16 %v2619
    %v2790 = vunpack.c.l.b16 %v2620
    %v2791 = vunpack.c.h.b16 %v2620
    %v2792 = vunpack.c.l.b16 %v2621
    %v2793 = vunpack.c.h.b16 %v2621
    %v2794 = vunpack.c.l.b16 %v2622
    %v2795 = vunpack.c.h.b16 %v2622
    %v2796 = vunpack.c.l.b16 %v2623
    %v2797 = vunpack.c.h.b16 %v2623
    %v2798 = vunpack.c.l.b16 %v2624
    %v2799 = vunpack.c.h.b16 %v2624
    %v2800 = vunpack.c.l.b16 %v2625
    %v2801 = vunpack.c.h.b16 %v2625
    %v2802 = vunpack.c.l.b16 %v2626
    %v2803 = vunpack.c.h.b16 %v2626
    %v2804 = vunpack.c.l.b16 %v2627
    %v2805 = vunpack.c.h.b16 %v2627
    %v2806 = vunpack.c.l.b16 %v2628
    %v2807 = vunpack.c.h.b16 %v2628
    %v2808 = vunpack.c.l.b16 %v2629
    %v2809 = vunpack.c.h.b16 %v2629
    %v2810 = vunpack.c.l.b16 %v2630
    %v2811 = vunpack.c.h.b16 %v2630
    %v2812 = vunpack.c.l.b16 %v2631
    %v2813 = vunpack.c.h.b16 %v2631
    %v2814 = vunpack.c.l.b16 %v2632
    %v2815 = vunpack.c.h.b16 %v2632
    %v2816 = vunpack.c.l.b16 %v2633
    %v2817 = vunpack.c.h.b16 %v2633
    %v2818 = vunpack.c.l.b16 %v2634
    %v2819 = vunpack.c.h.b16 %v2634
    %v2820 = vunpack.c.l.b16 %v2635
    %v2821 = vunpack.c.h.b16 %v2635
    %v2822 = vunpack.c.l.b16 %v2636
    %v2823 = vunpack.c.h.b16 %v2636
    %v2824 = vunpack.c.l.b16 %v2637
    %v2825 = vunpack.c.h.b16 %v2637
    %v2826 = vunpack.c.l.b16 %v2638
    %v2827 = vunpack.c.h.b16 %v2638
    %v2828 = vunpack.c.l.b16 %v2639
    %v2829 = vunpack.c.h.b16 %v2639
    %v2830 = vunpack.c.l.b16 %v2640
    %v2831 = vunpack.c.h.b16 %v2640
    %v2832 = vunpack.c.l.b16 %v2641
    %v2833 = vunpack.c.h.b16 %v2641
    %v2834 = vunpack.c.l.b16 %v2642
    %v2835 = vunpack.c.h.b16 %v2642
    %v2836 = vunpack.c.l.b16 %v2643
    %v2837 = vunpack.c.h.b16 %v2643
    %v2838 = vunpack.c.l.b16 %v2644
    %v2839 = vunpack.c.h.b16 %v2644
    %v2840 = vunpack.c.l.b16 %v2645
    %v2841 = vunpack.c.h.b16 %v2645
    %v2842 = vunpack.c.l.b16 %v2646
    %v2843 = vunpack.c.h.b16 %v2646
    %v2844 = vunpack.c.l.b16 %v2647
    %v2845 = vunpack.c.h.b16 %v2647
    %v2846 = vunpack.c.l.b16 %v2648
    %v2847 = vunpack.c.h.b16 %v2648
    %v2848 = vunpack.c.l.b16 %v2649
    %v2849 = vunpack.c.h.b16 %v2649
    %v2850 = vunpack.c.l.b16 %v2650
    %v2851 = vunpack.c.h.b16 %v2650
    %v2852 = vunpack.c.l.b16 %v2651
    %v2853 = vunpack.c.h.b16 %v2651
    %v2854 = vunpack.c.l.b16 %v2652
    %v2855 = vunpack.c.h.b16 %v2652
    %v2856 = vunpack.c.l.b16 %v2653
    %v2857 = vunpack.c.h.b16 %v2653
    %v2858 = vunpack.c.l.b16 %v2654
    %v2859 = vunpack.c.h.b16 %v2654
    %v2860 = vunpack.c.l.b16 %v2655
    %v2861 = vunpack.c.h.b16 %v2655
    %v2862 = vunpack.c.l.b16 %v2656
    %v2863 = vunpack.c.h.b16 %v2656
    %v2864 = vunpack.c.l.b16 %v2657
    %v2865 = vunpack.c.h.b16 %v2657
    %v2866 = vpack.c.b16 %v2742, %v2738
    %v2867 = vpack.c.b16 %v2743, %v2739
    %v2868 = vpack.c.b16 %v2744, %v2740
    %v2869 = vpack.c.b16 %v2745, %v2741
    %v2870 = vpack.c.b16 %v2750, %v2746
    %v2871 = vpack.c.b16 %v2751, %v2747
    %v2872 = vpack.c.b16 %v2752, %v2748
    %v2873 = vpack.c.b16 %v2753, %v2749
    %v2874 = vpack.c.b16 %v2758, %v2754
    %v2875 = vpack.c.b16 %v2759, %v2755
    %v2876 = vpack.c.b16 %v2760, %v2756
    %v2877 = vpack.c.b16 %v2761, %v2757
    %v2878 = vpack.c.b16 %v2766, %v2762
    %v2879 = vpack.c.b16 %v2767, %v2763
    %v2880 = vpack.c.b16 %v2768, %v2764
    %v2881 = vpack.c.b16 %v2769, %v2765
    %v2882 = vpack.c.b16 %v2774, %v2770
    %v2883 = vpack.c.b16 %v2775, %v2771
    %v2884 = vpack.c.b16 %v2776, %v2772
    %v2885 = vpack.c.b16 %v2777, %v2773
    %v2886 = vpack.c.b16 %v2782, %v2778
    %v2887 = vpack.c.b16 %v2783, %v2779
    %v2888 = vpack.c.b16 %v2784, %v2780
    %v2889 = vpack.c.b16 %v2785, %v2781
    %v2890 = vpack.c.b16 %v2790, %v2786
    %v2891 = vpack.c.b16 %v2791, %v2787
    %v2892 = vpack.c.b16 %v2792, %v2788
    %v2893 = vpack.c.b16 %v2793, %v2789
    %v2894 = vpack.c.b16 %v2798, %v2794
    %v2895 = vpack.c.b16 %v2799, %v2795
    %v2896 = vpack.c.b16 %v2800, %v2796
    %v2897 = vpack.c.b16 %v2801, %v2797
    %v2898 = vpack.c.b16 %v2806, %v2802
    %v2899 = vpack.c.b16 %v2807, %v2803
    %v2900 = vpack.c.b16 %v2808, %v2804
    %v2901 = vpack.c.b16 %v2809, %v2805
    %v2902 = vpack.c.b16 %v2814, %v2810
    %v2903 = vpack.c.b16 %v2815, %v2811
    %v2904 = vpack.c.b16 %v2816, %v2812
    %v2905 = vpack.c.b16 %v2817, %v2813
    %v2906 = vpack.c.b16 %v2822, %v2818
    %v2907 = vpack.c.b16 %v2823, %v2819
    %v2908 = vpack.c.b16 %v2824, %v2820
    %v2909 = vpack.c.b16 %v2825, %v2821
    %v2910 = vpack.c.b16 %v2830, %v2826
    %v2911 = vpack.c.b16 %v2831, %v2827
    %v2912 = vpack.c.b16 %v2832, %v2828
    %v2913 = vpack.c.b16 %v2833, %v2829
    %v2914 = vpack.c.b16 %v2838, %v2834
    %v2915 = vpack.c.b16 %v2839, %v2835
    %v2916 = vpack.c.b16 %v2840, %v2836
    %v2917 = vpack.c.b16 %v2841, %v2837
    %v2918 = vpack.c.b16 %v2846, %v2842
    %v2919 = vpack.c.b16 %v2847, %v2843
    %v2920 = vpack.c.b16 %v2848, %v2844
    %v2921 = vpack.c.b16 %v2849, %v2845
    %v2922 = vpack.c.b16 %v2854, %v2850
    %v2923 = vpack.c.b16 %v2855, %v2851
    %v2924 = vpack.c.b16 %v2856, %v2852
    %v2925 = vpack.c.b16 %v2857, %v2853
    %v2926 = vpack.c.b16 %v2862, %v2858
    %v2927 = vpack.c.b16 %v2863, %v2859
    %v2928 = vpack.c.b16 %v2864, %v2860
    %v2929 = vpack.c.b16 %v2865, %v2861
    %2994 = vmatprep.subr.bf16.mxu0 %v2867
    %2995 = vmatpush1.bf16.msra.mxu0 %v2866
    %2996 = vmatprep.subr.bf16.mxu0 %v2871
    %2997 = vmatpush1.bf16.msra.mxu0 %v2870
    %2998 = vmatprep.subr.bf16.mxu0 %v2875
    %2999 = vmatpush1.bf16.msra.mxu0 %v2874
    %3000 = vmatprep.subr.bf16.mxu0 %v2879
    %3001 = vmatpush1.bf16.msra.mxu0 %v2878
    %3002 = vmatprep.subr.bf16.mxu0 %v2883
    %3003 = vmatpush1.bf16.msra.mxu0 %v2882
    %3004 = vmatprep.subr.bf16.mxu0 %v2887
    %3005 = vmatpush1.bf16.msra.mxu0 %v2886
    %3006 = vmatprep.subr.bf16.mxu0 %v2891
    %3007 = vmatpush1.bf16.msra.mxu0 %v2890
    %3008 = vmatprep.subr.bf16.mxu0 %v2895
    %3009 = vmatpush1.bf16.msra.mxu0 %v2894
    %3010 = vmatprep.subr.bf16.mxu0 %v2899
    %3011 = vmatpush1.bf16.msra.mxu0 %v2898
    %3012 = vmatprep.subr.bf16.mxu0 %v2903
    %3013 = vmatpush1.bf16.msra.mxu0 %v2902
    %3014 = vmatprep.subr.bf16.mxu0 %v2907
    %3015 = vmatpush1.bf16.msra.mxu0 %v2906
    %3016 = vmatprep.subr.bf16.mxu0 %v2911
    %3017 = vmatpush1.bf16.msra.mxu0 %v2910
    %3018 = vmatprep.subr.bf16.mxu0 %v2915
    %3019 = vmatpush1.bf16.msra.mxu0 %v2914
    %3020 = vmatprep.subr.bf16.mxu0 %v2919
    %3021 = vmatpush1.bf16.msra.mxu0 %v2918
    %3022 = vmatprep.subr.bf16.mxu0 %v2923
    %3023 = vmatpush1.bf16.msra.mxu0 %v2922
    %3024 = vmatprep.subr.bf16.mxu0 %v2927
    %3025 = vmatpush1.bf16.msra.mxu0 %v2926
    %3026 = vmatprep.mubr.bf16.mxu0 %v2671
    %3027 = vmatmul.mubr.bf16.gmra.mrb[0].mxu0 %v2664
    %v3028 = vpop.f32.mrb[0].mxu0
    %v3029 = vadd.f32 0.0, %v3028
    %v3030 = vpop.f32.mrb[0].mxu0
    %v3031 = vadd.f32 0.0, %v3030
    %v3032 = vpop.f32.mrb[0].mxu0
    %v3033 = vpop.f32.mrb[0].mxu0
    %3034 = vdwg.mxu0
    %3035 = vmatprep.subr.bf16.mxu0 %v2869
    %3036 = vmatpush1.bf16.msra.mxu0 %v2868
    %3037 = vmatprep.subr.bf16.mxu0 %v2873
    %3038 = vmatpush1.bf16.msra.mxu0 %v2872
    %3039 = vmatprep.subr.bf16.mxu0 %v2877
    %3040 = vmatpush1.bf16.msra.mxu0 %v2876
    %3041 = vmatprep.subr.bf16.mxu0 %v2881
    %3042 = vmatpush1.bf16.msra.mxu0 %v2880
    %3043 = vmatprep.subr.bf16.mxu0 %v2885
    %3044 = vmatpush1.bf16.msra.mxu0 %v2884
    %3045 = vmatprep.subr.bf16.mxu0 %v2889
    %3046 = vmatpush1.bf16.msra.mxu0 %v2888
    %3047 = vmatprep.subr.bf16.mxu0 %v2893
    %3048 = vmatpush1.bf16.msra.mxu0 %v2892
    %3049 = vmatprep.subr.bf16.mxu0 %v2897
    %3050 = vmatpush1.bf16.msra.mxu0 %v2896
    %3051 = vmatprep.subr.bf16.mxu0 %v2901
    %3052 = vmatpush1.bf16.msra.mxu0 %v2900
    %3053 = vmatprep.subr.bf16.mxu0 %v2905
    %3054 = vmatpush1.bf16.msra.mxu0 %v2904
    %3055 = vmatprep.subr.bf16.mxu0 %v2909
    %3056 = vmatpush1.bf16.msra.mxu0 %v2908
    %3057 = vmatprep.subr.bf16.mxu0 %v2913
    %3058 = vmatpush1.bf16.msra.mxu0 %v2912
    %3059 = vmatprep.subr.bf16.mxu0 %v2917
    %3060 = vmatpush1.bf16.msra.mxu0 %v2916
    %3061 = vmatprep.subr.bf16.mxu0 %v2921
    %3062 = vmatpush1.bf16.msra.mxu0 %v2920
    %3063 = vmatprep.subr.bf16.mxu0 %v2925
    %3064 = vmatpush1.bf16.msra.mxu0 %v2924
    %3065 = vmatprep.subr.bf16.mxu0 %v2929
    %3066 = vmatpush1.bf16.msra.mxu0 %v2928
    %3067 = vmatprep.mubr.bf16.mxu0 %v2671
    %3068 = vmatmul.mubr.bf16.gmra.mrb[0].mxu0 %v2664
    %v3069 = vpop.f32.mrb[0].mxu0
    %v3070 = vadd.f32 0.0, %v3069
    %v3071 = vpop.f32.mrb[0].mxu0
    %v3072 = vadd.f32 0.0, %v3071
    %v3073 = vpop.f32.mrb[0].mxu0
    %v3074 = vpop.f32.mrb[0].mxu0
    %3075 = vdwg.mxu0
    %v3076 = vadd.f32 %v2542, %v3029
    %v3077 = vadd.f32 %v2544, %v3031
    %v3078 = vadd.f32 %v2583, %v3070
    %v3079 = vadd.f32 %v2585, %v3072
    %v3080 = vld [vmem:[#allocation3] sm:$0x3e]
    %v3081 = vld [vmem:[#allocation3 + $0x8] sm:$0x3e]
    %v3082 = vpack.c.bf16 %v3080, %v3080
    %v3083 = vpack.c.bf16 %v3081, %v3081
    %s3084 = scalar_lea.vmem %s3, 1536
    %v3085 = vld [vmem:[%s3084] sm:$0xff]
    %v3086 = vld [vmem:[%s3084 + $0x8] sm:$0xff]
    %v3087 = vld [vmem:[%s3084 + $0x10] sm:$0xff]
    %v3088 = vld [vmem:[%s3084 + $0x18] sm:$0xff]
    %v3089 = vld [vmem:[%s3084 + $0x20] sm:$0xff]
    %v3090 = vld [vmem:[%s3084 + $0x28] sm:$0xff]
    %v3091 = vld [vmem:[%s3084 + $0x30] sm:$0xff]
    %v3092 = vld [vmem:[%s3084 + $0x38] sm:$0xff]
    %v3093 = vld [vmem:[%s3084 + $0x40] sm:$0xff]
    %v3094 = vld [vmem:[%s3084 + $0x48] sm:$0xff]
    %v3095 = vld [vmem:[%s3084 + $0x50] sm:$0xff]
    %v3096 = vld [vmem:[%s3084 + $0x58] sm:$0xff]
    %v3097 = vld [vmem:[%s3084 + $0x60] sm:$0xff]
    %v3098 = vld [vmem:[%s3084 + $0x68] sm:$0xff]
    %v3099 = vld [vmem:[%s3084 + $0x70] sm:$0xff]
    %v3100 = vld [vmem:[%s3084 + $0x78] sm:$0xff]
    %v3101 = vld [vmem:[%s3084 + $0x80] sm:$0xff]
    %v3102 = vld [vmem:[%s3084 + $0x88] sm:$0xff]
    %v3103 = vld [vmem:[%s3084 + $0x90] sm:$0xff]
    %v3104 = vld [vmem:[%s3084 + $0x98] sm:$0xff]
    %v3105 = vld [vmem:[%s3084 + $0xa0] sm:$0xff]
    %v3106 = vld [vmem:[%s3084 + $0xa8] sm:$0xff]
    %v3107 = vld [vmem:[%s3084 + $0xb0] sm:$0xff]
    %v3108 = vld [vmem:[%s3084 + $0xb8] sm:$0xff]
    %v3109 = vld [vmem:[%s3084 + $0xc0] sm:$0xff]
    %v3110 = vld [vmem:[%s3084 + $0xc8] sm:$0xff]
    %v3111 = vld [vmem:[%s3084 + $0xd0] sm:$0xff]
    %v3112 = vld [vmem:[%s3084 + $0xd8] sm:$0xff]
    %v3113 = vld [vmem:[%s3084 + $0xe0] sm:$0xff]
    %v3114 = vld [vmem:[%s3084 + $0xe8] sm:$0xff]
    %v3115 = vld [vmem:[%s3084 + $0xf0] sm:$0xff]
    %v3116 = vld [vmem:[%s3084 + $0xf8] sm:$0xff]
    %v3117 = vld [vmem:[%s3084 + $0x100] sm:$0xff]
    %v3118 = vld [vmem:[%s3084 + $0x108] sm:$0xff]
    %v3119 = vld [vmem:[%s3084 + $0x110] sm:$0xff]
    %v3120 = vld [vmem:[%s3084 + $0x118] sm:$0xff]
    %v3121 = vld [vmem:[%s3084 + $0x120] sm:$0xff]
    %v3122 = vld [vmem:[%s3084 + $0x128] sm:$0xff]
    %v3123 = vld [vmem:[%s3084 + $0x130] sm:$0xff]
    %v3124 = vld [vmem:[%s3084 + $0x138] sm:$0xff]
    %v3125 = vld [vmem:[%s3084 + $0x140] sm:$0xff]
    %v3126 = vld [vmem:[%s3084 + $0x148] sm:$0xff]
    %v3127 = vld [vmem:[%s3084 + $0x150] sm:$0xff]
    %v3128 = vld [vmem:[%s3084 + $0x158] sm:$0xff]
    %v3129 = vld [vmem:[%s3084 + $0x160] sm:$0xff]
    %v3130 = vld [vmem:[%s3084 + $0x168] sm:$0xff]
    %v3131 = vld [vmem:[%s3084 + $0x170] sm:$0xff]
    %v3132 = vld [vmem:[%s3084 + $0x178] sm:$0xff]
    %v3133 = vld [vmem:[%s3084 + $0x180] sm:$0xff]
    %v3134 = vld [vmem:[%s3084 + $0x188] sm:$0xff]
    %v3135 = vld [vmem:[%s3084 + $0x190] sm:$0xff]
    %v3136 = vld [vmem:[%s3084 + $0x198] sm:$0xff]
    %v3137 = vld [vmem:[%s3084 + $0x1a0] sm:$0xff]
    %v3138 = vld [vmem:[%s3084 + $0x1a8] sm:$0xff]
    %v3139 = vld [vmem:[%s3084 + $0x1b0] sm:$0xff]
    %v3140 = vld [vmem:[%s3084 + $0x1b8] sm:$0xff]
    %v3141 = vld [vmem:[%s3084 + $0x1c0] sm:$0xff]
    %v3142 = vld [vmem:[%s3084 + $0x1c8] sm:$0xff]
    %v3143 = vld [vmem:[%s3084 + $0x1d0] sm:$0xff]
    %v3144 = vld [vmem:[%s3084 + $0x1d8] sm:$0xff]
    %v3145 = vld [vmem:[%s3084 + $0x1e0] sm:$0xff]
    %v3146 = vld [vmem:[%s3084 + $0x1e8] sm:$0xff]
    %v3147 = vld [vmem:[%s3084 + $0x1f0] sm:$0xff]
    %v3148 = vld [vmem:[%s3084 + $0x1f8] sm:$0xff]
    %v3150 = vshrl.u32 %v3082, 16
    %v3152 = vshll.u32 %v3082, 16
    %v3154 = vrot.slane %v3152, 1
    %v3155 = vor.u32 %v3150, %v3154
    %v3157 = vshrl.u32 %v3083, 16
    %v3159 = vshll.u32 %v3083, 16
    %v3161 = vrot.slane %v3159, 1
    %v3162 = vor.u32 %v3157, %v3161
    %v3229 = vunpack.c.l.b16 %v3085
    %v3230 = vunpack.c.h.b16 %v3085
    %v3231 = vunpack.c.l.b16 %v3086
    %v3232 = vunpack.c.h.b16 %v3086
    %v3233 = vunpack.c.l.b16 %v3087
    %v3234 = vunpack.c.h.b16 %v3087
    %v3235 = vunpack.c.l.b16 %v3088
    %v3236 = vunpack.c.h.b16 %v3088
    %v3237 = vunpack.c.l.b16 %v3089
    %v3238 = vunpack.c.h.b16 %v3089
    %v3239 = vunpack.c.l.b16 %v3090
    %v3240 = vunpack.c.h.b16 %v3090
    %v3241 = vunpack.c.l.b16 %v3091
    %v3242 = vunpack.c.h.b16 %v3091
    %v3243 = vunpack.c.l.b16 %v3092
    %v3244 = vunpack.c.h.b16 %v3092
    %v3245 = vunpack.c.l.b16 %v3093
    %v3246 = vunpack.c.h.b16 %v3093
    %v3247 = vunpack.c.l.b16 %v3094
    %v3248 = vunpack.c.h.b16 %v3094
    %v3249 = vunpack.c.l.b16 %v3095
    %v3250 = vunpack.c.h.b16 %v3095
    %v3251 = vunpack.c.l.b16 %v3096
    %v3252 = vunpack.c.h.b16 %v3096
    %v3253 = vunpack.c.l.b16 %v3097
    %v3254 = vunpack.c.h.b16 %v3097
    %v3255 = vunpack.c.l.b16 %v3098
    %v3256 = vunpack.c.h.b16 %v3098
    %v3257 = vunpack.c.l.b16 %v3099
    %v3258 = vunpack.c.h.b16 %v3099
    %v3259 = vunpack.c.l.b16 %v3100
    %v3260 = vunpack.c.h.b16 %v3100
    %v3261 = vunpack.c.l.b16 %v3101
    %v3262 = vunpack.c.h.b16 %v3101
    %v3263 = vunpack.c.l.b16 %v3102
    %v3264 = vunpack.c.h.b16 %v3102
    %v3265 = vunpack.c.l.b16 %v3103
    %v3266 = vunpack.c.h.b16 %v3103
    %v3267 = vunpack.c.l.b16 %v3104
    %v3268 = vunpack.c.h.b16 %v3104
    %v3269 = vunpack.c.l.b16 %v3105
    %v3270 = vunpack.c.h.b16 %v3105
    %v3271 = vunpack.c.l.b16 %v3106
    %v3272 = vunpack.c.h.b16 %v3106
    %v3273 = vunpack.c.l.b16 %v3107
    %v3274 = vunpack.c.h.b16 %v3107
    %v3275 = vunpack.c.l.b16 %v3108
    %v3276 = vunpack.c.h.b16 %v3108
    %v3277 = vunpack.c.l.b16 %v3109
    %v3278 = vunpack.c.h.b16 %v3109
    %v3279 = vunpack.c.l.b16 %v3110
    %v3280 = vunpack.c.h.b16 %v3110
    %v3281 = vunpack.c.l.b16 %v3111
    %v3282 = vunpack.c.h.b16 %v3111
    %v3283 = vunpack.c.l.b16 %v3112
    %v3284 = vunpack.c.h.b16 %v3112
    %v3285 = vunpack.c.l.b16 %v3113
    %v3286 = vunpack.c.h.b16 %v3113
    %v3287 = vunpack.c.l.b16 %v3114
    %v3288 = vunpack.c.h.b16 %v3114
    %v3289 = vunpack.c.l.b16 %v3115
    %v3290 = vunpack.c.h.b16 %v3115
    %v3291 = vunpack.c.l.b16 %v3116
    %v3292 = vunpack.c.h.b16 %v3116
    %v3293 = vunpack.c.l.b16 %v3117
    %v3294 = vunpack.c.h.b16 %v3117
    %v3295 = vunpack.c.l.b16 %v3118
    %v3296 = vunpack.c.h.b16 %v3118
    %v3297 = vunpack.c.l.b16 %v3119
    %v3298 = vunpack.c.h.b16 %v3119
    %v3299 = vunpack.c.l.b16 %v3120
    %v3300 = vunpack.c.h.b16 %v3120
    %v3301 = vunpack.c.l.b16 %v3121
    %v3302 = vunpack.c.h.b16 %v3121
    %v3303 = vunpack.c.l.b16 %v3122
    %v3304 = vunpack.c.h.b16 %v3122
    %v3305 = vunpack.c.l.b16 %v3123
    %v3306 = vunpack.c.h.b16 %v3123
    %v3307 = vunpack.c.l.b16 %v3124
    %v3308 = vunpack.c.h.b16 %v3124
    %v3309 = vunpack.c.l.b16 %v3125
    %v3310 = vunpack.c.h.b16 %v3125
    %v3311 = vunpack.c.l.b16 %v3126
    %v3312 = vunpack.c.h.b16 %v3126
    %v3313 = vunpack.c.l.b16 %v3127
    %v3314 = vunpack.c.h.b16 %v3127
    %v3315 = vunpack.c.l.b16 %v3128
    %v3316 = vunpack.c.h.b16 %v3128
    %v3317 = vunpack.c.l.b16 %v3129
    %v3318 = vunpack.c.h.b16 %v3129
    %v3319 = vunpack.c.l.b16 %v3130
    %v3320 = vunpack.c.h.b16 %v3130
    %v3321 = vunpack.c.l.b16 %v3131
    %v3322 = vunpack.c.h.b16 %v3131
    %v3323 = vunpack.c.l.b16 %v3132
    %v3324 = vunpack.c.h.b16 %v3132
    %v3325 = vunpack.c.l.b16 %v3133
    %v3326 = vunpack.c.h.b16 %v3133
    %v3327 = vunpack.c.l.b16 %v3134
    %v3328 = vunpack.c.h.b16 %v3134
    %v3329 = vunpack.c.l.b16 %v3135
    %v3330 = vunpack.c.h.b16 %v3135
    %v3331 = vunpack.c.l.b16 %v3136
    %v3332 = vunpack.c.h.b16 %v3136
    %v3333 = vunpack.c.l.b16 %v3137
    %v3334 = vunpack.c.h.b16 %v3137
    %v3335 = vunpack.c.l.b16 %v3138
    %v3336 = vunpack.c.h.b16 %v3138
    %v3337 = vunpack.c.l.b16 %v3139
    %v3338 = vunpack.c.h.b16 %v3139
    %v3339 = vunpack.c.l.b16 %v3140
    %v3340 = vunpack.c.h.b16 %v3140
    %v3341 = vunpack.c.l.b16 %v3141
    %v3342 = vunpack.c.h.b16 %v3141
    %v3343 = vunpack.c.l.b16 %v3142
    %v3344 = vunpack.c.h.b16 %v3142
    %v3345 = vunpack.c.l.b16 %v3143
    %v3346 = vunpack.c.h.b16 %v3143
    %v3347 = vunpack.c.l.b16 %v3144
    %v3348 = vunpack.c.h.b16 %v3144
    %v3349 = vunpack.c.l.b16 %v3145
    %v3350 = vunpack.c.h.b16 %v3145
    %v3351 = vunpack.c.l.b16 %v3146
    %v3352 = vunpack.c.h.b16 %v3146
    %v3353 = vunpack.c.l.b16 %v3147
    %v3354 = vunpack.c.h.b16 %v3147
    %v3355 = vunpack.c.l.b16 %v3148
    %v3356 = vunpack.c.h.b16 %v3148
    %v3357 = vpack.c.b16 %v3233, %v3229
    %v3358 = vpack.c.b16 %v3234, %v3230
    %v3359 = vpack.c.b16 %v3235, %v3231
    %v3360 = vpack.c.b16 %v3236, %v3232
    %v3361 = vpack.c.b16 %v3241, %v3237
    %v3362 = vpack.c.b16 %v3242, %v3238
    %v3363 = vpack.c.b16 %v3243, %v3239
    %v3364 = vpack.c.b16 %v3244, %v3240
    %v3365 = vpack.c.b16 %v3249, %v3245
    %v3366 = vpack.c.b16 %v3250, %v3246
    %v3367 = vpack.c.b16 %v3251, %v3247
    %v3368 = vpack.c.b16 %v3252, %v3248
    %v3369 = vpack.c.b16 %v3257, %v3253
    %v3370 = vpack.c.b16 %v3258, %v3254
    %v3371 = vpack.c.b16 %v3259, %v3255
    %v3372 = vpack.c.b16 %v3260, %v3256
    %v3373 = vpack.c.b16 %v3265, %v3261
    %v3374 = vpack.c.b16 %v3266, %v3262
    %v3375 = vpack.c.b16 %v3267, %v3263
    %v3376 = vpack.c.b16 %v3268, %v3264
    %v3377 = vpack.c.b16 %v3273, %v3269
    %v3378 = vpack.c.b16 %v3274, %v3270
    %v3379 = vpack.c.b16 %v3275, %v3271
    %v3380 = vpack.c.b16 %v3276, %v3272
    %v3381 = vpack.c.b16 %v3281, %v3277
    %v3382 = vpack.c.b16 %v3282, %v3278
    %v3383 = vpack.c.b16 %v3283, %v3279
    %v3384 = vpack.c.b16 %v3284, %v3280
    %v3385 = vpack.c.b16 %v3289, %v3285
    %v3386 = vpack.c.b16 %v3290, %v3286
    %v3387 = vpack.c.b16 %v3291, %v3287
    %v3388 = vpack.c.b16 %v3292, %v3288
    %v3389 = vpack.c.b16 %v3297, %v3293
    %v3390 = vpack.c.b16 %v3298, %v3294
    %v3391 = vpack.c.b16 %v3299, %v3295
    %v3392 = vpack.c.b16 %v3300, %v3296
    %v3393 = vpack.c.b16 %v3305, %v3301
    %v3394 = vpack.c.b16 %v3306, %v3302
    %v3395 = vpack.c.b16 %v3307, %v3303
    %v3396 = vpack.c.b16 %v3308, %v3304
    %v3397 = vpack.c.b16 %v3313, %v3309
    %v3398 = vpack.c.b16 %v3314, %v3310
    %v3399 = vpack.c.b16 %v3315, %v3311
    %v3400 = vpack.c.b16 %v3316, %v3312
    %v3401 = vpack.c.b16 %v3321, %v3317
    %v3402 = vpack.c.b16 %v3322, %v3318
    %v3403 = vpack.c.b16 %v3323, %v3319
    %v3404 = vpack.c.b16 %v3324, %v3320
    %v3405 = vpack.c.b16 %v3329, %v3325
    %v3406 = vpack.c.b16 %v3330, %v3326
    %v3407 = vpack.c.b16 %v3331, %v3327
    %v3408 = vpack.c.b16 %v3332, %v3328
    %v3409 = vpack.c.b16 %v3337, %v3333
    %v3410 = vpack.c.b16 %v3338, %v3334
    %v3411 = vpack.c.b16 %v3339, %v3335
    %v3412 = vpack.c.b16 %v3340, %v3336
    %v3413 = vpack.c.b16 %v3345, %v3341
    %v3414 = vpack.c.b16 %v3346, %v3342
    %v3415 = vpack.c.b16 %v3347, %v3343
    %v3416 = vpack.c.b16 %v3348, %v3344
    %v3417 = vpack.c.b16 %v3353, %v3349
    %v3418 = vpack.c.b16 %v3354, %v3350
    %v3419 = vpack.c.b16 %v3355, %v3351
    %v3420 = vpack.c.b16 %v3356, %v3352
    %3485 = vmatprep.subr.bf16.mxu0 %v3358
    %3486 = vmatpush1.bf16.msra.mxu0 %v3357
    %3487 = vmatprep.subr.bf16.mxu0 %v3362
    %3488 = vmatpush1.bf16.msra.mxu0 %v3361
    %3489 = vmatprep.subr.bf16.mxu0 %v3366
    %3490 = vmatpush1.bf16.msra.mxu0 %v3365
    %3491 = vmatprep.subr.bf16.mxu0 %v3370
    %3492 = vmatpush1.bf16.msra.mxu0 %v3369
    %3493 = vmatprep.subr.bf16.mxu0 %v3374
    %3494 = vmatpush1.bf16.msra.mxu0 %v3373
    %3495 = vmatprep.subr.bf16.mxu0 %v3378
    %3496 = vmatpush1.bf16.msra.mxu0 %v3377
    %3497 = vmatprep.subr.bf16.mxu0 %v3382
    %3498 = vmatpush1.bf16.msra.mxu0 %v3381
    %3499 = vmatprep.subr.bf16.mxu0 %v3386
    %3500 = vmatpush1.bf16.msra.mxu0 %v3385
    %3501 = vmatprep.subr.bf16.mxu0 %v3390
    %3502 = vmatpush1.bf16.msra.mxu0 %v3389
    %3503 = vmatprep.subr.bf16.mxu0 %v3394
    %3504 = vmatpush1.bf16.msra.mxu0 %v3393
    %3505 = vmatprep.subr.bf16.mxu0 %v3398
    %3506 = vmatpush1.bf16.msra.mxu0 %v3397
    %3507 = vmatprep.subr.bf16.mxu0 %v3402
    %3508 = vmatpush1.bf16.msra.mxu0 %v3401
    %3509 = vmatprep.subr.bf16.mxu0 %v3406
    %3510 = vmatpush1.bf16.msra.mxu0 %v3405
    %3511 = vmatprep.subr.bf16.mxu0 %v3410
    %3512 = vmatpush1.bf16.msra.mxu0 %v3409
    %3513 = vmatprep.subr.bf16.mxu0 %v3414
    %3514 = vmatpush1.bf16.msra.mxu0 %v3413
    %3515 = vmatprep.subr.bf16.mxu0 %v3418
    %3516 = vmatpush1.bf16.msra.mxu0 %v3417
    %3517 = vmatprep.mubr.bf16.mxu0 %v3162
    %3518 = vmatmul.mubr.bf16.gmra.mrb[0].mxu0 %v3155
    %v3519 = vpop.f32.mrb[0].mxu0
    %v3520 = vadd.f32 0.0, %v3519
    %v3521 = vpop.f32.mrb[0].mxu0
    %v3522 = vadd.f32 0.0, %v3521
    %v3523 = vpop.f32.mrb[0].mxu0
    %v3524 = vpop.f32.mrb[0].mxu0
    %3525 = vdwg.mxu0
    %3526 = vmatprep.subr.bf16.mxu0 %v3360
    %3527 = vmatpush1.bf16.msra.mxu0 %v3359
    %3528 = vmatprep.subr.bf16.mxu0 %v3364
    %3529 = vmatpush1.bf16.msra.mxu0 %v3363
    %3530 = vmatprep.subr.bf16.mxu0 %v3368
    %3531 = vmatpush1.bf16.msra.mxu0 %v3367
    %3532 = vmatprep.subr.bf16.mxu0 %v3372
    %3533 = vmatpush1.bf16.msra.mxu0 %v3371
    %3534 = vmatprep.subr.bf16.mxu0 %v3376
    %3535 = vmatpush1.bf16.msra.mxu0 %v3375
    %3536 = vmatprep.subr.bf16.mxu0 %v3380
    %3537 = vmatpush1.bf16.msra.mxu0 %v3379
    %3538 = vmatprep.subr.bf16.mxu0 %v3384
    %3539 = vmatpush1.bf16.msra.mxu0 %v3383
    %3540 = vmatprep.subr.bf16.mxu0 %v3388
    %3541 = vmatpush1.bf16.msra.mxu0 %v3387
    %3542 = vmatprep.subr.bf16.mxu0 %v3392
    %3543 = vmatpush1.bf16.msra.mxu0 %v3391
    %3544 = vmatprep.subr.bf16.mxu0 %v3396
    %3545 = vmatpush1.bf16.msra.mxu0 %v3395
    %3546 = vmatprep.subr.bf16.mxu0 %v3400
    %3547 = vmatpush1.bf16.msra.mxu0 %v3399
    %3548 = vmatprep.subr.bf16.mxu0 %v3404
    %3549 = vmatpush1.bf16.msra.mxu0 %v3403
    %3550 = vmatprep.subr.bf16.mxu0 %v3408
    %3551 = vmatpush1.bf16.msra.mxu0 %v3407
    %3552 = vmatprep.subr.bf16.mxu0 %v3412
    %3553 = vmatpush1.bf16.msra.mxu0 %v3411
    %3554 = vmatprep.subr.bf16.mxu0 %v3416
    %3555 = vmatpush1.bf16.msra.mxu0 %v3415
    %3556 = vmatprep.subr.bf16.mxu0 %v3420
    %3557 = vmatpush1.bf16.msra.mxu0 %v3419
    %3558 = vmatprep.mubr.bf16.mxu0 %v3162
    %3559 = vmatmul.mubr.bf16.gmra.mrb[0].mxu0 %v3155
    %v3560 = vpop.f32.mrb[0].mxu0
    %v3561 = vadd.f32 0.0, %v3560
    %v3562 = vpop.f32.mrb[0].mxu0
    %v3563 = vadd.f32 0.0, %v3562
    %v3564 = vpop.f32.mrb[0].mxu0
    %v3565 = vpop.f32.mrb[0].mxu0
    %3566 = vdwg.mxu0
    %v3567 = vadd.f32 %v3076, %v3520
    %v3568 = vadd.f32 %v3077, %v3522
    %v3569 = vadd.f32 %v3078, %v3561
    %v3570 = vadd.f32 %v3079, %v3563
    %v3571 = vld [vmem:[#allocation2] sm:$0x7c]
    %v3572 = vld [vmem:[#allocation2 + $0x8] sm:$0x7c]
    %v3573 = vpack.c.bf16 %v3571, %v3571
    %v3574 = vpack.c.bf16 %v3572, %v3572
    %s3575 = scalar_lea.vmem %s3, 2048
    %v3576 = vld [vmem:[%s3575] sm:$0xff]
    %v3577 = vld [vmem:[%s3575 + $0x8] sm:$0xff]
    %v3578 = vld [vmem:[%s3575 + $0x10] sm:$0xff]
    %v3579 = vld [vmem:[%s3575 + $0x18] sm:$0xff]
    %v3580 = vld [vmem:[%s3575 + $0x20] sm:$0xff]
    %v3581 = vld [vmem:[%s3575 + $0x28] sm:$0xff]
    %v3582 = vld [vmem:[%s3575 + $0x30] sm:$0xff]
    %v3583 = vld [vmem:[%s3575 + $0x38] sm:$0xff]
    %v3584 = vld [vmem:[%s3575 + $0x40] sm:$0xff]
    %v3585 = vld [vmem:[%s3575 + $0x48] sm:$0xff]
    %v3586 = vld [vmem:[%s3575 + $0x50] sm:$0xff]
    %v3587 = vld [vmem:[%s3575 + $0x58] sm:$0xff]
    %v3588 = vld [vmem:[%s3575 + $0x60] sm:$0xff]
    %v3589 = vld [vmem:[%s3575 + $0x68] sm:$0xff]
    %v3590 = vld [vmem:[%s3575 + $0x70] sm:$0xff]
    %v3591 = vld [vmem:[%s3575 + $0x78] sm:$0xff]
    %v3592 = vld [vmem:[%s3575 + $0x80] sm:$0xff]
    %v3593 = vld [vmem:[%s3575 + $0x88] sm:$0xff]
    %v3594 = vld [vmem:[%s3575 + $0x90] sm:$0xff]
    %v3595 = vld [vmem:[%s3575 + $0x98] sm:$0xff]
    %v3596 = vld [vmem:[%s3575 + $0xa0] sm:$0xff]
    %v3597 = vld [vmem:[%s3575 + $0xa8] sm:$0xff]
    %v3598 = vld [vmem:[%s3575 + $0xb0] sm:$0xff]
    %v3599 = vld [vmem:[%s3575 + $0xb8] sm:$0xff]
    %v3600 = vld [vmem:[%s3575 + $0xc0] sm:$0xff]
    %v3601 = vld [vmem:[%s3575 + $0xc8] sm:$0xff]
    %v3602 = vld [vmem:[%s3575 + $0xd0] sm:$0xff]
    %v3603 = vld [vmem:[%s3575 + $0xd8] sm:$0xff]
    %v3604 = vld [vmem:[%s3575 + $0xe0] sm:$0xff]
    %v3605 = vld [vmem:[%s3575 + $0xe8] sm:$0xff]
    %v3606 = vld [vmem:[%s3575 + $0xf0] sm:$0xff]
    %v3607 = vld [vmem:[%s3575 + $0xf8] sm:$0xff]
    %v3608 = vld [vmem:[%s3575 + $0x100] sm:$0xff]
    %v3609 = vld [vmem:[%s3575 + $0x108] sm:$0xff]
    %v3610 = vld [vmem:[%s3575 + $0x110] sm:$0xff]
    %v3611 = vld [vmem:[%s3575 + $0x118] sm:$0xff]
    %v3612 = vld [vmem:[%s3575 + $0x120] sm:$0xff]
    %v3613 = vld [vmem:[%s3575 + $0x128] sm:$0xff]
    %v3614 = vld [vmem:[%s3575 + $0x130] sm:$0xff]
    %v3615 = vld [vmem:[%s3575 + $0x138] sm:$0xff]
    %v3616 = vld [vmem:[%s3575 + $0x140] sm:$0xff]
    %v3617 = vld [vmem:[%s3575 + $0x148] sm:$0xff]
    %v3618 = vld [vmem:[%s3575 + $0x150] sm:$0xff]
    %v3619 = vld [vmem:[%s3575 + $0x158] sm:$0xff]
    %v3620 = vld [vmem:[%s3575 + $0x160] sm:$0xff]
    %v3621 = vld [vmem:[%s3575 + $0x168] sm:$0xff]
    %v3622 = vld [vmem:[%s3575 + $0x170] sm:$0xff]
    %v3623 = vld [vmem:[%s3575 + $0x178] sm:$0xff]
    %v3624 = vld [vmem:[%s3575 + $0x180] sm:$0xff]
    %v3625 = vld [vmem:[%s3575 + $0x188] sm:$0xff]
    %v3626 = vld [vmem:[%s3575 + $0x190] sm:$0xff]
    %v3627 = vld [vmem:[%s3575 + $0x198] sm:$0xff]
    %v3628 = vld [vmem:[%s3575 + $0x1a0] sm:$0xff]
    %v3629 = vld [vmem:[%s3575 + $0x1a8] sm:$0xff]
    %v3630 = vld [vmem:[%s3575 + $0x1b0] sm:$0xff]
    %v3631 = vld [vmem:[%s3575 + $0x1b8] sm:$0xff]
    %v3632 = vld [vmem:[%s3575 + $0x1c0] sm:$0xff]
    %v3633 = vld [vmem:[%s3575 + $0x1c8] sm:$0xff]
    %v3634 = vld [vmem:[%s3575 + $0x1d0] sm:$0xff]
    %v3635 = vld [vmem:[%s3575 + $0x1d8] sm:$0xff]
    %v3636 = vld [vmem:[%s3575 + $0x1e0] sm:$0xff]
    %v3637 = vld [vmem:[%s3575 + $0x1e8] sm:$0xff]
    %v3638 = vld [vmem:[%s3575 + $0x1f0] sm:$0xff]
    %v3639 = vld [vmem:[%s3575 + $0x1f8] sm:$0xff]
    %v3642 = vrot.slane %v3573, 1
    %v3643 = vrot.slane %v3574, 1
    %v3710 = vunpack.c.l.b16 %v3576
    %v3711 = vunpack.c.h.b16 %v3576
    %v3712 = vunpack.c.l.b16 %v3577
    %v3713 = vunpack.c.h.b16 %v3577
    %v3714 = vunpack.c.l.b16 %v3578
    %v3715 = vunpack.c.h.b16 %v3578
    %v3716 = vunpack.c.l.b16 %v3579
    %v3717 = vunpack.c.h.b16 %v3579
    %v3718 = vunpack.c.l.b16 %v3580
    %v3719 = vunpack.c.h.b16 %v3580
    %v3720 = vunpack.c.l.b16 %v3581
    %v3721 = vunpack.c.h.b16 %v3581
    %v3722 = vunpack.c.l.b16 %v3582
    %v3723 = vunpack.c.h.b16 %v3582
    %v3724 = vunpack.c.l.b16 %v3583
    %v3725 = vunpack.c.h.b16 %v3583
    %v3726 = vunpack.c.l.b16 %v3584
    %v3727 = vunpack.c.h.b16 %v3584
    %v3728 = vunpack.c.l.b16 %v3585
    %v3729 = vunpack.c.h.b16 %v3585
    %v3730 = vunpack.c.l.b16 %v3586
    %v3731 = vunpack.c.h.b16 %v3586
    %v3732 = vunpack.c.l.b16 %v3587
    %v3733 = vunpack.c.h.b16 %v3587
    %v3734 = vunpack.c.l.b16 %v3588
    %v3735 = vunpack.c.h.b16 %v3588
    %v3736 = vunpack.c.l.b16 %v3589
    %v3737 = vunpack.c.h.b16 %v3589
    %v3738 = vunpack.c.l.b16 %v3590
    %v3739 = vunpack.c.h.b16 %v3590
    %v3740 = vunpack.c.l.b16 %v3591
    %v3741 = vunpack.c.h.b16 %v3591
    %v3742 = vunpack.c.l.b16 %v3592
    %v3743 = vunpack.c.h.b16 %v3592
    %v3744 = vunpack.c.l.b16 %v3593
    %v3745 = vunpack.c.h.b16 %v3593
    %v3746 = vunpack.c.l.b16 %v3594
    %v3747 = vunpack.c.h.b16 %v3594
    %v3748 = vunpack.c.l.b16 %v3595
    %v3749 = vunpack.c.h.b16 %v3595
    %v3750 = vunpack.c.l.b16 %v3596
    %v3751 = vunpack.c.h.b16 %v3596
    %v3752 = vunpack.c.l.b16 %v3597
    %v3753 = vunpack.c.h.b16 %v3597
    %v3754 = vunpack.c.l.b16 %v3598
    %v3755 = vunpack.c.h.b16 %v3598
    %v3756 = vunpack.c.l.b16 %v3599
    %v3757 = vunpack.c.h.b16 %v3599
    %v3758 = vunpack.c.l.b16 %v3600
    %v3759 = vunpack.c.h.b16 %v3600
    %v3760 = vunpack.c.l.b16 %v3601
    %v3761 = vunpack.c.h.b16 %v3601
    %v3762 = vunpack.c.l.b16 %v3602
    %v3763 = vunpack.c.h.b16 %v3602
    %v3764 = vunpack.c.l.b16 %v3603
    %v3765 = vunpack.c.h.b16 %v3603
    %v3766 = vunpack.c.l.b16 %v3604
    %v3767 = vunpack.c.h.b16 %v3604
    %v3768 = vunpack.c.l.b16 %v3605
    %v3769 = vunpack.c.h.b16 %v3605
    %v3770 = vunpack.c.l.b16 %v3606
    %v3771 = vunpack.c.h.b16 %v3606
    %v3772 = vunpack.c.l.b16 %v3607
    %v3773 = vunpack.c.h.b16 %v3607
    %v3774 = vunpack.c.l.b16 %v3608
    %v3775 = vunpack.c.h.b16 %v3608
    %v3776 = vunpack.c.l.b16 %v3609
    %v3777 = vunpack.c.h.b16 %v3609
    %v3778 = vunpack.c.l.b16 %v3610
    %v3779 = vunpack.c.h.b16 %v3610
    %v3780 = vunpack.c.l.b16 %v3611
    %v3781 = vunpack.c.h.b16 %v3611
    %v3782 = vunpack.c.l.b16 %v3612
    %v3783 = vunpack.c.h.b16 %v3612
    %v3784 = vunpack.c.l.b16 %v3613
    %v3785 = vunpack.c.h.b16 %v3613
    %v3786 = vunpack.c.l.b16 %v3614
    %v3787 = vunpack.c.h.b16 %v3614
    %v3788 = vunpack.c.l.b16 %v3615
    %v3789 = vunpack.c.h.b16 %v3615
    %v3790 = vunpack.c.l.b16 %v3616
    %v3791 = vunpack.c.h.b16 %v3616
    %v3792 = vunpack.c.l.b16 %v3617
    %v3793 = vunpack.c.h.b16 %v3617
    %v3794 = vunpack.c.l.b16 %v3618
    %v3795 = vunpack.c.h.b16 %v3618
    %v3796 = vunpack.c.l.b16 %v3619
    %v3797 = vunpack.c.h.b16 %v3619
    %v3798 = vunpack.c.l.b16 %v3620
    %v3799 = vunpack.c.h.b16 %v3620
    %v3800 = vunpack.c.l.b16 %v3621
    %v3801 = vunpack.c.h.b16 %v3621
    %v3802 = vunpack.c.l.b16 %v3622
    %v3803 = vunpack.c.h.b16 %v3622
    %v3804 = vunpack.c.l.b16 %v3623
    %v3805 = vunpack.c.h.b16 %v3623
    %v3806 = vunpack.c.l.b16 %v3624
    %v3807 = vunpack.c.h.b16 %v3624
    %v3808 = vunpack.c.l.b16 %v3625
    %v3809 = vunpack.c.h.b16 %v3625
    %v3810 = vunpack.c.l.b16 %v3626
    %v3811 = vunpack.c.h.b16 %v3626
    %v3812 = vunpack.c.l.b16 %v3627
    %v3813 = vunpack.c.h.b16 %v3627
    %v3814 = vunpack.c.l.b16 %v3628
    %v3815 = vunpack.c.h.b16 %v3628
    %v3816 = vunpack.c.l.b16 %v3629
    %v3817 = vunpack.c.h.b16 %v3629
    %v3818 = vunpack.c.l.b16 %v3630
    %v3819 = vunpack.c.h.b16 %v3630
    %v3820 = vunpack.c.l.b16 %v3631
    %v3821 = vunpack.c.h.b16 %v3631
    %v3822 = vunpack.c.l.b16 %v3632
    %v3823 = vunpack.c.h.b16 %v3632
    %v3824 = vunpack.c.l.b16 %v3633
    %v3825 = vunpack.c.h.b16 %v3633
    %v3826 = vunpack.c.l.b16 %v3634
    %v3827 = vunpack.c.h.b16 %v3634
    %v3828 = vunpack.c.l.b16 %v3635
    %v3829 = vunpack.c.h.b16 %v3635
    %v3830 = vunpack.c.l.b16 %v3636
    %v3831 = vunpack.c.h.b16 %v3636
    %v3832 = vunpack.c.l.b16 %v3637
    %v3833 = vunpack.c.h.b16 %v3637
    %v3834 = vunpack.c.l.b16 %v3638
    %v3835 = vunpack.c.h.b16 %v3638
    %v3836 = vunpack.c.l.b16 %v3639
    %v3837 = vunpack.c.h.b16 %v3639
    %v3838 = vpack.c.b16 %v3714, %v3710
    %v3839 = vpack.c.b16 %v3715, %v3711
    %v3840 = vpack.c.b16 %v3716, %v3712
    %v3841 = vpack.c.b16 %v3717, %v3713
    %v3842 = vpack.c.b16 %v3722, %v3718
    %v3843 = vpack.c.b16 %v3723, %v3719
    %v3844 = vpack.c.b16 %v3724, %v3720
    %v3845 = vpack.c.b16 %v3725, %v3721
    %v3846 = vpack.c.b16 %v3730, %v3726
    %v3847 = vpack.c.b16 %v3731, %v3727
    %v3848 = vpack.c.b16 %v3732, %v3728
    %v3849 = vpack.c.b16 %v3733, %v3729
    %v3850 = vpack.c.b16 %v3738, %v3734
    %v3851 = vpack.c.b16 %v3739, %v3735
    %v3852 = vpack.c.b16 %v3740, %v3736
    %v3853 = vpack.c.b16 %v3741, %v3737
    %v3854 = vpack.c.b16 %v3746, %v3742
    %v3855 = vpack.c.b16 %v3747, %v3743
    %v3856 = vpack.c.b16 %v3748, %v3744
    %v3857 = vpack.c.b16 %v3749, %v3745
    %v3858 = vpack.c.b16 %v3754, %v3750
    %v3859 = vpack.c.b16 %v3755, %v3751
    %v3860 = vpack.c.b16 %v3756, %v3752
    %v3861 = vpack.c.b16 %v3757, %v3753
    %v3862 = vpack.c.b16 %v3762, %v3758
    %v3863 = vpack.c.b16 %v3763, %v3759
    %v3864 = vpack.c.b16 %v3764, %v3760
    %v3865 = vpack.c.b16 %v3765, %v3761
    %v3866 = vpack.c.b16 %v3770, %v3766
    %v3867 = vpack.c.b16 %v3771, %v3767
    %v3868 = vpack.c.b16 %v3772, %v3768
    %v3869 = vpack.c.b16 %v3773, %v3769
    %v3870 = vpack.c.b16 %v3778, %v3774
    %v3871 = vpack.c.b16 %v3779, %v3775
    %v3872 = vpack.c.b16 %v3780, %v3776
    %v3873 = vpack.c.b16 %v3781, %v3777
    %v3874 = vpack.c.b16 %v3786, %v3782
    %v3875 = vpack.c.b16 %v3787, %v3783
    %v3876 = vpack.c.b16 %v3788, %v3784
    %v3877 = vpack.c.b16 %v3789, %v3785
    %v3878 = vpack.c.b16 %v3794, %v3790
    %v3879 = vpack.c.b16 %v3795, %v3791
    %v3880 = vpack.c.b16 %v3796, %v3792
    %v3881 = vpack.c.b16 %v3797, %v3793
    %v3882 = vpack.c.b16 %v3802, %v3798
    %v3883 = vpack.c.b16 %v3803, %v3799
    %v3884 = vpack.c.b16 %v3804, %v3800
    %v3885 = vpack.c.b16 %v3805, %v3801
    %v3886 = vpack.c.b16 %v3810, %v3806
    %v3887 = vpack.c.b16 %v3811, %v3807
    %v3888 = vpack.c.b16 %v3812, %v3808
    %v3889 = vpack.c.b16 %v3813, %v3809
    %v3890 = vpack.c.b16 %v3818, %v3814
    %v3891 = vpack.c.b16 %v3819, %v3815
    %v3892 = vpack.c.b16 %v3820, %v3816
    %v3893 = vpack.c.b16 %v3821, %v3817
    %v3894 = vpack.c.b16 %v3826, %v3822
    %v3895 = vpack.c.b16 %v3827, %v3823
    %v3896 = vpack.c.b16 %v3828, %v3824
    %v3897 = vpack.c.b16 %v3829, %v3825
    %v3898 = vpack.c.b16 %v3834, %v3830
    %v3899 = vpack.c.b16 %v3835, %v3831
    %v3900 = vpack.c.b16 %v3836, %v3832
    %v3901 = vpack.c.b16 %v3837, %v3833
    %3966 = vmatprep.subr.bf16.mxu0 %v3839
    %3967 = vmatpush1.bf16.msra.mxu0 %v3838
    %3968 = vmatprep.subr.bf16.mxu0 %v3843
    %3969 = vmatpush1.bf16.msra.mxu0 %v3842
    %3970 = vmatprep.subr.bf16.mxu0 %v3847
    %3971 = vmatpush1.bf16.msra.mxu0 %v3846
    %3972 = vmatprep.subr.bf16.mxu0 %v3851
    %3973 = vmatpush1.bf16.msra.mxu0 %v3850
    %3974 = vmatprep.subr.bf16.mxu0 %v3855
    %3975 = vmatpush1.bf16.msra.mxu0 %v3854
    %3976 = vmatprep.subr.bf16.mxu0 %v3859
    %3977 = vmatpush1.bf16.msra.mxu0 %v3858
    %3978 = vmatprep.subr.bf16.mxu0 %v3863
    %3979 = vmatpush1.bf16.msra.mxu0 %v3862
    %3980 = vmatprep.subr.bf16.mxu0 %v3867
    %3981 = vmatpush1.bf16.msra.mxu0 %v3866
    %3982 = vmatprep.subr.bf16.mxu0 %v3871
    %3983 = vmatpush1.bf16.msra.mxu0 %v3870
    %3984 = vmatprep.subr.bf16.mxu0 %v3875
    %3985 = vmatpush1.bf16.msra.mxu0 %v3874
    %3986 = vmatprep.subr.bf16.mxu0 %v3879
    %3987 = vmatpush1.bf16.msra.mxu0 %v3878
    %3988 = vmatprep.subr.bf16.mxu0 %v3883
    %3989 = vmatpush1.bf16.msra.mxu0 %v3882
    %3990 = vmatprep.subr.bf16.mxu0 %v3887
    %3991 = vmatpush1.bf16.msra.mxu0 %v3886
    %3992 = vmatprep.subr.bf16.mxu0 %v3891
    %3993 = vmatpush1.bf16.msra.mxu0 %v3890
    %3994 = vmatprep.subr.bf16.mxu0 %v3895
    %3995 = vmatpush1.bf16.msra.mxu0 %v3894
    %3996 = vmatprep.subr.bf16.mxu0 %v3899
    %3997 = vmatpush1.bf16.msra.mxu0 %v3898
    %3998 = vmatprep.mubr.bf16.mxu0 %v3643
    %3999 = vmatmul.mubr.bf16.gmra.mrb[0].mxu0 %v3642
    %v4000 = vpop.f32.mrb[0].mxu0
    %v4001 = vadd.f32 0.0, %v4000
    %v4002 = vpop.f32.mrb[0].mxu0
    %v4003 = vadd.f32 0.0, %v4002
    %v4004 = vpop.f32.mrb[0].mxu0
    %v4005 = vpop.f32.mrb[0].mxu0
    %4006 = vdwg.mxu0
    %4007 = vmatprep.subr.bf16.mxu0 %v3841
    %4008 = vmatpush1.bf16.msra.mxu0 %v3840
    %4009 = vmatprep.subr.bf16.mxu0 %v3845
    %4010 = vmatpush1.bf16.msra.mxu0 %v3844
    %4011 = vmatprep.subr.bf16.mxu0 %v3849
    %4012 = vmatpush1.bf16.msra.mxu0 %v3848
    %4013 = vmatprep.subr.bf16.mxu0 %v3853
    %4014 = vmatpush1.bf16.msra.mxu0 %v3852
    %4015 = vmatprep.subr.bf16.mxu0 %v3857
    %4016 = vmatpush1.bf16.msra.mxu0 %v3856
    %4017 = vmatprep.subr.bf16.mxu0 %v3861
    %4018 = vmatpush1.bf16.msra.mxu0 %v3860
    %4019 = vmatprep.subr.bf16.mxu0 %v3865
    %4020 = vmatpush1.bf16.msra.mxu0 %v3864
    %4021 = vmatprep.subr.bf16.mxu0 %v3869
    %4022 = vmatpush1.bf16.msra.mxu0 %v3868
    %4023 = vmatprep.subr.bf16.mxu0 %v3873
    %4024 = vmatpush1.bf16.msra.mxu0 %v3872
    %4025 = vmatprep.subr.bf16.mxu0 %v3877
    %4026 = vmatpush1.bf16.msra.mxu0 %v3876
    %4027 = vmatprep.subr.bf16.mxu0 %v3881
    %4028 = vmatpush1.bf16.msra.mxu0 %v3880
    %4029 = vmatprep.subr.bf16.mxu0 %v3885
    %4030 = vmatpush1.bf16.msra.mxu0 %v3884
    %4031 = vmatprep.subr.bf16.mxu0 %v3889
    %4032 = vmatpush1.bf16.msra.mxu0 %v3888
    %4033 = vmatprep.subr.bf16.mxu0 %v3893
    %4034 = vmatpush1.bf16.msra.mxu0 %v3892
    %4035 = vmatprep.subr.bf16.mxu0 %v3897
    %4036 = vmatpush1.bf16.msra.mxu0 %v3896
    %4037 = vmatprep.subr.bf16.mxu0 %v3901
    %4038 = vmatpush1.bf16.msra.mxu0 %v3900
    %4039 = vmatprep.mubr.bf16.mxu0 %v3643
    %4040 = vmatmul.mubr.bf16.gmra.mrb[0].mxu0 %v3642
    %v4041 = vpop.f32.mrb[0].mxu0
    %v4042 = vadd.f32 0.0, %v4041
    %v4043 = vpop.f32.mrb[0].mxu0
    %v4044 = vadd.f32 0.0, %v4043
    %v4045 = vpop.f32.mrb[0].mxu0
    %v4046 = vpop.f32.mrb[0].mxu0
    %4047 = vdwg.mxu0
    %v4048 = vadd.f32 %v3567, %v4001
    %v4049 = vadd.f32 %v3568, %v4003
    %v4050 = vadd.f32 %v3569, %v4042
    %v4051 = vadd.f32 %v3570, %v4044
    %v4052 = vmax.f32 %v4048, %v4050
    %v4053 = vmax.f32 %v4049, %v4051
    %4054 = vmatprep.subr.bf16.mxu0 %v1978
    %4055 = vmatpush1.bf16.msra.mxu0 %v1977
    %4056 = vmatprep.subr.bf16.mxu0 %v1982
    %4057 = vmatpush1.bf16.msra.mxu0 %v1981
    %4058 = vmatprep.subr.bf16.mxu0 %v1986
    %4059 = vmatpush1.bf16.msra.mxu0 %v1985
    %4060 = vmatprep.subr.bf16.mxu0 %v1990
    %4061 = vmatpush1.bf16.msra.mxu0 %v1989
    %4062 = vmatprep.subr.bf16.mxu0 %v1994
    %4063 = vmatpush1.bf16.msra.mxu0 %v1993
    %4064 = vmatprep.subr.bf16.mxu0 %v1998
    %4065 = vmatpush1.bf16.msra.mxu0 %v1997
    %4066 = vmatprep.subr.bf16.mxu0 %v2002
    %4067 = vmatpush1.bf16.msra.mxu0 %v2001
    %4068 = vmatprep.subr.bf16.mxu0 %v2006
    %4069 = vmatpush1.bf16.msra.mxu0 %v2005
    %4070 = vmatprep.subr.bf16.mxu0 %v2010
    %4071 = vmatpush1.bf16.msra.mxu0 %v2009
    %4072 = vmatprep.subr.bf16.mxu0 %v2014
    %4073 = vmatpush1.bf16.msra.mxu0 %v2013
    %4074 = vmatprep.subr.bf16.mxu0 %v2018
    %4075 = vmatpush1.bf16.msra.mxu0 %v2017
    %4076 = vmatprep.subr.bf16.mxu0 %v2022
    %4077 = vmatpush1.bf16.msra.mxu0 %v2021
    %4078 = vmatprep.subr.bf16.mxu0 %v2026
    %4079 = vmatpush1.bf16.msra.mxu0 %v2025
    %4080 = vmatprep.subr.bf16.mxu0 %v2030
    %4081 = vmatpush1.bf16.msra.mxu0 %v2029
    %4082 = vmatprep.subr.bf16.mxu0 %v2034
    %4083 = vmatpush1.bf16.msra.mxu0 %v2033
    %4084 = vmatprep.subr.bf16.mxu0 %v2038
    %4085 = vmatpush1.bf16.msra.mxu0 %v2037
    %4086 = vmatprep.mubr.bf16.mxu0 %v2671
    %4087 = vmatmul.mubr.bf16.gmra.mrb[0].mxu0 %v2664
    %v4088 = vpop.f32.mrb[0].mxu0
    %v4089 = vadd.f32 0.0, %v4088
    %v4090 = vpop.f32.mrb[0].mxu0
    %v4091 = vadd.f32 0.0, %v4090
    %v4092 = vpop.f32.mrb[0].mxu0
    %v4093 = vpop.f32.mrb[0].mxu0
    %4094 = vdwg.mxu0
    %4095 = vmatprep.subr.bf16.mxu0 %v1980
    %4096 = vmatpush1.bf16.msra.mxu0 %v1979
    %4097 = vmatprep.subr.bf16.mxu0 %v1984
    %4098 = vmatpush1.bf16.msra.mxu0 %v1983
    %4099 = vmatprep.subr.bf16.mxu0 %v1988
    %4100 = vmatpush1.bf16.msra.mxu0 %v1987
    %4101 = vmatprep.subr.bf16.mxu0 %v1992
    %4102 = vmatpush1.bf16.msra.mxu0 %v1991
    %4103 = vmatprep.subr.bf16.mxu0 %v1996
    %4104 = vmatpush1.bf16.msra.mxu0 %v1995
    %4105 = vmatprep.subr.bf16.mxu0 %v2000
    %4106 = vmatpush1.bf16.msra.mxu0 %v1999
    %4107 = vmatprep.subr.bf16.mxu0 %v2004
    %4108 = vmatpush1.bf16.msra.mxu0 %v2003
    %4109 = vmatprep.subr.bf16.mxu0 %v2008
    %4110 = vmatpush1.bf16.msra.mxu0 %v2007
    %4111 = vmatprep.subr.bf16.mxu0 %v2012
    %4112 = vmatpush1.bf16.msra.mxu0 %v2011
    %4113 = vmatprep.subr.bf16.mxu0 %v2016
    %4114 = vmatpush1.bf16.msra.mxu0 %v2015
    %4115 = vmatprep.subr.bf16.mxu0 %v2020
    %4116 = vmatpush1.bf16.msra.mxu0 %v2019
    %4117 = vmatprep.subr.bf16.mxu0 %v2024
    %4118 = vmatpush1.bf16.msra.mxu0 %v2023
    %4119 = vmatprep.subr.bf16.mxu0 %v2028
    %4120 = vmatpush1.bf16.msra.mxu0 %v2027
    %4121 = vmatprep.subr.bf16.mxu0 %v2032
    %4122 = vmatpush1.bf16.msra.mxu0 %v2031
    %4123 = vmatprep.subr.bf16.mxu0 %v2036
    %4124 = vmatpush1.bf16.msra.mxu0 %v2035
    %4125 = vmatprep.subr.bf16.mxu0 %v2040
    %4126 = vmatpush1.bf16.msra.mxu0 %v2039
    %4127 = vmatprep.mubr.bf16.mxu0 %v2671
    %4128 = vmatmul.mubr.bf16.gmra.mrb[0].mxu0 %v2664
    %v4129 = vpop.f32.mrb[0].mxu0
    %v4130 = vadd.f32 0.0, %v4129
    %v4131 = vpop.f32.mrb[0].mxu0
    %v4132 = vadd.f32 0.0, %v4131
    %v4133 = vpop.f32.mrb[0].mxu0
    %v4134 = vpop.f32.mrb[0].mxu0
    %4135 = vdwg.mxu0
    %4136 = vmatprep.subr.bf16.mxu0 %v2380
    %4137 = vmatpush1.bf16.msra.mxu0 %v2379
    %4138 = vmatprep.subr.bf16.mxu0 %v2384
    %4139 = vmatpush1.bf16.msra.mxu0 %v2383
    %4140 = vmatprep.subr.bf16.mxu0 %v2388
    %4141 = vmatpush1.bf16.msra.mxu0 %v2387
    %4142 = vmatprep.subr.bf16.mxu0 %v2392
    %4143 = vmatpush1.bf16.msra.mxu0 %v2391
    %4144 = vmatprep.subr.bf16.mxu0 %v2396
    %4145 = vmatpush1.bf16.msra.mxu0 %v2395
    %4146 = vmatprep.subr.bf16.mxu0 %v2400
    %4147 = vmatpush1.bf16.msra.mxu0 %v2399
    %4148 = vmatprep.subr.bf16.mxu0 %v2404
    %4149 = vmatpush1.bf16.msra.mxu0 %v2403
    %4150 = vmatprep.subr.bf16.mxu0 %v2408
    %4151 = vmatpush1.bf16.msra.mxu0 %v2407
    %4152 = vmatprep.subr.bf16.mxu0 %v2412
    %4153 = vmatpush1.bf16.msra.mxu0 %v2411
    %4154 = vmatprep.subr.bf16.mxu0 %v2416
    %4155 = vmatpush1.bf16.msra.mxu0 %v2415
    %4156 = vmatprep.subr.bf16.mxu0 %v2420
    %4157 = vmatpush1.bf16.msra.mxu0 %v2419
    %4158 = vmatprep.subr.bf16.mxu0 %v2424
    %4159 = vmatpush1.bf16.msra.mxu0 %v2423
    %4160 = vmatprep.subr.bf16.mxu0 %v2428
    %4161 = vmatpush1.bf16.msra.mxu0 %v2427
    %4162 = vmatprep.subr.bf16.mxu0 %v2432
    %4163 = vmatpush1.bf16.msra.mxu0 %v2431
    %4164 = vmatprep.subr.bf16.mxu0 %v2436
    %4165 = vmatpush1.bf16.msra.mxu0 %v2435
    %4166 = vmatprep.subr.bf16.mxu0 %v2440
    %4167 = vmatpush1.bf16.msra.mxu0 %v2439
    %4168 = vmatprep.mubr.bf16.mxu0 %v1719
    %4169 = vmatmul.mubr.bf16.gmra.mrb[0].mxu0 %v1718
    %v4170 = vpop.f32.mrb[0].mxu0
    %v4171 = vadd.f32 %v4089, %v4170
    %v4172 = vpop.f32.mrb[0].mxu0
    %v4173 = vadd.f32 %v4091, %v4172
    %v4174 = vpop.f32.mrb[0].mxu0
    %v4175 = vpop.f32.mrb[0].mxu0
    %4176 = vdwg.mxu0
    %4177 = vmatprep.subr.bf16.mxu0 %v2382
    %4178 = vmatpush1.bf16.msra.mxu0 %v2381
    %4179 = vmatprep.subr.bf16.mxu0 %v2386
    %4180 = vmatpush1.bf16.msra.mxu0 %v2385
    %4181 = vmatprep.subr.bf16.mxu0 %v2390
    %4182 = vmatpush1.bf16.msra.mxu0 %v2389
    %4183 = vmatprep.subr.bf16.mxu0 %v2394
    %4184 = vmatpush1.bf16.msra.mxu0 %v2393
    %4185 = vmatprep.subr.bf16.mxu0 %v2398
    %4186 = vmatpush1.bf16.msra.mxu0 %v2397
    %4187 = vmatprep.subr.bf16.mxu0 %v2402
    %4188 = vmatpush1.bf16.msra.mxu0 %v2401
    %4189 = vmatprep.subr.bf16.mxu0 %v2406
    %4190 = vmatpush1.bf16.msra.mxu0 %v2405
    %4191 = vmatprep.subr.bf16.mxu0 %v2410
    %4192 = vmatpush1.bf16.msra.mxu0 %v2409
    %4193 = vmatprep.subr.bf16.mxu0 %v2414
    %4194 = vmatpush1.bf16.msra.mxu0 %v2413
    %4195 = vmatprep.subr.bf16.mxu0 %v2418
    %4196 = vmatpush1.bf16.msra.mxu0 %v2417
    %4197 = vmatprep.subr.bf16.mxu0 %v2422
    %4198 = vmatpush1.bf16.msra.mxu0 %v2421
    %4199 = vmatprep.subr.bf16.mxu0 %v2426
    %4200 = vmatpush1.bf16.msra.mxu0 %v2425
    %4201 = vmatprep.subr.bf16.mxu0 %v2430
    %4202 = vmatpush1.bf16.msra.mxu0 %v2429
    %4203 = vmatprep.subr.bf16.mxu0 %v2434
    %4204 = vmatpush1.bf16.msra.mxu0 %v2433
    %4205 = vmatprep.subr.bf16.mxu0 %v2438
    %4206 = vmatpush1.bf16.msra.mxu0 %v2437
    %4207 = vmatprep.subr.bf16.mxu0 %v2442
    %4208 = vmatpush1.bf16.msra.mxu0 %v2441
    %4209 = vmatprep.mubr.bf16.mxu0 %v1719
    %4210 = vmatmul.mubr.bf16.gmra.mrb[0].mxu0 %v1718
    %v4211 = vpop.f32.mrb[0].mxu0
    %v4212 = vadd.f32 %v4130, %v4211
    %v4213 = vpop.f32.mrb[0].mxu0
    %v4214 = vadd.f32 %v4132, %v4213
    %v4215 = vpop.f32.mrb[0].mxu0
    %v4216 = vpop.f32.mrb[0].mxu0
    %4217 = vdwg.mxu0
    %4218 = vmatprep.subr.bf16.mxu0 %v2867
    %4219 = vmatpush1.bf16.msra.mxu0 %v2866
    %4220 = vmatprep.subr.bf16.mxu0 %v2871
    %4221 = vmatpush1.bf16.msra.mxu0 %v2870
    %4222 = vmatprep.subr.bf16.mxu0 %v2875
    %4223 = vmatpush1.bf16.msra.mxu0 %v2874
    %4224 = vmatprep.subr.bf16.mxu0 %v2879
    %4225 = vmatpush1.bf16.msra.mxu0 %v2878
    %4226 = vmatprep.subr.bf16.mxu0 %v2883
    %4227 = vmatpush1.bf16.msra.mxu0 %v2882
    %4228 = vmatprep.subr.bf16.mxu0 %v2887
    %4229 = vmatpush1.bf16.msra.mxu0 %v2886
    %4230 = vmatprep.subr.bf16.mxu0 %v2891
    %4231 = vmatpush1.bf16.msra.mxu0 %v2890
    %4232 = vmatprep.subr.bf16.mxu0 %v2895
    %4233 = vmatpush1.bf16.msra.mxu0 %v2894
    %4234 = vmatprep.subr.bf16.mxu0 %v2899
    %4235 = vmatpush1.bf16.msra.mxu0 %v2898
    %4236 = vmatprep.subr.bf16.mxu0 %v2903
    %4237 = vmatpush1.bf16.msra.mxu0 %v2902
    %4238 = vmatprep.subr.bf16.mxu0 %v2907
    %4239 = vmatpush1.bf16.msra.mxu0 %v2906
    %4240 = vmatprep.subr.bf16.mxu0 %v2911
    %4241 = vmatpush1.bf16.msra.mxu0 %v2910
    %4242 = vmatprep.subr.bf16.mxu0 %v2915
    %4243 = vmatpush1.bf16.msra.mxu0 %v2914
    %4244 = vmatprep.subr.bf16.mxu0 %v2919
    %4245 = vmatpush1.bf16.msra.mxu0 %v2918
    %4246 = vmatprep.subr.bf16.mxu0 %v2923
    %4247 = vmatpush1.bf16.msra.mxu0 %v2922
    %4248 = vmatprep.subr.bf16.mxu0 %v2927
    %4249 = vmatpush1.bf16.msra.mxu0 %v2926
    %4250 = vmatprep.mubr.bf16.mxu0 %v3162
    %4251 = vmatmul.mubr.bf16.gmra.mrb[0].mxu0 %v3155
    %v4252 = vpop.f32.mrb[0].mxu0
    %v4253 = vadd.f32 0.0, %v4252
    %v4254 = vpop.f32.mrb[0].mxu0
    %v4255 = vadd.f32 0.0, %v4254
    %v4256 = vpop.f32.mrb[0].mxu0
    %v4257 = vpop.f32.mrb[0].mxu0
    %4258 = vdwg.mxu0
    %4259 = vmatprep.subr.bf16.mxu0 %v2869
    %4260 = vmatpush1.bf16.msra.mxu0 %v2868
    %4261 = vmatprep.subr.bf16.mxu0 %v2873
    %4262 = vmatpush1.bf16.msra.mxu0 %v2872
    %4263 = vmatprep.subr.bf16.mxu0 %v2877
    %4264 = vmatpush1.bf16.msra.mxu0 %v2876
    %4265 = vmatprep.subr.bf16.mxu0 %v2881
    %4266 = vmatpush1.bf16.msra.mxu0 %v2880
    %4267 = vmatprep.subr.bf16.mxu0 %v2885
    %4268 = vmatpush1.bf16.msra.mxu0 %v2884
    %4269 = vmatprep.subr.bf16.mxu0 %v2889
    %4270 = vmatpush1.bf16.msra.mxu0 %v2888
    %4271 = vmatprep.subr.bf16.mxu0 %v2893
    %4272 = vmatpush1.bf16.msra.mxu0 %v2892
    %4273 = vmatprep.subr.bf16.mxu0 %v2897
    %4274 = vmatpush1.bf16.msra.mxu0 %v2896
    %4275 = vmatprep.subr.bf16.mxu0 %v2901
    %4276 = vmatpush1.bf16.msra.mxu0 %v2900
    %4277 = vmatprep.subr.bf16.mxu0 %v2905
    %4278 = vmatpush1.bf16.msra.mxu0 %v2904
    %4279 = vmatprep.subr.bf16.mxu0 %v2909
    %4280 = vmatpush1.bf16.msra.mxu0 %v2908
    %4281 = vmatprep.subr.bf16.mxu0 %v2913
    %4282 = vmatpush1.bf16.msra.mxu0 %v2912
    %4283 = vmatprep.subr.bf16.mxu0 %v2917
    %4284 = vmatpush1.bf16.msra.mxu0 %v2916
    %4285 = vmatprep.subr.bf16.mxu0 %v2921
    %4286 = vmatpush1.bf16.msra.mxu0 %v2920
    %4287 = vmatprep.subr.bf16.mxu0 %v2925
    %4288 = vmatpush1.bf16.msra.mxu0 %v2924
    %4289 = vmatprep.subr.bf16.mxu0 %v2929
    %4290 = vmatpush1.bf16.msra.mxu0 %v2928
    %4291 = vmatprep.mubr.bf16.mxu0 %v3162
    %4292 = vmatmul.mubr.bf16.gmra.mrb[0].mxu0 %v3155
    %v4293 = vpop.f32.mrb[0].mxu0
    %v4294 = vadd.f32 0.0, %v4293
    %v4295 = vpop.f32.mrb[0].mxu0
    %v4296 = vadd.f32 0.0, %v4295
    %v4297 = vpop.f32.mrb[0].mxu0
    %v4298 = vpop.f32.mrb[0].mxu0
    %4299 = vdwg.mxu0
    %v4300 = vadd.f32 %v4171, %v4253
    %v4301 = vadd.f32 %v4173, %v4255
    %v4302 = vadd.f32 %v4212, %v4294
    %v4303 = vadd.f32 %v4214, %v4296
    %4304 = vmatprep.subr.bf16.mxu0 %v3358
    %4305 = vmatpush1.bf16.msra.mxu0 %v3357
    %4306 = vmatprep.subr.bf16.mxu0 %v3362
    %4307 = vmatpush1.bf16.msra.mxu0 %v3361
    %4308 = vmatprep.subr.bf16.mxu0 %v3366
    %4309 = vmatpush1.bf16.msra.mxu0 %v3365
    %4310 = vmatprep.subr.bf16.mxu0 %v3370
    %4311 = vmatpush1.bf16.msra.mxu0 %v3369
    %4312 = vmatprep.subr.bf16.mxu0 %v3374
    %4313 = vmatpush1.bf16.msra.mxu0 %v3373
    %4314 = vmatprep.subr.bf16.mxu0 %v3378
    %4315 = vmatpush1.bf16.msra.mxu0 %v3377
    %4316 = vmatprep.subr.bf16.mxu0 %v3382
    %4317 = vmatpush1.bf16.msra.mxu0 %v3381
    %4318 = vmatprep.subr.bf16.mxu0 %v3386
    %4319 = vmatpush1.bf16.msra.mxu0 %v3385
    %4320 = vmatprep.subr.bf16.mxu0 %v3390
    %4321 = vmatpush1.bf16.msra.mxu0 %v3389
    %4322 = vmatprep.subr.bf16.mxu0 %v3394
    %4323 = vmatpush1.bf16.msra.mxu0 %v3393
    %4324 = vmatprep.subr.bf16.mxu0 %v3398
    %4325 = vmatpush1.bf16.msra.mxu0 %v3397
    %4326 = vmatprep.subr.bf16.mxu0 %v3402
    %4327 = vmatpush1.bf16.msra.mxu0 %v3401
    %4328 = vmatprep.subr.bf16.mxu0 %v3406
    %4329 = vmatpush1.bf16.msra.mxu0 %v3405
    %4330 = vmatprep.subr.bf16.mxu0 %v3410
    %4331 = vmatpush1.bf16.msra.mxu0 %v3409
    %4332 = vmatprep.subr.bf16.mxu0 %v3414
    %4333 = vmatpush1.bf16.msra.mxu0 %v3413
    %4334 = vmatprep.subr.bf16.mxu0 %v3418
    %4335 = vmatpush1.bf16.msra.mxu0 %v3417
    %4336 = vmatprep.mubr.bf16.mxu0 %v3643
    %4337 = vmatmul.mubr.bf16.gmra.mrb[0].mxu0 %v3642
    %v4338 = vpop.f32.mrb[0].mxu0
    %v4339 = vadd.f32 0.0, %v4338
    %v4340 = vpop.f32.mrb[0].mxu0
    %v4341 = vadd.f32 0.0, %v4340
    %v4342 = vpop.f32.mrb[0].mxu0
    %v4343 = vpop.f32.mrb[0].mxu0
    %4344 = vdwg.mxu0
    %4345 = vmatprep.subr.bf16.mxu0 %v3360
    %4346 = vmatpush1.bf16.msra.mxu0 %v3359
    %4347 = vmatprep.subr.bf16.mxu0 %v3364
    %4348 = vmatpush1.bf16.msra.mxu0 %v3363
    %4349 = vmatprep.subr.bf16.mxu0 %v3368
    %4350 = vmatpush1.bf16.msra.mxu0 %v3367
    %4351 = vmatprep.subr.bf16.mxu0 %v3372
    %4352 = vmatpush1.bf16.msra.mxu0 %v3371
    %4353 = vmatprep.subr.bf16.mxu0 %v3376
    %4354 = vmatpush1.bf16.msra.mxu0 %v3375
    %4355 = vmatprep.subr.bf16.mxu0 %v3380
    %4356 = vmatpush1.bf16.msra.mxu0 %v3379
    %4357 = vmatprep.subr.bf16.mxu0 %v3384
    %4358 = vmatpush1.bf16.msra.mxu0 %v3383
    %4359 = vmatprep.subr.bf16.mxu0 %v3388
    %4360 = vmatpush1.bf16.msra.mxu0 %v3387
    %4361 = vmatprep.subr.bf16.mxu0 %v3392
    %4362 = vmatpush1.bf16.msra.mxu0 %v3391
    %4363 = vmatprep.subr.bf16.mxu0 %v3396
    %4364 = vmatpush1.bf16.msra.mxu0 %v3395
    %4365 = vmatprep.subr.bf16.mxu0 %v3400
    %4366 = vmatpush1.bf16.msra.mxu0 %v3399
    %4367 = vmatprep.subr.bf16.mxu0 %v3404
    %4368 = vmatpush1.bf16.msra.mxu0 %v3403
    %4369 = vmatprep.subr.bf16.mxu0 %v3408
    %4370 = vmatpush1.bf16.msra.mxu0 %v3407
    %4371 = vmatprep.subr.bf16.mxu0 %v3412
    %4372 = vmatpush1.bf16.msra.mxu0 %v3411
    %4373 = vmatprep.subr.bf16.mxu0 %v3416
    %4374 = vmatpush1.bf16.msra.mxu0 %v3415
    %4375 = vmatprep.subr.bf16.mxu0 %v3420
    %4376 = vmatpush1.bf16.msra.mxu0 %v3419
    %4377 = vmatprep.mubr.bf16.mxu0 %v3643
    %4378 = vmatmul.mubr.bf16.gmra.mrb[0].mxu0 %v3642
    %v4379 = vpop.f32.mrb[0].mxu0
    %v4380 = vadd.f32 0.0, %v4379
    %v4381 = vpop.f32.mrb[0].mxu0
    %v4382 = vadd.f32 0.0, %v4381
    %v4383 = vpop.f32.mrb[0].mxu0
    %v4384 = vpop.f32.mrb[0].mxu0
    %4385 = vdwg.mxu0
    %v4386 = vadd.f32 %v4300, %v4339
    %v4387 = vadd.f32 %v4301, %v4341
    %v4388 = vadd.f32 %v4302, %v4380
    %v4389 = vadd.f32 %v4303, %v4382
    %v4390 = vld [vmem:[#allocation3] sm:$0x7c]
    %v4391 = vld [vmem:[#allocation3 + $0x8] sm:$0x7c]
    %v4392 = vpack.c.bf16 %v4390, %v4390
    %v4393 = vpack.c.bf16 %v4391, %v4391
    %v4396 = vrot.slane %v4392, 1
    %v4397 = vrot.slane %v4393, 1
    %4400 = vmatprep.subr.bf16.mxu0 %v3839
    %4401 = vmatpush1.bf16.msra.mxu0 %v3838
    %4402 = vmatprep.subr.bf16.mxu0 %v3843
    %4403 = vmatpush1.bf16.msra.mxu0 %v3842
    %4404 = vmatprep.subr.bf16.mxu0 %v3847
    %4405 = vmatpush1.bf16.msra.mxu0 %v3846
    %4406 = vmatprep.subr.bf16.mxu0 %v3851
    %4407 = vmatpush1.bf16.msra.mxu0 %v3850
    %4408 = vmatprep.subr.bf16.mxu0 %v3855
    %4409 = vmatpush1.bf16.msra.mxu0 %v3854
    %4410 = vmatprep.subr.bf16.mxu0 %v3859
    %4411 = vmatpush1.bf16.msra.mxu0 %v3858
    %4412 = vmatprep.subr.bf16.mxu0 %v3863
    %4413 = vmatpush1.bf16.msra.mxu0 %v3862
    %4414 = vmatprep.subr.bf16.mxu0 %v3867
    %4415 = vmatpush1.bf16.msra.mxu0 %v3866
    %4416 = vmatprep.subr.bf16.mxu0 %v3871
    %4417 = vmatpush1.bf16.msra.mxu0 %v3870
    %4418 = vmatprep.subr.bf16.mxu0 %v3875
    %4419 = vmatpush1.bf16.msra.mxu0 %v3874
    %4420 = vmatprep.subr.bf16.mxu0 %v3879
    %4421 = vmatpush1.bf16.msra.mxu0 %v3878
    %4422 = vmatprep.subr.bf16.mxu0 %v3883
    %4423 = vmatpush1.bf16.msra.mxu0 %v3882
    %4424 = vmatprep.subr.bf16.mxu0 %v3887
    %4425 = vmatpush1.bf16.msra.mxu0 %v3886
    %4426 = vmatprep.subr.bf16.mxu0 %v3891
    %4427 = vmatpush1.bf16.msra.mxu0 %v3890
    %4428 = vmatprep.subr.bf16.mxu0 %v3895
    %4429 = vmatpush1.bf16.msra.mxu0 %v3894
    %4430 = vmatprep.subr.bf16.mxu0 %v3899
    %4431 = vmatpush1.bf16.msra.mxu0 %v3898
    %4432 = vmatprep.mubr.bf16.mxu0 %v4397
    %4433 = vmatmul.mubr.bf16.gmra.mrb[0].mxu0 %v4396
    %v4434 = vpop.f32.mrb[0].mxu0
    %v4435 = vadd.f32 0.0, %v4434
    %v4436 = vpop.f32.mrb[0].mxu0
    %v4437 = vadd.f32 0.0, %v4436
    %v4438 = vpop.f32.mrb[0].mxu0
    %v4439 = vpop.f32.mrb[0].mxu0
    %4440 = vdwg.mxu0
    %4441 = vmatprep.subr.bf16.mxu0 %v3841
    %4442 = vmatpush1.bf16.msra.mxu0 %v3840
    %4443 = vmatprep.subr.bf16.mxu0 %v3845
    %4444 = vmatpush1.bf16.msra.mxu0 %v3844
    %4445 = vmatprep.subr.bf16.mxu0 %v3849
    %4446 = vmatpush1.bf16.msra.mxu0 %v3848
    %4447 = vmatprep.subr.bf16.mxu0 %v3853
    %4448 = vmatpush1.bf16.msra.mxu0 %v3852
    %4449 = vmatprep.subr.bf16.mxu0 %v3857
    %4450 = vmatpush1.bf16.msra.mxu0 %v3856
    %4451 = vmatprep.subr.bf16.mxu0 %v3861
    %4452 = vmatpush1.bf16.msra.mxu0 %v3860
    %4453 = vmatprep.subr.bf16.mxu0 %v3865
    %4454 = vmatpush1.bf16.msra.mxu0 %v3864
    %4455 = vmatprep.subr.bf16.mxu0 %v3869
    %4456 = vmatpush1.bf16.msra.mxu0 %v3868
    %4457 = vmatprep.subr.bf16.mxu0 %v3873
    %4458 = vmatpush1.bf16.msra.mxu0 %v3872
    %4459 = vmatprep.subr.bf16.mxu0 %v3877
    %4460 = vmatpush1.bf16.msra.mxu0 %v3876
    %4461 = vmatprep.subr.bf16.mxu0 %v3881
    %4462 = vmatpush1.bf16.msra.mxu0 %v3880
    %4463 = vmatprep.subr.bf16.mxu0 %v3885
    %4464 = vmatpush1.bf16.msra.mxu0 %v3884
    %4465 = vmatprep.subr.bf16.mxu0 %v3889
    %4466 = vmatpush1.bf16.msra.mxu0 %v3888
    %4467 = vmatprep.subr.bf16.mxu0 %v3893
    %4468 = vmatpush1.bf16.msra.mxu0 %v3892
    %4469 = vmatprep.subr.bf16.mxu0 %v3897
    %4470 = vmatpush1.bf16.msra.mxu0 %v3896
    %4471 = vmatprep.subr.bf16.mxu0 %v3901
    %4472 = vmatpush1.bf16.msra.mxu0 %v3900
    %4473 = vmatprep.mubr.bf16.mxu0 %v4397
    %4474 = vmatmul.mubr.bf16.gmra.mrb[0].mxu0 %v4396
    %v4475 = vpop.f32.mrb[0].mxu0
    %v4476 = vadd.f32 0.0, %v4475
    %v4477 = vpop.f32.mrb[0].mxu0
    %v4478 = vadd.f32 0.0, %v4477
    %v4479 = vpop.f32.mrb[0].mxu0
    %v4480 = vpop.f32.mrb[0].mxu0
    %4481 = vdwg.mxu0
    %v4482 = vadd.f32 %v4386, %v4435
    %v4483 = vadd.f32 %v4387, %v4437
    %v4484 = vadd.f32 %v4388, %v4476
    %v4485 = vadd.f32 %v4389, %v4478
    %v4486 = vmax.f32 %v4482, %v4484
    %v4487 = vmax.f32 %v4483, %v4485
    %v4488 = vmax.f32 %v4052, %v4486
    %v4489 = vmax.f32 %v4053, %v4487
    %v4491 = vlaneseq
    %v4492 = vshrl.u32 %v4491, 7
    %v4493 = vsub.s32 0, %v4492
    %v4494 = vrot.slane %v1644, %v4493
    %v4495 = vlaneseq
    %v4496 = vshrl.u32 %v4495, 7
    %v4497 = vsub.s32 1, %v4496
    %v4498 = vrot.slane %v1644, %v4497
    %v4501 = vadd.f32 %v4488, %v4494
    %v4502 = vadd.f32 %v4489, %v4498
    %v4503 = vmax.f32 %v4501, 0.0
    %v4504 = vmax.f32 %v4502, 0.0
    %v4505 = vpack.c.bf16 %v4503, %v4503
    %v4506 = vpack.c.bf16 %v4504, %v4504
    %v4507 = vld [vmem:[#allocation7] sm:$0xf]
    %v4508 = vld [vmem:[#allocation7 + $0x4] sm:$0xf]
    %v4509 = vld [vmem:[#allocation7 + $0x8] sm:$0xf]
    %v4510 = vld [vmem:[#allocation7 + $0xc] sm:$0xf]
    %v4511 = vld [vmem:[#allocation7 + $0x10] sm:$0xf]
    %v4512 = vld [vmem:[#allocation7 + $0x14] sm:$0xf]
    %v4513 = vld [vmem:[#allocation7 + $0x18] sm:$0xf]
    %v4514 = vld [vmem:[#allocation7 + $0x1c] sm:$0xf]
    %v4515 = vld [vmem:[#allocation7 + $0x20] sm:$0xf]
    %v4516 = vld [vmem:[#allocation7 + $0x24] sm:$0xf]
    %v4517 = vld [vmem:[#allocation7 + $0x28] sm:$0xf]
    %v4518 = vld [vmem:[#allocation7 + $0x2c] sm:$0xf]
    %v4519 = vld [vmem:[#allocation7 + $0x30] sm:$0xf]
    %v4520 = vld [vmem:[#allocation7 + $0x34] sm:$0xf]
    %v4521 = vld [vmem:[#allocation7 + $0x38] sm:$0xf]
    %v4522 = vld [vmem:[#allocation7 + $0x3c] sm:$0xf]
    %v4523 = vld [vmem:[#allocation7 + $0x40] sm:$0xf]
    %v4524 = vld [vmem:[#allocation7 + $0x44] sm:$0xf]
    %v4525 = vld [vmem:[#allocation7 + $0x48] sm:$0xf]
    %v4526 = vld [vmem:[#allocation7 + $0x4c] sm:$0xf]
    %v4527 = vld [vmem:[#allocation7 + $0x50] sm:$0xf]
    %v4528 = vld [vmem:[#allocation7 + $0x54] sm:$0xf]
    %v4529 = vld [vmem:[#allocation7 + $0x58] sm:$0xf]
    %v4530 = vld [vmem:[#allocation7 + $0x5c] sm:$0xf]
    %v4531 = vld [vmem:[#allocation7 + $0x60] sm:$0xf]
    %v4532 = vld [vmem:[#allocation7 + $0x64] sm:$0xf]
    %v4533 = vld [vmem:[#allocation7 + $0x68] sm:$0xf]
    %v4534 = vld [vmem:[#allocation7 + $0x6c] sm:$0xf]
    %v4535 = vld [vmem:[#allocation7 + $0x70] sm:$0xf]
    %v4536 = vld [vmem:[#allocation7 + $0x74] sm:$0xf]
    %v4537 = vld [vmem:[#allocation7 + $0x78] sm:$0xf]
    %v4538 = vld [vmem:[#allocation7 + $0x7c] sm:$0xf]
    %s4539 = scalar_lea.vmem [#allocation7], 128
    %v4540 = vld [vmem:[%s4539] sm:$0xf]
    %v4541 = vld [vmem:[%s4539 + $0x4] sm:$0xf]
    %v4542 = vld [vmem:[%s4539 + $0x8] sm:$0xf]
    %v4543 = vld [vmem:[%s4539 + $0xc] sm:$0xf]
    %v4544 = vld [vmem:[%s4539 + $0x10] sm:$0xf]
    %v4545 = vld [vmem:[%s4539 + $0x14] sm:$0xf]
    %v4546 = vld [vmem:[%s4539 + $0x18] sm:$0xf]
    %v4547 = vld [vmem:[%s4539 + $0x1c] sm:$0xf]
    %v4548 = vld [vmem:[%s4539 + $0x20] sm:$0xf]
    %v4549 = vld [vmem:[%s4539 + $0x24] sm:$0xf]
    %v4550 = vld [vmem:[%s4539 + $0x28] sm:$0xf]
    %v4551 = vld [vmem:[%s4539 + $0x2c] sm:$0xf]
    %v4552 = vld [vmem:[%s4539 + $0x30] sm:$0xf]
    %v4553 = vld [vmem:[%s4539 + $0x34] sm:$0xf]
    %v4554 = vld [vmem:[%s4539 + $0x38] sm:$0xf]
    %v4555 = vld [vmem:[%s4539 + $0x3c] sm:$0xf]
    %v4556 = vld [vmem:[%s4539 + $0x40] sm:$0xf]
    %v4557 = vld [vmem:[%s4539 + $0x44] sm:$0xf]
    %v4558 = vld [vmem:[%s4539 + $0x48] sm:$0xf]
    %v4559 = vld [vmem:[%s4539 + $0x4c] sm:$0xf]
    %v4560 = vld [vmem:[%s4539 + $0x50] sm:$0xf]
    %v4561 = vld [vmem:[%s4539 + $0x54] sm:$0xf]
    %v4562 = vld [vmem:[%s4539 + $0x58] sm:$0xf]
    %v4563 = vld [vmem:[%s4539 + $0x5c] sm:$0xf]
    %v4564 = vld [vmem:[%s4539 + $0x60] sm:$0xf]
    %v4565 = vld [vmem:[%s4539 + $0x64] sm:$0xf]
    %v4566 = vld [vmem:[%s4539 + $0x68] sm:$0xf]
    %v4567 = vld [vmem:[%s4539 + $0x6c] sm:$0xf]
    %v4568 = vld [vmem:[%s4539 + $0x70] sm:$0xf]
    %v4569 = vld [vmem:[%s4539 + $0x74] sm:$0xf]
    %v4570 = vld [vmem:[%s4539 + $0x78] sm:$0xf]
    %v4571 = vld [vmem:[%s4539 + $0x7c] sm:$0xf]
    %v4573 = vshrl.u32 %v4505, 16
    %v4576 = vshrl.u32 %v4506, 16
    %v4612 = vunpack.c.l.b16 %v4540
    %v4613 = vunpack.c.l.b16 %v4541
    %v4614 = vunpack.c.l.b16 %v4542
    %v4615 = vunpack.c.l.b16 %v4543
    %v4616 = vunpack.c.l.b16 %v4544
    %v4617 = vunpack.c.l.b16 %v4545
    %v4618 = vunpack.c.l.b16 %v4546
    %v4619 = vunpack.c.l.b16 %v4547
    %v4620 = vunpack.c.l.b16 %v4548
    %v4621 = vunpack.c.l.b16 %v4549
    %v4622 = vunpack.c.l.b16 %v4550
    %v4623 = vunpack.c.l.b16 %v4551
    %v4624 = vunpack.c.l.b16 %v4552
    %v4625 = vunpack.c.l.b16 %v4553
    %v4626 = vunpack.c.l.b16 %v4554
    %v4627 = vunpack.c.l.b16 %v4555
    %v4628 = vunpack.c.l.b16 %v4556
    %v4629 = vunpack.c.l.b16 %v4557
    %v4630 = vunpack.c.l.b16 %v4558
    %v4631 = vunpack.c.l.b16 %v4559
    %v4632 = vunpack.c.l.b16 %v4560
    %v4633 = vunpack.c.l.b16 %v4561
    %v4634 = vunpack.c.l.b16 %v4562
    %v4635 = vunpack.c.l.b16 %v4563
    %v4636 = vunpack.c.l.b16 %v4564
    %v4637 = vunpack.c.l.b16 %v4565
    %v4638 = vunpack.c.l.b16 %v4566
    %v4639 = vunpack.c.l.b16 %v4567
    %v4640 = vunpack.c.l.b16 %v4568
    %v4641 = vunpack.c.l.b16 %v4569
    %v4642 = vunpack.c.l.b16 %v4570
    %v4643 = vunpack.c.l.b16 %v4571
    %v4644 = vpack.c.b16 %v4613, %v4612
    %v4645 = vpack.c.b16 %v4615, %v4614
    %v4646 = vpack.c.b16 %v4617, %v4616
    %v4647 = vpack.c.b16 %v4619, %v4618
    %v4648 = vpack.c.b16 %v4621, %v4620
    %v4649 = vpack.c.b16 %v4623, %v4622
    %v4650 = vpack.c.b16 %v4625, %v4624
    %v4651 = vpack.c.b16 %v4627, %v4626
    %v4652 = vpack.c.b16 %v4629, %v4628
    %v4653 = vpack.c.b16 %v4631, %v4630
    %v4654 = vpack.c.b16 %v4633, %v4632
    %v4655 = vpack.c.b16 %v4635, %v4634
    %v4656 = vpack.c.b16 %v4637, %v4636
    %v4657 = vpack.c.b16 %v4639, %v4638
    %v4658 = vpack.c.b16 %v4641, %v4640
    %v4659 = vpack.c.b16 %v4643, %v4642
    %4676 = vmatprep.subr.bf16.mxu0 0
    %4677 = vmatpush1.bf16.msra.mxu0 %v4644
    %4678 = vmatprep.subr.bf16.mxu0 0
    %4679 = vmatpush1.bf16.msra.mxu0 %v4645
    %4680 = vmatprep.subr.bf16.mxu0 0
    %4681 = vmatpush1.bf16.msra.mxu0 %v4646
    %4682 = vmatprep.subr.bf16.mxu0 0
    %4683 = vmatpush1.bf16.msra.mxu0 %v4647
    %4684 = vmatprep.subr.bf16.mxu0 0
    %4685 = vmatpush1.bf16.msra.mxu0 %v4648
    %4686 = vmatprep.subr.bf16.mxu0 0
    %4687 = vmatpush1.bf16.msra.mxu0 %v4649
    %4688 = vmatprep.subr.bf16.mxu0 0
    %4689 = vmatpush1.bf16.msra.mxu0 %v4650
    %4690 = vmatprep.subr.bf16.mxu0 0
    %4691 = vmatpush1.bf16.msra.mxu0 %v4651
    %4692 = vmatprep.subr.bf16.mxu0 0
    %4693 = vmatpush1.bf16.msra.mxu0 %v4652
    %4694 = vmatprep.subr.bf16.mxu0 0
    %4695 = vmatpush1.bf16.msra.mxu0 %v4653
    %4696 = vmatprep.subr.bf16.mxu0 0
    %4697 = vmatpush1.bf16.msra.mxu0 %v4654
    %4698 = vmatprep.subr.bf16.mxu0 0
    %4699 = vmatpush1.bf16.msra.mxu0 %v4655
    %4700 = vmatprep.subr.bf16.mxu0 0
    %4701 = vmatpush1.bf16.msra.mxu0 %v4656
    %4702 = vmatprep.subr.bf16.mxu0 0
    %4703 = vmatpush1.bf16.msra.mxu0 %v4657
    %4704 = vmatprep.subr.bf16.mxu0 0
    %4705 = vmatpush1.bf16.msra.mxu0 %v4658
    %4706 = vmatprep.subr.bf16.mxu0 0
    %4707 = vmatpush1.bf16.msra.mxu0 %v4659
    %4708 = vmatprep.mubr.bf16.mxu0 %v4576
    %4709 = vmatmul.mubr.bf16.gmra.mrb[0].mxu0 %v4573
    %v4710 = vpop.f32.mrb[0].mxu0
    %v4711 = vadd.f32 0.0, %v4710
    %v4712 = vpop.f32.mrb[0].mxu0
    %v4713 = vpop.f32.mrb[0].mxu0
    %v4714 = vpop.f32.mrb[0].mxu0
    %4715 = vdwg.mxu0
    %v4748 = vunpack.c.l.b16 %v4507
    %v4749 = vunpack.c.l.b16 %v4508
    %v4750 = vunpack.c.l.b16 %v4509
    %v4751 = vunpack.c.l.b16 %v4510
    %v4752 = vunpack.c.l.b16 %v4511
    %v4753 = vunpack.c.l.b16 %v4512
    %v4754 = vunpack.c.l.b16 %v4513
    %v4755 = vunpack.c.l.b16 %v4514
    %v4756 = vunpack.c.l.b16 %v4515
    %v4757 = vunpack.c.l.b16 %v4516
    %v4758 = vunpack.c.l.b16 %v4517
    %v4759 = vunpack.c.l.b16 %v4518
    %v4760 = vunpack.c.l.b16 %v4519
    %v4761 = vunpack.c.l.b16 %v4520
    %v4762 = vunpack.c.l.b16 %v4521
    %v4763 = vunpack.c.l.b16 %v4522
    %v4764 = vunpack.c.l.b16 %v4523
    %v4765 = vunpack.c.l.b16 %v4524
    %v4766 = vunpack.c.l.b16 %v4525
    %v4767 = vunpack.c.l.b16 %v4526
    %v4768 = vunpack.c.l.b16 %v4527
    %v4769 = vunpack.c.l.b16 %v4528
    %v4770 = vunpack.c.l.b16 %v4529
    %v4771 = vunpack.c.l.b16 %v4530
    %v4772 = vunpack.c.l.b16 %v4531
    %v4773 = vunpack.c.l.b16 %v4532
    %v4774 = vunpack.c.l.b16 %v4533
    %v4775 = vunpack.c.l.b16 %v4534
    %v4776 = vunpack.c.l.b16 %v4535
    %v4777 = vunpack.c.l.b16 %v4536
    %v4778 = vunpack.c.l.b16 %v4537
    %v4779 = vunpack.c.l.b16 %v4538
    %v4780 = vpack.c.b16 %v4749, %v4748
    %v4781 = vpack.c.b16 %v4751, %v4750
    %v4782 = vpack.c.b16 %v4753, %v4752
    %v4783 = vpack.c.b16 %v4755, %v4754
    %v4784 = vpack.c.b16 %v4757, %v4756
    %v4785 = vpack.c.b16 %v4759, %v4758
    %v4786 = vpack.c.b16 %v4761, %v4760
    %v4787 = vpack.c.b16 %v4763, %v4762
    %v4788 = vpack.c.b16 %v4765, %v4764
    %v4789 = vpack.c.b16 %v4767, %v4766
    %v4790 = vpack.c.b16 %v4769, %v4768
    %v4791 = vpack.c.b16 %v4771, %v4770
    %v4792 = vpack.c.b16 %v4773, %v4772
    %v4793 = vpack.c.b16 %v4775, %v4774
    %v4794 = vpack.c.b16 %v4777, %v4776
    %v4795 = vpack.c.b16 %v4779, %v4778
    %4812 = vmatprep.subr.bf16.mxu0 0
    %4813 = vmatpush1.bf16.msra.mxu0 %v4780
    %4814 = vmatprep.subr.bf16.mxu0 0
    %4815 = vmatpush1.bf16.msra.mxu0 %v4781
    %4816 = vmatprep.subr.bf16.mxu0 0
    %4817 = vmatpush1.bf16.msra.mxu0 %v4782
    %4818 = vmatprep.subr.bf16.mxu0 0
    %4819 = vmatpush1.bf16.msra.mxu0 %v4783
    %4820 = vmatprep.subr.bf16.mxu0 0
    %4821 = vmatpush1.bf16.msra.mxu0 %v4784
    %4822 = vmatprep.subr.bf16.mxu0 0
    %4823 = vmatpush1.bf16.msra.mxu0 %v4785
    %4824 = vmatprep.subr.bf16.mxu0 0
    %4825 = vmatpush1.bf16.msra.mxu0 %v4786
    %4826 = vmatprep.subr.bf16.mxu0 0
    %4827 = vmatpush1.bf16.msra.mxu0 %v4787
    %4828 = vmatprep.subr.bf16.mxu0 0
    %4829 = vmatpush1.bf16.msra.mxu0 %v4788
    %4830 = vmatprep.subr.bf16.mxu0 0
    %4831 = vmatpush1.bf16.msra.mxu0 %v4789
    %4832 = vmatprep.subr.bf16.mxu0 0
    %4833 = vmatpush1.bf16.msra.mxu0 %v4790
    %4834 = vmatprep.subr.bf16.mxu0 0
    %4835 = vmatpush1.bf16.msra.mxu0 %v4791
    %4836 = vmatprep.subr.bf16.mxu0 0
    %4837 = vmatpush1.bf16.msra.mxu0 %v4792
    %4838 = vmatprep.subr.bf16.mxu0 0
    %4839 = vmatpush1.bf16.msra.mxu0 %v4793
    %4840 = vmatprep.subr.bf16.mxu0 0
    %4841 = vmatpush1.bf16.msra.mxu0 %v4794
    %4842 = vmatprep.subr.bf16.mxu0 0
    %4843 = vmatpush1.bf16.msra.mxu0 %v4795
    %4844 = vmatprep.mubr.bf16.mxu0 %v4506
    %4845 = vmatmul.mubr.bf16.gmra.mrb[0].mxu0 %v4505
    %v4846 = vpop.f32.mrb[0].mxu0
    %v4847 = vadd.f32 %v4711, %v4846
    %v4848 = vpop.f32.mrb[0].mxu0
    %v4849 = vpop.f32.mrb[0].mxu0
    %v4850 = vpop.f32.mrb[0].mxu0
    %4851 = vdwg.mxu0
    %s4852 = scalar_lea.vmem [#allocation7], 256
    %v4853 = vld [vmem:[%s4852] sm:$0xf]
    %v4854 = vld [vmem:[%s4852 + $0x4] sm:$0xf]
    %v4855 = vld [vmem:[%s4852 + $0x8] sm:$0xf]
    %v4856 = vld [vmem:[%s4852 + $0xc] sm:$0xf]
    %v4857 = vld [vmem:[%s4852 + $0x10] sm:$0xf]
    %v4858 = vld [vmem:[%s4852 + $0x14] sm:$0xf]
    %v4859 = vld [vmem:[%s4852 + $0x18] sm:$0xf]
    %v4860 = vld [vmem:[%s4852 + $0x1c] sm:$0xf]
    %v4861 = vld [vmem:[%s4852 + $0x20] sm:$0xf]
    %v4862 = vld [vmem:[%s4852 + $0x24] sm:$0xf]
    %v4863 = vld [vmem:[%s4852 + $0x28] sm:$0xf]
    %v4864 = vld [vmem:[%s4852 + $0x2c] sm:$0xf]
    %v4865 = vld [vmem:[%s4852 + $0x30] sm:$0xf]
    %v4866 = vld [vmem:[%s4852 + $0x34] sm:$0xf]
    %v4867 = vld [vmem:[%s4852 + $0x38] sm:$0xf]
    %v4868 = vld [vmem:[%s4852 + $0x3c] sm:$0xf]
    %v4869 = vld [vmem:[%s4852 + $0x40] sm:$0xf]
    %v4870 = vld [vmem:[%s4852 + $0x44] sm:$0xf]
    %v4871 = vld [vmem:[%s4852 + $0x48] sm:$0xf]
    %v4872 = vld [vmem:[%s4852 + $0x4c] sm:$0xf]
    %v4873 = vld [vmem:[%s4852 + $0x50] sm:$0xf]
    %v4874 = vld [vmem:[%s4852 + $0x54] sm:$0xf]
    %v4875 = vld [vmem:[%s4852 + $0x58] sm:$0xf]
    %v4876 = vld [vmem:[%s4852 + $0x5c] sm:$0xf]
    %v4877 = vld [vmem:[%s4852 + $0x60] sm:$0xf]
    %v4878 = vld [vmem:[%s4852 + $0x64] sm:$0xf]
    %v4879 = vld [vmem:[%s4852 + $0x68] sm:$0xf]
    %v4880 = vld [vmem:[%s4852 + $0x6c] sm:$0xf]
    %v4881 = vld [vmem:[%s4852 + $0x70] sm:$0xf]
    %v4882 = vld [vmem:[%s4852 + $0x74] sm:$0xf]
    %v4883 = vld [vmem:[%s4852 + $0x78] sm:$0xf]
    %v4884 = vld [vmem:[%s4852 + $0x7c] sm:$0xf]
    %v4887 = vrot.slane %v4505, 1
    %v4888 = vrot.slane %v4506, 1
    %v4923 = vunpack.c.l.b16 %v4853
    %v4924 = vunpack.c.l.b16 %v4854
    %v4925 = vunpack.c.l.b16 %v4855
    %v4926 = vunpack.c.l.b16 %v4856
    %v4927 = vunpack.c.l.b16 %v4857
    %v4928 = vunpack.c.l.b16 %v4858
    %v4929 = vunpack.c.l.b16 %v4859
    %v4930 = vunpack.c.l.b16 %v4860
    %v4931 = vunpack.c.l.b16 %v4861
    %v4932 = vunpack.c.l.b16 %v4862
    %v4933 = vunpack.c.l.b16 %v4863
    %v4934 = vunpack.c.l.b16 %v4864
    %v4935 = vunpack.c.l.b16 %v4865
    %v4936 = vunpack.c.l.b16 %v4866
    %v4937 = vunpack.c.l.b16 %v4867
    %v4938 = vunpack.c.l.b16 %v4868
    %v4939 = vunpack.c.l.b16 %v4869
    %v4940 = vunpack.c.l.b16 %v4870
    %v4941 = vunpack.c.l.b16 %v4871
    %v4942 = vunpack.c.l.b16 %v4872
    %v4943 = vunpack.c.l.b16 %v4873
    %v4944 = vunpack.c.l.b16 %v4874
    %v4945 = vunpack.c.l.b16 %v4875
    %v4946 = vunpack.c.l.b16 %v4876
    %v4947 = vunpack.c.l.b16 %v4877
    %v4948 = vunpack.c.l.b16 %v4878
    %v4949 = vunpack.c.l.b16 %v4879
    %v4950 = vunpack.c.l.b16 %v4880
    %v4951 = vunpack.c.l.b16 %v4881
    %v4952 = vunpack.c.l.b16 %v4882
    %v4953 = vunpack.c.l.b16 %v4883
    %v4954 = vunpack.c.l.b16 %v4884
    %v4955 = vpack.c.b16 %v4924, %v4923
    %v4956 = vpack.c.b16 %v4926, %v4925
    %v4957 = vpack.c.b16 %v4928, %v4927
    %v4958 = vpack.c.b16 %v4930, %v4929
    %v4959 = vpack.c.b16 %v4932, %v4931
    %v4960 = vpack.c.b16 %v4934, %v4933
    %v4961 = vpack.c.b16 %v4936, %v4935
    %v4962 = vpack.c.b16 %v4938, %v4937
    %v4963 = vpack.c.b16 %v4940, %v4939
    %v4964 = vpack.c.b16 %v4942, %v4941
    %v4965 = vpack.c.b16 %v4944, %v4943
    %v4966 = vpack.c.b16 %v4946, %v4945
    %v4967 = vpack.c.b16 %v4948, %v4947
    %v4968 = vpack.c.b16 %v4950, %v4949
    %v4969 = vpack.c.b16 %v4952, %v4951
    %v4970 = vpack.c.b16 %v4954, %v4953
    %4987 = vmatprep.subr.bf16.mxu0 0
    %4988 = vmatpush1.bf16.msra.mxu0 %v4955
    %4989 = vmatprep.subr.bf16.mxu0 0
    %4990 = vmatpush1.bf16.msra.mxu0 %v4956
    %4991 = vmatprep.subr.bf16.mxu0 0
    %4992 = vmatpush1.bf16.msra.mxu0 %v4957
    %4993 = vmatprep.subr.bf16.mxu0 0
    %4994 = vmatpush1.bf16.msra.mxu0 %v4958
    %4995 = vmatprep.subr.bf16.mxu0 0
    %4996 = vmatpush1.bf16.msra.mxu0 %v4959
    %4997 = vmatprep.subr.bf16.mxu0 0
    %4998 = vmatpush1.bf16.msra.mxu0 %v4960
    %4999 = vmatprep.subr.bf16.mxu0 0
    %5000 = vmatpush1.bf16.msra.mxu0 %v4961
    %5001 = vmatprep.subr.bf16.mxu0 0
    %5002 = vmatpush1.bf16.msra.mxu0 %v4962
    %5003 = vmatprep.subr.bf16.mxu0 0
    %5004 = vmatpush1.bf16.msra.mxu0 %v4963
    %5005 = vmatprep.subr.bf16.mxu0 0
    %5006 = vmatpush1.bf16.msra.mxu0 %v4964
    %5007 = vmatprep.subr.bf16.mxu0 0
    %5008 = vmatpush1.bf16.msra.mxu0 %v4965
    %5009 = vmatprep.subr.bf16.mxu0 0
    %5010 = vmatpush1.bf16.msra.mxu0 %v4966
    %5011 = vmatprep.subr.bf16.mxu0 0
    %5012 = vmatpush1.bf16.msra.mxu0 %v4967
    %5013 = vmatprep.subr.bf16.mxu0 0
    %5014 = vmatpush1.bf16.msra.mxu0 %v4968
    %5015 = vmatprep.subr.bf16.mxu0 0
    %5016 = vmatpush1.bf16.msra.mxu0 %v4969
    %5017 = vmatprep.subr.bf16.mxu0 0
    %5018 = vmatpush1.bf16.msra.mxu0 %v4970
    %5019 = vmatprep.mubr.bf16.mxu0 %v4888
    %5020 = vmatmul.mubr.bf16.gmra.mrb[0].mxu0 %v4887
    %v5021 = vpop.f32.mrb[0].mxu0
    %v5022 = vadd.f32 0.0, %v5021
    %v5023 = vpop.f32.mrb[0].mxu0
    %v5024 = vpop.f32.mrb[0].mxu0
    %v5025 = vpop.f32.mrb[0].mxu0
    %5026 = vdwg.mxu0
    %v5027 = vadd.f32 %v4847, %v5022
    %s5028 = scalar_lea.vmem [#allocation7], 384
    %v5029 = vld [vmem:[%s5028] sm:$0xf]
    %v5030 = vld [vmem:[%s5028 + $0x4] sm:$0xf]
    %v5031 = vld [vmem:[%s5028 + $0x8] sm:$0xf]
    %v5032 = vld [vmem:[%s5028 + $0xc] sm:$0xf]
    %v5033 = vld [vmem:[%s5028 + $0x10] sm:$0xf]
    %v5034 = vld [vmem:[%s5028 + $0x14] sm:$0xf]
    %v5035 = vld [vmem:[%s5028 + $0x18] sm:$0xf]
    %v5036 = vld [vmem:[%s5028 + $0x1c] sm:$0xf]
    %v5037 = vld [vmem:[%s5028 + $0x20] sm:$0xf]
    %v5038 = vld [vmem:[%s5028 + $0x24] sm:$0xf]
    %v5039 = vld [vmem:[%s5028 + $0x28] sm:$0xf]
    %v5040 = vld [vmem:[%s5028 + $0x2c] sm:$0xf]
    %v5041 = vld [vmem:[%s5028 + $0x30] sm:$0xf]
    %v5042 = vld [vmem:[%s5028 + $0x34] sm:$0xf]
    %v5043 = vld [vmem:[%s5028 + $0x38] sm:$0xf]
    %v5044 = vld [vmem:[%s5028 + $0x3c] sm:$0xf]
    %v5045 = vld [vmem:[%s5028 + $0x40] sm:$0xf]
    %v5046 = vld [vmem:[%s5028 + $0x44] sm:$0xf]
    %v5047 = vld [vmem:[%s5028 + $0x48] sm:$0xf]
    %v5048 = vld [vmem:[%s5028 + $0x4c] sm:$0xf]
    %v5049 = vld [vmem:[%s5028 + $0x50] sm:$0xf]
    %v5050 = vld [vmem:[%s5028 + $0x54] sm:$0xf]
    %v5051 = vld [vmem:[%s5028 + $0x58] sm:$0xf]
    %v5052 = vld [vmem:[%s5028 + $0x5c] sm:$0xf]
    %v5053 = vld [vmem:[%s5028 + $0x60] sm:$0xf]
    %v5054 = vld [vmem:[%s5028 + $0x64] sm:$0xf]
    %v5055 = vld [vmem:[%s5028 + $0x68] sm:$0xf]
    %v5056 = vld [vmem:[%s5028 + $0x6c] sm:$0xf]
    %v5057 = vld [vmem:[%s5028 + $0x70] sm:$0xf]
    %v5058 = vld [vmem:[%s5028 + $0x74] sm:$0xf]
    %v5059 = vld [vmem:[%s5028 + $0x78] sm:$0xf]
    %v5060 = vld [vmem:[%s5028 + $0x7c] sm:$0xf]
    %v5061 = vrot.slane %v4573, 1
    %v5062 = vrot.slane %v4576, 1
    %v5097 = vunpack.c.l.b16 %v5029
    %v5098 = vunpack.c.l.b16 %v5030
    %v5099 = vunpack.c.l.b16 %v5031
    %v5100 = vunpack.c.l.b16 %v5032
    %v5101 = vunpack.c.l.b16 %v5033
    %v5102 = vunpack.c.l.b16 %v5034
    %v5103 = vunpack.c.l.b16 %v5035
    %v5104 = vunpack.c.l.b16 %v5036
    %v5105 = vunpack.c.l.b16 %v5037
    %v5106 = vunpack.c.l.b16 %v5038
    %v5107 = vunpack.c.l.b16 %v5039
    %v5108 = vunpack.c.l.b16 %v5040
    %v5109 = vunpack.c.l.b16 %v5041
    %v5110 = vunpack.c.l.b16 %v5042
    %v5111 = vunpack.c.l.b16 %v5043
    %v5112 = vunpack.c.l.b16 %v5044
    %v5113 = vunpack.c.l.b16 %v5045
    %v5114 = vunpack.c.l.b16 %v5046
    %v5115 = vunpack.c.l.b16 %v5047
    %v5116 = vunpack.c.l.b16 %v5048
    %v5117 = vunpack.c.l.b16 %v5049
    %v5118 = vunpack.c.l.b16 %v5050
    %v5119 = vunpack.c.l.b16 %v5051
    %v5120 = vunpack.c.l.b16 %v5052
    %v5121 = vunpack.c.l.b16 %v5053
    %v5122 = vunpack.c.l.b16 %v5054
    %v5123 = vunpack.c.l.b16 %v5055
    %v5124 = vunpack.c.l.b16 %v5056
    %v5125 = vunpack.c.l.b16 %v5057
    %v5126 = vunpack.c.l.b16 %v5058
    %v5127 = vunpack.c.l.b16 %v5059
    %v5128 = vunpack.c.l.b16 %v5060
    %v5129 = vpack.c.b16 %v5098, %v5097
    %v5130 = vpack.c.b16 %v5100, %v5099
    %v5131 = vpack.c.b16 %v5102, %v5101
    %v5132 = vpack.c.b16 %v5104, %v5103
    %v5133 = vpack.c.b16 %v5106, %v5105
    %v5134 = vpack.c.b16 %v5108, %v5107
    %v5135 = vpack.c.b16 %v5110, %v5109
    %v5136 = vpack.c.b16 %v5112, %v5111
    %v5137 = vpack.c.b16 %v5114, %v5113
    %v5138 = vpack.c.b16 %v5116, %v5115
    %v5139 = vpack.c.b16 %v5118, %v5117
    %v5140 = vpack.c.b16 %v5120, %v5119
    %v5141 = vpack.c.b16 %v5122, %v5121
    %v5142 = vpack.c.b16 %v5124, %v5123
    %v5143 = vpack.c.b16 %v5126, %v5125
    %v5144 = vpack.c.b16 %v5128, %v5127
    %5161 = vmatprep.subr.bf16.mxu0 0
    %5162 = vmatpush1.bf16.msra.mxu0 %v5129
    %5163 = vmatprep.subr.bf16.mxu0 0
    %5164 = vmatpush1.bf16.msra.mxu0 %v5130
    %5165 = vmatprep.subr.bf16.mxu0 0
    %5166 = vmatpush1.bf16.msra.mxu0 %v5131
    %5167 = vmatprep.subr.bf16.mxu0 0
    %5168 = vmatpush1.bf16.msra.mxu0 %v5132
    %5169 = vmatprep.subr.bf16.mxu0 0
    %5170 = vmatpush1.bf16.msra.mxu0 %v5133
    %5171 = vmatprep.subr.bf16.mxu0 0
    %5172 = vmatpush1.bf16.msra.mxu0 %v5134
    %5173 = vmatprep.subr.bf16.mxu0 0
    %5174 = vmatpush1.bf16.msra.mxu0 %v5135
    %5175 = vmatprep.subr.bf16.mxu0 0
    %5176 = vmatpush1.bf16.msra.mxu0 %v5136
    %5177 = vmatprep.subr.bf16.mxu0 0
    %5178 = vmatpush1.bf16.msra.mxu0 %v5137
    %5179 = vmatprep.subr.bf16.mxu0 0
    %5180 = vmatpush1.bf16.msra.mxu0 %v5138
    %5181 = vmatprep.subr.bf16.mxu0 0
    %5182 = vmatpush1.bf16.msra.mxu0 %v5139
    %5183 = vmatprep.subr.bf16.mxu0 0
    %5184 = vmatpush1.bf16.msra.mxu0 %v5140
    %5185 = vmatprep.subr.bf16.mxu0 0
    %5186 = vmatpush1.bf16.msra.mxu0 %v5141
    %5187 = vmatprep.subr.bf16.mxu0 0
    %5188 = vmatpush1.bf16.msra.mxu0 %v5142
    %5189 = vmatprep.subr.bf16.mxu0 0
    %5190 = vmatpush1.bf16.msra.mxu0 %v5143
    %5191 = vmatprep.subr.bf16.mxu0 0
    %5192 = vmatpush1.bf16.msra.mxu0 %v5144
    %5193 = vmatprep.mubr.bf16.mxu0 %v5062
    %5194 = vmatmul.mubr.bf16.gmra.mrb[0].mxu0 %v5061
    %v5195 = vpop.f32.mrb[0].mxu0
    %v5196 = vadd.f32 0.0, %v5195
    %v5197 = vpop.f32.mrb[0].mxu0
    %v5198 = vpop.f32.mrb[0].mxu0
    %v5199 = vpop.f32.mrb[0].mxu0
    %5200 = vdwg.mxu0
    %v5201 = vadd.f32 %v5027, %v5196
    %s5202 = scalar_lea.vmem [#allocation7], 512
    %v5203 = vld [vmem:[%s5202] sm:$0xf]
    %v5204 = vld [vmem:[%s5202 + $0x4] sm:$0xf]
    %v5205 = vld [vmem:[%s5202 + $0x8] sm:$0xf]
    %v5206 = vld [vmem:[%s5202 + $0xc] sm:$0xf]
    %v5207 = vld [vmem:[%s5202 + $0x10] sm:$0xf]
    %v5208 = vld [vmem:[%s5202 + $0x14] sm:$0xf]
    %v5209 = vld [vmem:[%s5202 + $0x18] sm:$0xf]
    %v5210 = vld [vmem:[%s5202 + $0x1c] sm:$0xf]
    %v5211 = vld [vmem:[%s5202 + $0x20] sm:$0xf]
    %v5212 = vld [vmem:[%s5202 + $0x24] sm:$0xf]
    %v5213 = vld [vmem:[%s5202 + $0x28] sm:$0xf]
    %v5214 = vld [vmem:[%s5202 + $0x2c] sm:$0xf]
    %v5215 = vld [vmem:[%s5202 + $0x30] sm:$0xf]
    %v5216 = vld [vmem:[%s5202 + $0x34] sm:$0xf]
    %v5217 = vld [vmem:[%s5202 + $0x38] sm:$0xf]
    %v5218 = vld [vmem:[%s5202 + $0x3c] sm:$0xf]
    %v5219 = vld [vmem:[%s5202 + $0x40] sm:$0xf]
    %v5220 = vld [vmem:[%s5202 + $0x44] sm:$0xf]
    %v5221 = vld [vmem:[%s5202 + $0x48] sm:$0xf]
    %v5222 = vld [vmem:[%s5202 + $0x4c] sm:$0xf]
    %v5223 = vld [vmem:[%s5202 + $0x50] sm:$0xf]
    %v5224 = vld [vmem:[%s5202 + $0x54] sm:$0xf]
    %v5225 = vld [vmem:[%s5202 + $0x58] sm:$0xf]
    %v5226 = vld [vmem:[%s5202 + $0x5c] sm:$0xf]
    %v5227 = vld [vmem:[%s5202 + $0x60] sm:$0xf]
    %v5228 = vld [vmem:[%s5202 + $0x64] sm:$0xf]
    %v5229 = vld [vmem:[%s5202 + $0x68] sm:$0xf]
    %v5230 = vld [vmem:[%s5202 + $0x6c] sm:$0xf]
    %v5231 = vld [vmem:[%s5202 + $0x70] sm:$0xf]
    %v5232 = vld [vmem:[%s5202 + $0x74] sm:$0xf]
    %v5233 = vld [vmem:[%s5202 + $0x78] sm:$0xf]
    %v5234 = vld [vmem:[%s5202 + $0x7c] sm:$0xf]
    %v5235 = vrot.slane %v4505, 2
    %v5236 = vrot.slane %v4506, 2
    %v5271 = vunpack.c.l.b16 %v5203
    %v5272 = vunpack.c.l.b16 %v5204
    %v5273 = vunpack.c.l.b16 %v5205
    %v5274 = vunpack.c.l.b16 %v5206
    %v5275 = vunpack.c.l.b16 %v5207
    %v5276 = vunpack.c.l.b16 %v5208
    %v5277 = vunpack.c.l.b16 %v5209
    %v5278 = vunpack.c.l.b16 %v5210
    %v5279 = vunpack.c.l.b16 %v5211
    %v5280 = vunpack.c.l.b16 %v5212
    %v5281 = vunpack.c.l.b16 %v5213
    %v5282 = vunpack.c.l.b16 %v5214
    %v5283 = vunpack.c.l.b16 %v5215
    %v5284 = vunpack.c.l.b16 %v5216
    %v5285 = vunpack.c.l.b16 %v5217
    %v5286 = vunpack.c.l.b16 %v5218
    %v5287 = vunpack.c.l.b16 %v5219
    %v5288 = vunpack.c.l.b16 %v5220
    %v5289 = vunpack.c.l.b16 %v5221
    %v5290 = vunpack.c.l.b16 %v5222
    %v5291 = vunpack.c.l.b16 %v5223
    %v5292 = vunpack.c.l.b16 %v5224
    %v5293 = vunpack.c.l.b16 %v5225
    %v5294 = vunpack.c.l.b16 %v5226
    %v5295 = vunpack.c.l.b16 %v5227
    %v5296 = vunpack.c.l.b16 %v5228
    %v5297 = vunpack.c.l.b16 %v5229
    %v5298 = vunpack.c.l.b16 %v5230
    %v5299 = vunpack.c.l.b16 %v5231
    %v5300 = vunpack.c.l.b16 %v5232
    %v5301 = vunpack.c.l.b16 %v5233
    %v5302 = vunpack.c.l.b16 %v5234
    %v5303 = vpack.c.b16 %v5272, %v5271
    %v5304 = vpack.c.b16 %v5274, %v5273
    %v5305 = vpack.c.b16 %v5276, %v5275
    %v5306 = vpack.c.b16 %v5278, %v5277
    %v5307 = vpack.c.b16 %v5280, %v5279
    %v5308 = vpack.c.b16 %v5282, %v5281
    %v5309 = vpack.c.b16 %v5284, %v5283
    %v5310 = vpack.c.b16 %v5286, %v5285
    %v5311 = vpack.c.b16 %v5288, %v5287
    %v5312 = vpack.c.b16 %v5290, %v5289
    %v5313 = vpack.c.b16 %v5292, %v5291
    %v5314 = vpack.c.b16 %v5294, %v5293
    %v5315 = vpack.c.b16 %v5296, %v5295
    %v5316 = vpack.c.b16 %v5298, %v5297
    %v5317 = vpack.c.b16 %v5300, %v5299
    %v5318 = vpack.c.b16 %v5302, %v5301
    %5335 = vmatprep.subr.bf16.mxu0 0
    %5336 = vmatpush1.bf16.msra.mxu0 %v5303
    %5337 = vmatprep.subr.bf16.mxu0 0
    %5338 = vmatpush1.bf16.msra.mxu0 %v5304
    %5339 = vmatprep.subr.bf16.mxu0 0
    %5340 = vmatpush1.bf16.msra.mxu0 %v5305
    %5341 = vmatprep.subr.bf16.mxu0 0
    %5342 = vmatpush1.bf16.msra.mxu0 %v5306
    %5343 = vmatprep.subr.bf16.mxu0 0
    %5344 = vmatpush1.bf16.msra.mxu0 %v5307
    %5345 = vmatprep.subr.bf16.mxu0 0
    %5346 = vmatpush1.bf16.msra.mxu0 %v5308
    %5347 = vmatprep.subr.bf16.mxu0 0
    %5348 = vmatpush1.bf16.msra.mxu0 %v5309
    %5349 = vmatprep.subr.bf16.mxu0 0
    %5350 = vmatpush1.bf16.msra.mxu0 %v5310
    %5351 = vmatprep.subr.bf16.mxu0 0
    %5352 = vmatpush1.bf16.msra.mxu0 %v5311
    %5353 = vmatprep.subr.bf16.mxu0 0
    %5354 = vmatpush1.bf16.msra.mxu0 %v5312
    %5355 = vmatprep.subr.bf16.mxu0 0
    %5356 = vmatpush1.bf16.msra.mxu0 %v5313
    %5357 = vmatprep.subr.bf16.mxu0 0
    %5358 = vmatpush1.bf16.msra.mxu0 %v5314
    %5359 = vmatprep.subr.bf16.mxu0 0
    %5360 = vmatpush1.bf16.msra.mxu0 %v5315
    %5361 = vmatprep.subr.bf16.mxu0 0
    %5362 = vmatpush1.bf16.msra.mxu0 %v5316
    %5363 = vmatprep.subr.bf16.mxu0 0
    %5364 = vmatpush1.bf16.msra.mxu0 %v5317
    %5365 = vmatprep.subr.bf16.mxu0 0
    %5366 = vmatpush1.bf16.msra.mxu0 %v5318
    %5367 = vmatprep.mubr.bf16.mxu0 %v5236
    %5368 = vmatmul.mubr.bf16.gmra.mrb[0].mxu0 %v5235
    %v5369 = vpop.f32.mrb[0].mxu0
    %v5370 = vadd.f32 0.0, %v5369
    %v5371 = vpop.f32.mrb[0].mxu0
    %v5372 = vpop.f32.mrb[0].mxu0
    %v5373 = vpop.f32.mrb[0].mxu0
    %5374 = vdwg.mxu0
    %v5375 = vadd.f32 %v5201, %v5370
    %v5376 = vadd.f32 %v5375, %v1645
    %v5377 = vmax.f32 %v5376, 0.0
    %v5378 = vpack.c.bf16 %v5377, %v5377
    %v5379 = vld [vmem:[%s7] sm:$0xf]
    %v5380 = vld [vmem:[%s7 + $0x4] sm:$0xf]
    %v5381 = vld [vmem:[%s7 + $0x8] sm:$0xf]
    %v5382 = vld [vmem:[%s7 + $0xc] sm:$0xf]
    %v5383 = vld [vmem:[%s7 + $0x10] sm:$0xf]
    %v5384 = vld [vmem:[%s7 + $0x14] sm:$0xf]
    %v5385 = vld [vmem:[%s7 + $0x18] sm:$0xf]
    %v5386 = vld [vmem:[%s7 + $0x1c] sm:$0xf]
    %v5387 = vld [vmem:[%s7 + $0x20] sm:$0xf]
    %v5388 = vld [vmem:[%s7 + $0x24] sm:$0xf]
    %v5389 = vld [vmem:[%s7 + $0x28] sm:$0xf]
    %v5390 = vld [vmem:[%s7 + $0x2c] sm:$0xf]
    %v5391 = vld [vmem:[%s7 + $0x30] sm:$0xf]
    %v5392 = vld [vmem:[%s7 + $0x34] sm:$0xf]
    %v5393 = vld [vmem:[%s7 + $0x38] sm:$0xf]
    %v5394 = vld [vmem:[%s7 + $0x3c] sm:$0xf]
    %v5411 = vunpack.c.l.b16 %v5379
    %v5412 = vunpack.c.l.b16 %v5380
    %v5413 = vunpack.c.l.b16 %v5381
    %v5414 = vunpack.c.l.b16 %v5382
    %v5415 = vunpack.c.l.b16 %v5383
    %v5416 = vunpack.c.l.b16 %v5384
    %v5417 = vunpack.c.l.b16 %v5385
    %v5418 = vunpack.c.l.b16 %v5386
    %v5419 = vunpack.c.l.b16 %v5387
    %v5420 = vunpack.c.l.b16 %v5388
    %v5421 = vunpack.c.l.b16 %v5389
    %v5422 = vunpack.c.l.b16 %v5390
    %v5423 = vunpack.c.l.b16 %v5391
    %v5424 = vunpack.c.l.b16 %v5392
    %v5425 = vunpack.c.l.b16 %v5393
    %v5426 = vunpack.c.l.b16 %v5394
    %v5427 = vpack.c.b16 %v5412, %v5411
    %v5428 = vpack.c.b16 %v5414, %v5413
    %v5429 = vpack.c.b16 %v5416, %v5415
    %v5430 = vpack.c.b16 %v5418, %v5417
    %v5431 = vpack.c.b16 %v5420, %v5419
    %v5432 = vpack.c.b16 %v5422, %v5421
    %v5433 = vpack.c.b16 %v5424, %v5423
    %v5434 = vpack.c.b16 %v5426, %v5425
    %5443 = vmatprep.subr.bf16.mxu0 0
    %5444 = vmatpush1.bf16.msra.mxu0 %v5427
    %5445 = vmatprep.subr.bf16.mxu0 0
    %5446 = vmatpush1.bf16.msra.mxu0 %v5428
    %5447 = vmatprep.subr.bf16.mxu0 0
    %5448 = vmatpush1.bf16.msra.mxu0 %v5429
    %5449 = vmatprep.subr.bf16.mxu0 0
    %5450 = vmatpush1.bf16.msra.mxu0 %v5430
    %5451 = vmatprep.subr.bf16.mxu0 0
    %5452 = vmatpush1.bf16.msra.mxu0 %v5431
    %5453 = vmatprep.subr.bf16.mxu0 0
    %5454 = vmatpush1.bf16.msra.mxu0 %v5432
    %5455 = vmatprep.subr.bf16.mxu0 0
    %5456 = vmatpush1.bf16.msra.mxu0 %v5433
    %5457 = vmatprep.subr.bf16.mxu0 0
    %5458 = vmatpush1.bf16.msra.mxu0 %v5434
    %5459 = vmatprep.subr.bf16.mxu0 0
    %5460 = vmatpush1.bf16.msra.mxu0 0
    %5461 = vmatprep.subr.bf16.mxu0 0
    %5462 = vmatpush1.bf16.msra.mxu0 0
    %5463 = vmatprep.subr.bf16.mxu0 0
    %5464 = vmatpush1.bf16.msra.mxu0 0
    %5465 = vmatprep.subr.bf16.mxu0 0
    %5466 = vmatpush1.bf16.msra.mxu0 0
    %5467 = vmatprep.subr.bf16.mxu0 0
    %5468 = vmatpush1.bf16.msra.mxu0 0
    %5469 = vmatprep.subr.bf16.mxu0 0
    %5470 = vmatpush1.bf16.msra.mxu0 0
    %5471 = vmatprep.subr.bf16.mxu0 0
    %5472 = vmatpush1.bf16.msra.mxu0 0
    %5473 = vmatprep.subr.bf16.mxu0 0
    %5474 = vmatpush1.bf16.msra.mxu0 0
    %5475 = vmatprep.mubr.bf16.mxu0 0
    %5476 = vmatmul.mubr.bf16.gmra.mrb[0].mxu0 %v5378
    %v5477 = vpop.f32.mrb[0].mxu0
    %v5478 = vadd.f32 %v1646, %v5477
    %v5479 = vpop.f32.mrb[0].mxu0
    %v5480 = vpop.f32.mrb[0].mxu0
    %v5481 = vpop.f32.mrb[0].mxu0
    %5482 = vdwg.mxu0
    %v5483 = vmax.f32 %v5478, 0.0
    %v5484 = vpack.c.bf16 %v5483, %v5483
    %v5485 = vld [vmem:[%s9] sm:$0xf]
    %v5486 = vld [vmem:[%s9 + $0x4] sm:$0xf]
    %v5487 = vld [vmem:[%s9 + $0x8] sm:$0xf]
    %v5488 = vld [vmem:[%s9 + $0xc] sm:$0xf]
    %v5489 = vld [vmem:[%s9 + $0x10] sm:$0xf]
    %v5490 = vld [vmem:[%s9 + $0x14] sm:$0xf]
    %v5491 = vld [vmem:[%s9 + $0x18] sm:$0xf]
    %v5492 = vld [vmem:[%s9 + $0x1c] sm:$0xf]
    %v5493 = vld [vmem:[%s9 + $0x20] sm:$0xf]
    %v5494 = vld [vmem:[%s9 + $0x24] sm:$0xf]
    %v5495 = vld [vmem:[%s9 + $0x28] sm:$0xf]
    %v5496 = vld [vmem:[%s9 + $0x2c] sm:$0xf]
    %v5497 = vld [vmem:[%s9 + $0x30] sm:$0xf]
    %v5498 = vld [vmem:[%s9 + $0x34] sm:$0xf]
    %v5499 = vld [vmem:[%s9 + $0x38] sm:$0xf]
    %v5500 = vld [vmem:[%s9 + $0x3c] sm:$0xf]
    %v5517 = vunpack.c.l.b16 %v5485
    %v5518 = vunpack.c.l.b16 %v5486
    %v5519 = vunpack.c.l.b16 %v5487
    %v5520 = vunpack.c.l.b16 %v5488
    %v5521 = vunpack.c.l.b16 %v5489
    %v5522 = vunpack.c.l.b16 %v5490
    %v5523 = vunpack.c.l.b16 %v5491
    %v5524 = vunpack.c.l.b16 %v5492
    %v5525 = vunpack.c.l.b16 %v5493
    %v5526 = vunpack.c.l.b16 %v5494
    %v5527 = vunpack.c.l.b16 %v5495
    %v5528 = vunpack.c.l.b16 %v5496
    %v5529 = vunpack.c.l.b16 %v5497
    %v5530 = vunpack.c.l.b16 %v5498
    %v5531 = vunpack.c.l.b16 %v5499
    %v5532 = vunpack.c.l.b16 %v5500
    %v5533 = vpack.c.b16 %v5518, %v5517
    %v5534 = vpack.c.b16 %v5520, %v5519
    %v5535 = vpack.c.b16 %v5522, %v5521
    %v5536 = vpack.c.b16 %v5524, %v5523
    %v5537 = vpack.c.b16 %v5526, %v5525
    %v5538 = vpack.c.b16 %v5528, %v5527
    %v5539 = vpack.c.b16 %v5530, %v5529
    %v5540 = vpack.c.b16 %v5532, %v5531
    %5549 = vmatprep.subr.bf16.mxu0 0
    %5550 = vmatpush1.bf16.msra.mxu0 %v5533
    %5551 = vmatprep.subr.bf16.mxu0 0
    %5552 = vmatpush1.bf16.msra.mxu0 %v5534
    %5553 = vmatprep.subr.bf16.mxu0 0
    %5554 = vmatpush1.bf16.msra.mxu0 %v5535
    %5555 = vmatprep.subr.bf16.mxu0 0
    %5556 = vmatpush1.bf16.msra.mxu0 %v5536
    %5557 = vmatprep.subr.bf16.mxu0 0
    %5558 = vmatpush1.bf16.msra.mxu0 %v5537
    %5559 = vmatprep.subr.bf16.mxu0 0
    %5560 = vmatpush1.bf16.msra.mxu0 %v5538
    %5561 = vmatprep.subr.bf16.mxu0 0
    %5562 = vmatpush1.bf16.msra.mxu0 %v5539
    %5563 = vmatprep.subr.bf16.mxu0 0
    %5564 = vmatpush1.bf16.msra.mxu0 %v5540
    %5565 = vmatprep.subr.bf16.mxu0 0
    %5566 = vmatpush1.bf16.msra.mxu0 0
    %5567 = vmatprep.subr.bf16.mxu0 0
    %5568 = vmatpush1.bf16.msra.mxu0 0
    %5569 = vmatprep.subr.bf16.mxu0 0
    %5570 = vmatpush1.bf16.msra.mxu0 0
    %5571 = vmatprep.subr.bf16.mxu0 0
    %5572 = vmatpush1.bf16.msra.mxu0 0
    %5573 = vmatprep.subr.bf16.mxu0 0
    %5574 = vmatpush1.bf16.msra.mxu0 0
    %5575 = vmatprep.subr.bf16.mxu0 0
    %5576 = vmatpush1.bf16.msra.mxu0 0
    %5577 = vmatprep.subr.bf16.mxu0 0
    %5578 = vmatpush1.bf16.msra.mxu0 0
    %5579 = vmatprep.subr.bf16.mxu0 0
    %5580 = vmatpush1.bf16.msra.mxu0 0
    %5581 = vmatprep.mubr.bf16.mxu0 0
    %5582 = vmatmul.mubr.bf16.gmra.mrb[0].mxu0 %v5484
    %v5583 = vpop.f32.mrb[0].mxu0
    %v5584 = vadd.f32 %v1647, %v5583
    %v5585 = vpop.f32.mrb[0].mxu0
    %v5586 = vpop.f32.mrb[0].mxu0
    %v5587 = vpop.f32.mrb[0].mxu0
    %5588 = vdwg.mxu0
    %5589 = vst [vmem:[#allocation9] sm:$0x1] %v5584
    %v5590 = vld [vmem:[#allocation2] sm:$0x80]
    %v5591 = vld [vmem:[#allocation2 + $0x8] sm:$0x80]
    %v5592 = vld [vmem:[#allocation2 + $0x10] sm:$0xf]
    %v5593 = vld [vmem:[#allocation2 + $0x18] sm:$0xf]
    %v5594 = vpack.c.bf16 %v5592, %v5590
    %v5595 = vpack.c.bf16 %v5593, %v5591
    %v5596 = vld [vmem:[%s3] sm:$0xff]
    %v5597 = vld [vmem:[%s3 + $0x8] sm:$0xff]
    %v5598 = vld [vmem:[%s3 + $0x10] sm:$0xff]
    %v5599 = vld [vmem:[%s3 + $0x18] sm:$0xff]
    %v5600 = vld [vmem:[%s3 + $0x20] sm:$0xff]
    %v5601 = vld [vmem:[%s3 + $0x28] sm:$0xff]
    %v5602 = vld [vmem:[%s3 + $0x30] sm:$0xff]
    %v5603 = vld [vmem:[%s3 + $0x38] sm:$0xff]
    %v5604 = vld [vmem:[%s3 + $0x40] sm:$0xff]
    %v5605 = vld [vmem:[%s3 + $0x48] sm:$0xff]
    %v5606 = vld [vmem:[%s3 + $0x50] sm:$0xff]
    %v5607 = vld [vmem:[%s3 + $0x58] sm:$0xff]
    %v5608 = vld [vmem:[%s3 + $0x60] sm:$0xff]
    %v5609 = vld [vmem:[%s3 + $0x68] sm:$0xff]
    %v5610 = vld [vmem:[%s3 + $0x70] sm:$0xff]
    %v5611 = vld [vmem:[%s3 + $0x78] sm:$0xff]
    %v5612 = vld [vmem:[%s3 + $0x80] sm:$0xff]
    %v5613 = vld [vmem:[%s3 + $0x88] sm:$0xff]
    %v5614 = vld [vmem:[%s3 + $0x90] sm:$0xff]
    %v5615 = vld [vmem:[%s3 + $0x98] sm:$0xff]
    %v5616 = vld [vmem:[%s3 + $0xa0] sm:$0xff]
    %v5617 = vld [vmem:[%s3 + $0xa8] sm:$0xff]
    %v5618 = vld [vmem:[%s3 + $0xb0] sm:$0xff]
    %v5619 = vld [vmem:[%s3 + $0xb8] sm:$0xff]
    %v5620 = vld [vmem:[%s3 + $0xc0] sm:$0xff]
    %v5621 = vld [vmem:[%s3 + $0xc8] sm:$0xff]
    %v5622 = vld [vmem:[%s3 + $0xd0] sm:$0xff]
    %v5623 = vld [vmem:[%s3 + $0xd8] sm:$0xff]
    %v5624 = vld [vmem:[%s3 + $0xe0] sm:$0xff]
    %v5625 = vld [vmem:[%s3 + $0xe8] sm:$0xff]
    %v5626 = vld [vmem:[%s3 + $0xf0] sm:$0xff]
    %v5627 = vld [vmem:[%s3 + $0xf8] sm:$0xff]
    %v5628 = vld [vmem:[%s3 + $0x100] sm:$0xff]
    %v5629 = vld [vmem:[%s3 + $0x108] sm:$0xff]
    %v5630 = vld [vmem:[%s3 + $0x110] sm:$0xff]
    %v5631 = vld [vmem:[%s3 + $0x118] sm:$0xff]
    %v5632 = vld [vmem:[%s3 + $0x120] sm:$0xff]
    %v5633 = vld [vmem:[%s3 + $0x128] sm:$0xff]
    %v5634 = vld [vmem:[%s3 + $0x130] sm:$0xff]
    %v5635 = vld [vmem:[%s3 + $0x138] sm:$0xff]
    %v5636 = vld [vmem:[%s3 + $0x140] sm:$0xff]
    %v5637 = vld [vmem:[%s3 + $0x148] sm:$0xff]
    %v5638 = vld [vmem:[%s3 + $0x150] sm:$0xff]
    %v5639 = vld [vmem:[%s3 + $0x158] sm:$0xff]
    %v5640 = vld [vmem:[%s3 + $0x160] sm:$0xff]
    %v5641 = vld [vmem:[%s3 + $0x168] sm:$0xff]
    %v5642 = vld [vmem:[%s3 + $0x170] sm:$0xff]
    %v5643 = vld [vmem:[%s3 + $0x178] sm:$0xff]
    %v5644 = vld [vmem:[%s3 + $0x180] sm:$0xff]
    %v5645 = vld [vmem:[%s3 + $0x188] sm:$0xff]
    %v5646 = vld [vmem:[%s3 + $0x190] sm:$0xff]
    %v5647 = vld [vmem:[%s3 + $0x198] sm:$0xff]
    %v5648 = vld [vmem:[%s3 + $0x1a0] sm:$0xff]
    %v5649 = vld [vmem:[%s3 + $0x1a8] sm:$0xff]
    %v5650 = vld [vmem:[%s3 + $0x1b0] sm:$0xff]
    %v5651 = vld [vmem:[%s3 + $0x1b8] sm:$0xff]
    %v5652 = vld [vmem:[%s3 + $0x1c0] sm:$0xff]
    %v5653 = vld [vmem:[%s3 + $0x1c8] sm:$0xff]
    %v5654 = vld [vmem:[%s3 + $0x1d0] sm:$0xff]
    %v5655 = vld [vmem:[%s3 + $0x1d8] sm:$0xff]
    %v5656 = vld [vmem:[%s3 + $0x1e0] sm:$0xff]
    %v5657 = vld [vmem:[%s3 + $0x1e8] sm:$0xff]
    %v5658 = vld [vmem:[%s3 + $0x1f0] sm:$0xff]
    %v5659 = vld [vmem:[%s3 + $0x1f8] sm:$0xff]
    %v5660 = vld [vmem:[#allocation3] sm:$0x80]
    %v5661 = vld [vmem:[#allocation3 + $0x8] sm:$0x80]
    %v5662 = vld [vmem:[#allocation3 + $0x10] sm:$0xf]
    %v5663 = vld [vmem:[#allocation3 + $0x18] sm:$0xf]
    %v5664 = vpack.c.bf16 %v5662, %v5660
    %v5665 = vpack.c.bf16 %v5663, %v5661
    %v5666 = vld [vmem:[%s1720] sm:$0xff]
    %v5667 = vld [vmem:[%s1720 + $0x8] sm:$0xff]
    %v5668 = vld [vmem:[%s1720 + $0x10] sm:$0xff]
    %v5669 = vld [vmem:[%s1720 + $0x18] sm:$0xff]
    %v5670 = vld [vmem:[%s1720 + $0x20] sm:$0xff]
    %v5671 = vld [vmem:[%s1720 + $0x28] sm:$0xff]
    %v5672 = vld [vmem:[%s1720 + $0x30] sm:$0xff]
    %v5673 = vld [vmem:[%s1720 + $0x38] sm:$0xff]
    %v5674 = vld [vmem:[%s1720 + $0x40] sm:$0xff]
    %v5675 = vld [vmem:[%s1720 + $0x48] sm:$0xff]
    %v5676 = vld [vmem:[%s1720 + $0x50] sm:$0xff]
    %v5677 = vld [vmem:[%s1720 + $0x58] sm:$0xff]
    %v5678 = vld [vmem:[%s1720 + $0x60] sm:$0xff]
    %v5679 = vld [vmem:[%s1720 + $0x68] sm:$0xff]
    %v5680 = vld [vmem:[%s1720 + $0x70] sm:$0xff]
    %v5681 = vld [vmem:[%s1720 + $0x78] sm:$0xff]
    %v5682 = vld [vmem:[%s1720 + $0x80] sm:$0xff]
    %v5683 = vld [vmem:[%s1720 + $0x88] sm:$0xff]
    %v5684 = vld [vmem:[%s1720 + $0x90] sm:$0xff]
    %v5685 = vld [vmem:[%s1720 + $0x98] sm:$0xff]
    %v5686 = vld [vmem:[%s1720 + $0xa0] sm:$0xff]
    %v5687 = vld [vmem:[%s1720 + $0xa8] sm:$0xff]
    %v5688 = vld [vmem:[%s1720 + $0xb0] sm:$0xff]
    %v5689 = vld [vmem:[%s1720 + $0xb8] sm:$0xff]
    %v5690 = vld [vmem:[%s1720 + $0xc0] sm:$0xff]
    %v5691 = vld [vmem:[%s1720 + $0xc8] sm:$0xff]
    %v5692 = vld [vmem:[%s1720 + $0xd0] sm:$0xff]
    %v5693 = vld [vmem:[%s1720 + $0xd8] sm:$0xff]
    %v5694 = vld [vmem:[%s1720 + $0xe0] sm:$0xff]
    %v5695 = vld [vmem:[%s1720 + $0xe8] sm:$0xff]
    %v5696 = vld [vmem:[%s1720 + $0xf0] sm:$0xff]
    %v5697 = vld [vmem:[%s1720 + $0xf8] sm:$0xff]
    %v5698 = vld [vmem:[%s1720 + $0x100] sm:$0xff]
    %v5699 = vld [vmem:[%s1720 + $0x108] sm:$0xff]
    %v5700 = vld [vmem:[%s1720 + $0x110] sm:$0xff]
    %v5701 = vld [vmem:[%s1720 + $0x118] sm:$0xff]
    %v5702 = vld [vmem:[%s1720 + $0x120] sm:$0xff]
    %v5703 = vld [vmem:[%s1720 + $0x128] sm:$0xff]
    %v5704 = vld [vmem:[%s1720 + $0x130] sm:$0xff]
    %v5705 = vld [vmem:[%s1720 + $0x138] sm:$0xff]
    %v5706 = vld [vmem:[%s1720 + $0x140] sm:$0xff]
    %v5707 = vld [vmem:[%s1720 + $0x148] sm:$0xff]
    %v5708 = vld [vmem:[%s1720 + $0x150] sm:$0xff]
    %v5709 = vld [vmem:[%s1720 + $0x158] sm:$0xff]
    %v5710 = vld [vmem:[%s1720 + $0x160] sm:$0xff]
    %v5711 = vld [vmem:[%s1720 + $0x168] sm:$0xff]
    %v5712 = vld [vmem:[%s1720 + $0x170] sm:$0xff]
    %v5713 = vld [vmem:[%s1720 + $0x178] sm:$0xff]
    %v5714 = vld [vmem:[%s1720 + $0x180] sm:$0xff]
    %v5715 = vld [vmem:[%s1720 + $0x188] sm:$0xff]
    %v5716 = vld [vmem:[%s1720 + $0x190] sm:$0xff]
    %v5717 = vld [vmem:[%s1720 + $0x198] sm:$0xff]
    %v5718 = vld [vmem:[%s1720 + $0x1a0] sm:$0xff]
    %v5719 = vld [vmem:[%s1720 + $0x1a8] sm:$0xff]
    %v5720 = vld [vmem:[%s1720 + $0x1b0] sm:$0xff]
    %v5721 = vld [vmem:[%s1720 + $0x1b8] sm:$0xff]
    %v5722 = vld [vmem:[%s1720 + $0x1c0] sm:$0xff]
    %v5723 = vld [vmem:[%s1720 + $0x1c8] sm:$0xff]
    %v5724 = vld [vmem:[%s1720 + $0x1d0] sm:$0xff]
    %v5725 = vld [vmem:[%s1720 + $0x1d8] sm:$0xff]
    %v5726 = vld [vmem:[%s1720 + $0x1e0] sm:$0xff]
    %v5727 = vld [vmem:[%s1720 + $0x1e8] sm:$0xff]
    %v5728 = vld [vmem:[%s1720 + $0x1f0] sm:$0xff]
    %v5729 = vld [vmem:[%s1720 + $0x1f8] sm:$0xff]
    %v5731 = vshrl.u32 %v5664, 16
    %v5733 = vrot.slane %v5731, 3
    %v5734 = vshll.u32 %v5664, 16
    %v5736 = vrot.slane %v5734, 4
    %v5737 = vor.u32 %v5733, %v5736
    %v5739 = vshrl.u32 %v5665, 16
    %v5741 = vrot.slane %v5739, 3
    %v5742 = vshll.u32 %v5665, 16
    %v5744 = vrot.slane %v5742, 4
    %v5745 = vor.u32 %v5741, %v5744
    %v5812 = vunpack.c.l.b16 %v5666
    %v5813 = vunpack.c.h.b16 %v5666
    %v5814 = vunpack.c.l.b16 %v5667
    %v5815 = vunpack.c.h.b16 %v5667
    %v5816 = vunpack.c.l.b16 %v5668
    %v5817 = vunpack.c.h.b16 %v5668
    %v5818 = vunpack.c.l.b16 %v5669
    %v5819 = vunpack.c.h.b16 %v5669
    %v5820 = vunpack.c.l.b16 %v5670
    %v5821 = vunpack.c.h.b16 %v5670
    %v5822 = vunpack.c.l.b16 %v5671
    %v5823 = vunpack.c.h.b16 %v5671
    %v5824 = vunpack.c.l.b16 %v5672
    %v5825 = vunpack.c.h.b16 %v5672
    %v5826 = vunpack.c.l.b16 %v5673
    %v5827 = vunpack.c.h.b16 %v5673
    %v5828 = vunpack.c.l.b16 %v5674
    %v5829 = vunpack.c.h.b16 %v5674
    %v5830 = vunpack.c.l.b16 %v5675
    %v5831 = vunpack.c.h.b16 %v5675
    %v5832 = vunpack.c.l.b16 %v5676
    %v5833 = vunpack.c.h.b16 %v5676
    %v5834 = vunpack.c.l.b16 %v5677
    %v5835 = vunpack.c.h.b16 %v5677
    %v5836 = vunpack.c.l.b16 %v5678
    %v5837 = vunpack.c.h.b16 %v5678
    %v5838 = vunpack.c.l.b16 %v5679
    %v5839 = vunpack.c.h.b16 %v5679
    %v5840 = vunpack.c.l.b16 %v5680
    %v5841 = vunpack.c.h.b16 %v5680
    %v5842 = vunpack.c.l.b16 %v5681
    %v5843 = vunpack.c.h.b16 %v5681
    %v5844 = vunpack.c.l.b16 %v5682
    %v5845 = vunpack.c.h.b16 %v5682
    %v5846 = vunpack.c.l.b16 %v5683
    %v5847 = vunpack.c.h.b16 %v5683
    %v5848 = vunpack.c.l.b16 %v5684
    %v5849 = vunpack.c.h.b16 %v5684
    %v5850 = vunpack.c.l.b16 %v5685
    %v5851 = vunpack.c.h.b16 %v5685
    %v5852 = vunpack.c.l.b16 %v5686
    %v5853 = vunpack.c.h.b16 %v5686
    %v5854 = vunpack.c.l.b16 %v5687
    %v5855 = vunpack.c.h.b16 %v5687
    %v5856 = vunpack.c.l.b16 %v5688
    %v5857 = vunpack.c.h.b16 %v5688
    %v5858 = vunpack.c.l.b16 %v5689
    %v5859 = vunpack.c.h.b16 %v5689
    %v5860 = vunpack.c.l.b16 %v5690
    %v5861 = vunpack.c.h.b16 %v5690
    %v5862 = vunpack.c.l.b16 %v5691
    %v5863 = vunpack.c.h.b16 %v5691
    %v5864 = vunpack.c.l.b16 %v5692
    %v5865 = vunpack.c.h.b16 %v5692
    %v5866 = vunpack.c.l.b16 %v5693
    %v5867 = vunpack.c.h.b16 %v5693
    %v5868 = vunpack.c.l.b16 %v5694
    %v5869 = vunpack.c.h.b16 %v5694
    %v5870 = vunpack.c.l.b16 %v5695
    %v5871 = vunpack.c.h.b16 %v5695
    %v5872 = vunpack.c.l.b16 %v5696
    %v5873 = vunpack.c.h.b16 %v5696
    %v5874 = vunpack.c.l.b16 %v5697
    %v5875 = vunpack.c.h.b16 %v5697
    %v5876 = vunpack.c.l.b16 %v5698
    %v5877 = vunpack.c.h.b16 %v5698
    %v5878 = vunpack.c.l.b16 %v5699
    %v5879 = vunpack.c.h.b16 %v5699
    %v5880 = vunpack.c.l.b16 %v5700
    %v5881 = vunpack.c.h.b16 %v5700
    %v5882 = vunpack.c.l.b16 %v5701
    %v5883 = vunpack.c.h.b16 %v5701
    %v5884 = vunpack.c.l.b16 %v5702
    %v5885 = vunpack.c.h.b16 %v5702
    %v5886 = vunpack.c.l.b16 %v5703
    %v5887 = vunpack.c.h.b16 %v5703
    %v5888 = vunpack.c.l.b16 %v5704
    %v5889 = vunpack.c.h.b16 %v5704
    %v5890 = vunpack.c.l.b16 %v5705
    %v5891 = vunpack.c.h.b16 %v5705
    %v5892 = vunpack.c.l.b16 %v5706
    %v5893 = vunpack.c.h.b16 %v5706
    %v5894 = vunpack.c.l.b16 %v5707
    %v5895 = vunpack.c.h.b16 %v5707
    %v5896 = vunpack.c.l.b16 %v5708
    %v5897 = vunpack.c.h.b16 %v5708
    %v5898 = vunpack.c.l.b16 %v5709
    %v5899 = vunpack.c.h.b16 %v5709
    %v5900 = vunpack.c.l.b16 %v5710
    %v5901 = vunpack.c.h.b16 %v5710
    %v5902 = vunpack.c.l.b16 %v5711
    %v5903 = vunpack.c.h.b16 %v5711
    %v5904 = vunpack.c.l.b16 %v5712
    %v5905 = vunpack.c.h.b16 %v5712
    %v5906 = vunpack.c.l.b16 %v5713
    %v5907 = vunpack.c.h.b16 %v5713
    %v5908 = vunpack.c.l.b16 %v5714
    %v5909 = vunpack.c.h.b16 %v5714
    %v5910 = vunpack.c.l.b16 %v5715
    %v5911 = vunpack.c.h.b16 %v5715
    %v5912 = vunpack.c.l.b16 %v5716
    %v5913 = vunpack.c.h.b16 %v5716
    %v5914 = vunpack.c.l.b16 %v5717
    %v5915 = vunpack.c.h.b16 %v5717
    %v5916 = vunpack.c.l.b16 %v5718
    %v5917 = vunpack.c.h.b16 %v5718
    %v5918 = vunpack.c.l.b16 %v5719
    %v5919 = vunpack.c.h.b16 %v5719
    %v5920 = vunpack.c.l.b16 %v5720
    %v5921 = vunpack.c.h.b16 %v5720
    %v5922 = vunpack.c.l.b16 %v5721
    %v5923 = vunpack.c.h.b16 %v5721
    %v5924 = vunpack.c.l.b16 %v5722
    %v5925 = vunpack.c.h.b16 %v5722
    %v5926 = vunpack.c.l.b16 %v5723
    %v5927 = vunpack.c.h.b16 %v5723
    %v5928 = vunpack.c.l.b16 %v5724
    %v5929 = vunpack.c.h.b16 %v5724
    %v5930 = vunpack.c.l.b16 %v5725
    %v5931 = vunpack.c.h.b16 %v5725
    %v5932 = vunpack.c.l.b16 %v5726
    %v5933 = vunpack.c.h.b16 %v5726
    %v5934 = vunpack.c.l.b16 %v5727
    %v5935 = vunpack.c.h.b16 %v5727
    %v5936 = vunpack.c.l.b16 %v5728
    %v5937 = vunpack.c.h.b16 %v5728
    %v5938 = vunpack.c.l.b16 %v5729
    %v5939 = vunpack.c.h.b16 %v5729
    %v5940 = vpack.c.b16 %v5816, %v5812
    %v5941 = vpack.c.b16 %v5817, %v5813
    %v5942 = vpack.c.b16 %v5818, %v5814
    %v5943 = vpack.c.b16 %v5819, %v5815
    %v5944 = vpack.c.b16 %v5824, %v5820
    %v5945 = vpack.c.b16 %v5825, %v5821
    %v5946 = vpack.c.b16 %v5826, %v5822
    %v5947 = vpack.c.b16 %v5827, %v5823
    %v5948 = vpack.c.b16 %v5832, %v5828
    %v5949 = vpack.c.b16 %v5833, %v5829
    %v5950 = vpack.c.b16 %v5834, %v5830
    %v5951 = vpack.c.b16 %v5835, %v5831
    %v5952 = vpack.c.b16 %v5840, %v5836
    %v5953 = vpack.c.b16 %v5841, %v5837
    %v5954 = vpack.c.b16 %v5842, %v5838
    %v5955 = vpack.c.b16 %v5843, %v5839
    %v5956 = vpack.c.b16 %v5848, %v5844
    %v5957 = vpack.c.b16 %v5849, %v5845
    %v5958 = vpack.c.b16 %v5850, %v5846
    %v5959 = vpack.c.b16 %v5851, %v5847
    %v5960 = vpack.c.b16 %v5856, %v5852
    %v5961 = vpack.c.b16 %v5857, %v5853
    %v5962 = vpack.c.b16 %v5858, %v5854
    %v5963 = vpack.c.b16 %v5859, %v5855
    %v5964 = vpack.c.b16 %v5864, %v5860
    %v5965 = vpack.c.b16 %v5865, %v5861
    %v5966 = vpack.c.b16 %v5866, %v5862
    %v5967 = vpack.c.b16 %v5867, %v5863
    %v5968 = vpack.c.b16 %v5872, %v5868
    %v5969 = vpack.c.b16 %v5873, %v5869
    %v5970 = vpack.c.b16 %v5874, %v5870
    %v5971 = vpack.c.b16 %v5875, %v5871
    %v5972 = vpack.c.b16 %v5880, %v5876
    %v5973 = vpack.c.b16 %v5881, %v5877
    %v5974 = vpack.c.b16 %v5882, %v5878
    %v5975 = vpack.c.b16 %v5883, %v5879
    %v5976 = vpack.c.b16 %v5888, %v5884
    %v5977 = vpack.c.b16 %v5889, %v5885
    %v5978 = vpack.c.b16 %v5890, %v5886
    %v5979 = vpack.c.b16 %v5891, %v5887
    %v5980 = vpack.c.b16 %v5896, %v5892
    %v5981 = vpack.c.b16 %v5897, %v5893
    %v5982 = vpack.c.b16 %v5898, %v5894
    %v5983 = vpack.c.b16 %v5899, %v5895
    %v5984 = vpack.c.b16 %v5904, %v5900
    %v5985 = vpack.c.b16 %v5905, %v5901
    %v5986 = vpack.c.b16 %v5906, %v5902
    %v5987 = vpack.c.b16 %v5907, %v5903
    %v5988 = vpack.c.b16 %v5912, %v5908
    %v5989 = vpack.c.b16 %v5913, %v5909
    %v5990 = vpack.c.b16 %v5914, %v5910
    %v5991 = vpack.c.b16 %v5915, %v5911
    %v5992 = vpack.c.b16 %v5920, %v5916
    %v5993 = vpack.c.b16 %v5921, %v5917
    %v5994 = vpack.c.b16 %v5922, %v5918
    %v5995 = vpack.c.b16 %v5923, %v5919
    %v5996 = vpack.c.b16 %v5928, %v5924
    %v5997 = vpack.c.b16 %v5929, %v5925
    %v5998 = vpack.c.b16 %v5930, %v5926
    %v5999 = vpack.c.b16 %v5931, %v5927
    %v6000 = vpack.c.b16 %v5936, %v5932
    %v6001 = vpack.c.b16 %v5937, %v5933
    %v6002 = vpack.c.b16 %v5938, %v5934
    %v6003 = vpack.c.b16 %v5939, %v5935
    %6068 = vmatprep.subr.bf16.mxu0 %v5941
    %6069 = vmatpush1.bf16.msra.mxu0 %v5940
    %6070 = vmatprep.subr.bf16.mxu0 %v5945
    %6071 = vmatpush1.bf16.msra.mxu0 %v5944
    %6072 = vmatprep.subr.bf16.mxu0 %v5949
    %6073 = vmatpush1.bf16.msra.mxu0 %v5948
    %6074 = vmatprep.subr.bf16.mxu0 %v5953
    %6075 = vmatpush1.bf16.msra.mxu0 %v5952
    %6076 = vmatprep.subr.bf16.mxu0 %v5957
    %6077 = vmatpush1.bf16.msra.mxu0 %v5956
    %6078 = vmatprep.subr.bf16.mxu0 %v5961
    %6079 = vmatpush1.bf16.msra.mxu0 %v5960
    %6080 = vmatprep.subr.bf16.mxu0 %v5965
    %6081 = vmatpush1.bf16.msra.mxu0 %v5964
    %6082 = vmatprep.subr.bf16.mxu0 %v5969
    %6083 = vmatpush1.bf16.msra.mxu0 %v5968
    %6084 = vmatprep.subr.bf16.mxu0 %v5973
    %6085 = vmatpush1.bf16.msra.mxu0 %v5972
    %6086 = vmatprep.subr.bf16.mxu0 %v5977
    %6087 = vmatpush1.bf16.msra.mxu0 %v5976
    %6088 = vmatprep.subr.bf16.mxu0 %v5981
    %6089 = vmatpush1.bf16.msra.mxu0 %v5980
    %6090 = vmatprep.subr.bf16.mxu0 %v5985
    %6091 = vmatpush1.bf16.msra.mxu0 %v5984
    %6092 = vmatprep.subr.bf16.mxu0 %v5989
    %6093 = vmatpush1.bf16.msra.mxu0 %v5988
    %6094 = vmatprep.subr.bf16.mxu0 %v5993
    %6095 = vmatpush1.bf16.msra.mxu0 %v5992
    %6096 = vmatprep.subr.bf16.mxu0 %v5997
    %6097 = vmatpush1.bf16.msra.mxu0 %v5996
    %6098 = vmatprep.subr.bf16.mxu0 %v6001
    %6099 = vmatpush1.bf16.msra.mxu0 %v6000
    %6100 = vmatprep.mubr.bf16.mxu0 %v5745
    %6101 = vmatmul.mubr.bf16.gmra.mrb[0].mxu0 %v5737
    %v6102 = vpop.f32.mrb[0].mxu0
    %v6103 = vadd.f32 0.0, %v6102
    %v6104 = vpop.f32.mrb[0].mxu0
    %v6105 = vadd.f32 0.0, %v6104
    %v6106 = vpop.f32.mrb[0].mxu0
    %v6107 = vpop.f32.mrb[0].mxu0
    %6108 = vdwg.mxu0
    %6109 = vmatprep.subr.bf16.mxu0 %v5943
    %6110 = vmatpush1.bf16.msra.mxu0 %v5942
    %6111 = vmatprep.subr.bf16.mxu0 %v5947
    %6112 = vmatpush1.bf16.msra.mxu0 %v5946
    %6113 = vmatprep.subr.bf16.mxu0 %v5951
    %6114 = vmatpush1.bf16.msra.mxu0 %v5950
    %6115 = vmatprep.subr.bf16.mxu0 %v5955
    %6116 = vmatpush1.bf16.msra.mxu0 %v5954
    %6117 = vmatprep.subr.bf16.mxu0 %v5959
    %6118 = vmatpush1.bf16.msra.mxu0 %v5958
    %6119 = vmatprep.subr.bf16.mxu0 %v5963
    %6120 = vmatpush1.bf16.msra.mxu0 %v5962
    %6121 = vmatprep.subr.bf16.mxu0 %v5967
    %6122 = vmatpush1.bf16.msra.mxu0 %v5966
    %6123 = vmatprep.subr.bf16.mxu0 %v5971
    %6124 = vmatpush1.bf16.msra.mxu0 %v5970
    %6125 = vmatprep.subr.bf16.mxu0 %v5975
    %6126 = vmatpush1.bf16.msra.mxu0 %v5974
    %6127 = vmatprep.subr.bf16.mxu0 %v5979
    %6128 = vmatpush1.bf16.msra.mxu0 %v5978
    %6129 = vmatprep.subr.bf16.mxu0 %v5983
    %6130 = vmatpush1.bf16.msra.mxu0 %v5982
    %6131 = vmatprep.subr.bf16.mxu0 %v5987
    %6132 = vmatpush1.bf16.msra.mxu0 %v5986
    %6133 = vmatprep.subr.bf16.mxu0 %v5991
    %6134 = vmatpush1.bf16.msra.mxu0 %v5990
    %6135 = vmatprep.subr.bf16.mxu0 %v5995
    %6136 = vmatpush1.bf16.msra.mxu0 %v5994
    %6137 = vmatprep.subr.bf16.mxu0 %v5999
    %6138 = vmatpush1.bf16.msra.mxu0 %v5998
    %6139 = vmatprep.subr.bf16.mxu0 %v6003
    %6140 = vmatpush1.bf16.msra.mxu0 %v6002
    %6141 = vmatprep.mubr.bf16.mxu0 %v5745
    %6142 = vmatmul.mubr.bf16.gmra.mrb[0].mxu0 %v5737
    %v6143 = vpop.f32.mrb[0].mxu0
    %v6144 = vadd.f32 0.0, %v6143
    %v6145 = vpop.f32.mrb[0].mxu0
    %v6146 = vadd.f32 0.0, %v6145
    %v6147 = vpop.f32.mrb[0].mxu0
    %v6148 = vpop.f32.mrb[0].mxu0
    %6149 = vdwg.mxu0
    %v6151 = vshrl.u32 %v5594, 16
    %v6153 = vrot.slane %v6151, 3
    %v6154 = vshll.u32 %v5594, 16
    %v6156 = vrot.slane %v6154, 4
    %v6157 = vor.u32 %v6153, %v6156
    %v6159 = vshrl.u32 %v5595, 16
    %v6161 = vrot.slane %v6159, 3
    %v6162 = vshll.u32 %v5595, 16
    %v6164 = vrot.slane %v6162, 4
    %v6165 = vor.u32 %v6161, %v6164
    %v6232 = vunpack.c.l.b16 %v5596
    %v6233 = vunpack.c.h.b16 %v5596
    %v6234 = vunpack.c.l.b16 %v5597
    %v6235 = vunpack.c.h.b16 %v5597
    %v6236 = vunpack.c.l.b16 %v5598
    %v6237 = vunpack.c.h.b16 %v5598
    %v6238 = vunpack.c.l.b16 %v5599
    %v6239 = vunpack.c.h.b16 %v5599
    %v6240 = vunpack.c.l.b16 %v5600
    %v6241 = vunpack.c.h.b16 %v5600
    %v6242 = vunpack.c.l.b16 %v5601
    %v6243 = vunpack.c.h.b16 %v5601
    %v6244 = vunpack.c.l.b16 %v5602
    %v6245 = vunpack.c.h.b16 %v5602
    %v6246 = vunpack.c.l.b16 %v5603
    %v6247 = vunpack.c.h.b16 %v5603
    %v6248 = vunpack.c.l.b16 %v5604
    %v6249 = vunpack.c.h.b16 %v5604
    %v6250 = vunpack.c.l.b16 %v5605
    %v6251 = vunpack.c.h.b16 %v5605
    %v6252 = vunpack.c.l.b16 %v5606
    %v6253 = vunpack.c.h.b16 %v5606
    %v6254 = vunpack.c.l.b16 %v5607
    %v6255 = vunpack.c.h.b16 %v5607
    %v6256 = vunpack.c.l.b16 %v5608
    %v6257 = vunpack.c.h.b16 %v5608
    %v6258 = vunpack.c.l.b16 %v5609
    %v6259 = vunpack.c.h.b16 %v5609
    %v6260 = vunpack.c.l.b16 %v5610
    %v6261 = vunpack.c.h.b16 %v5610
    %v6262 = vunpack.c.l.b16 %v5611
    %v6263 = vunpack.c.h.b16 %v5611
    %v6264 = vunpack.c.l.b16 %v5612
    %v6265 = vunpack.c.h.b16 %v5612
    %v6266 = vunpack.c.l.b16 %v5613
    %v6267 = vunpack.c.h.b16 %v5613
    %v6268 = vunpack.c.l.b16 %v5614
    %v6269 = vunpack.c.h.b16 %v5614
    %v6270 = vunpack.c.l.b16 %v5615
    %v6271 = vunpack.c.h.b16 %v5615
    %v6272 = vunpack.c.l.b16 %v5616
    %v6273 = vunpack.c.h.b16 %v5616
    %v6274 = vunpack.c.l.b16 %v5617
    %v6275 = vunpack.c.h.b16 %v5617
    %v6276 = vunpack.c.l.b16 %v5618
    %v6277 = vunpack.c.h.b16 %v5618
    %v6278 = vunpack.c.l.b16 %v5619
    %v6279 = vunpack.c.h.b16 %v5619
    %v6280 = vunpack.c.l.b16 %v5620
    %v6281 = vunpack.c.h.b16 %v5620
    %v6282 = vunpack.c.l.b16 %v5621
    %v6283 = vunpack.c.h.b16 %v5621
    %v6284 = vunpack.c.l.b16 %v5622
    %v6285 = vunpack.c.h.b16 %v5622
    %v6286 = vunpack.c.l.b16 %v5623
    %v6287 = vunpack.c.h.b16 %v5623
    %v6288 = vunpack.c.l.b16 %v5624
    %v6289 = vunpack.c.h.b16 %v5624
    %v6290 = vunpack.c.l.b16 %v5625
    %v6291 = vunpack.c.h.b16 %v5625
    %v6292 = vunpack.c.l.b16 %v5626
    %v6293 = vunpack.c.h.b16 %v5626
    %v6294 = vunpack.c.l.b16 %v5627
    %v6295 = vunpack.c.h.b16 %v5627
    %v6296 = vunpack.c.l.b16 %v5628
    %v6297 = vunpack.c.h.b16 %v5628
    %v6298 = vunpack.c.l.b16 %v5629
    %v6299 = vunpack.c.h.b16 %v5629
    %v6300 = vunpack.c.l.b16 %v5630
    %v6301 = vunpack.c.h.b16 %v5630
    %v6302 = vunpack.c.l.b16 %v5631
    %v6303 = vunpack.c.h.b16 %v5631
    %v6304 = vunpack.c.l.b16 %v5632
    %v6305 = vunpack.c.h.b16 %v5632
    %v6306 = vunpack.c.l.b16 %v5633
    %v6307 = vunpack.c.h.b16 %v5633
    %v6308 = vunpack.c.l.b16 %v5634
    %v6309 = vunpack.c.h.b16 %v5634
    %v6310 = vunpack.c.l.b16 %v5635
    %v6311 = vunpack.c.h.b16 %v5635
    %v6312 = vunpack.c.l.b16 %v5636
    %v6313 = vunpack.c.h.b16 %v5636
    %v6314 = vunpack.c.l.b16 %v5637
    %v6315 = vunpack.c.h.b16 %v5637
    %v6316 = vunpack.c.l.b16 %v5638
    %v6317 = vunpack.c.h.b16 %v5638
    %v6318 = vunpack.c.l.b16 %v5639
    %v6319 = vunpack.c.h.b16 %v5639
    %v6320 = vunpack.c.l.b16 %v5640
    %v6321 = vunpack.c.h.b16 %v5640
    %v6322 = vunpack.c.l.b16 %v5641
    %v6323 = vunpack.c.h.b16 %v5641
    %v6324 = vunpack.c.l.b16 %v5642
    %v6325 = vunpack.c.h.b16 %v5642
    %v6326 = vunpack.c.l.b16 %v5643
    %v6327 = vunpack.c.h.b16 %v5643
    %v6328 = vunpack.c.l.b16 %v5644
    %v6329 = vunpack.c.h.b16 %v5644
    %v6330 = vunpack.c.l.b16 %v5645
    %v6331 = vunpack.c.h.b16 %v5645
    %v6332 = vunpack.c.l.b16 %v5646
    %v6333 = vunpack.c.h.b16 %v5646
    %v6334 = vunpack.c.l.b16 %v5647
    %v6335 = vunpack.c.h.b16 %v5647
    %v6336 = vunpack.c.l.b16 %v5648
    %v6337 = vunpack.c.h.b16 %v5648
    %v6338 = vunpack.c.l.b16 %v5649
    %v6339 = vunpack.c.h.b16 %v5649
    %v6340 = vunpack.c.l.b16 %v5650
    %v6341 = vunpack.c.h.b16 %v5650
    %v6342 = vunpack.c.l.b16 %v5651
    %v6343 = vunpack.c.h.b16 %v5651
    %v6344 = vunpack.c.l.b16 %v5652
    %v6345 = vunpack.c.h.b16 %v5652
    %v6346 = vunpack.c.l.b16 %v5653
    %v6347 = vunpack.c.h.b16 %v5653
    %v6348 = vunpack.c.l.b16 %v5654
    %v6349 = vunpack.c.h.b16 %v5654
    %v6350 = vunpack.c.l.b16 %v5655
    %v6351 = vunpack.c.h.b16 %v5655
    %v6352 = vunpack.c.l.b16 %v5656
    %v6353 = vunpack.c.h.b16 %v5656
    %v6354 = vunpack.c.l.b16 %v5657
    %v6355 = vunpack.c.h.b16 %v5657
    %v6356 = vunpack.c.l.b16 %v5658
    %v6357 = vunpack.c.h.b16 %v5658
    %v6358 = vunpack.c.l.b16 %v5659
    %v6359 = vunpack.c.h.b16 %v5659
    %v6360 = vpack.c.b16 %v6236, %v6232
    %v6361 = vpack.c.b16 %v6237, %v6233
    %v6362 = vpack.c.b16 %v6238, %v6234
    %v6363 = vpack.c.b16 %v6239, %v6235
    %v6364 = vpack.c.b16 %v6244, %v6240
    %v6365 = vpack.c.b16 %v6245, %v6241
    %v6366 = vpack.c.b16 %v6246, %v6242
    %v6367 = vpack.c.b16 %v6247, %v6243
    %v6368 = vpack.c.b16 %v6252, %v6248
    %v6369 = vpack.c.b16 %v6253, %v6249
    %v6370 = vpack.c.b16 %v6254, %v6250
    %v6371 = vpack.c.b16 %v6255, %v6251
    %v6372 = vpack.c.b16 %v6260, %v6256
    %v6373 = vpack.c.b16 %v6261, %v6257
    %v6374 = vpack.c.b16 %v6262, %v6258
    %v6375 = vpack.c.b16 %v6263, %v6259
    %v6376 = vpack.c.b16 %v6268, %v6264
    %v6377 = vpack.c.b16 %v6269, %v6265
    %v6378 = vpack.c.b16 %v6270, %v6266
    %v6379 = vpack.c.b16 %v6271, %v6267
    %v6380 = vpack.c.b16 %v6276, %v6272
    %v6381 = vpack.c.b16 %v6277, %v6273
    %v6382 = vpack.c.b16 %v6278, %v6274
    %v6383 = vpack.c.b16 %v6279, %v6275
    %v6384 = vpack.c.b16 %v6284, %v6280
    %v6385 = vpack.c.b16 %v6285, %v6281
    %v6386 = vpack.c.b16 %v6286, %v6282
    %v6387 = vpack.c.b16 %v6287, %v6283
    %v6388 = vpack.c.b16 %v6292, %v6288
    %v6389 = vpack.c.b16 %v6293, %v6289
    %v6390 = vpack.c.b16 %v6294, %v6290
    %v6391 = vpack.c.b16 %v6295, %v6291
    %v6392 = vpack.c.b16 %v6300, %v6296
    %v6393 = vpack.c.b16 %v6301, %v6297
    %v6394 = vpack.c.b16 %v6302, %v6298
    %v6395 = vpack.c.b16 %v6303, %v6299
    %v6396 = vpack.c.b16 %v6308, %v6304
    %v6397 = vpack.c.b16 %v6309, %v6305
    %v6398 = vpack.c.b16 %v6310, %v6306
    %v6399 = vpack.c.b16 %v6311, %v6307
    %v6400 = vpack.c.b16 %v6316, %v6312
    %v6401 = vpack.c.b16 %v6317, %v6313
    %v6402 = vpack.c.b16 %v6318, %v6314
    %v6403 = vpack.c.b16 %v6319, %v6315
    %v6404 = vpack.c.b16 %v6324, %v6320
    %v6405 = vpack.c.b16 %v6325, %v6321
    %v6406 = vpack.c.b16 %v6326, %v6322
    %v6407 = vpack.c.b16 %v6327, %v6323
    %v6408 = vpack.c.b16 %v6332, %v6328
    %v6409 = vpack.c.b16 %v6333, %v6329
    %v6410 = vpack.c.b16 %v6334, %v6330
    %v6411 = vpack.c.b16 %v6335, %v6331
    %v6412 = vpack.c.b16 %v6340, %v6336
    %v6413 = vpack.c.b16 %v6341, %v6337
    %v6414 = vpack.c.b16 %v6342, %v6338
    %v6415 = vpack.c.b16 %v6343, %v6339
    %v6416 = vpack.c.b16 %v6348, %v6344
    %v6417 = vpack.c.b16 %v6349, %v6345
    %v6418 = vpack.c.b16 %v6350, %v6346
    %v6419 = vpack.c.b16 %v6351, %v6347
    %v6420 = vpack.c.b16 %v6356, %v6352
    %v6421 = vpack.c.b16 %v6357, %v6353
    %v6422 = vpack.c.b16 %v6358, %v6354
    %v6423 = vpack.c.b16 %v6359, %v6355
    %6488 = vmatprep.subr.bf16.mxu0 %v6361
    %6489 = vmatpush1.bf16.msra.mxu0 %v6360
    %6490 = vmatprep.subr.bf16.mxu0 %v6365
    %6491 = vmatpush1.bf16.msra.mxu0 %v6364
    %6492 = vmatprep.subr.bf16.mxu0 %v6369
    %6493 = vmatpush1.bf16.msra.mxu0 %v6368
    %6494 = vmatprep.subr.bf16.mxu0 %v6373
    %6495 = vmatpush1.bf16.msra.mxu0 %v6372
    %6496 = vmatprep.subr.bf16.mxu0 %v6377
    %6497 = vmatpush1.bf16.msra.mxu0 %v6376
    %6498 = vmatprep.subr.bf16.mxu0 %v6381
    %6499 = vmatpush1.bf16.msra.mxu0 %v6380
    %6500 = vmatprep.subr.bf16.mxu0 %v6385
    %6501 = vmatpush1.bf16.msra.mxu0 %v6384
    %6502 = vmatprep.subr.bf16.mxu0 %v6389
    %6503 = vmatpush1.bf16.msra.mxu0 %v6388
    %6504 = vmatprep.subr.bf16.mxu0 %v6393
    %6505 = vmatpush1.bf16.msra.mxu0 %v6392
    %6506 = vmatprep.subr.bf16.mxu0 %v6397
    %6507 = vmatpush1.bf16.msra.mxu0 %v6396
    %6508 = vmatprep.subr.bf16.mxu0 %v6401
    %6509 = vmatpush1.bf16.msra.mxu0 %v6400
    %6510 = vmatprep.subr.bf16.mxu0 %v6405
    %6511 = vmatpush1.bf16.msra.mxu0 %v6404
    %6512 = vmatprep.subr.bf16.mxu0 %v6409
    %6513 = vmatpush1.bf16.msra.mxu0 %v6408
    %6514 = vmatprep.subr.bf16.mxu0 %v6413
    %6515 = vmatpush1.bf16.msra.mxu0 %v6412
    %6516 = vmatprep.subr.bf16.mxu0 %v6417
    %6517 = vmatpush1.bf16.msra.mxu0 %v6416
    %6518 = vmatprep.subr.bf16.mxu0 %v6421
    %6519 = vmatpush1.bf16.msra.mxu0 %v6420
    %6520 = vmatprep.mubr.bf16.mxu0 %v6165
    %6521 = vmatmul.mubr.bf16.gmra.mrb[0].mxu0 %v6157
    %v6522 = vpop.f32.mrb[0].mxu0
    %v6523 = vadd.f32 %v6103, %v6522
    %v6524 = vpop.f32.mrb[0].mxu0
    %v6525 = vadd.f32 %v6105, %v6524
    %v6526 = vpop.f32.mrb[0].mxu0
    %v6527 = vpop.f32.mrb[0].mxu0
    %6528 = vdwg.mxu0
    %6529 = vmatprep.subr.bf16.mxu0 %v6363
    %6530 = vmatpush1.bf16.msra.mxu0 %v6362
    %6531 = vmatprep.subr.bf16.mxu0 %v6367
    %6532 = vmatpush1.bf16.msra.mxu0 %v6366
    %6533 = vmatprep.subr.bf16.mxu0 %v6371
    %6534 = vmatpush1.bf16.msra.mxu0 %v6370
    %6535 = vmatprep.subr.bf16.mxu0 %v6375
    %6536 = vmatpush1.bf16.msra.mxu0 %v6374
    %6537 = vmatprep.subr.bf16.mxu0 %v6379
    %6538 = vmatpush1.bf16.msra.mxu0 %v6378
    %6539 = vmatprep.subr.bf16.mxu0 %v6383
    %6540 = vmatpush1.bf16.msra.mxu0 %v6382
    %6541 = vmatprep.subr.bf16.mxu0 %v6387
    %6542 = vmatpush1.bf16.msra.mxu0 %v6386
    %6543 = vmatprep.subr.bf16.mxu0 %v6391
    %6544 = vmatpush1.bf16.msra.mxu0 %v6390
    %6545 = vmatprep.subr.bf16.mxu0 %v6395
    %6546 = vmatpush1.bf16.msra.mxu0 %v6394
    %6547 = vmatprep.subr.bf16.mxu0 %v6399
    %6548 = vmatpush1.bf16.msra.mxu0 %v6398
    %6549 = vmatprep.subr.bf16.mxu0 %v6403
    %6550 = vmatpush1.bf16.msra.mxu0 %v6402
    %6551 = vmatprep.subr.bf16.mxu0 %v6407
    %6552 = vmatpush1.bf16.msra.mxu0 %v6406
    %6553 = vmatprep.subr.bf16.mxu0 %v6411
    %6554 = vmatpush1.bf16.msra.mxu0 %v6410
    %6555 = vmatprep.subr.bf16.mxu0 %v6415
    %6556 = vmatpush1.bf16.msra.mxu0 %v6414
    %6557 = vmatprep.subr.bf16.mxu0 %v6419
    %6558 = vmatpush1.bf16.msra.mxu0 %v6418
    %6559 = vmatprep.subr.bf16.mxu0 %v6423
    %6560 = vmatpush1.bf16.msra.mxu0 %v6422
    %6561 = vmatprep.mubr.bf16.mxu0 %v6165
    %6562 = vmatmul.mubr.bf16.gmra.mrb[0].mxu0 %v6157
    %v6563 = vpop.f32.mrb[0].mxu0
    %v6564 = vadd.f32 %v6144, %v6563
    %v6565 = vpop.f32.mrb[0].mxu0
    %v6566 = vadd.f32 %v6146, %v6565
    %v6567 = vpop.f32.mrb[0].mxu0
    %v6568 = vpop.f32.mrb[0].mxu0
    %6569 = vdwg.mxu0
    %v6570 = vld [vmem:[#allocation2 + $0x10] sm:$0x1f]
    %v6571 = vld [vmem:[#allocation2 + $0x18] sm:$0x1f]
    %v6572 = vpack.c.bf16 %v6570, %v6570
    %v6573 = vpack.c.bf16 %v6571, %v6571
    %v6574 = vld [vmem:[%s2593] sm:$0xff]
    %v6575 = vld [vmem:[%s2593 + $0x8] sm:$0xff]
    %v6576 = vld [vmem:[%s2593 + $0x10] sm:$0xff]
    %v6577 = vld [vmem:[%s2593 + $0x18] sm:$0xff]
    %v6578 = vld [vmem:[%s2593 + $0x20] sm:$0xff]
    %v6579 = vld [vmem:[%s2593 + $0x28] sm:$0xff]
    %v6580 = vld [vmem:[%s2593 + $0x30] sm:$0xff]
    %v6581 = vld [vmem:[%s2593 + $0x38] sm:$0xff]
    %v6582 = vld [vmem:[%s2593 + $0x40] sm:$0xff]
    %v6583 = vld [vmem:[%s2593 + $0x48] sm:$0xff]
    %v6584 = vld [vmem:[%s2593 + $0x50] sm:$0xff]
    %v6585 = vld [vmem:[%s2593 + $0x58] sm:$0xff]
    %v6586 = vld [vmem:[%s2593 + $0x60] sm:$0xff]
    %v6587 = vld [vmem:[%s2593 + $0x68] sm:$0xff]
    %v6588 = vld [vmem:[%s2593 + $0x70] sm:$0xff]
    %v6589 = vld [vmem:[%s2593 + $0x78] sm:$0xff]
    %v6590 = vld [vmem:[%s2593 + $0x80] sm:$0xff]
    %v6591 = vld [vmem:[%s2593 + $0x88] sm:$0xff]
    %v6592 = vld [vmem:[%s2593 + $0x90] sm:$0xff]
    %v6593 = vld [vmem:[%s2593 + $0x98] sm:$0xff]
    %v6594 = vld [vmem:[%s2593 + $0xa0] sm:$0xff]
    %v6595 = vld [vmem:[%s2593 + $0xa8] sm:$0xff]
    %v6596 = vld [vmem:[%s2593 + $0xb0] sm:$0xff]
    %v6597 = vld [vmem:[%s2593 + $0xb8] sm:$0xff]
    %v6598 = vld [vmem:[%s2593 + $0xc0] sm:$0xff]
    %v6599 = vld [vmem:[%s2593 + $0xc8] sm:$0xff]
    %v6600 = vld [vmem:[%s2593 + $0xd0] sm:$0xff]
    %v6601 = vld [vmem:[%s2593 + $0xd8] sm:$0xff]
    %v6602 = vld [vmem:[%s2593 + $0xe0] sm:$0xff]
    %v6603 = vld [vmem:[%s2593 + $0xe8] sm:$0xff]
    %v6604 = vld [vmem:[%s2593 + $0xf0] sm:$0xff]
    %v6605 = vld [vmem:[%s2593 + $0xf8] sm:$0xff]
    %v6606 = vld [vmem:[%s2593 + $0x100] sm:$0xff]
    %v6607 = vld [vmem:[%s2593 + $0x108] sm:$0xff]
    %v6608 = vld [vmem:[%s2593 + $0x110] sm:$0xff]
    %v6609 = vld [vmem:[%s2593 + $0x118] sm:$0xff]
    %v6610 = vld [vmem:[%s2593 + $0x120] sm:$0xff]
    %v6611 = vld [vmem:[%s2593 + $0x128] sm:$0xff]
    %v6612 = vld [vmem:[%s2593 + $0x130] sm:$0xff]
    %v6613 = vld [vmem:[%s2593 + $0x138] sm:$0xff]
    %v6614 = vld [vmem:[%s2593 + $0x140] sm:$0xff]
    %v6615 = vld [vmem:[%s2593 + $0x148] sm:$0xff]
    %v6616 = vld [vmem:[%s2593 + $0x150] sm:$0xff]
    %v6617 = vld [vmem:[%s2593 + $0x158] sm:$0xff]
    %v6618 = vld [vmem:[%s2593 + $0x160] sm:$0xff]
    %v6619 = vld [vmem:[%s2593 + $0x168] sm:$0xff]
    %v6620 = vld [vmem:[%s2593 + $0x170] sm:$0xff]
    %v6621 = vld [vmem:[%s2593 + $0x178] sm:$0xff]
    %v6622 = vld [vmem:[%s2593 + $0x180] sm:$0xff]
    %v6623 = vld [vmem:[%s2593 + $0x188] sm:$0xff]
    %v6624 = vld [vmem:[%s2593 + $0x190] sm:$0xff]
    %v6625 = vld [vmem:[%s2593 + $0x198] sm:$0xff]
    %v6626 = vld [vmem:[%s2593 + $0x1a0] sm:$0xff]
    %v6627 = vld [vmem:[%s2593 + $0x1a8] sm:$0xff]
    %v6628 = vld [vmem:[%s2593 + $0x1b0] sm:$0xff]
    %v6629 = vld [vmem:[%s2593 + $0x1b8] sm:$0xff]
    %v6630 = vld [vmem:[%s2593 + $0x1c0] sm:$0xff]
    %v6631 = vld [vmem:[%s2593 + $0x1c8] sm:$0xff]
    %v6632 = vld [vmem:[%s2593 + $0x1d0] sm:$0xff]
    %v6633 = vld [vmem:[%s2593 + $0x1d8] sm:$0xff]
    %v6634 = vld [vmem:[%s2593 + $0x1e0] sm:$0xff]
    %v6635 = vld [vmem:[%s2593 + $0x1e8] sm:$0xff]
    %v6636 = vld [vmem:[%s2593 + $0x1f0] sm:$0xff]
    %v6637 = vld [vmem:[%s2593 + $0x1f8] sm:$0xff]
    %v6702 = vunpack.c.l.b16 %v6574
    %v6703 = vunpack.c.h.b16 %v6574
    %v6704 = vunpack.c.l.b16 %v6575
    %v6705 = vunpack.c.h.b16 %v6575
    %v6706 = vunpack.c.l.b16 %v6576
    %v6707 = vunpack.c.h.b16 %v6576
    %v6708 = vunpack.c.l.b16 %v6577
    %v6709 = vunpack.c.h.b16 %v6577
    %v6710 = vunpack.c.l.b16 %v6578
    %v6711 = vunpack.c.h.b16 %v6578
    %v6712 = vunpack.c.l.b16 %v6579
    %v6713 = vunpack.c.h.b16 %v6579
    %v6714 = vunpack.c.l.b16 %v6580
    %v6715 = vunpack.c.h.b16 %v6580
    %v6716 = vunpack.c.l.b16 %v6581
    %v6717 = vunpack.c.h.b16 %v6581
    %v6718 = vunpack.c.l.b16 %v6582
    %v6719 = vunpack.c.h.b16 %v6582
    %v6720 = vunpack.c.l.b16 %v6583
    %v6721 = vunpack.c.h.b16 %v6583
    %v6722 = vunpack.c.l.b16 %v6584
    %v6723 = vunpack.c.h.b16 %v6584
    %v6724 = vunpack.c.l.b16 %v6585
    %v6725 = vunpack.c.h.b16 %v6585
    %v6726 = vunpack.c.l.b16 %v6586
    %v6727 = vunpack.c.h.b16 %v6586
    %v6728 = vunpack.c.l.b16 %v6587
    %v6729 = vunpack.c.h.b16 %v6587
    %v6730 = vunpack.c.l.b16 %v6588
    %v6731 = vunpack.c.h.b16 %v6588
    %v6732 = vunpack.c.l.b16 %v6589
    %v6733 = vunpack.c.h.b16 %v6589
    %v6734 = vunpack.c.l.b16 %v6590
    %v6735 = vunpack.c.h.b16 %v6590
    %v6736 = vunpack.c.l.b16 %v6591
    %v6737 = vunpack.c.h.b16 %v6591
    %v6738 = vunpack.c.l.b16 %v6592
    %v6739 = vunpack.c.h.b16 %v6592
    %v6740 = vunpack.c.l.b16 %v6593
    %v6741 = vunpack.c.h.b16 %v6593
    %v6742 = vunpack.c.l.b16 %v6594
    %v6743 = vunpack.c.h.b16 %v6594
    %v6744 = vunpack.c.l.b16 %v6595
    %v6745 = vunpack.c.h.b16 %v6595
    %v6746 = vunpack.c.l.b16 %v6596
    %v6747 = vunpack.c.h.b16 %v6596
    %v6748 = vunpack.c.l.b16 %v6597
    %v6749 = vunpack.c.h.b16 %v6597
    %v6750 = vunpack.c.l.b16 %v6598
    %v6751 = vunpack.c.h.b16 %v6598
    %v6752 = vunpack.c.l.b16 %v6599
    %v6753 = vunpack.c.h.b16 %v6599
    %v6754 = vunpack.c.l.b16 %v6600
    %v6755 = vunpack.c.h.b16 %v6600
    %v6756 = vunpack.c.l.b16 %v6601
    %v6757 = vunpack.c.h.b16 %v6601
    %v6758 = vunpack.c.l.b16 %v6602
    %v6759 = vunpack.c.h.b16 %v6602
    %v6760 = vunpack.c.l.b16 %v6603
    %v6761 = vunpack.c.h.b16 %v6603
    %v6762 = vunpack.c.l.b16 %v6604
    %v6763 = vunpack.c.h.b16 %v6604
    %v6764 = vunpack.c.l.b16 %v6605
    %v6765 = vunpack.c.h.b16 %v6605
    %v6766 = vunpack.c.l.b16 %v6606
    %v6767 = vunpack.c.h.b16 %v6606
    %v6768 = vunpack.c.l.b16 %v6607
    %v6769 = vunpack.c.h.b16 %v6607
    %v6770 = vunpack.c.l.b16 %v6608
    %v6771 = vunpack.c.h.b16 %v6608
    %v6772 = vunpack.c.l.b16 %v6609
    %v6773 = vunpack.c.h.b16 %v6609
    %v6774 = vunpack.c.l.b16 %v6610
    %v6775 = vunpack.c.h.b16 %v6610
    %v6776 = vunpack.c.l.b16 %v6611
    %v6777 = vunpack.c.h.b16 %v6611
    %v6778 = vunpack.c.l.b16 %v6612
    %v6779 = vunpack.c.h.b16 %v6612
    %v6780 = vunpack.c.l.b16 %v6613
    %v6781 = vunpack.c.h.b16 %v6613
    %v6782 = vunpack.c.l.b16 %v6614
    %v6783 = vunpack.c.h.b16 %v6614
    %v6784 = vunpack.c.l.b16 %v6615
    %v6785 = vunpack.c.h.b16 %v6615
    %v6786 = vunpack.c.l.b16 %v6616
    %v6787 = vunpack.c.h.b16 %v6616
    %v6788 = vunpack.c.l.b16 %v6617
    %v6789 = vunpack.c.h.b16 %v6617
    %v6790 = vunpack.c.l.b16 %v6618
    %v6791 = vunpack.c.h.b16 %v6618
    %v6792 = vunpack.c.l.b16 %v6619
    %v6793 = vunpack.c.h.b16 %v6619
    %v6794 = vunpack.c.l.b16 %v6620
    %v6795 = vunpack.c.h.b16 %v6620
    %v6796 = vunpack.c.l.b16 %v6621
    %v6797 = vunpack.c.h.b16 %v6621
    %v6798 = vunpack.c.l.b16 %v6622
    %v6799 = vunpack.c.h.b16 %v6622
    %v6800 = vunpack.c.l.b16 %v6623
    %v6801 = vunpack.c.h.b16 %v6623
    %v6802 = vunpack.c.l.b16 %v6624
    %v6803 = vunpack.c.h.b16 %v6624
    %v6804 = vunpack.c.l.b16 %v6625
    %v6805 = vunpack.c.h.b16 %v6625
    %v6806 = vunpack.c.l.b16 %v6626
    %v6807 = vunpack.c.h.b16 %v6626
    %v6808 = vunpack.c.l.b16 %v6627
    %v6809 = vunpack.c.h.b16 %v6627
    %v6810 = vunpack.c.l.b16 %v6628
    %v6811 = vunpack.c.h.b16 %v6628
    %v6812 = vunpack.c.l.b16 %v6629
    %v6813 = vunpack.c.h.b16 %v6629
    %v6814 = vunpack.c.l.b16 %v6630
    %v6815 = vunpack.c.h.b16 %v6630
    %v6816 = vunpack.c.l.b16 %v6631
    %v6817 = vunpack.c.h.b16 %v6631
    %v6818 = vunpack.c.l.b16 %v6632
    %v6819 = vunpack.c.h.b16 %v6632
    %v6820 = vunpack.c.l.b16 %v6633
    %v6821 = vunpack.c.h.b16 %v6633
    %v6822 = vunpack.c.l.b16 %v6634
    %v6823 = vunpack.c.h.b16 %v6634
    %v6824 = vunpack.c.l.b16 %v6635
    %v6825 = vunpack.c.h.b16 %v6635
    %v6826 = vunpack.c.l.b16 %v6636
    %v6827 = vunpack.c.h.b16 %v6636
    %v6828 = vunpack.c.l.b16 %v6637
    %v6829 = vunpack.c.h.b16 %v6637
    %v6830 = vpack.c.b16 %v6706, %v6702
    %v6831 = vpack.c.b16 %v6707, %v6703
    %v6832 = vpack.c.b16 %v6708, %v6704
    %v6833 = vpack.c.b16 %v6709, %v6705
    %v6834 = vpack.c.b16 %v6714, %v6710
    %v6835 = vpack.c.b16 %v6715, %v6711
    %v6836 = vpack.c.b16 %v6716, %v6712
    %v6837 = vpack.c.b16 %v6717, %v6713
    %v6838 = vpack.c.b16 %v6722, %v6718
    %v6839 = vpack.c.b16 %v6723, %v6719
    %v6840 = vpack.c.b16 %v6724, %v6720
    %v6841 = vpack.c.b16 %v6725, %v6721
    %v6842 = vpack.c.b16 %v6730, %v6726
    %v6843 = vpack.c.b16 %v6731, %v6727
    %v6844 = vpack.c.b16 %v6732, %v6728
    %v6845 = vpack.c.b16 %v6733, %v6729
    %v6846 = vpack.c.b16 %v6738, %v6734
    %v6847 = vpack.c.b16 %v6739, %v6735
    %v6848 = vpack.c.b16 %v6740, %v6736
    %v6849 = vpack.c.b16 %v6741, %v6737
    %v6850 = vpack.c.b16 %v6746, %v6742
    %v6851 = vpack.c.b16 %v6747, %v6743
    %v6852 = vpack.c.b16 %v6748, %v6744
    %v6853 = vpack.c.b16 %v6749, %v6745
    %v6854 = vpack.c.b16 %v6754, %v6750
    %v6855 = vpack.c.b16 %v6755, %v6751
    %v6856 = vpack.c.b16 %v6756, %v6752
    %v6857 = vpack.c.b16 %v6757, %v6753
    %v6858 = vpack.c.b16 %v6762, %v6758
    %v6859 = vpack.c.b16 %v6763, %v6759
    %v6860 = vpack.c.b16 %v6764, %v6760
    %v6861 = vpack.c.b16 %v6765, %v6761
    %v6862 = vpack.c.b16 %v6770, %v6766
    %v6863 = vpack.c.b16 %v6771, %v6767
    %v6864 = vpack.c.b16 %v6772, %v6768
    %v6865 = vpack.c.b16 %v6773, %v6769
    %v6866 = vpack.c.b16 %v6778, %v6774
    %v6867 = vpack.c.b16 %v6779, %v6775
    %v6868 = vpack.c.b16 %v6780, %v6776
    %v6869 = vpack.c.b16 %v6781, %v6777
    %v6870 = vpack.c.b16 %v6786, %v6782
    %v6871 = vpack.c.b16 %v6787, %v6783
    %v6872 = vpack.c.b16 %v6788, %v6784
    %v6873 = vpack.c.b16 %v6789, %v6785
    %v6874 = vpack.c.b16 %v6794, %v6790
    %v6875 = vpack.c.b16 %v6795, %v6791
    %v6876 = vpack.c.b16 %v6796, %v6792
    %v6877 = vpack.c.b16 %v6797, %v6793
    %v6878 = vpack.c.b16 %v6802, %v6798
    %v6879 = vpack.c.b16 %v6803, %v6799
    %v6880 = vpack.c.b16 %v6804, %v6800
    %v6881 = vpack.c.b16 %v6805, %v6801
    %v6882 = vpack.c.b16 %v6810, %v6806
    %v6883 = vpack.c.b16 %v6811, %v6807
    %v6884 = vpack.c.b16 %v6812, %v6808
    %v6885 = vpack.c.b16 %v6813, %v6809
    %v6886 = vpack.c.b16 %v6818, %v6814
    %v6887 = vpack.c.b16 %v6819, %v6815
    %v6888 = vpack.c.b16 %v6820, %v6816
    %v6889 = vpack.c.b16 %v6821, %v6817
    %v6890 = vpack.c.b16 %v6826, %v6822
    %v6891 = vpack.c.b16 %v6827, %v6823
    %v6892 = vpack.c.b16 %v6828, %v6824
    %v6893 = vpack.c.b16 %v6829, %v6825
    %6958 = vmatprep.subr.bf16.mxu0 %v6831
    %6959 = vmatpush1.bf16.msra.mxu0 %v6830
    %6960 = vmatprep.subr.bf16.mxu0 %v6835
    %6961 = vmatpush1.bf16.msra.mxu0 %v6834
    %6962 = vmatprep.subr.bf16.mxu0 %v6839
    %6963 = vmatpush1.bf16.msra.mxu0 %v6838
    %6964 = vmatprep.subr.bf16.mxu0 %v6843
    %6965 = vmatpush1.bf16.msra.mxu0 %v6842
    %6966 = vmatprep.subr.bf16.mxu0 %v6847
    %6967 = vmatpush1.bf16.msra.mxu0 %v6846
    %6968 = vmatprep.subr.bf16.mxu0 %v6851
    %6969 = vmatpush1.bf16.msra.mxu0 %v6850
    %6970 = vmatprep.subr.bf16.mxu0 %v6855
    %6971 = vmatpush1.bf16.msra.mxu0 %v6854
    %6972 = vmatprep.subr.bf16.mxu0 %v6859
    %6973 = vmatpush1.bf16.msra.mxu0 %v6858
    %6974 = vmatprep.subr.bf16.mxu0 %v6863
    %6975 = vmatpush1.bf16.msra.mxu0 %v6862
    %6976 = vmatprep.subr.bf16.mxu0 %v6867
    %6977 = vmatpush1.bf16.msra.mxu0 %v6866
    %6978 = vmatprep.subr.bf16.mxu0 %v6871
    %6979 = vmatpush1.bf16.msra.mxu0 %v6870
    %6980 = vmatprep.subr.bf16.mxu0 %v6875
    %6981 = vmatpush1.bf16.msra.mxu0 %v6874
    %6982 = vmatprep.subr.bf16.mxu0 %v6879
    %6983 = vmatpush1.bf16.msra.mxu0 %v6878
    %6984 = vmatprep.subr.bf16.mxu0 %v6883
    %6985 = vmatpush1.bf16.msra.mxu0 %v6882
    %6986 = vmatprep.subr.bf16.mxu0 %v6887
    %6987 = vmatpush1.bf16.msra.mxu0 %v6886
    %6988 = vmatprep.subr.bf16.mxu0 %v6891
    %6989 = vmatpush1.bf16.msra.mxu0 %v6890
    %6990 = vmatprep.mubr.bf16.mxu0 %v6573
    %6991 = vmatmul.mubr.bf16.gmra.mrb[0].mxu0 %v6572
    %v6992 = vpop.f32.mrb[0].mxu0
    %v6993 = vadd.f32 0.0, %v6992
    %v6994 = vpop.f32.mrb[0].mxu0
    %v6995 = vadd.f32 0.0, %v6994
    %v6996 = vpop.f32.mrb[0].mxu0
    %v6997 = vpop.f32.mrb[0].mxu0
    %6998 = vdwg.mxu0
    %6999 = vmatprep.subr.bf16.mxu0 %v6833
    %7000 = vmatpush1.bf16.msra.mxu0 %v6832
    %7001 = vmatprep.subr.bf16.mxu0 %v6837
    %7002 = vmatpush1.bf16.msra.mxu0 %v6836
    %7003 = vmatprep.subr.bf16.mxu0 %v6841
    %7004 = vmatpush1.bf16.msra.mxu0 %v6840
    %7005 = vmatprep.subr.bf16.mxu0 %v6845
    %7006 = vmatpush1.bf16.msra.mxu0 %v6844
    %7007 = vmatprep.subr.bf16.mxu0 %v6849
    %7008 = vmatpush1.bf16.msra.mxu0 %v6848
    %7009 = vmatprep.subr.bf16.mxu0 %v6853
    %7010 = vmatpush1.bf16.msra.mxu0 %v6852
    %7011 = vmatprep.subr.bf16.mxu0 %v6857
    %7012 = vmatpush1.bf16.msra.mxu0 %v6856
    %7013 = vmatprep.subr.bf16.mxu0 %v6861
    %7014 = vmatpush1.bf16.msra.mxu0 %v6860
    %7015 = vmatprep.subr.bf16.mxu0 %v6865
    %7016 = vmatpush1.bf16.msra.mxu0 %v6864
    %7017 = vmatprep.subr.bf16.mxu0 %v6869
    %7018 = vmatpush1.bf16.msra.mxu0 %v6868
    %7019 = vmatprep.subr.bf16.mxu0 %v6873
    %7020 = vmatpush1.bf16.msra.mxu0 %v6872
    %7021 = vmatprep.subr.bf16.mxu0 %v6877
    %7022 = vmatpush1.bf16.msra.mxu0 %v6876
    %7023 = vmatprep.subr.bf16.mxu0 %v6881
    %7024 = vmatpush1.bf16.msra.mxu0 %v6880
    %7025 = vmatprep.subr.bf16.mxu0 %v6885
    %7026 = vmatpush1.bf16.msra.mxu0 %v6884
    %7027 = vmatprep.subr.bf16.mxu0 %v6889
    %7028 = vmatpush1.bf16.msra.mxu0 %v6888
    %7029 = vmatprep.subr.bf16.mxu0 %v6893
    %7030 = vmatpush1.bf16.msra.mxu0 %v6892
    %7031 = vmatprep.mubr.bf16.mxu0 %v6573
    %7032 = vmatmul.mubr.bf16.gmra.mrb[0].mxu0 %v6572
    %v7033 = vpop.f32.mrb[0].mxu0
    %v7034 = vadd.f32 0.0, %v7033
    %v7035 = vpop.f32.mrb[0].mxu0
    %v7036 = vadd.f32 0.0, %v7035
    %v7037 = vpop.f32.mrb[0].mxu0
    %v7038 = vpop.f32.mrb[0].mxu0
    %7039 = vdwg.mxu0
    %v7040 = vadd.f32 %v6523, %v6993
    %v7041 = vadd.f32 %v6525, %v6995
    %v7042 = vadd.f32 %v6564, %v7034
    %v7043 = vadd.f32 %v6566, %v7036
    %v7044 = vld [vmem:[#allocation3 + $0x10] sm:$0x1f]
    %v7045 = vld [vmem:[#allocation3 + $0x18] sm:$0x1f]
    %v7046 = vpack.c.bf16 %v7044, %v7044
    %v7047 = vpack.c.bf16 %v7045, %v7045
    %v7048 = vld [vmem:[%s3084] sm:$0xff]
    %v7049 = vld [vmem:[%s3084 + $0x8] sm:$0xff]
    %v7050 = vld [vmem:[%s3084 + $0x10] sm:$0xff]
    %v7051 = vld [vmem:[%s3084 + $0x18] sm:$0xff]
    %v7052 = vld [vmem:[%s3084 + $0x20] sm:$0xff]
    %v7053 = vld [vmem:[%s3084 + $0x28] sm:$0xff]
    %v7054 = vld [vmem:[%s3084 + $0x30] sm:$0xff]
    %v7055 = vld [vmem:[%s3084 + $0x38] sm:$0xff]
    %v7056 = vld [vmem:[%s3084 + $0x40] sm:$0xff]
    %v7057 = vld [vmem:[%s3084 + $0x48] sm:$0xff]
    %v7058 = vld [vmem:[%s3084 + $0x50] sm:$0xff]
    %v7059 = vld [vmem:[%s3084 + $0x58] sm:$0xff]
    %v7060 = vld [vmem:[%s3084 + $0x60] sm:$0xff]
    %v7061 = vld [vmem:[%s3084 + $0x68] sm:$0xff]
    %v7062 = vld [vmem:[%s3084 + $0x70] sm:$0xff]
    %v7063 = vld [vmem:[%s3084 + $0x78] sm:$0xff]
    %v7064 = vld [vmem:[%s3084 + $0x80] sm:$0xff]
    %v7065 = vld [vmem:[%s3084 + $0x88] sm:$0xff]
    %v7066 = vld [vmem:[%s3084 + $0x90] sm:$0xff]
    %v7067 = vld [vmem:[%s3084 + $0x98] sm:$0xff]
    %v7068 = vld [vmem:[%s3084 + $0xa0] sm:$0xff]
    %v7069 = vld [vmem:[%s3084 + $0xa8] sm:$0xff]
    %v7070 = vld [vmem:[%s3084 + $0xb0] sm:$0xff]
    %v7071 = vld [vmem:[%s3084 + $0xb8] sm:$0xff]
    %v7072 = vld [vmem:[%s3084 + $0xc0] sm:$0xff]
    %v7073 = vld [vmem:[%s3084 + $0xc8] sm:$0xff]
    %v7074 = vld [vmem:[%s3084 + $0xd0] sm:$0xff]
    %v7075 = vld [vmem:[%s3084 + $0xd8] sm:$0xff]
    %v7076 = vld [vmem:[%s3084 + $0xe0] sm:$0xff]
    %v7077 = vld [vmem:[%s3084 + $0xe8] sm:$0xff]
    %v7078 = vld [vmem:[%s3084 + $0xf0] sm:$0xff]
    %v7079 = vld [vmem:[%s3084 + $0xf8] sm:$0xff]
    %v7080 = vld [vmem:[%s3084 + $0x100] sm:$0xff]
    %v7081 = vld [vmem:[%s3084 + $0x108] sm:$0xff]
    %v7082 = vld [vmem:[%s3084 + $0x110] sm:$0xff]
    %v7083 = vld [vmem:[%s3084 + $0x118] sm:$0xff]
    %v7084 = vld [vmem:[%s3084 + $0x120] sm:$0xff]
    %v7085 = vld [vmem:[%s3084 + $0x128] sm:$0xff]
    %v7086 = vld [vmem:[%s3084 + $0x130] sm:$0xff]
    %v7087 = vld [vmem:[%s3084 + $0x138] sm:$0xff]
    %v7088 = vld [vmem:[%s3084 + $0x140] sm:$0xff]
    %v7089 = vld [vmem:[%s3084 + $0x148] sm:$0xff]
    %v7090 = vld [vmem:[%s3084 + $0x150] sm:$0xff]
    %v7091 = vld [vmem:[%s3084 + $0x158] sm:$0xff]
    %v7092 = vld [vmem:[%s3084 + $0x160] sm:$0xff]
    %v7093 = vld [vmem:[%s3084 + $0x168] sm:$0xff]
    %v7094 = vld [vmem:[%s3084 + $0x170] sm:$0xff]
    %v7095 = vld [vmem:[%s3084 + $0x178] sm:$0xff]
    %v7096 = vld [vmem:[%s3084 + $0x180] sm:$0xff]
    %v7097 = vld [vmem:[%s3084 + $0x188] sm:$0xff]
    %v7098 = vld [vmem:[%s3084 + $0x190] sm:$0xff]
    %v7099 = vld [vmem:[%s3084 + $0x198] sm:$0xff]
    %v7100 = vld [vmem:[%s3084 + $0x1a0] sm:$0xff]
    %v7101 = vld [vmem:[%s3084 + $0x1a8] sm:$0xff]
    %v7102 = vld [vmem:[%s3084 + $0x1b0] sm:$0xff]
    %v7103 = vld [vmem:[%s3084 + $0x1b8] sm:$0xff]
    %v7104 = vld [vmem:[%s3084 + $0x1c0] sm:$0xff]
    %v7105 = vld [vmem:[%s3084 + $0x1c8] sm:$0xff]
    %v7106 = vld [vmem:[%s3084 + $0x1d0] sm:$0xff]
    %v7107 = vld [vmem:[%s3084 + $0x1d8] sm:$0xff]
    %v7108 = vld [vmem:[%s3084 + $0x1e0] sm:$0xff]
    %v7109 = vld [vmem:[%s3084 + $0x1e8] sm:$0xff]
    %v7110 = vld [vmem:[%s3084 + $0x1f0] sm:$0xff]
    %v7111 = vld [vmem:[%s3084 + $0x1f8] sm:$0xff]
    %v7176 = vunpack.c.l.b16 %v7048
    %v7177 = vunpack.c.h.b16 %v7048
    %v7178 = vunpack.c.l.b16 %v7049
    %v7179 = vunpack.c.h.b16 %v7049
    %v7180 = vunpack.c.l.b16 %v7050
    %v7181 = vunpack.c.h.b16 %v7050
    %v7182 = vunpack.c.l.b16 %v7051
    %v7183 = vunpack.c.h.b16 %v7051
    %v7184 = vunpack.c.l.b16 %v7052
    %v7185 = vunpack.c.h.b16 %v7052
    %v7186 = vunpack.c.l.b16 %v7053
    %v7187 = vunpack.c.h.b16 %v7053
    %v7188 = vunpack.c.l.b16 %v7054
    %v7189 = vunpack.c.h.b16 %v7054
    %v7190 = vunpack.c.l.b16 %v7055
    %v7191 = vunpack.c.h.b16 %v7055
    %v7192 = vunpack.c.l.b16 %v7056
    %v7193 = vunpack.c.h.b16 %v7056
    %v7194 = vunpack.c.l.b16 %v7057
    %v7195 = vunpack.c.h.b16 %v7057
    %v7196 = vunpack.c.l.b16 %v7058
    %v7197 = vunpack.c.h.b16 %v7058
    %v7198 = vunpack.c.l.b16 %v7059
    %v7199 = vunpack.c.h.b16 %v7059
    %v7200 = vunpack.c.l.b16 %v7060
    %v7201 = vunpack.c.h.b16 %v7060
    %v7202 = vunpack.c.l.b16 %v7061
    %v7203 = vunpack.c.h.b16 %v7061
    %v7204 = vunpack.c.l.b16 %v7062
    %v7205 = vunpack.c.h.b16 %v7062
    %v7206 = vunpack.c.l.b16 %v7063
    %v7207 = vunpack.c.h.b16 %v7063
    %v7208 = vunpack.c.l.b16 %v7064
    %v7209 = vunpack.c.h.b16 %v7064
    %v7210 = vunpack.c.l.b16 %v7065
    %v7211 = vunpack.c.h.b16 %v7065
    %v7212 = vunpack.c.l.b16 %v7066
    %v7213 = vunpack.c.h.b16 %v7066
    %v7214 = vunpack.c.l.b16 %v7067
    %v7215 = vunpack.c.h.b16 %v7067
    %v7216 = vunpack.c.l.b16 %v7068
    %v7217 = vunpack.c.h.b16 %v7068
    %v7218 = vunpack.c.l.b16 %v7069
    %v7219 = vunpack.c.h.b16 %v7069
    %v7220 = vunpack.c.l.b16 %v7070
    %v7221 = vunpack.c.h.b16 %v7070
    %v7222 = vunpack.c.l.b16 %v7071
    %v7223 = vunpack.c.h.b16 %v7071
    %v7224 = vunpack.c.l.b16 %v7072
    %v7225 = vunpack.c.h.b16 %v7072
    %v7226 = vunpack.c.l.b16 %v7073
    %v7227 = vunpack.c.h.b16 %v7073
    %v7228 = vunpack.c.l.b16 %v7074
    %v7229 = vunpack.c.h.b16 %v7074
    %v7230 = vunpack.c.l.b16 %v7075
    %v7231 = vunpack.c.h.b16 %v7075
    %v7232 = vunpack.c.l.b16 %v7076
    %v7233 = vunpack.c.h.b16 %v7076
    %v7234 = vunpack.c.l.b16 %v7077
    %v7235 = vunpack.c.h.b16 %v7077
    %v7236 = vunpack.c.l.b16 %v7078
    %v7237 = vunpack.c.h.b16 %v7078
    %v7238 = vunpack.c.l.b16 %v7079
    %v7239 = vunpack.c.h.b16 %v7079
    %v7240 = vunpack.c.l.b16 %v7080
    %v7241 = vunpack.c.h.b16 %v7080
    %v7242 = vunpack.c.l.b16 %v7081
    %v7243 = vunpack.c.h.b16 %v7081
    %v7244 = vunpack.c.l.b16 %v7082
    %v7245 = vunpack.c.h.b16 %v7082
    %v7246 = vunpack.c.l.b16 %v7083
    %v7247 = vunpack.c.h.b16 %v7083
    %v7248 = vunpack.c.l.b16 %v7084
    %v7249 = vunpack.c.h.b16 %v7084
    %v7250 = vunpack.c.l.b16 %v7085
    %v7251 = vunpack.c.h.b16 %v7085
    %v7252 = vunpack.c.l.b16 %v7086
    %v7253 = vunpack.c.h.b16 %v7086
    %v7254 = vunpack.c.l.b16 %v7087
    %v7255 = vunpack.c.h.b16 %v7087
    %v7256 = vunpack.c.l.b16 %v7088
    %v7257 = vunpack.c.h.b16 %v7088
    %v7258 = vunpack.c.l.b16 %v7089
    %v7259 = vunpack.c.h.b16 %v7089
    %v7260 = vunpack.c.l.b16 %v7090
    %v7261 = vunpack.c.h.b16 %v7090
    %v7262 = vunpack.c.l.b16 %v7091
    %v7263 = vunpack.c.h.b16 %v7091
    %v7264 = vunpack.c.l.b16 %v7092
    %v7265 = vunpack.c.h.b16 %v7092
    %v7266 = vunpack.c.l.b16 %v7093
    %v7267 = vunpack.c.h.b16 %v7093
    %v7268 = vunpack.c.l.b16 %v7094
    %v7269 = vunpack.c.h.b16 %v7094
    %v7270 = vunpack.c.l.b16 %v7095
    %v7271 = vunpack.c.h.b16 %v7095
    %v7272 = vunpack.c.l.b16 %v7096
    %v7273 = vunpack.c.h.b16 %v7096
    %v7274 = vunpack.c.l.b16 %v7097
    %v7275 = vunpack.c.h.b16 %v7097
    %v7276 = vunpack.c.l.b16 %v7098
    %v7277 = vunpack.c.h.b16 %v7098
    %v7278 = vunpack.c.l.b16 %v7099
    %v7279 = vunpack.c.h.b16 %v7099
    %v7280 = vunpack.c.l.b16 %v7100
    %v7281 = vunpack.c.h.b16 %v7100
    %v7282 = vunpack.c.l.b16 %v7101
    %v7283 = vunpack.c.h.b16 %v7101
    %v7284 = vunpack.c.l.b16 %v7102
    %v7285 = vunpack.c.h.b16 %v7102
    %v7286 = vunpack.c.l.b16 %v7103
    %v7287 = vunpack.c.h.b16 %v7103
    %v7288 = vunpack.c.l.b16 %v7104
    %v7289 = vunpack.c.h.b16 %v7104
    %v7290 = vunpack.c.l.b16 %v7105
    %v7291 = vunpack.c.h.b16 %v7105
    %v7292 = vunpack.c.l.b16 %v7106
    %v7293 = vunpack.c.h.b16 %v7106
    %v7294 = vunpack.c.l.b16 %v7107
    %v7295 = vunpack.c.h.b16 %v7107
    %v7296 = vunpack.c.l.b16 %v7108
    %v7297 = vunpack.c.h.b16 %v7108
    %v7298 = vunpack.c.l.b16 %v7109
    %v7299 = vunpack.c.h.b16 %v7109
    %v7300 = vunpack.c.l.b16 %v7110
    %v7301 = vunpack.c.h.b16 %v7110
    %v7302 = vunpack.c.l.b16 %v7111
    %v7303 = vunpack.c.h.b16 %v7111
    %v7304 = vpack.c.b16 %v7180, %v7176
    %v7305 = vpack.c.b16 %v7181, %v7177
    %v7306 = vpack.c.b16 %v7182, %v7178
    %v7307 = vpack.c.b16 %v7183, %v7179
    %v7308 = vpack.c.b16 %v7188, %v7184
    %v7309 = vpack.c.b16 %v7189, %v7185
    %v7310 = vpack.c.b16 %v7190, %v7186
    %v7311 = vpack.c.b16 %v7191, %v7187
    %v7312 = vpack.c.b16 %v7196, %v7192
    %v7313 = vpack.c.b16 %v7197, %v7193
    %v7314 = vpack.c.b16 %v7198, %v7194
    %v7315 = vpack.c.b16 %v7199, %v7195
    %v7316 = vpack.c.b16 %v7204, %v7200
    %v7317 = vpack.c.b16 %v7205, %v7201
    %v7318 = vpack.c.b16 %v7206, %v7202
    %v7319 = vpack.c.b16 %v7207, %v7203
    %v7320 = vpack.c.b16 %v7212, %v7208
    %v7321 = vpack.c.b16 %v7213, %v7209
    %v7322 = vpack.c.b16 %v7214, %v7210
    %v7323 = vpack.c.b16 %v7215, %v7211
    %v7324 = vpack.c.b16 %v7220, %v7216
    %v7325 = vpack.c.b16 %v7221, %v7217
    %v7326 = vpack.c.b16 %v7222, %v7218
    %v7327 = vpack.c.b16 %v7223, %v7219
    %v7328 = vpack.c.b16 %v7228, %v7224
    %v7329 = vpack.c.b16 %v7229, %v7225
    %v7330 = vpack.c.b16 %v7230, %v7226
    %v7331 = vpack.c.b16 %v7231, %v7227
    %v7332 = vpack.c.b16 %v7236, %v7232
    %v7333 = vpack.c.b16 %v7237, %v7233
    %v7334 = vpack.c.b16 %v7238, %v7234
    %v7335 = vpack.c.b16 %v7239, %v7235
    %v7336 = vpack.c.b16 %v7244, %v7240
    %v7337 = vpack.c.b16 %v7245, %v7241
    %v7338 = vpack.c.b16 %v7246, %v7242
    %v7339 = vpack.c.b16 %v7247, %v7243
    %v7340 = vpack.c.b16 %v7252, %v7248
    %v7341 = vpack.c.b16 %v7253, %v7249
    %v7342 = vpack.c.b16 %v7254, %v7250
    %v7343 = vpack.c.b16 %v7255, %v7251
    %v7344 = vpack.c.b16 %v7260, %v7256
    %v7345 = vpack.c.b16 %v7261, %v7257
    %v7346 = vpack.c.b16 %v7262, %v7258
    %v7347 = vpack.c.b16 %v7263, %v7259
    %v7348 = vpack.c.b16 %v7268, %v7264
    %v7349 = vpack.c.b16 %v7269, %v7265
    %v7350 = vpack.c.b16 %v7270, %v7266
    %v7351 = vpack.c.b16 %v7271, %v7267
    %v7352 = vpack.c.b16 %v7276, %v7272
    %v7353 = vpack.c.b16 %v7277, %v7273
    %v7354 = vpack.c.b16 %v7278, %v7274
    %v7355 = vpack.c.b16 %v7279, %v7275
    %v7356 = vpack.c.b16 %v7284, %v7280
    %v7357 = vpack.c.b16 %v7285, %v7281
    %v7358 = vpack.c.b16 %v7286, %v7282
    %v7359 = vpack.c.b16 %v7287, %v7283
    %v7360 = vpack.c.b16 %v7292, %v7288
    %v7361 = vpack.c.b16 %v7293, %v7289
    %v7362 = vpack.c.b16 %v7294, %v7290
    %v7363 = vpack.c.b16 %v7295, %v7291
    %v7364 = vpack.c.b16 %v7300, %v7296
    %v7365 = vpack.c.b16 %v7301, %v7297
    %v7366 = vpack.c.b16 %v7302, %v7298
    %v7367 = vpack.c.b16 %v7303, %v7299
    %7432 = vmatprep.subr.bf16.mxu0 %v7305
    %7433 = vmatpush1.bf16.msra.mxu0 %v7304
    %7434 = vmatprep.subr.bf16.mxu0 %v7309
    %7435 = vmatpush1.bf16.msra.mxu0 %v7308
    %7436 = vmatprep.subr.bf16.mxu0 %v7313
    %7437 = vmatpush1.bf16.msra.mxu0 %v7312
    %7438 = vmatprep.subr.bf16.mxu0 %v7317
    %7439 = vmatpush1.bf16.msra.mxu0 %v7316
    %7440 = vmatprep.subr.bf16.mxu0 %v7321
    %7441 = vmatpush1.bf16.msra.mxu0 %v7320
    %7442 = vmatprep.subr.bf16.mxu0 %v7325
    %7443 = vmatpush1.bf16.msra.mxu0 %v7324
    %7444 = vmatprep.subr.bf16.mxu0 %v7329
    %7445 = vmatpush1.bf16.msra.mxu0 %v7328
    %7446 = vmatprep.subr.bf16.mxu0 %v7333
    %7447 = vmatpush1.bf16.msra.mxu0 %v7332
    %7448 = vmatprep.subr.bf16.mxu0 %v7337
    %7449 = vmatpush1.bf16.msra.mxu0 %v7336
    %7450 = vmatprep.subr.bf16.mxu0 %v7341
    %7451 = vmatpush1.bf16.msra.mxu0 %v7340
    %7452 = vmatprep.subr.bf16.mxu0 %v7345
    %7453 = vmatpush1.bf16.msra.mxu0 %v7344
    %7454 = vmatprep.subr.bf16.mxu0 %v7349
    %7455 = vmatpush1.bf16.msra.mxu0 %v7348
    %7456 = vmatprep.subr.bf16.mxu0 %v7353
    %7457 = vmatpush1.bf16.msra.mxu0 %v7352
    %7458 = vmatprep.subr.bf16.mxu0 %v7357
    %7459 = vmatpush1.bf16.msra.mxu0 %v7356
    %7460 = vmatprep.subr.bf16.mxu0 %v7361
    %7461 = vmatpush1.bf16.msra.mxu0 %v7360
    %7462 = vmatprep.subr.bf16.mxu0 %v7365
    %7463 = vmatpush1.bf16.msra.mxu0 %v7364
    %7464 = vmatprep.mubr.bf16.mxu0 %v7047
    %7465 = vmatmul.mubr.bf16.gmra.mrb[0].mxu0 %v7046
    %v7466 = vpop.f32.mrb[0].mxu0
    %v7467 = vadd.f32 0.0, %v7466
    %v7468 = vpop.f32.mrb[0].mxu0
    %v7469 = vadd.f32 0.0, %v7468
    %v7470 = vpop.f32.mrb[0].mxu0
    %v7471 = vpop.f32.mrb[0].mxu0
    %7472 = vdwg.mxu0
    %7473 = vmatprep.subr.bf16.mxu0 %v7307
    %7474 = vmatpush1.bf16.msra.mxu0 %v7306
    %7475 = vmatprep.subr.bf16.mxu0 %v7311
    %7476 = vmatpush1.bf16.msra.mxu0 %v7310
    %7477 = vmatprep.subr.bf16.mxu0 %v7315
    %7478 = vmatpush1.bf16.msra.mxu0 %v7314
    %7479 = vmatprep.subr.bf16.mxu0 %v7319
    %7480 = vmatpush1.bf16.msra.mxu0 %v7318
    %7481 = vmatprep.subr.bf16.mxu0 %v7323
    %7482 = vmatpush1.bf16.msra.mxu0 %v7322
    %7483 = vmatprep.subr.bf16.mxu0 %v7327
    %7484 = vmatpush1.bf16.msra.mxu0 %v7326
    %7485 = vmatprep.subr.bf16.mxu0 %v7331
    %7486 = vmatpush1.bf16.msra.mxu0 %v7330
    %7487 = vmatprep.subr.bf16.mxu0 %v7335
    %7488 = vmatpush1.bf16.msra.mxu0 %v7334
    %7489 = vmatprep.subr.bf16.mxu0 %v7339
    %7490 = vmatpush1.bf16.msra.mxu0 %v7338
    %7491 = vmatprep.subr.bf16.mxu0 %v7343
    %7492 = vmatpush1.bf16.msra.mxu0 %v7342
    %7493 = vmatprep.subr.bf16.mxu0 %v7347
    %7494 = vmatpush1.bf16.msra.mxu0 %v7346
    %7495 = vmatprep.subr.bf16.mxu0 %v7351
    %7496 = vmatpush1.bf16.msra.mxu0 %v7350
    %7497 = vmatprep.subr.bf16.mxu0 %v7355
    %7498 = vmatpush1.bf16.msra.mxu0 %v7354
    %7499 = vmatprep.subr.bf16.mxu0 %v7359
    %7500 = vmatpush1.bf16.msra.mxu0 %v7358
    %7501 = vmatprep.subr.bf16.mxu0 %v7363
    %7502 = vmatpush1.bf16.msra.mxu0 %v7362
    %7503 = vmatprep.subr.bf16.mxu0 %v7367
    %7504 = vmatpush1.bf16.msra.mxu0 %v7366
    %7505 = vmatprep.mubr.bf16.mxu0 %v7047
    %7506 = vmatmul.mubr.bf16.gmra.mrb[0].mxu0 %v7046
    %v7507 = vpop.f32.mrb[0].mxu0
    %v7508 = vadd.f32 0.0, %v7507
    %v7509 = vpop.f32.mrb[0].mxu0
    %v7510 = vadd.f32 0.0, %v7509
    %v7511 = vpop.f32.mrb[0].mxu0
    %v7512 = vpop.f32.mrb[0].mxu0
    %7513 = vdwg.mxu0
    %v7514 = vadd.f32 %v7040, %v7467
    %v7515 = vadd.f32 %v7041, %v7469
    %v7516 = vadd.f32 %v7042, %v7508
    %v7517 = vadd.f32 %v7043, %v7510
    %v7518 = vld [vmem:[#allocation2 + $0x10] sm:$0x3e]
    %v7519 = vld [vmem:[#allocation2 + $0x18] sm:$0x3e]
    %v7520 = vpack.c.bf16 %v7518, %v7518
    %v7521 = vpack.c.bf16 %v7519, %v7519
    %v7522 = vld [vmem:[%s3575] sm:$0xff]
    %v7523 = vld [vmem:[%s3575 + $0x8] sm:$0xff]
    %v7524 = vld [vmem:[%s3575 + $0x10] sm:$0xff]
    %v7525 = vld [vmem:[%s3575 + $0x18] sm:$0xff]
    %v7526 = vld [vmem:[%s3575 + $0x20] sm:$0xff]
    %v7527 = vld [vmem:[%s3575 + $0x28] sm:$0xff]
    %v7528 = vld [vmem:[%s3575 + $0x30] sm:$0xff]
    %v7529 = vld [vmem:[%s3575 + $0x38] sm:$0xff]
    %v7530 = vld [vmem:[%s3575 + $0x40] sm:$0xff]
    %v7531 = vld [vmem:[%s3575 + $0x48] sm:$0xff]
    %v7532 = vld [vmem:[%s3575 + $0x50] sm:$0xff]
    %v7533 = vld [vmem:[%s3575 + $0x58] sm:$0xff]
    %v7534 = vld [vmem:[%s3575 + $0x60] sm:$0xff]
    %v7535 = vld [vmem:[%s3575 + $0x68] sm:$0xff]
    %v7536 = vld [vmem:[%s3575 + $0x70] sm:$0xff]
    %v7537 = vld [vmem:[%s3575 + $0x78] sm:$0xff]
    %v7538 = vld [vmem:[%s3575 + $0x80] sm:$0xff]
    %v7539 = vld [vmem:[%s3575 + $0x88] sm:$0xff]
    %v7540 = vld [vmem:[%s3575 + $0x90] sm:$0xff]
    %v7541 = vld [vmem:[%s3575 + $0x98] sm:$0xff]
    %v7542 = vld [vmem:[%s3575 + $0xa0] sm:$0xff]
    %v7543 = vld [vmem:[%s3575 + $0xa8] sm:$0xff]
    %v7544 = vld [vmem:[%s3575 + $0xb0] sm:$0xff]
    %v7545 = vld [vmem:[%s3575 + $0xb8] sm:$0xff]
    %v7546 = vld [vmem:[%s3575 + $0xc0] sm:$0xff]
    %v7547 = vld [vmem:[%s3575 + $0xc8] sm:$0xff]
    %v7548 = vld [vmem:[%s3575 + $0xd0] sm:$0xff]
    %v7549 = vld [vmem:[%s3575 + $0xd8] sm:$0xff]
    %v7550 = vld [vmem:[%s3575 + $0xe0] sm:$0xff]
    %v7551 = vld [vmem:[%s3575 + $0xe8] sm:$0xff]
    %v7552 = vld [vmem:[%s3575 + $0xf0] sm:$0xff]
    %v7553 = vld [vmem:[%s3575 + $0xf8] sm:$0xff]
    %v7554 = vld [vmem:[%s3575 + $0x100] sm:$0xff]
    %v7555 = vld [vmem:[%s3575 + $0x108] sm:$0xff]
    %v7556 = vld [vmem:[%s3575 + $0x110] sm:$0xff]
    %v7557 = vld [vmem:[%s3575 + $0x118] sm:$0xff]
    %v7558 = vld [vmem:[%s3575 + $0x120] sm:$0xff]
    %v7559 = vld [vmem:[%s3575 + $0x128] sm:$0xff]
    %v7560 = vld [vmem:[%s3575 + $0x130] sm:$0xff]
    %v7561 = vld [vmem:[%s3575 + $0x138] sm:$0xff]
    %v7562 = vld [vmem:[%s3575 + $0x140] sm:$0xff]
    %v7563 = vld [vmem:[%s3575 + $0x148] sm:$0xff]
    %v7564 = vld [vmem:[%s3575 + $0x150] sm:$0xff]
    %v7565 = vld [vmem:[%s3575 + $0x158] sm:$0xff]
    %v7566 = vld [vmem:[%s3575 + $0x160] sm:$0xff]
    %v7567 = vld [vmem:[%s3575 + $0x168] sm:$0xff]
    %v7568 = vld [vmem:[%s3575 + $0x170] sm:$0xff]
    %v7569 = vld [vmem:[%s3575 + $0x178] sm:$0xff]
    %v7570 = vld [vmem:[%s3575 + $0x180] sm:$0xff]
    %v7571 = vld [vmem:[%s3575 + $0x188] sm:$0xff]
    %v7572 = vld [vmem:[%s3575 + $0x190] sm:$0xff]
    %v7573 = vld [vmem:[%s3575 + $0x198] sm:$0xff]
    %v7574 = vld [vmem:[%s3575 + $0x1a0] sm:$0xff]
    %v7575 = vld [vmem:[%s3575 + $0x1a8] sm:$0xff]
    %v7576 = vld [vmem:[%s3575 + $0x1b0] sm:$0xff]
    %v7577 = vld [vmem:[%s3575 + $0x1b8] sm:$0xff]
    %v7578 = vld [vmem:[%s3575 + $0x1c0] sm:$0xff]
    %v7579 = vld [vmem:[%s3575 + $0x1c8] sm:$0xff]
    %v7580 = vld [vmem:[%s3575 + $0x1d0] sm:$0xff]
    %v7581 = vld [vmem:[%s3575 + $0x1d8] sm:$0xff]
    %v7582 = vld [vmem:[%s3575 + $0x1e0] sm:$0xff]
    %v7583 = vld [vmem:[%s3575 + $0x1e8] sm:$0xff]
    %v7584 = vld [vmem:[%s3575 + $0x1f0] sm:$0xff]
    %v7585 = vld [vmem:[%s3575 + $0x1f8] sm:$0xff]
    %v7587 = vshrl.u32 %v7520, 16
    %v7589 = vshll.u32 %v7520, 16
    %v7591 = vrot.slane %v7589, 1
    %v7592 = vor.u32 %v7587, %v7591
    %v7594 = vshrl.u32 %v7521, 16
    %v7596 = vshll.u32 %v7521, 16
    %v7598 = vrot.slane %v7596, 1
    %v7599 = vor.u32 %v7594, %v7598
    %v7666 = vunpack.c.l.b16 %v7522
    %v7667 = vunpack.c.h.b16 %v7522
    %v7668 = vunpack.c.l.b16 %v7523
    %v7669 = vunpack.c.h.b16 %v7523
    %v7670 = vunpack.c.l.b16 %v7524
    %v7671 = vunpack.c.h.b16 %v7524
    %v7672 = vunpack.c.l.b16 %v7525
    %v7673 = vunpack.c.h.b16 %v7525
    %v7674 = vunpack.c.l.b16 %v7526
    %v7675 = vunpack.c.h.b16 %v7526
    %v7676 = vunpack.c.l.b16 %v7527
    %v7677 = vunpack.c.h.b16 %v7527
    %v7678 = vunpack.c.l.b16 %v7528
    %v7679 = vunpack.c.h.b16 %v7528
    %v7680 = vunpack.c.l.b16 %v7529
    %v7681 = vunpack.c.h.b16 %v7529
    %v7682 = vunpack.c.l.b16 %v7530
    %v7683 = vunpack.c.h.b16 %v7530
    %v7684 = vunpack.c.l.b16 %v7531
    %v7685 = vunpack.c.h.b16 %v7531
    %v7686 = vunpack.c.l.b16 %v7532
    %v7687 = vunpack.c.h.b16 %v7532
    %v7688 = vunpack.c.l.b16 %v7533
    %v7689 = vunpack.c.h.b16 %v7533
    %v7690 = vunpack.c.l.b16 %v7534
    %v7691 = vunpack.c.h.b16 %v7534
    %v7692 = vunpack.c.l.b16 %v7535
    %v7693 = vunpack.c.h.b16 %v7535
    %v7694 = vunpack.c.l.b16 %v7536
    %v7695 = vunpack.c.h.b16 %v7536
    %v7696 = vunpack.c.l.b16 %v7537
    %v7697 = vunpack.c.h.b16 %v7537
    %v7698 = vunpack.c.l.b16 %v7538
    %v7699 = vunpack.c.h.b16 %v7538
    %v7700 = vunpack.c.l.b16 %v7539
    %v7701 = vunpack.c.h.b16 %v7539
    %v7702 = vunpack.c.l.b16 %v7540
    %v7703 = vunpack.c.h.b16 %v7540
    %v7704 = vunpack.c.l.b16 %v7541
    %v7705 = vunpack.c.h.b16 %v7541
    %v7706 = vunpack.c.l.b16 %v7542
    %v7707 = vunpack.c.h.b16 %v7542
    %v7708 = vunpack.c.l.b16 %v7543
    %v7709 = vunpack.c.h.b16 %v7543
    %v7710 = vunpack.c.l.b16 %v7544
    %v7711 = vunpack.c.h.b16 %v7544
    %v7712 = vunpack.c.l.b16 %v7545
    %v7713 = vunpack.c.h.b16 %v7545
    %v7714 = vunpack.c.l.b16 %v7546
    %v7715 = vunpack.c.h.b16 %v7546
    %v7716 = vunpack.c.l.b16 %v7547
    %v7717 = vunpack.c.h.b16 %v7547
    %v7718 = vunpack.c.l.b16 %v7548
    %v7719 = vunpack.c.h.b16 %v7548
    %v7720 = vunpack.c.l.b16 %v7549
    %v7721 = vunpack.c.h.b16 %v7549
    %v7722 = vunpack.c.l.b16 %v7550
    %v7723 = vunpack.c.h.b16 %v7550
    %v7724 = vunpack.c.l.b16 %v7551
    %v7725 = vunpack.c.h.b16 %v7551
    %v7726 = vunpack.c.l.b16 %v7552
    %v7727 = vunpack.c.h.b16 %v7552
    %v7728 = vunpack.c.l.b16 %v7553
    %v7729 = vunpack.c.h.b16 %v7553
    %v7730 = vunpack.c.l.b16 %v7554
    %v7731 = vunpack.c.h.b16 %v7554
    %v7732 = vunpack.c.l.b16 %v7555
    %v7733 = vunpack.c.h.b16 %v7555
    %v7734 = vunpack.c.l.b16 %v7556
    %v7735 = vunpack.c.h.b16 %v7556
    %v7736 = vunpack.c.l.b16 %v7557
    %v7737 = vunpack.c.h.b16 %v7557
    %v7738 = vunpack.c.l.b16 %v7558
    %v7739 = vunpack.c.h.b16 %v7558
    %v7740 = vunpack.c.l.b16 %v7559
    %v7741 = vunpack.c.h.b16 %v7559
    %v7742 = vunpack.c.l.b16 %v7560
    %v7743 = vunpack.c.h.b16 %v7560
    %v7744 = vunpack.c.l.b16 %v7561
    %v7745 = vunpack.c.h.b16 %v7561
    %v7746 = vunpack.c.l.b16 %v7562
    %v7747 = vunpack.c.h.b16 %v7562
    %v7748 = vunpack.c.l.b16 %v7563
    %v7749 = vunpack.c.h.b16 %v7563
    %v7750 = vunpack.c.l.b16 %v7564
    %v7751 = vunpack.c.h.b16 %v7564
    %v7752 = vunpack.c.l.b16 %v7565
    %v7753 = vunpack.c.h.b16 %v7565
    %v7754 = vunpack.c.l.b16 %v7566
    %v7755 = vunpack.c.h.b16 %v7566
    %v7756 = vunpack.c.l.b16 %v7567
    %v7757 = vunpack.c.h.b16 %v7567
    %v7758 = vunpack.c.l.b16 %v7568
    %v7759 = vunpack.c.h.b16 %v7568
    %v7760 = vunpack.c.l.b16 %v7569
    %v7761 = vunpack.c.h.b16 %v7569
    %v7762 = vunpack.c.l.b16 %v7570
    %v7763 = vunpack.c.h.b16 %v7570
    %v7764 = vunpack.c.l.b16 %v7571
    %v7765 = vunpack.c.h.b16 %v7571
    %v7766 = vunpack.c.l.b16 %v7572
    %v7767 = vunpack.c.h.b16 %v7572
    %v7768 = vunpack.c.l.b16 %v7573
    %v7769 = vunpack.c.h.b16 %v7573
    %v7770 = vunpack.c.l.b16 %v7574
    %v7771 = vunpack.c.h.b16 %v7574
    %v7772 = vunpack.c.l.b16 %v7575
    %v7773 = vunpack.c.h.b16 %v7575
    %v7774 = vunpack.c.l.b16 %v7576
    %v7775 = vunpack.c.h.b16 %v7576
    %v7776 = vunpack.c.l.b16 %v7577
    %v7777 = vunpack.c.h.b16 %v7577
    %v7778 = vunpack.c.l.b16 %v7578
    %v7779 = vunpack.c.h.b16 %v7578
    %v7780 = vunpack.c.l.b16 %v7579
    %v7781 = vunpack.c.h.b16 %v7579
    %v7782 = vunpack.c.l.b16 %v7580
    %v7783 = vunpack.c.h.b16 %v7580
    %v7784 = vunpack.c.l.b16 %v7581
    %v7785 = vunpack.c.h.b16 %v7581
    %v7786 = vunpack.c.l.b16 %v7582
    %v7787 = vunpack.c.h.b16 %v7582
    %v7788 = vunpack.c.l.b16 %v7583
    %v7789 = vunpack.c.h.b16 %v7583
    %v7790 = vunpack.c.l.b16 %v7584
    %v7791 = vunpack.c.h.b16 %v7584
    %v7792 = vunpack.c.l.b16 %v7585
    %v7793 = vunpack.c.h.b16 %v7585
    %v7794 = vpack.c.b16 %v7670, %v7666
    %v7795 = vpack.c.b16 %v7671, %v7667
    %v7796 = vpack.c.b16 %v7672, %v7668
    %v7797 = vpack.c.b16 %v7673, %v7669
    %v7798 = vpack.c.b16 %v7678, %v7674
    %v7799 = vpack.c.b16 %v7679, %v7675
    %v7800 = vpack.c.b16 %v7680, %v7676
    %v7801 = vpack.c.b16 %v7681, %v7677
    %v7802 = vpack.c.b16 %v7686, %v7682
    %v7803 = vpack.c.b16 %v7687, %v7683
    %v7804 = vpack.c.b16 %v7688, %v7684
    %v7805 = vpack.c.b16 %v7689, %v7685
    %v7806 = vpack.c.b16 %v7694, %v7690
    %v7807 = vpack.c.b16 %v7695, %v7691
    %v7808 = vpack.c.b16 %v7696, %v7692
    %v7809 = vpack.c.b16 %v7697, %v7693
    %v7810 = vpack.c.b16 %v7702, %v7698
    %v7811 = vpack.c.b16 %v7703, %v7699
    %v7812 = vpack.c.b16 %v7704, %v7700
    %v7813 = vpack.c.b16 %v7705, %v7701
    %v7814 = vpack.c.b16 %v7710, %v7706
    %v7815 = vpack.c.b16 %v7711, %v7707
    %v7816 = vpack.c.b16 %v7712, %v7708
    %v7817 = vpack.c.b16 %v7713, %v7709
    %v7818 = vpack.c.b16 %v7718, %v7714
    %v7819 = vpack.c.b16 %v7719, %v7715
    %v7820 = vpack.c.b16 %v7720, %v7716
    %v7821 = vpack.c.b16 %v7721, %v7717
    %v7822 = vpack.c.b16 %v7726, %v7722
    %v7823 = vpack.c.b16 %v7727, %v7723
    %v7824 = vpack.c.b16 %v7728, %v7724
    %v7825 = vpack.c.b16 %v7729, %v7725
    %v7826 = vpack.c.b16 %v7734, %v7730
    %v7827 = vpack.c.b16 %v7735, %v7731
    %v7828 = vpack.c.b16 %v7736, %v7732
    %v7829 = vpack.c.b16 %v7737, %v7733
    %v7830 = vpack.c.b16 %v7742, %v7738
    %v7831 = vpack.c.b16 %v7743, %v7739
    %v7832 = vpack.c.b16 %v7744, %v7740
    %v7833 = vpack.c.b16 %v7745, %v7741
    %v7834 = vpack.c.b16 %v7750, %v7746
    %v7835 = vpack.c.b16 %v7751, %v7747
    %v7836 = vpack.c.b16 %v7752, %v7748
    %v7837 = vpack.c.b16 %v7753, %v7749
    %v7838 = vpack.c.b16 %v7758, %v7754
    %v7839 = vpack.c.b16 %v7759, %v7755
    %v7840 = vpack.c.b16 %v7760, %v7756
    %v7841 = vpack.c.b16 %v7761, %v7757
    %v7842 = vpack.c.b16 %v7766, %v7762
    %v7843 = vpack.c.b16 %v7767, %v7763
    %v7844 = vpack.c.b16 %v7768, %v7764
    %v7845 = vpack.c.b16 %v7769, %v7765
    %v7846 = vpack.c.b16 %v7774, %v7770
    %v7847 = vpack.c.b16 %v7775, %v7771
    %v7848 = vpack.c.b16 %v7776, %v7772
    %v7849 = vpack.c.b16 %v7777, %v7773
    %v7850 = vpack.c.b16 %v7782, %v7778
    %v7851 = vpack.c.b16 %v7783, %v7779
    %v7852 = vpack.c.b16 %v7784, %v7780
    %v7853 = vpack.c.b16 %v7785, %v7781
    %v7854 = vpack.c.b16 %v7790, %v7786
    %v7855 = vpack.c.b16 %v7791, %v7787
    %v7856 = vpack.c.b16 %v7792, %v7788
    %v7857 = vpack.c.b16 %v7793, %v7789
    %7922 = vmatprep.subr.bf16.mxu0 %v7795
    %7923 = vmatpush1.bf16.msra.mxu0 %v7794
    %7924 = vmatprep.subr.bf16.mxu0 %v7799
    %7925 = vmatpush1.bf16.msra.mxu0 %v7798
    %7926 = vmatprep.subr.bf16.mxu0 %v7803
    %7927 = vmatpush1.bf16.msra.mxu0 %v7802
    %7928 = vmatprep.subr.bf16.mxu0 %v7807
    %7929 = vmatpush1.bf16.msra.mxu0 %v7806
    %7930 = vmatprep.subr.bf16.mxu0 %v7811
    %7931 = vmatpush1.bf16.msra.mxu0 %v7810
    %7932 = vmatprep.subr.bf16.mxu0 %v7815
    %7933 = vmatpush1.bf16.msra.mxu0 %v7814
    %7934 = vmatprep.subr.bf16.mxu0 %v7819
    %7935 = vmatpush1.bf16.msra.mxu0 %v7818
    %7936 = vmatprep.subr.bf16.mxu0 %v7823
    %7937 = vmatpush1.bf16.msra.mxu0 %v7822
    %7938 = vmatprep.subr.bf16.mxu0 %v7827
    %7939 = vmatpush1.bf16.msra.mxu0 %v7826
    %7940 = vmatprep.subr.bf16.mxu0 %v7831
    %7941 = vmatpush1.bf16.msra.mxu0 %v7830
    %7942 = vmatprep.subr.bf16.mxu0 %v7835
    %7943 = vmatpush1.bf16.msra.mxu0 %v7834
    %7944 = vmatprep.subr.bf16.mxu0 %v7839
    %7945 = vmatpush1.bf16.msra.mxu0 %v7838
    %7946 = vmatprep.subr.bf16.mxu0 %v7843
    %7947 = vmatpush1.bf16.msra.mxu0 %v7842
    %7948 = vmatprep.subr.bf16.mxu0 %v7847
    %7949 = vmatpush1.bf16.msra.mxu0 %v7846
    %7950 = vmatprep.subr.bf16.mxu0 %v7851
    %7951 = vmatpush1.bf16.msra.mxu0 %v7850
    %7952 = vmatprep.subr.bf16.mxu0 %v7855
    %7953 = vmatpush1.bf16.msra.mxu0 %v7854
    %7954 = vmatprep.mubr.bf16.mxu0 %v7599
    %7955 = vmatmul.mubr.bf16.gmra.mrb[0].mxu0 %v7592
    %v7956 = vpop.f32.mrb[0].mxu0
    %v7957 = vadd.f32 0.0, %v7956
    %v7958 = vpop.f32.mrb[0].mxu0
    %v7959 = vadd.f32 0.0, %v7958
    %v7960 = vpop.f32.mrb[0].mxu0
    %v7961 = vpop.f32.mrb[0].mxu0
    %7962 = vdwg.mxu0
    %7963 = vmatprep.subr.bf16.mxu0 %v7797
    %7964 = vmatpush1.bf16.msra.mxu0 %v7796
    %7965 = vmatprep.subr.bf16.mxu0 %v7801
    %7966 = vmatpush1.bf16.msra.mxu0 %v7800
    %7967 = vmatprep.subr.bf16.mxu0 %v7805
    %7968 = vmatpush1.bf16.msra.mxu0 %v7804
    %7969 = vmatprep.subr.bf16.mxu0 %v7809
    %7970 = vmatpush1.bf16.msra.mxu0 %v7808
    %7971 = vmatprep.subr.bf16.mxu0 %v7813
    %7972 = vmatpush1.bf16.msra.mxu0 %v7812
    %7973 = vmatprep.subr.bf16.mxu0 %v7817
    %7974 = vmatpush1.bf16.msra.mxu0 %v7816
    %7975 = vmatprep.subr.bf16.mxu0 %v7821
    %7976 = vmatpush1.bf16.msra.mxu0 %v7820
    %7977 = vmatprep.subr.bf16.mxu0 %v7825
    %7978 = vmatpush1.bf16.msra.mxu0 %v7824
    %7979 = vmatprep.subr.bf16.mxu0 %v7829
    %7980 = vmatpush1.bf16.msra.mxu0 %v7828
    %7981 = vmatprep.subr.bf16.mxu0 %v7833
    %7982 = vmatpush1.bf16.msra.mxu0 %v7832
    %7983 = vmatprep.subr.bf16.mxu0 %v7837
    %7984 = vmatpush1.bf16.msra.mxu0 %v7836
    %7985 = vmatprep.subr.bf16.mxu0 %v7841
    %7986 = vmatpush1.bf16.msra.mxu0 %v7840
    %7987 = vmatprep.subr.bf16.mxu0 %v7845
    %7988 = vmatpush1.bf16.msra.mxu0 %v7844
    %7989 = vmatprep.subr.bf16.mxu0 %v7849
    %7990 = vmatpush1.bf16.msra.mxu0 %v7848
    %7991 = vmatprep.subr.bf16.mxu0 %v7853
    %7992 = vmatpush1.bf16.msra.mxu0 %v7852
    %7993 = vmatprep.subr.bf16.mxu0 %v7857
    %7994 = vmatpush1.bf16.msra.mxu0 %v7856
    %7995 = vmatprep.mubr.bf16.mxu0 %v7599
    %7996 = vmatmul.mubr.bf16.gmra.mrb[0].mxu0 %v7592
    %v7997 = vpop.f32.mrb[0].mxu0
    %v7998 = vadd.f32 0.0, %v7997
    %v7999 = vpop.f32.mrb[0].mxu0
    %v8000 = vadd.f32 0.0, %v7999
    %v8001 = vpop.f32.mrb[0].mxu0
    %v8002 = vpop.f32.mrb[0].mxu0
    %8003 = vdwg.mxu0
    %v8004 = vadd.f32 %v7514, %v7957
    %v8005 = vadd.f32 %v7515, %v7959
    %v8006 = vadd.f32 %v7516, %v7998
    %v8007 = vadd.f32 %v7517, %v8000
    %v8008 = vmax.f32 %v8004, %v8006
    %v8009 = vmax.f32 %v8005, %v8007
    %8010 = vmatprep.subr.bf16.mxu0 %v5941
    %8011 = vmatpush1.bf16.msra.mxu0 %v5940
    %8012 = vmatprep.subr.bf16.mxu0 %v5945
    %8013 = vmatpush1.bf16.msra.mxu0 %v5944
    %8014 = vmatprep.subr.bf16.mxu0 %v5949
    %8015 = vmatpush1.bf16.msra.mxu0 %v5948
    %8016 = vmatprep.subr.bf16.mxu0 %v5953
    %8017 = vmatpush1.bf16.msra.mxu0 %v5952
    %8018 = vmatprep.subr.bf16.mxu0 %v5957
    %8019 = vmatpush1.bf16.msra.mxu0 %v5956
    %8020 = vmatprep.subr.bf16.mxu0 %v5961
    %8021 = vmatpush1.bf16.msra.mxu0 %v5960
    %8022 = vmatprep.subr.bf16.mxu0 %v5965
    %8023 = vmatpush1.bf16.msra.mxu0 %v5964
    %8024 = vmatprep.subr.bf16.mxu0 %v5969
    %8025 = vmatpush1.bf16.msra.mxu0 %v5968
    %8026 = vmatprep.subr.bf16.mxu0 %v5973
    %8027 = vmatpush1.bf16.msra.mxu0 %v5972
    %8028 = vmatprep.subr.bf16.mxu0 %v5977
    %8029 = vmatpush1.bf16.msra.mxu0 %v5976
    %8030 = vmatprep.subr.bf16.mxu0 %v5981
    %8031 = vmatpush1.bf16.msra.mxu0 %v5980
    %8032 = vmatprep.subr.bf16.mxu0 %v5985
    %8033 = vmatpush1.bf16.msra.mxu0 %v5984
    %8034 = vmatprep.subr.bf16.mxu0 %v5989
    %8035 = vmatpush1.bf16.msra.mxu0 %v5988
    %8036 = vmatprep.subr.bf16.mxu0 %v5993
    %8037 = vmatpush1.bf16.msra.mxu0 %v5992
    %8038 = vmatprep.subr.bf16.mxu0 %v5997
    %8039 = vmatpush1.bf16.msra.mxu0 %v5996
    %8040 = vmatprep.subr.bf16.mxu0 %v6001
    %8041 = vmatpush1.bf16.msra.mxu0 %v6000
    %8042 = vmatprep.mubr.bf16.mxu0 %v6573
    %8043 = vmatmul.mubr.bf16.gmra.mrb[0].mxu0 %v6572
    %v8044 = vpop.f32.mrb[0].mxu0
    %v8045 = vadd.f32 0.0, %v8044
    %v8046 = vpop.f32.mrb[0].mxu0
    %v8047 = vadd.f32 0.0, %v8046
    %v8048 = vpop.f32.mrb[0].mxu0
    %v8049 = vpop.f32.mrb[0].mxu0
    %8050 = vdwg.mxu0
    %8051 = vmatprep.subr.bf16.mxu0 %v5943
    %8052 = vmatpush1.bf16.msra.mxu0 %v5942
    %8053 = vmatprep.subr.bf16.mxu0 %v5947
    %8054 = vmatpush1.bf16.msra.mxu0 %v5946
    %8055 = vmatprep.subr.bf16.mxu0 %v5951
    %8056 = vmatpush1.bf16.msra.mxu0 %v5950
    %8057 = vmatprep.subr.bf16.mxu0 %v5955
    %8058 = vmatpush1.bf16.msra.mxu0 %v5954
    %8059 = vmatprep.subr.bf16.mxu0 %v5959
    %8060 = vmatpush1.bf16.msra.mxu0 %v5958
    %8061 = vmatprep.subr.bf16.mxu0 %v5963
    %8062 = vmatpush1.bf16.msra.mxu0 %v5962
    %8063 = vmatprep.subr.bf16.mxu0 %v5967
    %8064 = vmatpush1.bf16.msra.mxu0 %v5966
    %8065 = vmatprep.subr.bf16.mxu0 %v5971
    %8066 = vmatpush1.bf16.msra.mxu0 %v5970
    %8067 = vmatprep.subr.bf16.mxu0 %v5975
    %8068 = vmatpush1.bf16.msra.mxu0 %v5974
    %8069 = vmatprep.subr.bf16.mxu0 %v5979
    %8070 = vmatpush1.bf16.msra.mxu0 %v5978
    %8071 = vmatprep.subr.bf16.mxu0 %v5983
    %8072 = vmatpush1.bf16.msra.mxu0 %v5982
    %8073 = vmatprep.subr.bf16.mxu0 %v5987
    %8074 = vmatpush1.bf16.msra.mxu0 %v5986
    %8075 = vmatprep.subr.bf16.mxu0 %v5991
    %8076 = vmatpush1.bf16.msra.mxu0 %v5990
    %8077 = vmatprep.subr.bf16.mxu0 %v5995
    %8078 = vmatpush1.bf16.msra.mxu0 %v5994
    %8079 = vmatprep.subr.bf16.mxu0 %v5999
    %8080 = vmatpush1.bf16.msra.mxu0 %v5998
    %8081 = vmatprep.subr.bf16.mxu0 %v6003
    %8082 = vmatpush1.bf16.msra.mxu0 %v6002
    %8083 = vmatprep.mubr.bf16.mxu0 %v6573
    %8084 = vmatmul.mubr.bf16.gmra.mrb[0].mxu0 %v6572
    %v8085 = vpop.f32.mrb[0].mxu0
    %v8086 = vadd.f32 0.0, %v8085
    %v8087 = vpop.f32.mrb[0].mxu0
    %v8088 = vadd.f32 0.0, %v8087
    %v8089 = vpop.f32.mrb[0].mxu0
    %v8090 = vpop.f32.mrb[0].mxu0
    %8091 = vdwg.mxu0
    %8092 = vmatprep.subr.bf16.mxu0 %v6361
    %8093 = vmatpush1.bf16.msra.mxu0 %v6360
    %8094 = vmatprep.subr.bf16.mxu0 %v6365
    %8095 = vmatpush1.bf16.msra.mxu0 %v6364
    %8096 = vmatprep.subr.bf16.mxu0 %v6369
    %8097 = vmatpush1.bf16.msra.mxu0 %v6368
    %8098 = vmatprep.subr.bf16.mxu0 %v6373
    %8099 = vmatpush1.bf16.msra.mxu0 %v6372
    %8100 = vmatprep.subr.bf16.mxu0 %v6377
    %8101 = vmatpush1.bf16.msra.mxu0 %v6376
    %8102 = vmatprep.subr.bf16.mxu0 %v6381
    %8103 = vmatpush1.bf16.msra.mxu0 %v6380
    %8104 = vmatprep.subr.bf16.mxu0 %v6385
    %8105 = vmatpush1.bf16.msra.mxu0 %v6384
    %8106 = vmatprep.subr.bf16.mxu0 %v6389
    %8107 = vmatpush1.bf16.msra.mxu0 %v6388
    %8108 = vmatprep.subr.bf16.mxu0 %v6393
    %8109 = vmatpush1.bf16.msra.mxu0 %v6392
    %8110 = vmatprep.subr.bf16.mxu0 %v6397
    %8111 = vmatpush1.bf16.msra.mxu0 %v6396
    %8112 = vmatprep.subr.bf16.mxu0 %v6401
    %8113 = vmatpush1.bf16.msra.mxu0 %v6400
    %8114 = vmatprep.subr.bf16.mxu0 %v6405
    %8115 = vmatpush1.bf16.msra.mxu0 %v6404
    %8116 = vmatprep.subr.bf16.mxu0 %v6409
    %8117 = vmatpush1.bf16.msra.mxu0 %v6408
    %8118 = vmatprep.subr.bf16.mxu0 %v6413
    %8119 = vmatpush1.bf16.msra.mxu0 %v6412
    %8120 = vmatprep.subr.bf16.mxu0 %v6417
    %8121 = vmatpush1.bf16.msra.mxu0 %v6416
    %8122 = vmatprep.subr.bf16.mxu0 %v6421
    %8123 = vmatpush1.bf16.msra.mxu0 %v6420
    %8124 = vmatprep.mubr.bf16.mxu0 %v5745
    %8125 = vmatmul.mubr.bf16.gmra.mrb[0].mxu0 %v5737
    %v8126 = vpop.f32.mrb[0].mxu0
    %v8127 = vadd.f32 %v8045, %v8126
    %v8128 = vpop.f32.mrb[0].mxu0
    %v8129 = vadd.f32 %v8047, %v8128
    %v8130 = vpop.f32.mrb[0].mxu0
    %v8131 = vpop.f32.mrb[0].mxu0
    %8132 = vdwg.mxu0
    %8133 = vmatprep.subr.bf16.mxu0 %v6363
    %8134 = vmatpush1.bf16.msra.mxu0 %v6362
    %8135 = vmatprep.subr.bf16.mxu0 %v6367
    %8136 = vmatpush1.bf16.msra.mxu0 %v6366
    %8137 = vmatprep.subr.bf16.mxu0 %v6371
    %8138 = vmatpush1.bf16.msra.mxu0 %v6370
    %8139 = vmatprep.subr.bf16.mxu0 %v6375
    %8140 = vmatpush1.bf16.msra.mxu0 %v6374
    %8141 = vmatprep.subr.bf16.mxu0 %v6379
    %8142 = vmatpush1.bf16.msra.mxu0 %v6378
    %8143 = vmatprep.subr.bf16.mxu0 %v6383
    %8144 = vmatpush1.bf16.msra.mxu0 %v6382
    %8145 = vmatprep.subr.bf16.mxu0 %v6387
    %8146 = vmatpush1.bf16.msra.mxu0 %v6386
    %8147 = vmatprep.subr.bf16.mxu0 %v6391
    %8148 = vmatpush1.bf16.msra.mxu0 %v6390
    %8149 = vmatprep.subr.bf16.mxu0 %v6395
    %8150 = vmatpush1.bf16.msra.mxu0 %v6394
    %8151 = vmatprep.subr.bf16.mxu0 %v6399
    %8152 = vmatpush1.bf16.msra.mxu0 %v6398
    %8153 = vmatprep.subr.bf16.mxu0 %v6403
    %8154 = vmatpush1.bf16.msra.mxu0 %v6402
    %8155 = vmatprep.subr.bf16.mxu0 %v6407
    %8156 = vmatpush1.bf16.msra.mxu0 %v6406
    %8157 = vmatprep.subr.bf16.mxu0 %v6411
    %8158 = vmatpush1.bf16.msra.mxu0 %v6410
    %8159 = vmatprep.subr.bf16.mxu0 %v6415
    %8160 = vmatpush1.bf16.msra.mxu0 %v6414
    %8161 = vmatprep.subr.bf16.mxu0 %v6419
    %8162 = vmatpush1.bf16.msra.mxu0 %v6418
    %8163 = vmatprep.subr.bf16.mxu0 %v6423
    %8164 = vmatpush1.bf16.msra.mxu0 %v6422
    %8165 = vmatprep.mubr.bf16.mxu0 %v5745
    %8166 = vmatmul.mubr.bf16.gmra.mrb[0].mxu0 %v5737
    %v8167 = vpop.f32.mrb[0].mxu0
    %v8168 = vadd.f32 %v8086, %v8167
    %v8169 = vpop.f32.mrb[0].mxu0
    %v8170 = vadd.f32 %v8088, %v8169
    %v8171 = vpop.f32.mrb[0].mxu0
    %v8172 = vpop.f32.mrb[0].mxu0
    %8173 = vdwg.mxu0
    %8174 = vmatprep.subr.bf16.mxu0 %v6831
    %8175 = vmatpush1.bf16.msra.mxu0 %v6830
    %8176 = vmatprep.subr.bf16.mxu0 %v6835
    %8177 = vmatpush1.bf16.msra.mxu0 %v6834
    %8178 = vmatprep.subr.bf16.mxu0 %v6839
    %8179 = vmatpush1.bf16.msra.mxu0 %v6838
    %8180 = vmatprep.subr.bf16.mxu0 %v6843
    %8181 = vmatpush1.bf16.msra.mxu0 %v6842
    %8182 = vmatprep.subr.bf16.mxu0 %v6847
    %8183 = vmatpush1.bf16.msra.mxu0 %v6846
    %8184 = vmatprep.subr.bf16.mxu0 %v6851
    %8185 = vmatpush1.bf16.msra.mxu0 %v6850
    %8186 = vmatprep.subr.bf16.mxu0 %v6855
    %8187 = vmatpush1.bf16.msra.mxu0 %v6854
    %8188 = vmatprep.subr.bf16.mxu0 %v6859
    %8189 = vmatpush1.bf16.msra.mxu0 %v6858
    %8190 = vmatprep.subr.bf16.mxu0 %v6863
    %8191 = vmatpush1.bf16.msra.mxu0 %v6862
    %8192 = vmatprep.subr.bf16.mxu0 %v6867
    %8193 = vmatpush1.bf16.msra.mxu0 %v6866
    %8194 = vmatprep.subr.bf16.mxu0 %v6871
    %8195 = vmatpush1.bf16.msra.mxu0 %v6870
    %8196 = vmatprep.subr.bf16.mxu0 %v6875
    %8197 = vmatpush1.bf16.msra.mxu0 %v6874
    %8198 = vmatprep.subr.bf16.mxu0 %v6879
    %8199 = vmatpush1.bf16.msra.mxu0 %v6878
    %8200 = vmatprep.subr.bf16.mxu0 %v6883
    %8201 = vmatpush1.bf16.msra.mxu0 %v6882
    %8202 = vmatprep.subr.bf16.mxu0 %v6887
    %8203 = vmatpush1.bf16.msra.mxu0 %v6886
    %8204 = vmatprep.subr.bf16.mxu0 %v6891
    %8205 = vmatpush1.bf16.msra.mxu0 %v6890
    %8206 = vmatprep.mubr.bf16.mxu0 %v7047
    %8207 = vmatmul.mubr.bf16.gmra.mrb[0].mxu0 %v7046
    %v8208 = vpop.f32.mrb[0].mxu0
    %v8209 = vadd.f32 0.0, %v8208
    %v8210 = vpop.f32.mrb[0].mxu0
    %v8211 = vadd.f32 0.0, %v8210
    %v8212 = vpop.f32.mrb[0].mxu0
    %v8213 = vpop.f32.mrb[0].mxu0
    %8214 = vdwg.mxu0
    %8215 = vmatprep.subr.bf16.mxu0 %v6833
    %8216 = vmatpush1.bf16.msra.mxu0 %v6832
    %8217 = vmatprep.subr.bf16.mxu0 %v6837
    %8218 = vmatpush1.bf16.msra.mxu0 %v6836
    %8219 = vmatprep.subr.bf16.mxu0 %v6841
    %8220 = vmatpush1.bf16.msra.mxu0 %v6840
    %8221 = vmatprep.subr.bf16.mxu0 %v6845
    %8222 = vmatpush1.bf16.msra.mxu0 %v6844
    %8223 = vmatprep.subr.bf16.mxu0 %v6849
    %8224 = vmatpush1.bf16.msra.mxu0 %v6848
    %8225 = vmatprep.subr.bf16.mxu0 %v6853
    %8226 = vmatpush1.bf16.msra.mxu0 %v6852
    %8227 = vmatprep.subr.bf16.mxu0 %v6857
    %8228 = vmatpush1.bf16.msra.mxu0 %v6856
    %8229 = vmatprep.subr.bf16.mxu0 %v6861
    %8230 = vmatpush1.bf16.msra.mxu0 %v6860
    %8231 = vmatprep.subr.bf16.mxu0 %v6865
    %8232 = vmatpush1.bf16.msra.mxu0 %v6864
    %8233 = vmatprep.subr.bf16.mxu0 %v6869
    %8234 = vmatpush1.bf16.msra.mxu0 %v6868
    %8235 = vmatprep.subr.bf16.mxu0 %v6873
    %8236 = vmatpush1.bf16.msra.mxu0 %v6872
    %8237 = vmatprep.subr.bf16.mxu0 %v6877
    %8238 = vmatpush1.bf16.msra.mxu0 %v6876
    %8239 = vmatprep.subr.bf16.mxu0 %v6881
    %8240 = vmatpush1.bf16.msra.mxu0 %v6880
    %8241 = vmatprep.subr.bf16.mxu0 %v6885
    %8242 = vmatpush1.bf16.msra.mxu0 %v6884
    %8243 = vmatprep.subr.bf16.mxu0 %v6889
    %8244 = vmatpush1.bf16.msra.mxu0 %v6888
    %8245 = vmatprep.subr.bf16.mxu0 %v6893
    %8246 = vmatpush1.bf16.msra.mxu0 %v6892
    %8247 = vmatprep.mubr.bf16.mxu0 %v7047
    %8248 = vmatmul.mubr.bf16.gmra.mrb[0].mxu0 %v7046
    %v8249 = vpop.f32.mrb[0].mxu0
    %v8250 = vadd.f32 0.0, %v8249
    %v8251 = vpop.f32.mrb[0].mxu0
    %v8252 = vadd.f32 0.0, %v8251
    %v8253 = vpop.f32.mrb[0].mxu0
    %v8254 = vpop.f32.mrb[0].mxu0
    %8255 = vdwg.mxu0
    %v8256 = vadd.f32 %v8127, %v8209
    %v8257 = vadd.f32 %v8129, %v8211
    %v8258 = vadd.f32 %v8168, %v8250
    %v8259 = vadd.f32 %v8170, %v8252
    %8260 = vmatprep.subr.bf16.mxu0 %v7305
    %8261 = vmatpush1.bf16.msra.mxu0 %v7304
    %8262 = vmatprep.subr.bf16.mxu0 %v7309
    %8263 = vmatpush1.bf16.msra.mxu0 %v7308
    %8264 = vmatprep.subr.bf16.mxu0 %v7313
    %8265 = vmatpush1.bf16.msra.mxu0 %v7312
    %8266 = vmatprep.subr.bf16.mxu0 %v7317
    %8267 = vmatpush1.bf16.msra.mxu0 %v7316
    %8268 = vmatprep.subr.bf16.mxu0 %v7321
    %8269 = vmatpush1.bf16.msra.mxu0 %v7320
    %8270 = vmatprep.subr.bf16.mxu0 %v7325
    %8271 = vmatpush1.bf16.msra.mxu0 %v7324
    %8272 = vmatprep.subr.bf16.mxu0 %v7329
    %8273 = vmatpush1.bf16.msra.mxu0 %v7328
    %8274 = vmatprep.subr.bf16.mxu0 %v7333
    %8275 = vmatpush1.bf16.msra.mxu0 %v7332
    %8276 = vmatprep.subr.bf16.mxu0 %v7337
    %8277 = vmatpush1.bf16.msra.mxu0 %v7336
    %8278 = vmatprep.subr.bf16.mxu0 %v7341
    %8279 = vmatpush1.bf16.msra.mxu0 %v7340
    %8280 = vmatprep.subr.bf16.mxu0 %v7345
    %8281 = vmatpush1.bf16.msra.mxu0 %v7344
    %8282 = vmatprep.subr.bf16.mxu0 %v7349
    %8283 = vmatpush1.bf16.msra.mxu0 %v7348
    %8284 = vmatprep.subr.bf16.mxu0 %v7353
    %8285 = vmatpush1.bf16.msra.mxu0 %v7352
    %8286 = vmatprep.subr.bf16.mxu0 %v7357
    %8287 = vmatpush1.bf16.msra.mxu0 %v7356
    %8288 = vmatprep.subr.bf16.mxu0 %v7361
    %8289 = vmatpush1.bf16.msra.mxu0 %v7360
    %8290 = vmatprep.subr.bf16.mxu0 %v7365
    %8291 = vmatpush1.bf16.msra.mxu0 %v7364
    %8292 = vmatprep.mubr.bf16.mxu0 %v7599
    %8293 = vmatmul.mubr.bf16.gmra.mrb[0].mxu0 %v7592
    %v8294 = vpop.f32.mrb[0].mxu0
    %v8295 = vadd.f32 0.0, %v8294
    %v8296 = vpop.f32.mrb[0].mxu0
    %v8297 = vadd.f32 0.0, %v8296
    %v8298 = vpop.f32.mrb[0].mxu0
    %v8299 = vpop.f32.mrb[0].mxu0
    %8300 = vdwg.mxu0
    %8301 = vmatprep.subr.bf16.mxu0 %v7307
    %8302 = vmatpush1.bf16.msra.mxu0 %v7306
    %8303 = vmatprep.subr.bf16.mxu0 %v7311
    %8304 = vmatpush1.bf16.msra.mxu0 %v7310
    %8305 = vmatprep.subr.bf16.mxu0 %v7315
    %8306 = vmatpush1.bf16.msra.mxu0 %v7314
    %8307 = vmatprep.subr.bf16.mxu0 %v7319
    %8308 = vmatpush1.bf16.msra.mxu0 %v7318
    %8309 = vmatprep.subr.bf16.mxu0 %v7323
    %8310 = vmatpush1.bf16.msra.mxu0 %v7322
    %8311 = vmatprep.subr.bf16.mxu0 %v7327
    %8312 = vmatpush1.bf16.msra.mxu0 %v7326
    %8313 = vmatprep.subr.bf16.mxu0 %v7331
    %8314 = vmatpush1.bf16.msra.mxu0 %v7330
    %8315 = vmatprep.subr.bf16.mxu0 %v7335
    %8316 = vmatpush1.bf16.msra.mxu0 %v7334
    %8317 = vmatprep.subr.bf16.mxu0 %v7339
    %8318 = vmatpush1.bf16.msra.mxu0 %v7338
    %8319 = vmatprep.subr.bf16.mxu0 %v7343
    %8320 = vmatpush1.bf16.msra.mxu0 %v7342
    %8321 = vmatprep.subr.bf16.mxu0 %v7347
    %8322 = vmatpush1.bf16.msra.mxu0 %v7346
    %8323 = vmatprep.subr.bf16.mxu0 %v7351
    %8324 = vmatpush1.bf16.msra.mxu0 %v7350
    %8325 = vmatprep.subr.bf16.mxu0 %v7355
    %8326 = vmatpush1.bf16.msra.mxu0 %v7354
    %8327 = vmatprep.subr.bf16.mxu0 %v7359
    %8328 = vmatpush1.bf16.msra.mxu0 %v7358
    %8329 = vmatprep.subr.bf16.mxu0 %v7363
    %8330 = vmatpush1.bf16.msra.mxu0 %v7362
    %8331 = vmatprep.subr.bf16.mxu0 %v7367
    %8332 = vmatpush1.bf16.msra.mxu0 %v7366
    %8333 = vmatprep.mubr.bf16.mxu0 %v7599
    %8334 = vmatmul.mubr.bf16.gmra.mrb[0].mxu0 %v7592
    %v8335 = vpop.f32.mrb[0].mxu0
    %v8336 = vadd.f32 0.0, %v8335
    %v8337 = vpop.f32.mrb[0].mxu0
    %v8338 = vadd.f32 0.0, %v8337
    %v8339 = vpop.f32.mrb[0].mxu0
    %v8340 = vpop.f32.mrb[0].mxu0
    %8341 = vdwg.mxu0
    %v8342 = vadd.f32 %v8256, %v8295
    %v8343 = vadd.f32 %v8257, %v8297
    %v8344 = vadd.f32 %v8258, %v8336
    %v8345 = vadd.f32 %v8259, %v8338
    %v8346 = vld [vmem:[#allocation3 + $0x10] sm:$0x3e]
    %v8347 = vld [vmem:[#allocation3 + $0x18] sm:$0x3e]
    %v8348 = vpack.c.bf16 %v8346, %v8346
    %v8349 = vpack.c.bf16 %v8347, %v8347
    %v8351 = vshrl.u32 %v8348, 16
    %v8353 = vshll.u32 %v8348, 16
    %v8355 = vrot.slane %v8353, 1
    %v8356 = vor.u32 %v8351, %v8355
    %v8358 = vshrl.u32 %v8349, 16
    %v8360 = vshll.u32 %v8349, 16
    %v8362 = vrot.slane %v8360, 1
    %v8363 = vor.u32 %v8358, %v8362
    %8366 = vmatprep.subr.bf16.mxu0 %v7795
    %8367 = vmatpush1.bf16.msra.mxu0 %v7794
    %8368 = vmatprep.subr.bf16.mxu0 %v7799
    %8369 = vmatpush1.bf16.msra.mxu0 %v7798
    %8370 = vmatprep.subr.bf16.mxu0 %v7803
    %8371 = vmatpush1.bf16.msra.mxu0 %v7802
    %8372 = vmatprep.subr.bf16.mxu0 %v7807
    %8373 = vmatpush1.bf16.msra.mxu0 %v7806
    %8374 = vmatprep.subr.bf16.mxu0 %v7811
    %8375 = vmatpush1.bf16.msra.mxu0 %v7810
    %8376 = vmatprep.subr.bf16.mxu0 %v7815
    %8377 = vmatpush1.bf16.msra.mxu0 %v7814
    %8378 = vmatprep.subr.bf16.mxu0 %v7819
    %8379 = vmatpush1.bf16.msra.mxu0 %v7818
    %8380 = vmatprep.subr.bf16.mxu0 %v7823
    %8381 = vmatpush1.bf16.msra.mxu0 %v7822
    %8382 = vmatprep.subr.bf16.mxu0 %v7827
    %8383 = vmatpush1.bf16.msra.mxu0 %v7826
    %8384 = vmatprep.subr.bf16.mxu0 %v7831
    %8385 = vmatpush1.bf16.msra.mxu0 %v7830
    %8386 = vmatprep.subr.bf16.mxu0 %v7835
    %8387 = vmatpush1.bf16.msra.mxu0 %v7834
    %8388 = vmatprep.subr.bf16.mxu0 %v7839
    %8389 = vmatpush1.bf16.msra.mxu0 %v7838
    %8390 = vmatprep.subr.bf16.mxu0 %v7843
    %8391 = vmatpush1.bf16.msra.mxu0 %v7842
    %8392 = vmatprep.subr.bf16.mxu0 %v7847
    %8393 = vmatpush1.bf16.msra.mxu0 %v7846
    %8394 = vmatprep.subr.bf16.mxu0 %v7851
    %8395 = vmatpush1.bf16.msra.mxu0 %v7850
    %8396 = vmatprep.subr.bf16.mxu0 %v7855
    %8397 = vmatpush1.bf16.msra.mxu0 %v7854
    %8398 = vmatprep.mubr.bf16.mxu0 %v8363
    %8399 = vmatmul.mubr.bf16.gmra.mrb[0].mxu0 %v8356
    %v8400 = vpop.f32.mrb[0].mxu0
    %v8401 = vadd.f32 0.0, %v8400
    %v8402 = vpop.f32.mrb[0].mxu0
    %v8403 = vadd.f32 0.0, %v8402
    %v8404 = vpop.f32.mrb[0].mxu0
    %v8405 = vpop.f32.mrb[0].mxu0
    %8406 = vdwg.mxu0
    %8407 = vmatprep.subr.bf16.mxu0 %v7797
    %8408 = vmatpush1.bf16.msra.mxu0 %v7796
    %8409 = vmatprep.subr.bf16.mxu0 %v7801
    %8410 = vmatpush1.bf16.msra.mxu0 %v7800
    %8411 = vmatprep.subr.bf16.mxu0 %v7805
    %8412 = vmatpush1.bf16.msra.mxu0 %v7804
    %8413 = vmatprep.subr.bf16.mxu0 %v7809
    %8414 = vmatpush1.bf16.msra.mxu0 %v7808
    %8415 = vmatprep.subr.bf16.mxu0 %v7813
    %8416 = vmatpush1.bf16.msra.mxu0 %v7812
    %8417 = vmatprep.subr.bf16.mxu0 %v7817
    %8418 = vmatpush1.bf16.msra.mxu0 %v7816
    %8419 = vmatprep.subr.bf16.mxu0 %v7821
    %8420 = vmatpush1.bf16.msra.mxu0 %v7820
    %8421 = vmatprep.subr.bf16.mxu0 %v7825
    %8422 = vmatpush1.bf16.msra.mxu0 %v7824
    %8423 = vmatprep.subr.bf16.mxu0 %v7829
    %8424 = vmatpush1.bf16.msra.mxu0 %v7828
    %8425 = vmatprep.subr.bf16.mxu0 %v7833
    %8426 = vmatpush1.bf16.msra.mxu0 %v7832
    %8427 = vmatprep.subr.bf16.mxu0 %v7837
    %8428 = vmatpush1.bf16.msra.mxu0 %v7836
    %8429 = vmatprep.subr.bf16.mxu0 %v7841
    %8430 = vmatpush1.bf16.msra.mxu0 %v7840
    %8431 = vmatprep.subr.bf16.mxu0 %v7845
    %8432 = vmatpush1.bf16.msra.mxu0 %v7844
    %8433 = vmatprep.subr.bf16.mxu0 %v7849
    %8434 = vmatpush1.bf16.msra.mxu0 %v7848
    %8435 = vmatprep.subr.bf16.mxu0 %v7853
    %8436 = vmatpush1.bf16.msra.mxu0 %v7852
    %8437 = vmatprep.subr.bf16.mxu0 %v7857
    %8438 = vmatpush1.bf16.msra.mxu0 %v7856
    %8439 = vmatprep.mubr.bf16.mxu0 %v8363
    %8440 = vmatmul.mubr.bf16.gmra.mrb[0].mxu0 %v8356
    %v8441 = vpop.f32.mrb[0].mxu0
    %v8442 = vadd.f32 0.0, %v8441
    %v8443 = vpop.f32.mrb[0].mxu0
    %v8444 = vadd.f32 0.0, %v8443
    %v8445 = vpop.f32.mrb[0].mxu0
    %v8446 = vpop.f32.mrb[0].mxu0
    %8447 = vdwg.mxu0
    %v8448 = vadd.f32 %v8342, %v8401
    %v8449 = vadd.f32 %v8343, %v8403
    %v8450 = vadd.f32 %v8344, %v8442
    %v8451 = vadd.f32 %v8345, %v8444
    %v8452 = vmax.f32 %v8448, %v8450
    %v8453 = vmax.f32 %v8449, %v8451
    %v8454 = vmax.f32 %v8008, %v8452
    %v8455 = vmax.f32 %v8009, %v8453
    %v8456 = vadd.f32 %v8454, %v4494
    %v8457 = vadd.f32 %v8455, %v4498
    %v8458 = vmax.f32 %v8456, 0.0
    %v8459 = vmax.f32 %v8457, 0.0
    %v8460 = vpack.c.bf16 %v8458, %v8458
    %v8461 = vpack.c.bf16 %v8459, %v8459
    %v8462 = vld [vmem:[#allocation7] sm:$0xf]
    %v8463 = vld [vmem:[#allocation7 + $0x4] sm:$0xf]
    %v8464 = vld [vmem:[#allocation7 + $0x8] sm:$0xf]
    %v8465 = vld [vmem:[#allocation7 + $0xc] sm:$0xf]
    %v8466 = vld [vmem:[#allocation7 + $0x10] sm:$0xf]
    %v8467 = vld [vmem:[#allocation7 + $0x14] sm:$0xf]
    %v8468 = vld [vmem:[#allocation7 + $0x18] sm:$0xf]
    %v8469 = vld [vmem:[#allocation7 + $0x1c] sm:$0xf]
    %v8470 = vld [vmem:[#allocation7 + $0x20] sm:$0xf]
    %v8471 = vld [vmem:[#allocation7 + $0x24] sm:$0xf]
    %v8472 = vld [vmem:[#allocation7 + $0x28] sm:$0xf]
    %v8473 = vld [vmem:[#allocation7 + $0x2c] sm:$0xf]
    %v8474 = vld [vmem:[#allocation7 + $0x30] sm:$0xf]
    %v8475 = vld [vmem:[#allocation7 + $0x34] sm:$0xf]
    %v8476 = vld [vmem:[#allocation7 + $0x38] sm:$0xf]
    %v8477 = vld [vmem:[#allocation7 + $0x3c] sm:$0xf]
    %v8478 = vld [vmem:[#allocation7 + $0x40] sm:$0xf]
    %v8479 = vld [vmem:[#allocation7 + $0x44] sm:$0xf]
    %v8480 = vld [vmem:[#allocation7 + $0x48] sm:$0xf]
    %v8481 = vld [vmem:[#allocation7 + $0x4c] sm:$0xf]
    %v8482 = vld [vmem:[#allocation7 + $0x50] sm:$0xf]
    %v8483 = vld [vmem:[#allocation7 + $0x54] sm:$0xf]
    %v8484 = vld [vmem:[#allocation7 + $0x58] sm:$0xf]
    %v8485 = vld [vmem:[#allocation7 + $0x5c] sm:$0xf]
    %v8486 = vld [vmem:[#allocation7 + $0x60] sm:$0xf]
    %v8487 = vld [vmem:[#allocation7 + $0x64] sm:$0xf]
    %v8488 = vld [vmem:[#allocation7 + $0x68] sm:$0xf]
    %v8489 = vld [vmem:[#allocation7 + $0x6c] sm:$0xf]
    %v8490 = vld [vmem:[#allocation7 + $0x70] sm:$0xf]
    %v8491 = vld [vmem:[#allocation7 + $0x74] sm:$0xf]
    %v8492 = vld [vmem:[#allocation7 + $0x78] sm:$0xf]
    %v8493 = vld [vmem:[#allocation7 + $0x7c] sm:$0xf]
    %v8494 = vld [vmem:[%s4539] sm:$0xf]
    %v8495 = vld [vmem:[%s4539 + $0x4] sm:$0xf]
    %v8496 = vld [vmem:[%s4539 + $0x8] sm:$0xf]
    %v8497 = vld [vmem:[%s4539 + $0xc] sm:$0xf]
    %v8498 = vld [vmem:[%s4539 + $0x10] sm:$0xf]
    %v8499 = vld [vmem:[%s4539 + $0x14] sm:$0xf]
    %v8500 = vld [vmem:[%s4539 + $0x18] sm:$0xf]
    %v8501 = vld [vmem:[%s4539 + $0x1c] sm:$0xf]
    %v8502 = vld [vmem:[%s4539 + $0x20] sm:$0xf]
    %v8503 = vld [vmem:[%s4539 + $0x24] sm:$0xf]
    %v8504 = vld [vmem:[%s4539 + $0x28] sm:$0xf]
    %v8505 = vld [vmem:[%s4539 + $0x2c] sm:$0xf]
    %v8506 = vld [vmem:[%s4539 + $0x30] sm:$0xf]
    %v8507 = vld [vmem:[%s4539 + $0x34] sm:$0xf]
    %v8508 = vld [vmem:[%s4539 + $0x38] sm:$0xf]
    %v8509 = vld [vmem:[%s4539 + $0x3c] sm:$0xf]
    %v8510 = vld [vmem:[%s4539 + $0x40] sm:$0xf]
    %v8511 = vld [vmem:[%s4539 + $0x44] sm:$0xf]
    %v8512 = vld [vmem:[%s4539 + $0x48] sm:$0xf]
    %v8513 = vld [vmem:[%s4539 + $0x4c] sm:$0xf]
    %v8514 = vld [vmem:[%s4539 + $0x50] sm:$0xf]
    %v8515 = vld [vmem:[%s4539 + $0x54] sm:$0xf]
    %v8516 = vld [vmem:[%s4539 + $0x58] sm:$0xf]
    %v8517 = vld [vmem:[%s4539 + $0x5c] sm:$0xf]
    %v8518 = vld [vmem:[%s4539 + $0x60] sm:$0xf]
    %v8519 = vld [vmem:[%s4539 + $0x64] sm:$0xf]
    %v8520 = vld [vmem:[%s4539 + $0x68] sm:$0xf]
    %v8521 = vld [vmem:[%s4539 + $0x6c] sm:$0xf]
    %v8522 = vld [vmem:[%s4539 + $0x70] sm:$0xf]
    %v8523 = vld [vmem:[%s4539 + $0x74] sm:$0xf]
    %v8524 = vld [vmem:[%s4539 + $0x78] sm:$0xf]
    %v8525 = vld [vmem:[%s4539 + $0x7c] sm:$0xf]
    %v8527 = vshrl.u32 %v8460, 16
    %v8530 = vshrl.u32 %v8461, 16
    %v8566 = vunpack.c.l.b16 %v8494
    %v8567 = vunpack.c.l.b16 %v8495
    %v8568 = vunpack.c.l.b16 %v8496
    %v8569 = vunpack.c.l.b16 %v8497
    %v8570 = vunpack.c.l.b16 %v8498
    %v8571 = vunpack.c.l.b16 %v8499
    %v8572 = vunpack.c.l.b16 %v8500
    %v8573 = vunpack.c.l.b16 %v8501
    %v8574 = vunpack.c.l.b16 %v8502
    %v8575 = vunpack.c.l.b16 %v8503
    %v8576 = vunpack.c.l.b16 %v8504
    %v8577 = vunpack.c.l.b16 %v8505
    %v8578 = vunpack.c.l.b16 %v8506
    %v8579 = vunpack.c.l.b16 %v8507
    %v8580 = vunpack.c.l.b16 %v8508
    %v8581 = vunpack.c.l.b16 %v8509
    %v8582 = vunpack.c.l.b16 %v8510
    %v8583 = vunpack.c.l.b16 %v8511
    %v8584 = vunpack.c.l.b16 %v8512
    %v8585 = vunpack.c.l.b16 %v8513
    %v8586 = vunpack.c.l.b16 %v8514
    %v8587 = vunpack.c.l.b16 %v8515
    %v8588 = vunpack.c.l.b16 %v8516
    %v8589 = vunpack.c.l.b16 %v8517
    %v8590 = vunpack.c.l.b16 %v8518
    %v8591 = vunpack.c.l.b16 %v8519
    %v8592 = vunpack.c.l.b16 %v8520
    %v8593 = vunpack.c.l.b16 %v8521
    %v8594 = vunpack.c.l.b16 %v8522
    %v8595 = vunpack.c.l.b16 %v8523
    %v8596 = vunpack.c.l.b16 %v8524
    %v8597 = vunpack.c.l.b16 %v8525
    %v8598 = vpack.c.b16 %v8567, %v8566
    %v8599 = vpack.c.b16 %v8569, %v8568
    %v8600 = vpack.c.b16 %v8571, %v8570
    %v8601 = vpack.c.b16 %v8573, %v8572
    %v8602 = vpack.c.b16 %v8575, %v8574
    %v8603 = vpack.c.b16 %v8577, %v8576
    %v8604 = vpack.c.b16 %v8579, %v8578
    %v8605 = vpack.c.b16 %v8581, %v8580
    %v8606 = vpack.c.b16 %v8583, %v8582
    %v8607 = vpack.c.b16 %v8585, %v8584
    %v8608 = vpack.c.b16 %v8587, %v8586
    %v8609 = vpack.c.b16 %v8589, %v8588
    %v8610 = vpack.c.b16 %v8591, %v8590
    %v8611 = vpack.c.b16 %v8593, %v8592
    %v8612 = vpack.c.b16 %v8595, %v8594
    %v8613 = vpack.c.b16 %v8597, %v8596
    %8630 = vmatprep.subr.bf16.mxu0 0
    %8631 = vmatpush1.bf16.msra.mxu0 %v8598
    %8632 = vmatprep.subr.bf16.mxu0 0
    %8633 = vmatpush1.bf16.msra.mxu0 %v8599
    %8634 = vmatprep.subr.bf16.mxu0 0
    %8635 = vmatpush1.bf16.msra.mxu0 %v8600
    %8636 = vmatprep.subr.bf16.mxu0 0
    %8637 = vmatpush1.bf16.msra.mxu0 %v8601
    %8638 = vmatprep.subr.bf16.mxu0 0
    %8639 = vmatpush1.bf16.msra.mxu0 %v8602
    %8640 = vmatprep.subr.bf16.mxu0 0
    %8641 = vmatpush1.bf16.msra.mxu0 %v8603
    %8642 = vmatprep.subr.bf16.mxu0 0
    %8643 = vmatpush1.bf16.msra.mxu0 %v8604
    %8644 = vmatprep.subr.bf16.mxu0 0
    %8645 = vmatpush1.bf16.msra.mxu0 %v8605
    %8646 = vmatprep.subr.bf16.mxu0 0
    %8647 = vmatpush1.bf16.msra.mxu0 %v8606
    %8648 = vmatprep.subr.bf16.mxu0 0
    %8649 = vmatpush1.bf16.msra.mxu0 %v8607
    %8650 = vmatprep.subr.bf16.mxu0 0
    %8651 = vmatpush1.bf16.msra.mxu0 %v8608
    %8652 = vmatprep.subr.bf16.mxu0 0
    %8653 = vmatpush1.bf16.msra.mxu0 %v8609
    %8654 = vmatprep.subr.bf16.mxu0 0
    %8655 = vmatpush1.bf16.msra.mxu0 %v8610
    %8656 = vmatprep.subr.bf16.mxu0 0
    %8657 = vmatpush1.bf16.msra.mxu0 %v8611
    %8658 = vmatprep.subr.bf16.mxu0 0
    %8659 = vmatpush1.bf16.msra.mxu0 %v8612
    %8660 = vmatprep.subr.bf16.mxu0 0
    %8661 = vmatpush1.bf16.msra.mxu0 %v8613
    %8662 = vmatprep.mubr.bf16.mxu0 %v8530
    %8663 = vmatmul.mubr.bf16.gmra.mrb[0].mxu0 %v8527
    %v8664 = vpop.f32.mrb[0].mxu0
    %v8665 = vadd.f32 0.0, %v8664
    %v8666 = vpop.f32.mrb[0].mxu0
    %v8667 = vpop.f32.mrb[0].mxu0
    %v8668 = vpop.f32.mrb[0].mxu0
    %8669 = vdwg.mxu0
    %v8702 = vunpack.c.l.b16 %v8462
    %v8703 = vunpack.c.l.b16 %v8463
    %v8704 = vunpack.c.l.b16 %v8464
    %v8705 = vunpack.c.l.b16 %v8465
    %v8706 = vunpack.c.l.b16 %v8466
    %v8707 = vunpack.c.l.b16 %v8467
    %v8708 = vunpack.c.l.b16 %v8468
    %v8709 = vunpack.c.l.b16 %v8469
    %v8710 = vunpack.c.l.b16 %v8470
    %v8711 = vunpack.c.l.b16 %v8471
    %v8712 = vunpack.c.l.b16 %v8472
    %v8713 = vunpack.c.l.b16 %v8473
    %v8714 = vunpack.c.l.b16 %v8474
    %v8715 = vunpack.c.l.b16 %v8475
    %v8716 = vunpack.c.l.b16 %v8476
    %v8717 = vunpack.c.l.b16 %v8477
    %v8718 = vunpack.c.l.b16 %v8478
    %v8719 = vunpack.c.l.b16 %v8479
    %v8720 = vunpack.c.l.b16 %v8480
    %v8721 = vunpack.c.l.b16 %v8481
    %v8722 = vunpack.c.l.b16 %v8482
    %v8723 = vunpack.c.l.b16 %v8483
    %v8724 = vunpack.c.l.b16 %v8484
    %v8725 = vunpack.c.l.b16 %v8485
    %v8726 = vunpack.c.l.b16 %v8486
    %v8727 = vunpack.c.l.b16 %v8487
    %v8728 = vunpack.c.l.b16 %v8488
    %v8729 = vunpack.c.l.b16 %v8489
    %v8730 = vunpack.c.l.b16 %v8490
    %v8731 = vunpack.c.l.b16 %v8491
    %v8732 = vunpack.c.l.b16 %v8492
    %v8733 = vunpack.c.l.b16 %v8493
    %v8734 = vpack.c.b16 %v8703, %v8702
    %v8735 = vpack.c.b16 %v8705, %v8704
    %v8736 = vpack.c.b16 %v8707, %v8706
    %v8737 = vpack.c.b16 %v8709, %v8708
    %v8738 = vpack.c.b16 %v8711, %v8710
    %v8739 = vpack.c.b16 %v8713, %v8712
    %v8740 = vpack.c.b16 %v8715, %v8714
    %v8741 = vpack.c.b16 %v8717, %v8716
    %v8742 = vpack.c.b16 %v8719, %v8718
    %v8743 = vpack.c.b16 %v8721, %v8720
    %v8744 = vpack.c.b16 %v8723, %v8722
    %v8745 = vpack.c.b16 %v8725, %v8724
    %v8746 = vpack.c.b16 %v8727, %v8726
    %v8747 = vpack.c.b16 %v8729, %v8728
    %v8748 = vpack.c.b16 %v8731, %v8730
    %v8749 = vpack.c.b16 %v8733, %v8732
    %8766 = vmatprep.subr.bf16.mxu0 0
    %8767 = vmatpush1.bf16.msra.mxu0 %v8734
    %8768 = vmatprep.subr.bf16.mxu0 0
    %8769 = vmatpush1.bf16.msra.mxu0 %v8735
    %8770 = vmatprep.subr.bf16.mxu0 0
    %8771 = vmatpush1.bf16.msra.mxu0 %v8736
    %8772 = vmatprep.subr.bf16.mxu0 0
    %8773 = vmatpush1.bf16.msra.mxu0 %v8737
    %8774 = vmatprep.subr.bf16.mxu0 0
    %8775 = vmatpush1.bf16.msra.mxu0 %v8738
    %8776 = vmatprep.subr.bf16.mxu0 0
    %8777 = vmatpush1.bf16.msra.mxu0 %v8739
    %8778 = vmatprep.subr.bf16.mxu0 0
    %8779 = vmatpush1.bf16.msra.mxu0 %v8740
    %8780 = vmatprep.subr.bf16.mxu0 0
    %8781 = vmatpush1.bf16.msra.mxu0 %v8741
    %8782 = vmatprep.subr.bf16.mxu0 0
    %8783 = vmatpush1.bf16.msra.mxu0 %v8742
    %8784 = vmatprep.subr.bf16.mxu0 0
    %8785 = vmatpush1.bf16.msra.mxu0 %v8743
    %8786 = vmatprep.subr.bf16.mxu0 0
    %8787 = vmatpush1.bf16.msra.mxu0 %v8744
    %8788 = vmatprep.subr.bf16.mxu0 0
    %8789 = vmatpush1.bf16.msra.mxu0 %v8745
    %8790 = vmatprep.subr.bf16.mxu0 0
    %8791 = vmatpush1.bf16.msra.mxu0 %v8746
    %8792 = vmatprep.subr.bf16.mxu0 0
    %8793 = vmatpush1.bf16.msra.mxu0 %v8747
    %8794 = vmatprep.subr.bf16.mxu0 0
    %8795 = vmatpush1.bf16.msra.mxu0 %v8748
    %8796 = vmatprep.subr.bf16.mxu0 0
    %8797 = vmatpush1.bf16.msra.mxu0 %v8749
    %8798 = vmatprep.mubr.bf16.mxu0 %v8461
    %8799 = vmatmul.mubr.bf16.gmra.mrb[0].mxu0 %v8460
    %v8800 = vpop.f32.mrb[0].mxu0
    %v8801 = vadd.f32 %v8665, %v8800
    %v8802 = vpop.f32.mrb[0].mxu0
    %v8803 = vpop.f32.mrb[0].mxu0
    %v8804 = vpop.f32.mrb[0].mxu0
    %8805 = vdwg.mxu0
    %v8806 = vld [vmem:[%s4852] sm:$0xf]
    %v8807 = vld [vmem:[%s4852 + $0x4] sm:$0xf]
    %v8808 = vld [vmem:[%s4852 + $0x8] sm:$0xf]
    %v8809 = vld [vmem:[%s4852 + $0xc] sm:$0xf]
    %v8810 = vld [vmem:[%s4852 + $0x10] sm:$0xf]
    %v8811 = vld [vmem:[%s4852 + $0x14] sm:$0xf]
    %v8812 = vld [vmem:[%s4852 + $0x18] sm:$0xf]
    %v8813 = vld [vmem:[%s4852 + $0x1c] sm:$0xf]
    %v8814 = vld [vmem:[%s4852 + $0x20] sm:$0xf]
    %v8815 = vld [vmem:[%s4852 + $0x24] sm:$0xf]
    %v8816 = vld [vmem:[%s4852 + $0x28] sm:$0xf]
    %v8817 = vld [vmem:[%s4852 + $0x2c] sm:$0xf]
    %v8818 = vld [vmem:[%s4852 + $0x30] sm:$0xf]
    %v8819 = vld [vmem:[%s4852 + $0x34] sm:$0xf]
    %v8820 = vld [vmem:[%s4852 + $0x38] sm:$0xf]
    %v8821 = vld [vmem:[%s4852 + $0x3c] sm:$0xf]
    %v8822 = vld [vmem:[%s4852 + $0x40] sm:$0xf]
    %v8823 = vld [vmem:[%s4852 + $0x44] sm:$0xf]
    %v8824 = vld [vmem:[%s4852 + $0x48] sm:$0xf]
    %v8825 = vld [vmem:[%s4852 + $0x4c] sm:$0xf]
    %v8826 = vld [vmem:[%s4852 + $0x50] sm:$0xf]
    %v8827 = vld [vmem:[%s4852 + $0x54] sm:$0xf]
    %v8828 = vld [vmem:[%s4852 + $0x58] sm:$0xf]
    %v8829 = vld [vmem:[%s4852 + $0x5c] sm:$0xf]
    %v8830 = vld [vmem:[%s4852 + $0x60] sm:$0xf]
    %v8831 = vld [vmem:[%s4852 + $0x64] sm:$0xf]
    %v8832 = vld [vmem:[%s4852 + $0x68] sm:$0xf]
    %v8833 = vld [vmem:[%s4852 + $0x6c] sm:$0xf]
    %v8834 = vld [vmem:[%s4852 + $0x70] sm:$0xf]
    %v8835 = vld [vmem:[%s4852 + $0x74] sm:$0xf]
    %v8836 = vld [vmem:[%s4852 + $0x78] sm:$0xf]
    %v8837 = vld [vmem:[%s4852 + $0x7c] sm:$0xf]
    %v8840 = vrot.slane %v8460, 1
    %v8841 = vrot.slane %v8461, 1
    %v8876 = vunpack.c.l.b16 %v8806
    %v8877 = vunpack.c.l.b16 %v8807
    %v8878 = vunpack.c.l.b16 %v8808
    %v8879 = vunpack.c.l.b16 %v8809
    %v8880 = vunpack.c.l.b16 %v8810
    %v8881 = vunpack.c.l.b16 %v8811
    %v8882 = vunpack.c.l.b16 %v8812
    %v8883 = vunpack.c.l.b16 %v8813
    %v8884 = vunpack.c.l.b16 %v8814
    %v8885 = vunpack.c.l.b16 %v8815
    %v8886 = vunpack.c.l.b16 %v8816
    %v8887 = vunpack.c.l.b16 %v8817
    %v8888 = vunpack.c.l.b16 %v8818
    %v8889 = vunpack.c.l.b16 %v8819
    %v8890 = vunpack.c.l.b16 %v8820
    %v8891 = vunpack.c.l.b16 %v8821
    %v8892 = vunpack.c.l.b16 %v8822
    %v8893 = vunpack.c.l.b16 %v8823
    %v8894 = vunpack.c.l.b16 %v8824
    %v8895 = vunpack.c.l.b16 %v8825
    %v8896 = vunpack.c.l.b16 %v8826
    %v8897 = vunpack.c.l.b16 %v8827
    %v8898 = vunpack.c.l.b16 %v8828
    %v8899 = vunpack.c.l.b16 %v8829
    %v8900 = vunpack.c.l.b16 %v8830
    %v8901 = vunpack.c.l.b16 %v8831
    %v8902 = vunpack.c.l.b16 %v8832
    %v8903 = vunpack.c.l.b16 %v8833
    %v8904 = vunpack.c.l.b16 %v8834
    %v8905 = vunpack.c.l.b16 %v8835
    %v8906 = vunpack.c.l.b16 %v8836
    %v8907 = vunpack.c.l.b16 %v8837
    %v8908 = vpack.c.b16 %v8877, %v8876
    %v8909 = vpack.c.b16 %v8879, %v8878
    %v8910 = vpack.c.b16 %v8881, %v8880
    %v8911 = vpack.c.b16 %v8883, %v8882
    %v8912 = vpack.c.b16 %v8885, %v8884
    %v8913 = vpack.c.b16 %v8887, %v8886
    %v8914 = vpack.c.b16 %v8889, %v8888
    %v8915 = vpack.c.b16 %v8891, %v8890
    %v8916 = vpack.c.b16 %v8893, %v8892
    %v8917 = vpack.c.b16 %v8895, %v8894
    %v8918 = vpack.c.b16 %v8897, %v8896
    %v8919 = vpack.c.b16 %v8899, %v8898
    %v8920 = vpack.c.b16 %v8901, %v8900
    %v8921 = vpack.c.b16 %v8903, %v8902
    %v8922 = vpack.c.b16 %v8905, %v8904
    %v8923 = vpack.c.b16 %v8907, %v8906
    %8940 = vmatprep.subr.bf16.mxu0 0
    %8941 = vmatpush1.bf16.msra.mxu0 %v8908
    %8942 = vmatprep.subr.bf16.mxu0 0
    %8943 = vmatpush1.bf16.msra.mxu0 %v8909
    %8944 = vmatprep.subr.bf16.mxu0 0
    %8945 = vmatpush1.bf16.msra.mxu0 %v8910
    %8946 = vmatprep.subr.bf16.mxu0 0
    %8947 = vmatpush1.bf16.msra.mxu0 %v8911
    %8948 = vmatprep.subr.bf16.mxu0 0
    %8949 = vmatpush1.bf16.msra.mxu0 %v8912
    %8950 = vmatprep.subr.bf16.mxu0 0
    %8951 = vmatpush1.bf16.msra.mxu0 %v8913
    %8952 = vmatprep.subr.bf16.mxu0 0
    %8953 = vmatpush1.bf16.msra.mxu0 %v8914
    %8954 = vmatprep.subr.bf16.mxu0 0
    %8955 = vmatpush1.bf16.msra.mxu0 %v8915
    %8956 = vmatprep.subr.bf16.mxu0 0
    %8957 = vmatpush1.bf16.msra.mxu0 %v8916
    %8958 = vmatprep.subr.bf16.mxu0 0
    %8959 = vmatpush1.bf16.msra.mxu0 %v8917
    %8960 = vmatprep.subr.bf16.mxu0 0
    %8961 = vmatpush1.bf16.msra.mxu0 %v8918
    %8962 = vmatprep.subr.bf16.mxu0 0
    %8963 = vmatpush1.bf16.msra.mxu0 %v8919
    %8964 = vmatprep.subr.bf16.mxu0 0
    %8965 = vmatpush1.bf16.msra.mxu0 %v8920
    %8966 = vmatprep.subr.bf16.mxu0 0
    %8967 = vmatpush1.bf16.msra.mxu0 %v8921
    %8968 = vmatprep.subr.bf16.mxu0 0
    %8969 = vmatpush1.bf16.msra.mxu0 %v8922
    %8970 = vmatprep.subr.bf16.mxu0 0
    %8971 = vmatpush1.bf16.msra.mxu0 %v8923
    %8972 = vmatprep.mubr.bf16.mxu0 %v8841
    %8973 = vmatmul.mubr.bf16.gmra.mrb[0].mxu0 %v8840
    %v8974 = vpop.f32.mrb[0].mxu0
    %v8975 = vadd.f32 0.0, %v8974
    %v8976 = vpop.f32.mrb[0].mxu0
    %v8977 = vpop.f32.mrb[0].mxu0
    %v8978 = vpop.f32.mrb[0].mxu0
    %8979 = vdwg.mxu0
    %v8980 = vadd.f32 %v8801, %v8975
    %v8981 = vld [vmem:[%s5028] sm:$0xf]
    %v8982 = vld [vmem:[%s5028 + $0x4] sm:$0xf]
    %v8983 = vld [vmem:[%s5028 + $0x8] sm:$0xf]
    %v8984 = vld [vmem:[%s5028 + $0xc] sm:$0xf]
    %v8985 = vld [vmem:[%s5028 + $0x10] sm:$0xf]
    %v8986 = vld [vmem:[%s5028 + $0x14] sm:$0xf]
    %v8987 = vld [vmem:[%s5028 + $0x18] sm:$0xf]
    %v8988 = vld [vmem:[%s5028 + $0x1c] sm:$0xf]
    %v8989 = vld [vmem:[%s5028 + $0x20] sm:$0xf]
    %v8990 = vld [vmem:[%s5028 + $0x24] sm:$0xf]
    %v8991 = vld [vmem:[%s5028 + $0x28] sm:$0xf]
    %v8992 = vld [vmem:[%s5028 + $0x2c] sm:$0xf]
    %v8993 = vld [vmem:[%s5028 + $0x30] sm:$0xf]
    %v8994 = vld [vmem:[%s5028 + $0x34] sm:$0xf]
    %v8995 = vld [vmem:[%s5028 + $0x38] sm:$0xf]
    %v8996 = vld [vmem:[%s5028 + $0x3c] sm:$0xf]
    %v8997 = vld [vmem:[%s5028 + $0x40] sm:$0xf]
    %v8998 = vld [vmem:[%s5028 + $0x44] sm:$0xf]
    %v8999 = vld [vmem:[%s5028 + $0x48] sm:$0xf]
    %v9000 = vld [vmem:[%s5028 + $0x4c] sm:$0xf]
    %v9001 = vld [vmem:[%s5028 + $0x50] sm:$0xf]
    %v9002 = vld [vmem:[%s5028 + $0x54] sm:$0xf]
    %v9003 = vld [vmem:[%s5028 + $0x58] sm:$0xf]
    %v9004 = vld [vmem:[%s5028 + $0x5c] sm:$0xf]
    %v9005 = vld [vmem:[%s5028 + $0x60] sm:$0xf]
    %v9006 = vld [vmem:[%s5028 + $0x64] sm:$0xf]
    %v9007 = vld [vmem:[%s5028 + $0x68] sm:$0xf]
    %v9008 = vld [vmem:[%s5028 + $0x6c] sm:$0xf]
    %v9009 = vld [vmem:[%s5028 + $0x70] sm:$0xf]
    %v9010 = vld [vmem:[%s5028 + $0x74] sm:$0xf]
    %v9011 = vld [vmem:[%s5028 + $0x78] sm:$0xf]
    %v9012 = vld [vmem:[%s5028 + $0x7c] sm:$0xf]
    %v9013 = vrot.slane %v8527, 1
    %v9014 = vrot.slane %v8530, 1
    %v9049 = vunpack.c.l.b16 %v8981
    %v9050 = vunpack.c.l.b16 %v8982
    %v9051 = vunpack.c.l.b16 %v8983
    %v9052 = vunpack.c.l.b16 %v8984
    %v9053 = vunpack.c.l.b16 %v8985
    %v9054 = vunpack.c.l.b16 %v8986
    %v9055 = vunpack.c.l.b16 %v8987
    %v9056 = vunpack.c.l.b16 %v8988
    %v9057 = vunpack.c.l.b16 %v8989
    %v9058 = vunpack.c.l.b16 %v8990
    %v9059 = vunpack.c.l.b16 %v8991
    %v9060 = vunpack.c.l.b16 %v8992
    %v9061 = vunpack.c.l.b16 %v8993
    %v9062 = vunpack.c.l.b16 %v8994
    %v9063 = vunpack.c.l.b16 %v8995
    %v9064 = vunpack.c.l.b16 %v8996
    %v9065 = vunpack.c.l.b16 %v8997
    %v9066 = vunpack.c.l.b16 %v8998
    %v9067 = vunpack.c.l.b16 %v8999
    %v9068 = vunpack.c.l.b16 %v9000
    %v9069 = vunpack.c.l.b16 %v9001
    %v9070 = vunpack.c.l.b16 %v9002
    %v9071 = vunpack.c.l.b16 %v9003
    %v9072 = vunpack.c.l.b16 %v9004
    %v9073 = vunpack.c.l.b16 %v9005
    %v9074 = vunpack.c.l.b16 %v9006
    %v9075 = vunpack.c.l.b16 %v9007
    %v9076 = vunpack.c.l.b16 %v9008
    %v9077 = vunpack.c.l.b16 %v9009
    %v9078 = vunpack.c.l.b16 %v9010
    %v9079 = vunpack.c.l.b16 %v9011
    %v9080 = vunpack.c.l.b16 %v9012
    %v9081 = vpack.c.b16 %v9050, %v9049
    %v9082 = vpack.c.b16 %v9052, %v9051
    %v9083 = vpack.c.b16 %v9054, %v9053
    %v9084 = vpack.c.b16 %v9056, %v9055
    %v9085 = vpack.c.b16 %v9058, %v9057
    %v9086 = vpack.c.b16 %v9060, %v9059
    %v9087 = vpack.c.b16 %v9062, %v9061
    %v9088 = vpack.c.b16 %v9064, %v9063
    %v9089 = vpack.c.b16 %v9066, %v9065
    %v9090 = vpack.c.b16 %v9068, %v9067
    %v9091 = vpack.c.b16 %v9070, %v9069
    %v9092 = vpack.c.b16 %v9072, %v9071
    %v9093 = vpack.c.b16 %v9074, %v9073
    %v9094 = vpack.c.b16 %v9076, %v9075
    %v9095 = vpack.c.b16 %v9078, %v9077
    %v9096 = vpack.c.b16 %v9080, %v9079
    %9113 = vmatprep.subr.bf16.mxu0 0
    %9114 = vmatpush1.bf16.msra.mxu0 %v9081
    %9115 = vmatprep.subr.bf16.mxu0 0
    %9116 = vmatpush1.bf16.msra.mxu0 %v9082
    %9117 = vmatprep.subr.bf16.mxu0 0
    %9118 = vmatpush1.bf16.msra.mxu0 %v9083
    %9119 = vmatprep.subr.bf16.mxu0 0
    %9120 = vmatpush1.bf16.msra.mxu0 %v9084
    %9121 = vmatprep.subr.bf16.mxu0 0
    %9122 = vmatpush1.bf16.msra.mxu0 %v9085
    %9123 = vmatprep.subr.bf16.mxu0 0
    %9124 = vmatpush1.bf16.msra.mxu0 %v9086
    %9125 = vmatprep.subr.bf16.mxu0 0
    %9126 = vmatpush1.bf16.msra.mxu0 %v9087
    %9127 = vmatprep.subr.bf16.mxu0 0
    %9128 = vmatpush1.bf16.msra.mxu0 %v9088
    %9129 = vmatprep.subr.bf16.mxu0 0
    %9130 = vmatpush1.bf16.msra.mxu0 %v9089
    %9131 = vmatprep.subr.bf16.mxu0 0
    %9132 = vmatpush1.bf16.msra.mxu0 %v9090
    %9133 = vmatprep.subr.bf16.mxu0 0
    %9134 = vmatpush1.bf16.msra.mxu0 %v9091
    %9135 = vmatprep.subr.bf16.mxu0 0
    %9136 = vmatpush1.bf16.msra.mxu0 %v9092
    %9137 = vmatprep.subr.bf16.mxu0 0
    %9138 = vmatpush1.bf16.msra.mxu0 %v9093
    %9139 = vmatprep.subr.bf16.mxu0 0
    %9140 = vmatpush1.bf16.msra.mxu0 %v9094
    %9141 = vmatprep.subr.bf16.mxu0 0
    %9142 = vmatpush1.bf16.msra.mxu0 %v9095
    %9143 = vmatprep.subr.bf16.mxu0 0
    %9144 = vmatpush1.bf16.msra.mxu0 %v9096
    %9145 = vmatprep.mubr.bf16.mxu0 %v9014
    %9146 = vmatmul.mubr.bf16.gmra.mrb[0].mxu0 %v9013
    %v9147 = vpop.f32.mrb[0].mxu0
    %v9148 = vadd.f32 0.0, %v9147
    %v9149 = vpop.f32.mrb[0].mxu0
    %v9150 = vpop.f32.mrb[0].mxu0
    %v9151 = vpop.f32.mrb[0].mxu0
    %9152 = vdwg.mxu0
    %v9153 = vadd.f32 %v8980, %v9148
    %v9154 = vld [vmem:[%s5202] sm:$0xf]
    %v9155 = vld [vmem:[%s5202 + $0x4] sm:$0xf]
    %v9156 = vld [vmem:[%s5202 + $0x8] sm:$0xf]
    %v9157 = vld [vmem:[%s5202 + $0xc] sm:$0xf]
    %v9158 = vld [vmem:[%s5202 + $0x10] sm:$0xf]
    %v9159 = vld [vmem:[%s5202 + $0x14] sm:$0xf]
    %v9160 = vld [vmem:[%s5202 + $0x18] sm:$0xf]
    %v9161 = vld [vmem:[%s5202 + $0x1c] sm:$0xf]
    %v9162 = vld [vmem:[%s5202 + $0x20] sm:$0xf]
    %v9163 = vld [vmem:[%s5202 + $0x24] sm:$0xf]
    %v9164 = vld [vmem:[%s5202 + $0x28] sm:$0xf]
    %v9165 = vld [vmem:[%s5202 + $0x2c] sm:$0xf]
    %v9166 = vld [vmem:[%s5202 + $0x30] sm:$0xf]
    %v9167 = vld [vmem:[%s5202 + $0x34] sm:$0xf]
    %v9168 = vld [vmem:[%s5202 + $0x38] sm:$0xf]
    %v9169 = vld [vmem:[%s5202 + $0x3c] sm:$0xf]
    %v9170 = vld [vmem:[%s5202 + $0x40] sm:$0xf]
    %v9171 = vld [vmem:[%s5202 + $0x44] sm:$0xf]
    %v9172 = vld [vmem:[%s5202 + $0x48] sm:$0xf]
    %v9173 = vld [vmem:[%s5202 + $0x4c] sm:$0xf]
    %v9174 = vld [vmem:[%s5202 + $0x50] sm:$0xf]
    %v9175 = vld [vmem:[%s5202 + $0x54] sm:$0xf]
    %v9176 = vld [vmem:[%s5202 + $0x58] sm:$0xf]
    %v9177 = vld [vmem:[%s5202 + $0x5c] sm:$0xf]
    %v9178 = vld [vmem:[%s5202 + $0x60] sm:$0xf]
    %v9179 = vld [vmem:[%s5202 + $0x64] sm:$0xf]
    %v9180 = vld [vmem:[%s5202 + $0x68] sm:$0xf]
    %v9181 = vld [vmem:[%s5202 + $0x6c] sm:$0xf]
    %v9182 = vld [vmem:[%s5202 + $0x70] sm:$0xf]
    %v9183 = vld [vmem:[%s5202 + $0x74] sm:$0xf]
    %v9184 = vld [vmem:[%s5202 + $0x78] sm:$0xf]
    %v9185 = vld [vmem:[%s5202 + $0x7c] sm:$0xf]
    %v9186 = vrot.slane %v8460, 2
    %v9187 = vrot.slane %v8461, 2
    %v9222 = vunpack.c.l.b16 %v9154
    %v9223 = vunpack.c.l.b16 %v9155
    %v9224 = vunpack.c.l.b16 %v9156
    %v9225 = vunpack.c.l.b16 %v9157
    %v9226 = vunpack.c.l.b16 %v9158
    %v9227 = vunpack.c.l.b16 %v9159
    %v9228 = vunpack.c.l.b16 %v9160
    %v9229 = vunpack.c.l.b16 %v9161
    %v9230 = vunpack.c.l.b16 %v9162
    %v9231 = vunpack.c.l.b16 %v9163
    %v9232 = vunpack.c.l.b16 %v9164
    %v9233 = vunpack.c.l.b16 %v9165
    %v9234 = vunpack.c.l.b16 %v9166
    %v9235 = vunpack.c.l.b16 %v9167
    %v9236 = vunpack.c.l.b16 %v9168
    %v9237 = vunpack.c.l.b16 %v9169
    %v9238 = vunpack.c.l.b16 %v9170
    %v9239 = vunpack.c.l.b16 %v9171
    %v9240 = vunpack.c.l.b16 %v9172
    %v9241 = vunpack.c.l.b16 %v9173
    %v9242 = vunpack.c.l.b16 %v9174
    %v9243 = vunpack.c.l.b16 %v9175
    %v9244 = vunpack.c.l.b16 %v9176
    %v9245 = vunpack.c.l.b16 %v9177
    %v9246 = vunpack.c.l.b16 %v9178
    %v9247 = vunpack.c.l.b16 %v9179
    %v9248 = vunpack.c.l.b16 %v9180
    %v9249 = vunpack.c.l.b16 %v9181
    %v9250 = vunpack.c.l.b16 %v9182
    %v9251 = vunpack.c.l.b16 %v9183
    %v9252 = vunpack.c.l.b16 %v9184
    %v9253 = vunpack.c.l.b16 %v9185
    %v9254 = vpack.c.b16 %v9223, %v9222
    %v9255 = vpack.c.b16 %v9225, %v9224
    %v9256 = vpack.c.b16 %v9227, %v9226
    %v9257 = vpack.c.b16 %v9229, %v9228
    %v9258 = vpack.c.b16 %v9231, %v9230
    %v9259 = vpack.c.b16 %v9233, %v9232
    %v9260 = vpack.c.b16 %v9235, %v9234
    %v9261 = vpack.c.b16 %v9237, %v9236
    %v9262 = vpack.c.b16 %v9239, %v9238
    %v9263 = vpack.c.b16 %v9241, %v9240
    %v9264 = vpack.c.b16 %v9243, %v9242
    %v9265 = vpack.c.b16 %v9245, %v9244
    %v9266 = vpack.c.b16 %v9247, %v9246
    %v9267 = vpack.c.b16 %v9249, %v9248
    %v9268 = vpack.c.b16 %v9251, %v9250
    %v9269 = vpack.c.b16 %v9253, %v9252
    %9286 = vmatprep.subr.bf16.mxu0 0
    %9287 = vmatpush1.bf16.msra.mxu0 %v9254
    %9288 = vmatprep.subr.bf16.mxu0 0
    %9289 = vmatpush1.bf16.msra.mxu0 %v9255
    %9290 = vmatprep.subr.bf16.mxu0 0
    %9291 = vmatpush1.bf16.msra.mxu0 %v9256
    %9292 = vmatprep.subr.bf16.mxu0 0
    %9293 = vmatpush1.bf16.msra.mxu0 %v9257
    %9294 = vmatprep.subr.bf16.mxu0 0
    %9295 = vmatpush1.bf16.msra.mxu0 %v9258
    %9296 = vmatprep.subr.bf16.mxu0 0
    %9297 = vmatpush1.bf16.msra.mxu0 %v9259
    %9298 = vmatprep.subr.bf16.mxu0 0
    %9299 = vmatpush1.bf16.msra.mxu0 %v9260
    %9300 = vmatprep.subr.bf16.mxu0 0
    %9301 = vmatpush1.bf16.msra.mxu0 %v9261
    %9302 = vmatprep.subr.bf16.mxu0 0
    %9303 = vmatpush1.bf16.msra.mxu0 %v9262
    %9304 = vmatprep.subr.bf16.mxu0 0
    %9305 = vmatpush1.bf16.msra.mxu0 %v9263
    %9306 = vmatprep.subr.bf16.mxu0 0
    %9307 = vmatpush1.bf16.msra.mxu0 %v9264
    %9308 = vmatprep.subr.bf16.mxu0 0
    %9309 = vmatpush1.bf16.msra.mxu0 %v9265
    %9310 = vmatprep.subr.bf16.mxu0 0
    %9311 = vmatpush1.bf16.msra.mxu0 %v9266
    %9312 = vmatprep.subr.bf16.mxu0 0
    %9313 = vmatpush1.bf16.msra.mxu0 %v9267
    %9314 = vmatprep.subr.bf16.mxu0 0
    %9315 = vmatpush1.bf16.msra.mxu0 %v9268
    %9316 = vmatprep.subr.bf16.mxu0 0
    %9317 = vmatpush1.bf16.msra.mxu0 %v9269
    %9318 = vmatprep.mubr.bf16.mxu0 %v9187
    %9319 = vmatmul.mubr.bf16.gmra.mrb[0].mxu0 %v9186
    %v9320 = vpop.f32.mrb[0].mxu0
    %v9321 = vadd.f32 0.0, %v9320
    %v9322 = vpop.f32.mrb[0].mxu0
    %v9323 = vpop.f32.mrb[0].mxu0
    %v9324 = vpop.f32.mrb[0].mxu0
    %9325 = vdwg.mxu0
    %v9326 = vadd.f32 %v9153, %v9321
    %v9327 = vadd.f32 %v9326, %v1645
    %v9328 = vmax.f32 %v9327, 0.0
    %v9329 = vpack.c.bf16 %v9328, %v9328
    %v9330 = vld [vmem:[%s7] sm:$0xf]
    %v9331 = vld [vmem:[%s7 + $0x4] sm:$0xf]
    %v9332 = vld [vmem:[%s7 + $0x8] sm:$0xf]
    %v9333 = vld [vmem:[%s7 + $0xc] sm:$0xf]
    %v9334 = vld [vmem:[%s7 + $0x10] sm:$0xf]
    %v9335 = vld [vmem:[%s7 + $0x14] sm:$0xf]
    %v9336 = vld [vmem:[%s7 + $0x18] sm:$0xf]
    %v9337 = vld [vmem:[%s7 + $0x1c] sm:$0xf]
    %v9338 = vld [vmem:[%s7 + $0x20] sm:$0xf]
    %v9339 = vld [vmem:[%s7 + $0x24] sm:$0xf]
    %v9340 = vld [vmem:[%s7 + $0x28] sm:$0xf]
    %v9341 = vld [vmem:[%s7 + $0x2c] sm:$0xf]
    %v9342 = vld [vmem:[%s7 + $0x30] sm:$0xf]
    %v9343 = vld [vmem:[%s7 + $0x34] sm:$0xf]
    %v9344 = vld [vmem:[%s7 + $0x38] sm:$0xf]
    %v9345 = vld [vmem:[%s7 + $0x3c] sm:$0xf]
    %v9362 = vunpack.c.l.b16 %v9330
    %v9363 = vunpack.c.l.b16 %v9331
    %v9364 = vunpack.c.l.b16 %v9332
    %v9365 = vunpack.c.l.b16 %v9333
    %v9366 = vunpack.c.l.b16 %v9334
    %v9367 = vunpack.c.l.b16 %v9335
    %v9368 = vunpack.c.l.b16 %v9336
    %v9369 = vunpack.c.l.b16 %v9337
    %v9370 = vunpack.c.l.b16 %v9338
    %v9371 = vunpack.c.l.b16 %v9339
    %v9372 = vunpack.c.l.b16 %v9340
    %v9373 = vunpack.c.l.b16 %v9341
    %v9374 = vunpack.c.l.b16 %v9342
    %v9375 = vunpack.c.l.b16 %v9343
    %v9376 = vunpack.c.l.b16 %v9344
    %v9377 = vunpack.c.l.b16 %v9345
    %v9378 = vpack.c.b16 %v9363, %v9362
    %v9379 = vpack.c.b16 %v9365, %v9364
    %v9380 = vpack.c.b16 %v9367, %v9366
    %v9381 = vpack.c.b16 %v9369, %v9368
    %v9382 = vpack.c.b16 %v9371, %v9370
    %v9383 = vpack.c.b16 %v9373, %v9372
    %v9384 = vpack.c.b16 %v9375, %v9374
    %v9385 = vpack.c.b16 %v9377, %v9376
    %9394 = vmatprep.subr.bf16.mxu0 0
    %9395 = vmatpush1.bf16.msra.mxu0 %v9378
    %9396 = vmatprep.subr.bf16.mxu0 0
    %9397 = vmatpush1.bf16.msra.mxu0 %v9379
    %9398 = vmatprep.subr.bf16.mxu0 0
    %9399 = vmatpush1.bf16.msra.mxu0 %v9380
    %9400 = vmatprep.subr.bf16.mxu0 0
    %9401 = vmatpush1.bf16.msra.mxu0 %v9381
    %9402 = vmatprep.subr.bf16.mxu0 0
    %9403 = vmatpush1.bf16.msra.mxu0 %v9382
    %9404 = vmatprep.subr.bf16.mxu0 0
    %9405 = vmatpush1.bf16.msra.mxu0 %v9383
    %9406 = vmatprep.subr.bf16.mxu0 0
    %9407 = vmatpush1.bf16.msra.mxu0 %v9384
    %9408 = vmatprep.subr.bf16.mxu0 0
    %9409 = vmatpush1.bf16.msra.mxu0 %v9385
    %9410 = vmatprep.subr.bf16.mxu0 0
    %9411 = vmatpush1.bf16.msra.mxu0 0
    %9412 = vmatprep.subr.bf16.mxu0 0
    %9413 = vmatpush1.bf16.msra.mxu0 0
    %9414 = vmatprep.subr.bf16.mxu0 0
    %9415 = vmatpush1.bf16.msra.mxu0 0
    %9416 = vmatprep.subr.bf16.mxu0 0
    %9417 = vmatpush1.bf16.msra.mxu0 0
    %9418 = vmatprep.subr.bf16.mxu0 0
    %9419 = vmatpush1.bf16.msra.mxu0 0
    %9420 = vmatprep.subr.bf16.mxu0 0
    %9421 = vmatpush1.bf16.msra.mxu0 0
    %9422 = vmatprep.subr.bf16.mxu0 0
    %9423 = vmatpush1.bf16.msra.mxu0 0
    %9424 = vmatprep.subr.bf16.mxu0 0
    %9425 = vmatpush1.bf16.msra.mxu0 0
    %9426 = vmatprep.mubr.bf16.mxu0 0
    %9427 = vmatmul.mubr.bf16.gmra.mrb[0].mxu0 %v9329
    %v9428 = vpop.f32.mrb[0].mxu0
    %v9429 = vadd.f32 %v1646, %v9428
    %v9430 = vpop.f32.mrb[0].mxu0
    %v9431 = vpop.f32.mrb[0].mxu0
    %v9432 = vpop.f32.mrb[0].mxu0
    %9433 = vdwg.mxu0
    %v9434 = vmax.f32 %v9429, 0.0
    %v9435 = vpack.c.bf16 %v9434, %v9434
    %v9436 = vld [vmem:[%s9] sm:$0xf]
    %v9437 = vld [vmem:[%s9 + $0x4] sm:$0xf]
    %v9438 = vld [vmem:[%s9 + $0x8] sm:$0xf]
    %v9439 = vld [vmem:[%s9 + $0xc] sm:$0xf]
    %v9440 = vld [vmem:[%s9 + $0x10] sm:$0xf]
    %v9441 = vld [vmem:[%s9 + $0x14] sm:$0xf]
    %v9442 = vld [vmem:[%s9 + $0x18] sm:$0xf]
    %v9443 = vld [vmem:[%s9 + $0x1c] sm:$0xf]
    %v9444 = vld [vmem:[%s9 + $0x20] sm:$0xf]
    %v9445 = vld [vmem:[%s9 + $0x24] sm:$0xf]
    %v9446 = vld [vmem:[%s9 + $0x28] sm:$0xf]
    %v9447 = vld [vmem:[%s9 + $0x2c] sm:$0xf]
    %v9448 = vld [vmem:[%s9 + $0x30] sm:$0xf]
    %v9449 = vld [vmem:[%s9 + $0x34] sm:$0xf]
    %v9450 = vld [vmem:[%s9 + $0x38] sm:$0xf]
    %v9451 = vld [vmem:[%s9 + $0x3c] sm:$0xf]
    %v9468 = vunpack.c.l.b16 %v9436
    %v9469 = vunpack.c.l.b16 %v9437
    %v9470 = vunpack.c.l.b16 %v9438
    %v9471 = vunpack.c.l.b16 %v9439
    %v9472 = vunpack.c.l.b16 %v9440
    %v9473 = vunpack.c.l.b16 %v9441
    %v9474 = vunpack.c.l.b16 %v9442
    %v9475 = vunpack.c.l.b16 %v9443
    %v9476 = vunpack.c.l.b16 %v9444
    %v9477 = vunpack.c.l.b16 %v9445
    %v9478 = vunpack.c.l.b16 %v9446
    %v9479 = vunpack.c.l.b16 %v9447
    %v9480 = vunpack.c.l.b16 %v9448
    %v9481 = vunpack.c.l.b16 %v9449
    %v9482 = vunpack.c.l.b16 %v9450
    %v9483 = vunpack.c.l.b16 %v9451
    %v9484 = vpack.c.b16 %v9469, %v9468
    %v9485 = vpack.c.b16 %v9471, %v9470
    %v9486 = vpack.c.b16 %v9473, %v9472
    %v9487 = vpack.c.b16 %v9475, %v9474
    %v9488 = vpack.c.b16 %v9477, %v9476
    %v9489 = vpack.c.b16 %v9479, %v9478
    %v9490 = vpack.c.b16 %v9481, %v9480
    %v9491 = vpack.c.b16 %v9483, %v9482
    %9500 = vmatprep.subr.bf16.mxu0 0
    %9501 = vmatpush1.bf16.msra.mxu0 %v9484
    %9502 = vmatprep.subr.bf16.mxu0 0
    %9503 = vmatpush1.bf16.msra.mxu0 %v9485
    %9504 = vmatprep.subr.bf16.mxu0 0
    %9505 = vmatpush1.bf16.msra.mxu0 %v9486
    %9506 = vmatprep.subr.bf16.mxu0 0
    %9507 = vmatpush1.bf16.msra.mxu0 %v9487
    %9508 = vmatprep.subr.bf16.mxu0 0
    %9509 = vmatpush1.bf16.msra.mxu0 %v9488
    %9510 = vmatprep.subr.bf16.mxu0 0
    %9511 = vmatpush1.bf16.msra.mxu0 %v9489
    %9512 = vmatprep.subr.bf16.mxu0 0
    %9513 = vmatpush1.bf16.msra.mxu0 %v9490
    %9514 = vmatprep.subr.bf16.mxu0 0
    %9515 = vmatpush1.bf16.msra.mxu0 %v9491
    %9516 = vmatprep.subr.bf16.mxu0 0
    %9517 = vmatpush1.bf16.msra.mxu0 0
    %9518 = vmatprep.subr.bf16.mxu0 0
    %9519 = vmatpush1.bf16.msra.mxu0 0
    %9520 = vmatprep.subr.bf16.mxu0 0
    %9521 = vmatpush1.bf16.msra.mxu0 0
    %9522 = vmatprep.subr.bf16.mxu0 0
    %9523 = vmatpush1.bf16.msra.mxu0 0
    %9524 = vmatprep.subr.bf16.mxu0 0
    %9525 = vmatpush1.bf16.msra.mxu0 0
    %9526 = vmatprep.subr.bf16.mxu0 0
    %9527 = vmatpush1.bf16.msra.mxu0 0
    %9528 = vmatprep.subr.bf16.mxu0 0
    %9529 = vmatpush1.bf16.msra.mxu0 0
    %9530 = vmatprep.subr.bf16.mxu0 0
    %9531 = vmatpush1.bf16.msra.mxu0 0
    %9532 = vmatprep.mubr.bf16.mxu0 0
    %9533 = vmatmul.mubr.bf16.gmra.mrb[0].mxu0 %v9435
    %v9534 = vpop.f32.mrb[0].mxu0
    %v9535 = vadd.f32 %v1647, %v9534
    %v9536 = vpop.f32.mrb[0].mxu0
    %v9537 = vpop.f32.mrb[0].mxu0
    %v9538 = vpop.f32.mrb[0].mxu0
    %9539 = vdwg.mxu0
    %9540 = vst [vmem:[#allocation9 + $0x1] sm:$0x1] %v9535
    // Predicated region
    $region54: #{net_forward.1} parent=1 // pred_check
      _
    $region55: #{net_forward.1} parent=1 // pred_check_branch
      %9542 = sbr.rel (0) target = $region57
    $region56: #{net_forward.1} parent=1 // pred_region
      %s9544 = ssub.s32 32, 32
      %9545 = vsyncadd [#allocation6], %s9544
      %s9547 = sshll.u32 [#allocation9], 4
      %s9548 = int_to_ptr.vmem [resolvable:$true] %s9547
      %9550 = dma.vmem_to_hbm [thread:$0]  %s9548, 32, %s11, [#allocation6]
    $region57: #{net_forward.1} parent=1 // pred_fallthru
      _
    // Predicated region
    $region58: #{net_forward.1} parent=1 // pred_check
      _
    $region59: #{net_forward.1} parent=1 // pred_check_branch
      %9552 = sbr.rel (0) target = $region61
    $region60: #{net_forward.1} parent=1 // pred_region
      %9553 = dma.done [#allocation6], 32
    $region61: #{net_forward.1} parent=1 // pred_fallthru
      _
    %9554 = vsyncpa [#allocation5], 1
    %9555 = vsyncpa [#allocation8], 1
    %9556 = vsyncpa [#allocation6], 1

</llo_original>
